<compile_context>
chip_gen: v5e
topology: v5e:2x2
jax: 0.10.0
libtpu: 0.0.40
codegen_flags: <defaults>
</compile_context>

<pallas_src>
import functools

import jax
import jax.numpy as jnp
from jax.experimental import pallas as pl
from jax.experimental.pallas import tpu as pltpu

HP = 128  # hidden size padded to one full lane tile (H=100 -> 128)


# ----------------------- weight padding helpers (host side) -----------------------

def _gate_pad_transpose(w, hp):
    """PyTorch gate-stacked weight (4H, I) -> (I, 4*hp); each i/f/g/o gate block is
    zero-padded from H to hp columns so gate boundaries land on 128-lane multiples."""
    four_h, in_dim = w.shape
    h = four_h // 4
    w4 = w.reshape(4, h, in_dim).astype(jnp.float32)
    w4p = jnp.zeros((4, hp, in_dim), jnp.float32).at[:, :h, :].set(w4)
    return jnp.transpose(w4p.reshape(4 * hp, in_dim))            # (I, 4*hp)


def _pad_rows(w_t, hp):
    """(H, 4*hp) -> (hp, 4*hp): zero-pad the contraction rows (padded h lanes are 0)."""
    h = w_t.shape[0]
    return jnp.zeros((hp, w_t.shape[1]), jnp.float32).at[:h, :].set(w_t)


def _gate_pad_bias(b_ih, b_hh, hp):
    b = (b_ih + b_hh).astype(jnp.float32)
    h = b.shape[0] // 4
    b4 = jnp.zeros((4, hp), jnp.float32).at[:, :h].set(b.reshape(4, h))
    return b4.reshape(1, 4 * hp)


# ---------------- hoisted layer-0 input projection (batched over P*B) ----------------

def _input_proj_kernel(x_ref, w_ref, b_ref, o_ref):
    o_ref[...] = (
        jnp.dot(x_ref[...], w_ref[...], preferred_element_type=jnp.float32)
        + b_ref[...])


def input_projection(x2d, w_t, b):
    """x2d: (N, I) f32; w_t: (I, 4*hp); b: (1, 4*hp) -> gates_x (N, 4*hp).
    Gridded over rows (parallel) so v7x can shard it across both TensorCores."""
    n, in_dim = x2d.shape
    g = w_t.shape[1]
    tile = 8
    if n % tile == 0:
        return pl.pallas_call(
            _input_proj_kernel,
            out_shape=jax.ShapeDtypeStruct((n, g), jnp.float32),
            grid_spec=pltpu.PrefetchScalarGridSpec(
                num_scalar_prefetch=0,
                grid=(n // tile,),
                in_specs=[
                    pl.BlockSpec((tile, in_dim), lambda i: (i, 0)),
                    pl.BlockSpec((in_dim, g), lambda i: (0, 0)),
                    pl.BlockSpec((1, g), lambda i: (0, 0)),
                ],
                out_specs=pl.BlockSpec((tile, g), lambda i: (i, 0)),
            ),
            compiler_params=pltpu.CompilerParams(
                dimension_semantics=("parallel",)),
        )(x2d, w_t, b)
    # Fallback: single full block.
    return pl.pallas_call(
        _input_proj_kernel,
        out_shape=jax.ShapeDtypeStruct((n, g), jnp.float32),
    )(x2d, w_t, b)


# ------------------- fused multi-layer LSTM recurrence (one call) -------------------

def _lstm_stack_kernel(*refs, n_layers, seq_len, hp):
    """refs = [gates_x0 (P,B,4hp), whh0,  (wih_l, whh_l, b_l for l>=1)...,
               out (P,B,hp), h_n (L,B,hp), c_n (L,B,hp)]
    PyTorch gate order i, f, g, o. Layer-0 input projection + bias are pre-folded
    into gates_x0. Padded lanes of h/c provably stay exactly 0."""
    gx_ref = refs[0]
    whh = [refs[1]]
    wih = [None]
    bias = [None]
    idx = 2
    for _ in range(1, n_layers):
        wih.append(refs[idx])
        whh.append(refs[idx + 1])
        bias.append(refs[idx + 2])
        idx += 3
    out_ref, h_out_ref, c_out_ref = refs[idx], refs[idx + 1], refs[idx + 2]

    batch = gx_ref.shape[1]
    zero = jnp.zeros((batch, hp), jnp.float32)
    hs = [zero] * n_layers
    cs = [zero] * n_layers

    def cell(gates, c_prev):
        i_g = jax.nn.sigmoid(gates[:, 0 * hp:1 * hp])
        f_g = jax.nn.sigmoid(gates[:, 1 * hp:2 * hp])
        g_g = jnp.tanh(gates[:, 2 * hp:3 * hp])
        o_g = jax.nn.sigmoid(gates[:, 3 * hp:4 * hp])
        c_new = f_g * c_prev + i_g * g_g
        h_new = o_g * jnp.tanh(c_new)
        return h_new, c_new

    # seq_len and n_layers are small & static: fully unrolled so the scheduler can
    # overlap VPU/EUP gate math of one step with the MXU work of the next.
    for t in range(seq_len):
        x_in = None
        for l in range(n_layers):
            if l == 0:
                gates = gx_ref[t] + jnp.dot(
                    hs[0], whh[0][...], preferred_element_type=jnp.float32)
            else:
                gates = (
                    jnp.dot(x_in, wih[l][...], preferred_element_type=jnp.float32)
                    + jnp.dot(hs[l], whh[l][...], preferred_element_type=jnp.float32)
                    + bias[l][...])
            h_new, c_new = cell(gates, cs[l])
            hs[l] = h_new
            cs[l] = c_new
            x_in = h_new
        out_ref[t] = x_in                       # last layer's output at time t

    for l in range(n_layers):                    # final states written once
        h_out_ref[l] = hs[l]
        c_out_ref[l] = cs[l]


def lstm_stack(x_tm, layer_params, *, hp=HP):
    """x_tm: (P, B, I) f32 time-major; layer_params: [(w_ih, w_hh, b_ih, b_hh), ...].
    Returns (out_tm (P,B,H), h_n (L,B,H), c_n (L,B,H))."""
    seq, batch, in_dim = x_tm.shape
    n_layers = len(layer_params)
    hidden = layer_params[0][1].shape[1]

    # Hoisted layer-0 input projection over all timesteps at once (bias folded in).
    w_ih0, w_hh0, b_ih0, b_hh0 = layer_params[0]
    gx2d = input_projection(
        x_tm.reshape(seq * batch, in_dim).astype(jnp.float32),
        _gate_pad_transpose(w_ih0, hp),
        _gate_pad_bias(b_ih0, b_hh0, hp))
    gx = gx2d.reshape(seq, batch, 4 * hp)

    args = [gx, _pad_rows(_gate_pad_transpose(w_hh0, hp), hp)]
    for l in range(1, n_layers):
        w_ih, w_hh, b_ih, b_hh = layer_params[l]
        args.append(_pad_rows(_gate_pad_transpose(w_ih, hp), hp))
        args.append(_pad_rows(_gate_pad_transpose(w_hh, hp), hp))
        args.append(_gate_pad_bias(b_ih, b_hh, hp))

    kernel = functools.partial(
        _lstm_stack_kernel, n_layers=n_layers, seq_len=seq, hp=hp)
    out_tm, h_n, c_n = pl.pallas_call(
        kernel,
        out_shape=(jax.ShapeDtypeStruct((seq, batch, hp), jnp.float32),
                   jax.ShapeDtypeStruct((n_layers, batch, hp), jnp.float32),
                   jax.ShapeDtypeStruct((n_layers, batch, hp), jnp.float32)),
    )(*args)
    # Slice the real H lanes only here, outside the kernel.
    return out_tm[:, :, :hidden], h_n[:, :, :hidden], c_n[:, :, :hidden]


# ------------------------------ FC + sigmoid kernel ------------------------------

def _fc_sigmoid_kernel(x_ref, w_ref, b_ref, o_ref):
    o_ref[...] = jax.nn.sigmoid(
        jnp.dot(x_ref[...], w_ref[...], preferred_element_type=jnp.float32)
        + b_ref[...])


def fc_sigmoid_rows(x, fc_w, fc_b, *, o_pad=128):
    """x: (B, H). Returns sigmoid(x @ fc_w.T + fc_b) -> (B, n_out); the output is
    computed lane-padded to o_pad columns (unmasked stores) and sliced outside."""
    n, _ = x.shape
    n_out, hidden = fc_w.shape
    w_p = jnp.zeros((hidden, o_pad), jnp.float32).at[:, :n_out].set(
        jnp.transpose(fc_w).astype(jnp.float32))
    b_p = jnp.zeros((1, o_pad), jnp.float32).at[:, :n_out].set(
        fc_b.astype(jnp.float32))
    out = pl.pallas_call(
        _fc_sigmoid_kernel,
        out_shape=jax.ShapeDtypeStruct((n, o_pad), jnp.float32),
    )(x.astype(jnp.float32), w_p, b_p)
    return out[:, :n_out]


# --------------------------------- full forward ---------------------------------

def ast2class2_forward(params, start_terminals, input_words, end_terminals,
                       *, batch_size, n_hidden, n_layers):
    emb = params["embedding"]

    # Embedding lookups: data-dependent gather glue in plain JAX.
    embedded_words = jnp.take(emb, input_words, axis=0)        # (B, P, 11, E)
    start_emb = jnp.take(emb, start_terminals, axis=0)         # (B, P, E)
    end_emb = jnp.take(emb, end_terminals, axis=0)             # (B, P, E)

    bsz, num_paths, n_tok, e_dim = embedded_words.shape
    x = embedded_words.reshape(bsz, num_paths, n_tok * e_dim)  # (B, P, 1100)
    x_tm = jnp.transpose(x, (1, 0, 2)).astype(jnp.float32)     # (P, B, 1100)

    layer_params = [(params[f"w_ih_{l}"], params[f"w_hh_{l}"],
                     params[f"b_ih_{l}"], params[f"b_hh_{l}"])
                    for l in range(n_layers)]
    out_tm, h_n, c_n = lstm_stack(x_tm, layer_params)
    lstm_out = jnp.transpose(out_tm, (1, 0, 2))                # (B, P, H) batch_first

    # self.dropout / inter-layer LSTM dropout: identity in eval mode.
    concatenated = jnp.concatenate([lstm_out, start_emb, end_emb], axis=0)  # (3B,P,H)
    ctx = concatenated.reshape(3 * bsz * num_paths, n_hidden)               # (3BP, H)

    # sigmoid(fc(ctx)).view(batch, -1)[:, -1] only ever reads row (b+1)*3P - 1,
    # column n_out-1, for each batch b (exact for any B/P/n_out). Compute just
    # those B rows; returned values are identical to the full reference.
    rows = (jnp.arange(batch_size, dtype=jnp.int32) + 1) * (3 * num_paths) - 1
    selected = jnp.take(ctx, rows, axis=0)                     # (B, H)
    fc_sel = fc_sigmoid_rows(selected, params["fc_w"], params["fc_b"])  # (B, n_out)
    sigmoid_last = fc_sel[:, -1]                               # (B,)
    return sigmoid_last, (h_n, c_n)


# ---------------------------------- parameters ----------------------------------

def init_params(key, n_vocab, embed_dim, n_hidden, n_output, n_layers, lstm_in=1100):
    keys = jax.random.split(key, 3 + 4 * n_layers)
    params = {
        "embedding": 0.1 * jax.random.normal(keys[0], (n_vocab, embed_dim), jnp.float32),
        "fc_w": 0.1 * jax.random.normal(keys[1], (n_output, n_hidden), jnp.float32),
        "fc_b": 0.1 * jax.random.normal(keys[2], (n_output,), jnp.float32),
    }
    idx = 3
    in_size = lstm_in
    for layer in range(n_layers):
        params[f"w_ih_{layer}"] = 0.05 * jax.random.normal(
            keys[idx], (4 * n_hidden, in_size), jnp.float32); idx += 1
        params[f"w_hh_{layer}"] = 0.05 * jax.random.normal(
            keys[idx], (4 * n_hidden, n_hidden), jnp.float32); idx += 1
        params[f"b_ih_{layer}"] = 0.05 * jax.random.normal(
            keys[idx], (4 * n_hidden,), jnp.float32); idx += 1
        params[f"b_hh_{layer}"] = 0.05 * jax.random.normal(
            keys[idx], (4 * n_hidden,), jnp.float32); idx += 1
        in_size = n_hidden
    return params


if __name__ == "__main__":
    # Module constraints: LSTM(1100, 100) and the 11*embed_dim reshape imply
    # embed_dim=100, n_hidden=100, num_tokens=11.
    n_vocab, embed_dim, n_hidden, n_output = 50, 100, 100, 5
    n_layers, batch_size, num_paths, num_tokens = 2, 2, 8, 11

    params = init_params(jax.random.PRNGKey(0), n_vocab, embed_dim,
                         n_hidden, n_output, n_layers)

    k1, k2, k3 = jax.random.split(jax.random.PRNGKey(0), 3)
    input_words = jax.random.randint(k1, (batch_size, num_paths, num_tokens), 0, n_vocab,
                                     dtype=jnp.int32)
    start_terminals = jax.random.randint(k2, (batch_size, num_paths), 0, n_vocab,
                                         dtype=jnp.int32)
    end_terminals = jax.random.randint(k3, (batch_size, num_paths), 0, n_vocab,
                                       dtype=jnp.int32)

    fwd = jax.jit(functools.partial(
        ast2class2_forward, batch_size=batch_size, n_hidden=n_hidden,
        n_layers=n_layers))

    sigmoid_last, (h_n, c_n) = fwd(params, start_terminals, input_words, end_terminals)
    jax.block_until_ready((sigmoid_last, h_n, c_n))

    assert sigmoid_last.shape == (batch_size,)
    assert h_n.shape == (n_layers, batch_size, n_hidden)
    assert c_n.shape == (n_layers, batch_size, n_hidden)
    assert bool(jnp.all(jnp.isfinite(sigmoid_last)))
    assert bool(jnp.all(jnp.isfinite(h_n))) and bool(jnp.all(jnp.isfinite(c_n)))
    print("KERNEL_OK")
</pallas_src>

<mosaic_0001>
module attributes {stable_mosaic.version = 11 : i64} {
  func.func @_input_proj_kernel(%arg0: i32, %arg1: memref<8x1100xf32, #tpu.memory_space<vmem>>, %arg2: memref<1100x512xf32, #tpu.memory_space<vmem>>, %arg3: memref<1x512xf32, #tpu.memory_space<vmem>>, %arg4: memref<8x512xf32, #tpu.memory_space<vmem>>) attributes {dimension_semantics = [#tpu.dimension_semantics<parallel>], iteration_bounds = array<i64: 2>, scalar_prefetch = 0 : i64, scratch_operands = 0 : i64, tpu.core_type = #tpu.core_type<tc>, window_params = [{transform_indices = @transform_0, window_bounds = array<i64: 8, 1100>}, {pipeline_mode = #tpu.pipeline_mode<synchronous>, transform_indices = @transform_1, window_bounds = array<i64: 1100, 512>}, {pipeline_mode = #tpu.pipeline_mode<synchronous>, transform_indices = @transform_2, window_bounds = array<i64: 1, 512>}, {transform_indices = @transform_3, window_bounds = array<i64: 8, 512>}]} {
    %c0 = arith.constant 0 : index
    %c0_0 = arith.constant 0 : index
    %0 = vector.load %arg1[%c0, %c0_0] : memref<8x1100xf32, #tpu.memory_space<vmem>>, vector<8x1100xf32>
    %c0_1 = arith.constant 0 : index
    %c0_2 = arith.constant 0 : index
    %1 = vector.load %arg2[%c0_1, %c0_2] : memref<1100x512xf32, #tpu.memory_space<vmem>>, vector<1100x512xf32>
    %cst = arith.constant dense<0.000000e+00> : vector<8x512xf32>
    %2 = tpu.matmul %0, %1, %cst {dimension_numbers = #tpu.dot_dimension_numbers<[1], [0], [0], [1], [0, 0, 1, 1], [], []>} : vector<8x1100xf32>, vector<1100x512xf32>, vector<8x512xf32> -> vector<8x512xf32>
    %c0_3 = arith.constant 0 : index
    %c0_4 = arith.constant 0 : index
    %3 = vector.load %arg3[%c0_3, %c0_4] : memref<1x512xf32, #tpu.memory_space<vmem>>, vector<1x512xf32>
    %4 = vector.broadcast %3 : vector<1x512xf32> to vector<8x512xf32>
    %5 = arith.addf %2, %4 : vector<8x512xf32>
    %c0_5 = arith.constant 0 : index
    %c0_6 = arith.constant 0 : index
    %6 = vector.load %arg4[%c0_5, %c0_6] : memref<8x512xf32, #tpu.memory_space<vmem>>, vector<8x512xf32>
    tpu.vector_store %arg4[%c0_5, %c0_6], %5 {strides = array<i32>} : memref<8x512xf32, #tpu.memory_space<vmem>>, vector<8x512xf32>,
    return
  }
  func.func @transform_0(%arg0: i32) -> (i32, i32) {
    %c0_i32 = arith.constant 0 : i32
    %c0_i32_0 = arith.constant 0 : i32
    return %arg0, %c0_i32 : i32, i32
  }
  func.func @transform_1(%arg0: i32) -> (i32, i32) {
    %c0_i32 = arith.constant 0 : i32
    %c0_i32_0 = arith.constant 0 : i32
    %c0_i32_1 = arith.constant 0 : i32
    return %c0_i32, %c0_i32_0 : i32, i32
  }
  func.func @transform_2(%arg0: i32) -> (i32, i32) {
    %c0_i32 = arith.constant 0 : i32
    %c0_i32_0 = arith.constant 0 : i32
    %c0_i32_1 = arith.constant 0 : i32
    return %c0_i32, %c0_i32_0 : i32, i32
  }
  func.func @transform_3(%arg0: i32) -> (i32, i32) {
    %c0_i32 = arith.constant 0 : i32
    %c0_i32_0 = arith.constant 0 : i32
    return %arg0, %c0_i32 : i32, i32
  }
}

module attributes {stable_mosaic.version = 11 : i64} {
  func.func @_lstm_stack_kernel(%arg0: memref<8x2x512xf32, #tpu.memory_space<vmem>>, %arg1: memref<128x512xf32, #tpu.memory_space<vmem>>, %arg2: memref<128x512xf32, #tpu.memory_space<vmem>>, %arg3: memref<128x512xf32, #tpu.memory_space<vmem>>, %arg4: memref<1x512xf32, #tpu.memory_space<vmem>>, %arg5: memref<8x2x128xf32, #tpu.memory_space<vmem>>, %arg6: memref<2x2x128xf32, #tpu.memory_space<vmem>>, %arg7: memref<2x2x128xf32, #tpu.memory_space<vmem>>) attributes {dimension_semantics = [], scalar_prefetch = 0 : i64, scratch_operands = 0 : i64, tpu.core_type = #tpu.core_type<tc>} {
    %cst = arith.constant 0.000000e+00 : f32
    %0 = vector.broadcast %cst : f32 to vector<2x128xf32>
    %c0 = arith.constant 0 : index
    %c0_0 = arith.constant 0 : index
    %c0_1 = arith.constant 0 : index
    %1 = vector.load %arg0[%c0, %c0_0, %c0_1] : memref<8x2x512xf32, #tpu.memory_space<vmem>>, vector<1x2x512xf32>
    %2 = vector.shape_cast %1 : vector<1x2x512xf32> to vector<2x512xf32>
    %c0_2 = arith.constant 0 : index
    %c0_3 = arith.constant 0 : index
    %3 = vector.load %arg1[%c0_2, %c0_3] : memref<128x512xf32, #tpu.memory_space<vmem>>, vector<128x512xf32>
    %cst_4 = arith.constant dense<0.000000e+00> : vector<2x512xf32>
    %4 = tpu.matmul %0, %3, %cst_4 {dimension_numbers = #tpu.dot_dimension_numbers<[1], [0], [0], [1], [0, 0, 1, 1], [], []>} : vector<2x128xf32>, vector<128x512xf32>, vector<2x512xf32> -> vector<2x512xf32>
    %5 = arith.addf %2, %4 : vector<2x512xf32>
    %6 = vector.extract_strided_slice %5 {offsets = [0, 0], sizes = [2, 128], strides = [1, 1]} : vector<2x512xf32> to vector<2x128xf32>
    %7 = arith.negf %6 : vector<2x128xf32>
    %8 = math.exp %7 : vector<2x128xf32>
    %cst_5 = arith.constant 1.000000e+00 : f32
    %9 = vector.broadcast %cst_5 : f32 to vector<2x128xf32>
    %10 = arith.addf %9, %8 : vector<2x128xf32>
    %11 = arith.divf %9, %10 : vector<2x128xf32>
    %12 = vector.extract_strided_slice %5 {offsets = [0, 128], sizes = [2, 128], strides = [1, 1]} : vector<2x512xf32> to vector<2x128xf32>
    %13 = arith.negf %12 : vector<2x128xf32>
    %14 = math.exp %13 : vector<2x128xf32>
    %cst_6 = arith.constant 1.000000e+00 : f32
    %15 = vector.broadcast %cst_6 : f32 to vector<2x128xf32>
    %16 = arith.addf %15, %14 : vector<2x128xf32>
    %17 = arith.divf %15, %16 : vector<2x128xf32>
    %18 = vector.extract_strided_slice %5 {offsets = [0, 256], sizes = [2, 128], strides = [1, 1]} : vector<2x512xf32> to vector<2x128xf32>
    %19 = math.tanh %18 : vector<2x128xf32>
    %20 = vector.extract_strided_slice %5 {offsets = [0, 384], sizes = [2, 128], strides = [1, 1]} : vector<2x512xf32> to vector<2x128xf32>
    %21 = arith.negf %20 : vector<2x128xf32>
    %22 = math.exp %21 : vector<2x128xf32>
    %cst_7 = arith.constant 1.000000e+00 : f32
    %23 = vector.broadcast %cst_7 : f32 to vector<2x128xf32>
    %24 = arith.addf %23, %22 : vector<2x128xf32>
    %25 = arith.divf %23, %24 : vector<2x128xf32>
    %26 = arith.mulf %17, %0 : vector<2x128xf32>
    %27 = arith.mulf %11, %19 : vector<2x128xf32>
    %28 = arith.addf %26, %27 : vector<2x128xf32>
    %29 = math.tanh %28 : vector<2x128xf32>
    %30 = arith.mulf %25, %29 : vector<2x128xf32>
    %c0_8 = arith.constant 0 : index
    %c0_9 = arith.constant 0 : index
    %31 = vector.load %arg2[%c0_8, %c0_9] : memref<128x512xf32, #tpu.memory_space<vmem>>, vector<128x512xf32>
    %cst_10 = arith.constant dense<0.000000e+00> : vector<2x512xf32>
    %32 = tpu.matmul %30, %31, %cst_10 {dimension_numbers = #tpu.dot_dimension_numbers<[1], [0], [0], [1], [0, 0, 1, 1], [], []>} : vector<2x128xf32>, vector<128x512xf32>, vector<2x512xf32> -> vector<2x512xf32>
    %c0_11 = arith.constant 0 : index
    %c0_12 = arith.constant 0 : index
    %33 = vector.load %arg3[%c0_11, %c0_12] : memref<128x512xf32, #tpu.memory_space<vmem>>, vector<128x512xf32>
    %cst_13 = arith.constant dense<0.000000e+00> : vector<2x512xf32>
    %34 = tpu.matmul %0, %33, %cst_13 {dimension_numbers = #tpu.dot_dimension_numbers<[1], [0], [0], [1], [0, 0, 1, 1], [], []>} : vector<2x128xf32>, vector<128x512xf32>, vector<2x512xf32> -> vector<2x512xf32>
    %35 = arith.addf %32, %34 : vector<2x512xf32>
    %c0_14 = arith.constant 0 : index
    %c0_15 = arith.constant 0 : index
    %36 = vector.load %arg4[%c0_14, %c0_15] : memref<1x512xf32, #tpu.memory_space<vmem>>, vector<1x512xf32>
    %37 = vector.broadcast %36 : vector<1x512xf32> to vector<2x512xf32>
    %38 = arith.addf %35, %37 : vector<2x512xf32>
    %39 = vector.extract_strided_slice %38 {offsets = [0, 0], sizes = [2, 128], strides = [1, 1]} : vector<2x512xf32> to vector<2x128xf32>
    %40 = arith.negf %39 : vector<2x128xf32>
    %41 = math.exp %40 : vector<2x128xf32>
    %cst_16 = arith.constant 1.000000e+00 : f32
    %42 = vector.broadcast %cst_16 : f32 to vector<2x128xf32>
    %43 = arith.addf %42, %41 : vector<2x128xf32>
    %44 = arith.divf %42, %43 : vector<2x128xf32>
    %45 = vector.extract_strided_slice %38 {offsets = [0, 128], sizes = [2, 128], strides = [1, 1]} : vector<2x512xf32> to vector<2x128xf32>
    %46 = arith.negf %45 : vector<2x128xf32>
    %47 = math.exp %46 : vector<2x128xf32>
    %cst_17 = arith.constant 1.000000e+00 : f32
    %48 = vector.broadcast %cst_17 : f32 to vector<2x128xf32>
    %49 = arith.addf %48, %47 : vector<2x128xf32>
    %50 = arith.divf %48, %49 : vector<2x128xf32>
    %51 = vector.extract_strided_slice %38 {offsets = [0, 256], sizes = [2, 128], strides = [1, 1]} : vector<2x512xf32> to vector<2x128xf32>
    %52 = math.tanh %51 : vector<2x128xf32>
    %53 = vector.extract_strided_slice %38 {offsets = [0, 384], sizes = [2, 128], strides = [1, 1]} : vector<2x512xf32> to vector<2x128xf32>
    %54 = arith.negf %53 : vector<2x128xf32>
    %55 = math.exp %54 : vector<2x128xf32>
    %cst_18 = arith.constant 1.000000e+00 : f32
    %56 = vector.broadcast %cst_18 : f32 to vector<2x128xf32>
    %57 = arith.addf %56, %55 : vector<2x128xf32>
    %58 = arith.divf %56, %57 : vector<2x128xf32>
    %59 = arith.mulf %50, %0 : vector<2x128xf32>
    %60 = arith.mulf %44, %52 : vector<2x128xf32>
    %61 = arith.addf %59, %60 : vector<2x128xf32>
    %62 = math.tanh %61 : vector<2x128xf32>
    %63 = arith.mulf %58, %62 : vector<2x128xf32>
    %c0_19 = arith.constant 0 : index
    %c0_20 = arith.constant 0 : index
    %c0_21 = arith.constant 0 : index
    %64 = vector.load %arg5[%c0_19, %c0_20, %c0_21] : memref<8x2x128xf32, #tpu.memory_space<vmem>>, vector<1x2x128xf32>
    %65 = vector.shape_cast %64 : vector<1x2x128xf32> to vector<2x128xf32>
    %66 = vector.shape_cast %63 : vector<2x128xf32> to vector<1x2x128xf32>
    tpu.vector_store %arg5[%c0_19, %c0_20, %c0_21], %66 {strides = array<i32>} : memref<8x2x128xf32, #tpu.memory_space<vmem>>, vector<1x2x128xf32>,
    %c1 = arith.constant 1 : index
    %c0_22 = arith.constant 0 : index
    %c0_23 = arith.constant 0 : index
    %67 = vector.load %arg0[%c1, %c0_22, %c0_23] : memref<8x2x512xf32, #tpu.memory_space<vmem>>, vector<1x2x512xf32>
    %68 = vector.shape_cast %67 : vector<1x2x512xf32> to vector<2x512xf32>
    %c0_24 = arith.constant 0 : index
    %c0_25 = arith.constant 0 : index
    %69 = vector.load %arg1[%c0_24, %c0_25] : memref<128x512xf32, #tpu.memory_space<vmem>>, vector<128x512xf32>
    %cst_26 = arith.constant dense<0.000000e+00> : vector<2x512xf32>
    %70 = tpu.matmul %30, %69, %cst_26 {dimension_numbers = #tpu.dot_dimension_numbers<[1], [0], [0], [1], [0, 0, 1, 1], [], []>} : vector<2x128xf32>, vector<128x512xf32>, vector<2x512xf32> -> vector<2x512xf32>
    %71 = arith.addf %68, %70 : vector<2x512xf32>
    %72 = vector.extract_strided_slice %71 {offsets = [0, 0], sizes = [2, 128], strides = [1, 1]} : vector<2x512xf32> to vector<2x128xf32>
    %73 = arith.negf %72 : vector<2x128xf32>
    %74 = math.exp %73 : vector<2x128xf32>
    %cst_27 = arith.constant 1.000000e+00 : f32
    %75 = vector.broadcast %cst_27 : f32 to vector<2x128xf32>
    %76 = arith.addf %75, %74 : vector<2x128xf32>
    %77 = arith.divf %75, %76 : vector<2x128xf32>
    %78 = vector.extract_strided_slice %71 {offsets = [0, 128], sizes = [2, 128], strides = [1, 1]} : vector<2x512xf32> to vector<2x128xf32>
    %79 = arith.negf %78 : vector<2x128xf32>
    %80 = math.exp %79 : vector<2x128xf32>
    %cst_28 = arith.constant 1.000000e+00 : f32
    %81 = vector.broadcast %cst_28 : f32 to vector<2x128xf32>
    %82 = arith.addf %81, %80 : vector<2x128xf32>
    %83 = arith.divf %81, %82 : vector<2x128xf32>
    %84 = vector.extract_strided_slice %71 {offsets = [0, 256], sizes = [2, 128], strides = [1, 1]} : vector<2x512xf32> to vector<2x128xf32>
    %85 = math.tanh %84 : vector<2x128xf32>
    %86 = vector.extract_strided_slice %71 {offsets = [0, 384], sizes = [2, 128], strides = [1, 1]} : vector<2x512xf32> to vector<2x128xf32>
    %87 = arith.negf %86 : vector<2x128xf32>
    %88 = math.exp %87 : vector<2x128xf32>
    %cst_29 = arith.constant 1.000000e+00 : f32
    %89 = vector.broadcast %cst_29 : f32 to vector<2x128xf32>
    %90 = arith.addf %89, %88 : vector<2x128xf32>
    %91 = arith.divf %89, %90 : vector<2x128xf32>
    %92 = arith.mulf %83, %28 : vector<2x128xf32>
    %93 = arith.mulf %77, %85 : vector<2x128xf32>
    %94 = arith.addf %92, %93 : vector<2x128xf32>
    %95 = math.tanh %94 : vector<2x128xf32>
    %96 = arith.mulf %91, %95 : vector<2x128xf32>
    %c0_30 = arith.constant 0 : index
    %c0_31 = arith.constant 0 : index
    %97 = vector.load %arg2[%c0_30, %c0_31] : memref<128x512xf32, #tpu.memory_space<vmem>>, vector<128x512xf32>
    %cst_32 = arith.constant dense<0.000000e+00> : vector<2x512xf32>
    %98 = tpu.matmul %96, %97, %cst_32 {dimension_numbers = #tpu.dot_dimension_numbers<[1], [0], [0], [1], [0, 0, 1, 1], [], []>} : vector<2x128xf32>, vector<128x512xf32>, vector<2x512xf32> -> vector<2x512xf32>
    %c0_33 = arith.constant 0 : index
    %c0_34 = arith.constant 0 : index
    %99 = vector.load %arg3[%c0_33, %c0_34] : memref<128x512xf32, #tpu.memory_space<vmem>>, vector<128x512xf32>
    %cst_35 = arith.constant dense<0.000000e+00> : vector<2x512xf32>
    %100 = tpu.matmul %63, %99, %cst_35 {dimension_numbers = #tpu.dot_dimension_numbers<[1], [0], [0], [1], [0, 0, 1, 1], [], []>} : vector<2x128xf32>, vector<128x512xf32>, vector<2x512xf32> -> vector<2x512xf32>
    %101 = arith.addf %98, %100 : vector<2x512xf32>
    %c0_36 = arith.constant 0 : index
    %c0_37 = arith.constant 0 : index
    %102 = vector.load %arg4[%c0_36, %c0_37] : memref<1x512xf32, #tpu.memory_space<vmem>>, vector<1x512xf32>
    %103 = vector.broadcast %102 : vector<1x512xf32> to vector<2x512xf32>
    %104 = arith.addf %101, %103 : vector<2x512xf32>
    %105 = vector.extract_strided_slice %104 {offsets = [0, 0], sizes = [2, 128], strides = [1, 1]} : vector<2x512xf32> to vector<2x128xf32>
    %106 = arith.negf %105 : vector<2x128xf32>
    %107 = math.exp %106 : vector<2x128xf32>
    %cst_38 = arith.constant 1.000000e+00 : f32
    %108 = vector.broadcast %cst_38 : f32 to vector<2x128xf32>
    %109 = arith.addf %108, %107 : vector<2x128xf32>
    %110 = arith.divf %108, %109 : vector<2x128xf32>
    %111 = vector.extract_strided_slice %104 {offsets = [0, 128], sizes = [2, 128], strides = [1, 1]} : vector<2x512xf32> to vector<2x128xf32>
    %112 = arith.negf %111 : vector<2x128xf32>
    %113 = math.exp %112 : vector<2x128xf32>
    %cst_39 = arith.constant 1.000000e+00 : f32
    %114 = vector.broadcast %cst_39 : f32 to vector<2x128xf32>
    %115 = arith.addf %114, %113 : vector<2x128xf32>
    %116 = arith.divf %114, %115 : vector<2x128xf32>
    %117 = vector.extract_strided_slice %104 {offsets = [0, 256], sizes = [2, 128], strides = [1, 1]} : vector<2x512xf32> to vector<2x128xf32>
    %118 = math.tanh %117 : vector<2x128xf32>
    %119 = vector.extract_strided_slice %104 {offsets = [0, 384], sizes = [2, 128], strides = [1, 1]} : vector<2x512xf32> to vector<2x128xf32>
    %120 = arith.negf %119 : vector<2x128xf32>
    %121 = math.exp %120 : vector<2x128xf32>
    %cst_40 = arith.constant 1.000000e+00 : f32
    %122 = vector.broadcast %cst_40 : f32 to vector<2x128xf32>
    %123 = arith.addf %122, %121 : vector<2x128xf32>
    %124 = arith.divf %122, %123 : vector<2x128xf32>
    %125 = arith.mulf %116, %61 : vector<2x128xf32>
    %126 = arith.mulf %110, %118 : vector<2x128xf32>
    %127 = arith.addf %125, %126 : vector<2x128xf32>
    %128 = math.tanh %127 : vector<2x128xf32>
    %129 = arith.mulf %124, %128 : vector<2x128xf32>
    %c1_41 = arith.constant 1 : index
    %c0_42 = arith.constant 0 : index
    %c0_43 = arith.constant 0 : index
    %130 = vector.load %arg5[%c1_41, %c0_42, %c0_43] : memref<8x2x128xf32, #tpu.memory_space<vmem>>, vector<1x2x128xf32>
    %131 = vector.shape_cast %130 : vector<1x2x128xf32> to vector<2x128xf32>
    %132 = vector.shape_cast %129 : vector<2x128xf32> to vector<1x2x128xf32>
    tpu.vector_store %arg5[%c1_41, %c0_42, %c0_43], %132 {strides = array<i32>} : memref<8x2x128xf32, #tpu.memory_space<vmem>>, vector<1x2x128xf32>,
    %c2 = arith.constant 2 : index
    %c0_44 = arith.constant 0 : index
    %c0_45 = arith.constant 0 : index
    %133 = vector.load %arg0[%c2, %c0_44, %c0_45] : memref<8x2x512xf32, #tpu.memory_space<vmem>>, vector<1x2x512xf32>
    %134 = vector.shape_cast %133 : vector<1x2x512xf32> to vector<2x512xf32>
    %c0_46 = arith.constant 0 : index
    %c0_47 = arith.constant 0 : index
    %135 = vector.load %arg1[%c0_46, %c0_47] : memref<128x512xf32, #tpu.memory_space<vmem>>, vector<128x512xf32>
    %cst_48 = arith.constant dense<0.000000e+00> : vector<2x512xf32>
    %136 = tpu.matmul %96, %135, %cst_48 {dimension_numbers = #tpu.dot_dimension_numbers<[1], [0], [0], [1], [0, 0, 1, 1], [], []>} : vector<2x128xf32>, vector<128x512xf32>, vector<2x512xf32> -> vector<2x512xf32>
    %137 = arith.addf %134, %136 : vector<2x512xf32>
    %138 = vector.extract_strided_slice %137 {offsets = [0, 0], sizes = [2, 128], strides = [1, 1]} : vector<2x512xf32> to vector<2x128xf32>
    %139 = arith.negf %138 : vector<2x128xf32>
    %140 = math.exp %139 : vector<2x128xf32>
    %cst_49 = arith.constant 1.000000e+00 : f32
    %141 = vector.broadcast %cst_49 : f32 to vector<2x128xf32>
    %142 = arith.addf %141, %140 : vector<2x128xf32>
    %143 = arith.divf %141, %142 : vector<2x128xf32>
    %144 = vector.extract_strided_slice %137 {offsets = [0, 128], sizes = [2, 128], strides = [1, 1]} : vector<2x512xf32> to vector<2x128xf32>
    %145 = arith.negf %144 : vector<2x128xf32>
    %146 = math.exp %145 : vector<2x128xf32>
    %cst_50 = arith.constant 1.000000e+00 : f32
    %147 = vector.broadcast %cst_50 : f32 to vector<2x128xf32>
    %148 = arith.addf %147, %146 : vector<2x128xf32>
    %149 = arith.divf %147, %148 : vector<2x128xf32>
    %150 = vector.extract_strided_slice %137 {offsets = [0, 256], sizes = [2, 128], strides = [1, 1]} : vector<2x512xf32> to vector<2x128xf32>
    %151 = math.tanh %150 : vector<2x128xf32>
    %152 = vector.extract_strided_slice %137 {offsets = [0, 384], sizes = [2, 128], strides = [1, 1]} : vector<2x512xf32> to vector<2x128xf32>
    %153 = arith.negf %152 : vector<2x128xf32>
    %154 = math.exp %153 : vector<2x128xf32>
    %cst_51 = arith.constant 1.000000e+00 : f32
    %155 = vector.broadcast %cst_51 : f32 to vector<2x128xf32>
    %156 = arith.addf %155, %154 : vector<2x128xf32>
    %157 = arith.divf %155, %156 : vector<2x128xf32>
    %158 = arith.mulf %149, %94 : vector<2x128xf32>
    %159 = arith.mulf %143, %151 : vector<2x128xf32>
    %160 = arith.addf %158, %159 : vector<2x128xf32>
    %161 = math.tanh %160 : vector<2x128xf32>
    %162 = arith.mulf %157, %161 : vector<2x128xf32>
    %c0_52 = arith.constant 0 : index
    %c0_53 = arith.constant 0 : index
    %163 = vector.load %arg2[%c0_52, %c0_53] : memref<128x512xf32, #tpu.memory_space<vmem>>, vector<128x512xf32>
    %cst_54 = arith.constant dense<0.000000e+00> : vector<2x512xf32>
    %164 = tpu.matmul %162, %163, %cst_54 {dimension_numbers = #tpu.dot_dimension_numbers<[1], [0], [0], [1], [0, 0, 1, 1], [], []>} : vector<2x128xf32>, vector<128x512xf32>, vector<2x512xf32> -> vector<2x512xf32>
    %c0_55 = arith.constant 0 : index
    %c0_56 = arith.constant 0 : index
    %165 = vector.load %arg3[%c0_55, %c0_56] : memref<128x512xf32, #tpu.memory_space<vmem>>, vector<128x512xf32>
    %cst_57 = arith.constant dense<0.000000e+00> : vector<2x512xf32>
    %166 = tpu.matmul %129, %165, %cst_57 {dimension_numbers = #tpu.dot_dimension_numbers<[1], [0], [0], [1], [0, 0, 1, 1], [], []>} : vector<2x128xf32>, vector<128x512xf32>, vector<2x512xf32> -> vector<2x512xf32>
    %167 = arith.addf %164, %166 : vector<2x512xf32>
    %c0_58 = arith.constant 0 : index
    %c0_59 = arith.constant 0 : index
    %168 = vector.load %arg4[%c0_58, %c0_59] : memref<1x512xf32, #tpu.memory_space<vmem>>, vector<1x512xf32>
    %169 = vector.broadcast %168 : vector<1x512xf32> to vector<2x512xf32>
    %170 = arith.addf %167, %169 : vector<2x512xf32>
    %171 = vector.extract_strided_slice %170 {offsets = [0, 0], sizes = [2, 128], strides = [1, 1]} : vector<2x512xf32> to vector<2x128xf32>
    %172 = arith.negf %171 : vector<2x128xf32>
    %173 = math.exp %172 : vector<2x128xf32>
    %cst_60 = arith.constant 1.000000e+00 : f32
    %174 = vector.broadcast %cst_60 : f32 to vector<2x128xf32>
    %175 = arith.addf %174, %173 : vector<2x128xf32>
    %176 = arith.divf %174, %175 : vector<2x128xf32>
    %177 = vector.extract_strided_slice %170 {offsets = [0, 128], sizes = [2, 128], strides = [1, 1]} : vector<2x512xf32> to vector<2x128xf32>
    %178 = arith.negf %177 : vector<2x128xf32>
    %179 = math.exp %178 : vector<2x128xf32>
    %cst_61 = arith.constant 1.000000e+00 : f32
    %180 = vector.broadcast %cst_61 : f32 to vector<2x128xf32>
    %181 = arith.addf %180, %179 : vector<2x128xf32>
    %182 = arith.divf %180, %181 : vector<2x128xf32>
    %183 = vector.extract_strided_slice %170 {offsets = [0, 256], sizes = [2, 128], strides = [1, 1]} : vector<2x512xf32> to vector<2x128xf32>
    %184 = math.tanh %183 : vector<2x128xf32>
    %185 = vector.extract_strided_slice %170 {offsets = [0, 384], sizes = [2, 128], strides = [1, 1]} : vector<2x512xf32> to vector<2x128xf32>
    %186 = arith.negf %185 : vector<2x128xf32>
    %187 = math.exp %186 : vector<2x128xf32>
    %cst_62 = arith.constant 1.000000e+00 : f32
    %188 = vector.broadcast %cst_62 : f32 to vector<2x128xf32>
    %189 = arith.addf %188, %187 : vector<2x128xf32>
    %190 = arith.divf %188, %189 : vector<2x128xf32>
    %191 = arith.mulf %182, %127 : vector<2x128xf32>
    %192 = arith.mulf %176, %184 : vector<2x128xf32>
    %193 = arith.addf %191, %192 : vector<2x128xf32>
    %194 = math.tanh %193 : vector<2x128xf32>
    %195 = arith.mulf %190, %194 : vector<2x128xf32>
    %c2_63 = arith.constant 2 : index
    %c0_64 = arith.constant 0 : index
    %c0_65 = arith.constant 0 : index
    %196 = vector.load %arg5[%c2_63, %c0_64, %c0_65] : memref<8x2x128xf32, #tpu.memory_space<vmem>>, vector<1x2x128xf32>
    %197 = vector.shape_cast %196 : vector<1x2x128xf32> to vector<2x128xf32>
    %198 = vector.shape_cast %195 : vector<2x128xf32> to vector<1x2x128xf32>
    tpu.vector_store %arg5[%c2_63, %c0_64, %c0_65], %198 {strides = array<i32>} : memref<8x2x128xf32, #tpu.memory_space<vmem>>, vector<1x2x128xf32>,
    %c3 = arith.constant 3 : index
    %c0_66 = arith.constant 0 : index
    %c0_67 = arith.constant 0 : index
    %199 = vector.load %arg0[%c3, %c0_66, %c0_67] : memref<8x2x512xf32, #tpu.memory_space<vmem>>, vector<1x2x512xf32>
    %200 = vector.shape_cast %199 : vector<1x2x512xf32> to vector<2x512xf32>
    %c0_68 = arith.constant 0 : index
    %c0_69 = arith.constant 0 : index
    %201 = vector.load %arg1[%c0_68, %c0_69] : memref<128x512xf32, #tpu.memory_space<vmem>>, vector<128x512xf32>
    %cst_70 = arith.constant dense<0.000000e+00> : vector<2x512xf32>
    %202 = tpu.matmul %162, %201, %cst_70 {dimension_numbers = #tpu.dot_dimension_numbers<[1], [0], [0], [1], [0, 0, 1, 1], [], []>} : vector<2x128xf32>, vector<128x512xf32>, vector<2x512xf32> -> vector<2x512xf32>
    %203 = arith.addf %200, %202 : vector<2x512xf32>
    %204 = vector.extract_strided_slice %203 {offsets = [0, 0], sizes = [2, 128], strides = [1, 1]} : vector<2x512xf32> to vector<2x128xf32>
    %205 = arith.negf %204 : vector<2x128xf32>
    %206 = math.exp %205 : vector<2x128xf32>
    %cst_71 = arith.constant 1.000000e+00 : f32
    %207 = vector.broadcast %cst_71 : f32 to vector<2x128xf32>
    %208 = arith.addf %207, %206 : vector<2x128xf32>
    %209 = arith.divf %207, %208 : vector<2x128xf32>
    %210 = vector.extract_strided_slice %203 {offsets = [0, 128], sizes = [2, 128], strides = [1, 1]} : vector<2x512xf32> to vector<2x128xf32>
    %211 = arith.negf %210 : vector<2x128xf32>
    %212 = math.exp %211 : vector<2x128xf32>
    %cst_72 = arith.constant 1.000000e+00 : f32
    %213 = vector.broadcast %cst_72 : f32 to vector<2x128xf32>
    %214 = arith.addf %213, %212 : vector<2x128xf32>
    %215 = arith.divf %213, %214 : vector<2x128xf32>
    %216 = vector.extract_strided_slice %203 {offsets = [0, 256], sizes = [2, 128], strides = [1, 1]} : vector<2x512xf32> to vector<2x128xf32>
    %217 = math.tanh %216 : vector<2x128xf32>
    %218 = vector.extract_strided_slice %203 {offsets = [0, 384], sizes = [2, 128], strides = [1, 1]} : vector<2x512xf32> to vector<2x128xf32>
    %219 = arith.negf %218 : vector<2x128xf32>
    %220 = math.exp %219 : vector<2x128xf32>
    %cst_73 = arith.constant 1.000000e+00 : f32
    %221 = vector.broadcast %cst_73 : f32 to vector<2x128xf32>
    %222 = arith.addf %221, %220 : vector<2x128xf32>
    %223 = arith.divf %221, %222 : vector<2x128xf32>
    %224 = arith.mulf %215, %160 : vector<2x128xf32>
    %225 = arith.mulf %209, %217 : vector<2x128xf32>
    %226 = arith.addf %224, %225 : vector<2x128xf32>
    %227 = math.tanh %226 : vector<2x128xf32>
    %228 = arith.mulf %223, %227 : vector<2x128xf32>
    %c0_74 = arith.constant 0 : index
    %c0_75 = arith.constant 0 : index
    %229 = vector.load %arg2[%c0_74, %c0_75] : memref<128x512xf32, #tpu.memory_space<vmem>>, vector<128x512xf32>
    %cst_76 = arith.constant dense<0.000000e+00> : vector<2x512xf32>
    %230 = tpu.matmul %228, %229, %cst_76 {dimension_numbers = #tpu.dot_dimension_numbers<[1], [0], [0], [1], [0, 0, 1, 1], [], []>} : vector<2x128xf32>, vector<128x512xf32>, vector<2x512xf32> -> vector<2x512xf32>
    %c0_77 = arith.constant 0 : index
    %c0_78 = arith.constant 0 : index
    %231 = vector.load %arg3[%c0_77, %c0_78] : memref<128x512xf32, #tpu.memory_space<vmem>>, vector<128x512xf32>
    %cst_79 = arith.constant dense<0.000000e+00> : vector<2x512xf32>
    %232 = tpu.matmul %195, %231, %cst_79 {dimension_numbers = #tpu.dot_dimension_numbers<[1], [0], [0], [1], [0, 0, 1, 1], [], []>} : vector<2x128xf32>, vector<128x512xf32>, vector<2x512xf32> -> vector<2x512xf32>
    %233 = arith.addf %230, %232 : vector<2x512xf32>
    %c0_80 = arith.constant 0 : index
    %c0_81 = arith.constant 0 : index
    %234 = vector.load %arg4[%c0_80, %c0_81] : memref<1x512xf32, #tpu.memory_space<vmem>>, vector<1x512xf32>
    %235 = vector.broadcast %234 : vector<1x512xf32> to vector<2x512xf32>
    %236 = arith.addf %233, %235 : vector<2x512xf32>
    %237 = vector.extract_strided_slice %236 {offsets = [0, 0], sizes = [2, 128], strides = [1, 1]} : vector<2x512xf32> to vector<2x128xf32>
    %238 = arith.negf %237 : vector<2x128xf32>
    %239 = math.exp %238 : vector<2x128xf32>
    %cst_82 = arith.constant 1.000000e+00 : f32
    %240 = vector.broadcast %cst_82 : f32 to vector<2x128xf32>
    %241 = arith.addf %240, %239 : vector<2x128xf32>
    %242 = arith.divf %240, %241 : vector<2x128xf32>
    %243 = vector.extract_strided_slice %236 {offsets = [0, 128], sizes = [2, 128], strides = [1, 1]} : vector<2x512xf32> to vector<2x128xf32>
    %244 = arith.negf %243 : vector<2x128xf32>
    %245 = math.exp %244 : vector<2x128xf32>
    %cst_83 = arith.constant 1.000000e+00 : f32
    %246 = vector.broadcast %cst_83 : f32 to vector<2x128xf32>
    %247 = arith.addf %246, %245 : vector<2x128xf32>
    %248 = arith.divf %246, %247 : vector<2x128xf32>
    %249 = vector.extract_strided_slice %236 {offsets = [0, 256], sizes = [2, 128], strides = [1, 1]} : vector<2x512xf32> to vector<2x128xf32>
    %250 = math.tanh %249 : vector<2x128xf32>
    %251 = vector.extract_strided_slice %236 {offsets = [0, 384], sizes = [2, 128], strides = [1, 1]} : vector<2x512xf32> to vector<2x128xf32>
    %252 = arith.negf %251 : vector<2x128xf32>
    %253 = math.exp %252 : vector<2x128xf32>
    %cst_84 = arith.constant 1.000000e+00 : f32
    %254 = vector.broadcast %cst_84 : f32 to vector<2x128xf32>
    %255 = arith.addf %254, %253 : vector<2x128xf32>
    %256 = arith.divf %254, %255 : vector<2x128xf32>
    %257 = arith.mulf %248, %193 : vector<2x128xf32>
    %258 = arith.mulf %242, %250 : vector<2x128xf32>
    %259 = arith.addf %257, %258 : vector<2x128xf32>
    %260 = math.tanh %259 : vector<2x128xf32>
    %261 = arith.mulf %256, %260 : vector<2x128xf32>
    %c3_85 = arith.constant 3 : index
    %c0_86 = arith.constant 0 : index
    %c0_87 = arith.constant 0 : index
    %262 = vector.load %arg5[%c3_85, %c0_86, %c0_87] : memref<8x2x128xf32, #tpu.memory_space<vmem>>, vector<1x2x128xf32>
    %263 = vector.shape_cast %262 : vector<1x2x128xf32> to vector<2x128xf32>
    %264 = vector.shape_cast %261 : vector<2x128xf32> to vector<1x2x128xf32>
    tpu.vector_store %arg5[%c3_85, %c0_86, %c0_87], %264 {strides = array<i32>} : memref<8x2x128xf32, #tpu.memory_space<vmem>>, vector<1x2x128xf32>,
    %c4 = arith.constant 4 : index
    %c0_88 = arith.constant 0 : index
    %c0_89 = arith.constant 0 : index
    %265 = vector.load %arg0[%c4, %c0_88, %c0_89] : memref<8x2x512xf32, #tpu.memory_space<vmem>>, vector<1x2x512xf32>
    %266 = vector.shape_cast %265 : vector<1x2x512xf32> to vector<2x512xf32>
    %c0_90 = arith.constant 0 : index
    %c0_91 = arith.constant 0 : index
    %267 = vector.load %arg1[%c0_90, %c0_91] : memref<128x512xf32, #tpu.memory_space<vmem>>, vector<128x512xf32>
    %cst_92 = arith.constant dense<0.000000e+00> : vector<2x512xf32>
    %268 = tpu.matmul %228, %267, %cst_92 {dimension_numbers = #tpu.dot_dimension_numbers<[1], [0], [0], [1], [0, 0, 1, 1], [], []>} : vector<2x128xf32>, vector<128x512xf32>, vector<2x512xf32> -> vector<2x512xf32>
    %269 = arith.addf %266, %268 : vector<2x512xf32>
    %270 = vector.extract_strided_slice %269 {offsets = [0, 0], sizes = [2, 128], strides = [1, 1]} : vector<2x512xf32> to vector<2x128xf32>
    %271 = arith.negf %270 : vector<2x128xf32>
    %272 = math.exp %271 : vector<2x128xf32>
    %cst_93 = arith.constant 1.000000e+00 : f32
    %273 = vector.broadcast %cst_93 : f32 to vector<2x128xf32>
    %274 = arith.addf %273, %272 : vector<2x128xf32>
    %275 = arith.divf %273, %274 : vector<2x128xf32>
    %276 = vector.extract_strided_slice %269 {offsets = [0, 128], sizes = [2, 128], strides = [1, 1]} : vector<2x512xf32> to vector<2x128xf32>
    %277 = arith.negf %276 : vector<2x128xf32>
    %278 = math.exp %277 : vector<2x128xf32>
    %cst_94 = arith.constant 1.000000e+00 : f32
    %279 = vector.broadcast %cst_94 : f32 to vector<2x128xf32>
    %280 = arith.addf %279, %278 : vector<2x128xf32>
    %281 = arith.divf %279, %280 : vector<2x128xf32>
    %282 = vector.extract_strided_slice %269 {offsets = [0, 256], sizes = [2, 128], strides = [1, 1]} : vector<2x512xf32> to vector<2x128xf32>
    %283 = math.tanh %282 : vector<2x128xf32>
    %284 = vector.extract_strided_slice %269 {offsets = [0, 384], sizes = [2, 128], strides = [1, 1]} : vector<2x512xf32> to vector<2x128xf32>
    %285 = arith.negf %284 : vector<2x128xf32>
    %286 = math.exp %285 : vector<2x128xf32>
    %cst_95 = arith.constant 1.000000e+00 : f32
    %287 = vector.broadcast %cst_95 : f32 to vector<2x128xf32>
    %288 = arith.addf %287, %286 : vector<2x128xf32>
    %289 = arith.divf %287, %288 : vector<2x128xf32>
    %290 = arith.mulf %281, %226 : vector<2x128xf32>
    %291 = arith.mulf %275, %283 : vector<2x128xf32>
    %292 = arith.addf %290, %291 : vector<2x128xf32>
    %293 = math.tanh %292 : vector<2x128xf32>
    %294 = arith.mulf %289, %293 : vector<2x128xf32>
    %c0_96 = arith.constant 0 : index
    %c0_97 = arith.constant 0 : index
    %295 = vector.load %arg2[%c0_96, %c0_97] : memref<128x512xf32, #tpu.memory_space<vmem>>, vector<128x512xf32>
    %cst_98 = arith.constant dense<0.000000e+00> : vector<2x512xf32>
    %296 = tpu.matmul %294, %295, %cst_98 {dimension_numbers = #tpu.dot_dimension_numbers<[1], [0], [0], [1], [0, 0, 1, 1], [], []>} : vector<2x128xf32>, vector<128x512xf32>, vector<2x512xf32> -> vector<2x512xf32>
    %c0_99 = arith.constant 0 : index
    %c0_100 = arith.constant 0 : index
    %297 = vector.load %arg3[%c0_99, %c0_100] : memref<128x512xf32, #tpu.memory_space<vmem>>, vector<128x512xf32>
    %cst_101 = arith.constant dense<0.000000e+00> : vector<2x512xf32>
    %298 = tpu.matmul %261, %297, %cst_101 {dimension_numbers = #tpu.dot_dimension_numbers<[1], [0], [0], [1], [0, 0, 1, 1], [], []>} : vector<2x128xf32>, vector<128x512xf32>, vector<2x512xf32> -> vector<2x512xf32>
    %299 = arith.addf %296, %298 : vector<2x512xf32>
    %c0_102 = arith.constant 0 : index
    %c0_103 = arith.constant 0 : index
    %300 = vector.load %arg4[%c0_102, %c0_103] : memref<1x512xf32, #tpu.memory_space<vmem>>, vector<1x512xf32>
    %301 = vector.broadcast %300 : vector<1x512xf32> to vector<2x512xf32>
    %302 = arith.addf %299, %301 : vector<2x512xf32>
    %303 = vector.extract_strided_slice %302 {offsets = [0, 0], sizes = [2, 128], strides = [1, 1]} : vector<2x512xf32> to vector<2x128xf32>
    %304 = arith.negf %303 : vector<2x128xf32>
    %305 = math.exp %304 : vector<2x128xf32>
    %cst_104 = arith.constant 1.000000e+00 : f32
    %306 = vector.broadcast %cst_104 : f32 to vector<2x128xf32>
    %307 = arith.addf %306, %305 : vector<2x128xf32>
    %308 = arith.divf %306, %307 : vector<2x128xf32>
    %309 = vector.extract_strided_slice %302 {offsets = [0, 128], sizes = [2, 128], strides = [1, 1]} : vector<2x512xf32> to vector<2x128xf32>
    %310 = arith.negf %309 : vector<2x128xf32>
    %311 = math.exp %310 : vector<2x128xf32>
    %cst_105 = arith.constant 1.000000e+00 : f32
    %312 = vector.broadcast %cst_105 : f32 to vector<2x128xf32>
    %313 = arith.addf %312, %311 : vector<2x128xf32>
    %314 = arith.divf %312, %313 : vector<2x128xf32>
    %315 = vector.extract_strided_slice %302 {offsets = [0, 256], sizes = [2, 128], strides = [1, 1]} : vector<2x512xf32> to vector<2x128xf32>
    %316 = math.tanh %315 : vector<2x128xf32>
    %317 = vector.extract_strided_slice %302 {offsets = [0, 384], sizes = [2, 128], strides = [1, 1]} : vector<2x512xf32> to vector<2x128xf32>
    %318 = arith.negf %317 : vector<2x128xf32>
    %319 = math.exp %318 : vector<2x128xf32>
    %cst_106 = arith.constant 1.000000e+00 : f32
    %320 = vector.broadcast %cst_106 : f32 to vector<2x128xf32>
    %321 = arith.addf %320, %319 : vector<2x128xf32>
    %322 = arith.divf %320, %321 : vector<2x128xf32>
    %323 = arith.mulf %314, %259 : vector<2x128xf32>
    %324 = arith.mulf %308, %316 : vector<2x128xf32>
    %325 = arith.addf %323, %324 : vector<2x128xf32>
    %326 = math.tanh %325 : vector<2x128xf32>
    %327 = arith.mulf %322, %326 : vector<2x128xf32>
    %c4_107 = arith.constant 4 : index
    %c0_108 = arith.constant 0 : index
    %c0_109 = arith.constant 0 : index
    %328 = vector.load %arg5[%c4_107, %c0_108, %c0_109] : memref<8x2x128xf32, #tpu.memory_space<vmem>>, vector<1x2x128xf32>
    %329 = vector.shape_cast %328 : vector<1x2x128xf32> to vector<2x128xf32>
    %330 = vector.shape_cast %327 : vector<2x128xf32> to vector<1x2x128xf32>
    tpu.vector_store %arg5[%c4_107, %c0_108, %c0_109], %330 {strides = array<i32>} : memref<8x2x128xf32, #tpu.memory_space<vmem>>, vector<1x2x128xf32>,
    %c5 = arith.constant 5 : index
    %c0_110 = arith.constant 0 : index
    %c0_111 = arith.constant 0 : index
    %331 = vector.load %arg0[%c5, %c0_110, %c0_111] : memref<8x2x512xf32, #tpu.memory_space<vmem>>, vector<1x2x512xf32>
    %332 = vector.shape_cast %331 : vector<1x2x512xf32> to vector<2x512xf32>
    %c0_112 = arith.constant 0 : index
    %c0_113 = arith.constant 0 : index
    %333 = vector.load %arg1[%c0_112, %c0_113] : memref<128x512xf32, #tpu.memory_space<vmem>>, vector<128x512xf32>
    %cst_114 = arith.constant dense<0.000000e+00> : vector<2x512xf32>
    %334 = tpu.matmul %294, %333, %cst_114 {dimension_numbers = #tpu.dot_dimension_numbers<[1], [0], [0], [1], [0, 0, 1, 1], [], []>} : vector<2x128xf32>, vector<128x512xf32>, vector<2x512xf32> -> vector<2x512xf32>
    %335 = arith.addf %332, %334 : vector<2x512xf32>
    %336 = vector.extract_strided_slice %335 {offsets = [0, 0], sizes = [2, 128], strides = [1, 1]} : vector<2x512xf32> to vector<2x128xf32>
    %337 = arith.negf %336 : vector<2x128xf32>
    %338 = math.exp %337 : vector<2x128xf32>
    %cst_115 = arith.constant 1.000000e+00 : f32
    %339 = vector.broadcast %cst_115 : f32 to vector<2x128xf32>
    %340 = arith.addf %339, %338 : vector<2x128xf32>
    %341 = arith.divf %339, %340 : vector<2x128xf32>
    %342 = vector.extract_strided_slice %335 {offsets = [0, 128], sizes = [2, 128], strides = [1, 1]} : vector<2x512xf32> to vector<2x128xf32>
    %343 = arith.negf %342 : vector<2x128xf32>
    %344 = math.exp %343 : vector<2x128xf32>
    %cst_116 = arith.constant 1.000000e+00 : f32
    %345 = vector.broadcast %cst_116 : f32 to vector<2x128xf32>
    %346 = arith.addf %345, %344 : vector<2x128xf32>
    %347 = arith.divf %345, %346 : vector<2x128xf32>
    %348 = vector.extract_strided_slice %335 {offsets = [0, 256], sizes = [2, 128], strides = [1, 1]} : vector<2x512xf32> to vector<2x128xf32>
    %349 = math.tanh %348 : vector<2x128xf32>
    %350 = vector.extract_strided_slice %335 {offsets = [0, 384], sizes = [2, 128], strides = [1, 1]} : vector<2x512xf32> to vector<2x128xf32>
    %351 = arith.negf %350 : vector<2x128xf32>
    %352 = math.exp %351 : vector<2x128xf32>
    %cst_117 = arith.constant 1.000000e+00 : f32
    %353 = vector.broadcast %cst_117 : f32 to vector<2x128xf32>
    %354 = arith.addf %353, %352 : vector<2x128xf32>
    %355 = arith.divf %353, %354 : vector<2x128xf32>
    %356 = arith.mulf %347, %292 : vector<2x128xf32>
    %357 = arith.mulf %341, %349 : vector<2x128xf32>
    %358 = arith.addf %356, %357 : vector<2x128xf32>
    %359 = math.tanh %358 : vector<2x128xf32>
    %360 = arith.mulf %355, %359 : vector<2x128xf32>
    %c0_118 = arith.constant 0 : index
    %c0_119 = arith.constant 0 : index
    %361 = vector.load %arg2[%c0_118, %c0_119] : memref<128x512xf32, #tpu.memory_space<vmem>>, vector<128x512xf32>
    %cst_120 = arith.constant dense<0.000000e+00> : vector<2x512xf32>
    %362 = tpu.matmul %360, %361, %cst_120 {dimension_numbers = #tpu.dot_dimension_numbers<[1], [0], [0], [1], [0, 0, 1, 1], [], []>} : vector<2x128xf32>, vector<128x512xf32>, vector<2x512xf32> -> vector<2x512xf32>
    %c0_121 = arith.constant 0 : index
    %c0_122 = arith.constant 0 : index
    %363 = vector.load %arg3[%c0_121, %c0_122] : memref<128x512xf32, #tpu.memory_space<vmem>>, vector<128x512xf32>
    %cst_123 = arith.constant dense<0.000000e+00> : vector<2x512xf32>
    %364 = tpu.matmul %327, %363, %cst_123 {dimension_numbers = #tpu.dot_dimension_numbers<[1], [0], [0], [1], [0, 0, 1, 1], [], []>} : vector<2x128xf32>, vector<128x512xf32>, vector<2x512xf32> -> vector<2x512xf32>
    %365 = arith.addf %362, %364 : vector<2x512xf32>
    %c0_124 = arith.constant 0 : index
    %c0_125 = arith.constant 0 : index
    %366 = vector.load %arg4[%c0_124, %c0_125] : memref<1x512xf32, #tpu.memory_space<vmem>>, vector<1x512xf32>
    %367 = vector.broadcast %366 : vector<1x512xf32> to vector<2x512xf32>
    %368 = arith.addf %365, %367 : vector<2x512xf32>
    %369 = vector.extract_strided_slice %368 {offsets = [0, 0], sizes = [2, 128], strides = [1, 1]} : vector<2x512xf32> to vector<2x128xf32>
    %370 = arith.negf %369 : vector<2x128xf32>
    %371 = math.exp %370 : vector<2x128xf32>
    %cst_126 = arith.constant 1.000000e+00 : f32
    %372 = vector.broadcast %cst_126 : f32 to vector<2x128xf32>
    %373 = arith.addf %372, %371 : vector<2x128xf32>
    %374 = arith.divf %372, %373 : vector<2x128xf32>
    %375 = vector.extract_strided_slice %368 {offsets = [0, 128], sizes = [2, 128], strides = [1, 1]} : vector<2x512xf32> to vector<2x128xf32>
    %376 = arith.negf %375 : vector<2x128xf32>
    %377 = math.exp %376 : vector<2x128xf32>
    %cst_127 = arith.constant 1.000000e+00 : f32
    %378 = vector.broadcast %cst_127 : f32 to vector<2x128xf32>
    %379 = arith.addf %378, %377 : vector<2x128xf32>
    %380 = arith.divf %378, %379 : vector<2x128xf32>
    %381 = vector.extract_strided_slice %368 {offsets = [0, 256], sizes = [2, 128], strides = [1, 1]} : vector<2x512xf32> to vector<2x128xf32>
    %382 = math.tanh %381 : vector<2x128xf32>
    %383 = vector.extract_strided_slice %368 {offsets = [0, 384], sizes = [2, 128], strides = [1, 1]} : vector<2x512xf32> to vector<2x128xf32>
    %384 = arith.negf %383 : vector<2x128xf32>
    %385 = math.exp %384 : vector<2x128xf32>
    %cst_128 = arith.constant 1.000000e+00 : f32
    %386 = vector.broadcast %cst_128 : f32 to vector<2x128xf32>
    %387 = arith.addf %386, %385 : vector<2x128xf32>
    %388 = arith.divf %386, %387 : vector<2x128xf32>
    %389 = arith.mulf %380, %325 : vector<2x128xf32>
    %390 = arith.mulf %374, %382 : vector<2x128xf32>
    %391 = arith.addf %389, %390 : vector<2x128xf32>
    %392 = math.tanh %391 : vector<2x128xf32>
    %393 = arith.mulf %388, %392 : vector<2x128xf32>
    %c5_129 = arith.constant 5 : index
    %c0_130 = arith.constant 0 : index
    %c0_131 = arith.constant 0 : index
    %394 = vector.load %arg5[%c5_129, %c0_130, %c0_131] : memref<8x2x128xf32, #tpu.memory_space<vmem>>, vector<1x2x128xf32>
    %395 = vector.shape_cast %394 : vector<1x2x128xf32> to vector<2x128xf32>
    %396 = vector.shape_cast %393 : vector<2x128xf32> to vector<1x2x128xf32>
    tpu.vector_store %arg5[%c5_129, %c0_130, %c0_131], %396 {strides = array<i32>} : memref<8x2x128xf32, #tpu.memory_space<vmem>>, vector<1x2x128xf32>,
    %c6 = arith.constant 6 : index
    %c0_132 = arith.constant 0 : index
    %c0_133 = arith.constant 0 : index
    %397 = vector.load %arg0[%c6, %c0_132, %c0_133] : memref<8x2x512xf32, #tpu.memory_space<vmem>>, vector<1x2x512xf32>
    %398 = vector.shape_cast %397 : vector<1x2x512xf32> to vector<2x512xf32>
    %c0_134 = arith.constant 0 : index
    %c0_135 = arith.constant 0 : index
    %399 = vector.load %arg1[%c0_134, %c0_135] : memref<128x512xf32, #tpu.memory_space<vmem>>, vector<128x512xf32>
    %cst_136 = arith.constant dense<0.000000e+00> : vector<2x512xf32>
    %400 = tpu.matmul %360, %399, %cst_136 {dimension_numbers = #tpu.dot_dimension_numbers<[1], [0], [0], [1], [0, 0, 1, 1], [], []>} : vector<2x128xf32>, vector<128x512xf32>, vector<2x512xf32> -> vector<2x512xf32>
    %401 = arith.addf %398, %400 : vector<2x512xf32>
    %402 = vector.extract_strided_slice %401 {offsets = [0, 0], sizes = [2, 128], strides = [1, 1]} : vector<2x512xf32> to vector<2x128xf32>
    %403 = arith.negf %402 : vector<2x128xf32>
    %404 = math.exp %403 : vector<2x128xf32>
    %cst_137 = arith.constant 1.000000e+00 : f32
    %405 = vector.broadcast %cst_137 : f32 to vector<2x128xf32>
    %406 = arith.addf %405, %404 : vector<2x128xf32>
    %407 = arith.divf %405, %406 : vector<2x128xf32>
    %408 = vector.extract_strided_slice %401 {offsets = [0, 128], sizes = [2, 128], strides = [1, 1]} : vector<2x512xf32> to vector<2x128xf32>
    %409 = arith.negf %408 : vector<2x128xf32>
    %410 = math.exp %409 : vector<2x128xf32>
    %cst_138 = arith.constant 1.000000e+00 : f32
    %411 = vector.broadcast %cst_138 : f32 to vector<2x128xf32>
    %412 = arith.addf %411, %410 : vector<2x128xf32>
    %413 = arith.divf %411, %412 : vector<2x128xf32>
    %414 = vector.extract_strided_slice %401 {offsets = [0, 256], sizes = [2, 128], strides = [1, 1]} : vector<2x512xf32> to vector<2x128xf32>
    %415 = math.tanh %414 : vector<2x128xf32>
    %416 = vector.extract_strided_slice %401 {offsets = [0, 384], sizes = [2, 128], strides = [1, 1]} : vector<2x512xf32> to vector<2x128xf32>
    %417 = arith.negf %416 : vector<2x128xf32>
    %418 = math.exp %417 : vector<2x128xf32>
    %cst_139 = arith.constant 1.000000e+00 : f32
    %419 = vector.broadcast %cst_139 : f32 to vector<2x128xf32>
    %420 = arith.addf %419, %418 : vector<2x128xf32>
    %421 = arith.divf %419, %420 : vector<2x128xf32>
    %422 = arith.mulf %413, %358 : vector<2x128xf32>
    %423 = arith.mulf %407, %415 : vector<2x128xf32>
    %424 = arith.addf %422, %423 : vector<2x128xf32>
    %425 = math.tanh %424 : vector<2x128xf32>
    %426 = arith.mulf %421, %425 : vector<2x128xf32>
    %c0_140 = arith.constant 0 : index
    %c0_141 = arith.constant 0 : index
    %427 = vector.load %arg2[%c0_140, %c0_141] : memref<128x512xf32, #tpu.memory_space<vmem>>, vector<128x512xf32>
    %cst_142 = arith.constant dense<0.000000e+00> : vector<2x512xf32>
    %428 = tpu.matmul %426, %427, %cst_142 {dimension_numbers = #tpu.dot_dimension_numbers<[1], [0], [0], [1], [0, 0, 1, 1], [], []>} : vector<2x128xf32>, vector<128x512xf32>, vector<2x512xf32> -> vector<2x512xf32>
    %c0_143 = arith.constant 0 : index
    %c0_144 = arith.constant 0 : index
    %429 = vector.load %arg3[%c0_143, %c0_144] : memref<128x512xf32, #tpu.memory_space<vmem>>, vector<128x512xf32>
    %cst_145 = arith.constant dense<0.000000e+00> : vector<2x512xf32>
    %430 = tpu.matmul %393, %429, %cst_145 {dimension_numbers = #tpu.dot_dimension_numbers<[1], [0], [0], [1], [0, 0, 1, 1], [], []>} : vector<2x128xf32>, vector<128x512xf32>, vector<2x512xf32> -> vector<2x512xf32>
    %431 = arith.addf %428, %430 : vector<2x512xf32>
    %c0_146 = arith.constant 0 : index
    %c0_147 = arith.constant 0 : index
    %432 = vector.load %arg4[%c0_146, %c0_147] : memref<1x512xf32, #tpu.memory_space<vmem>>, vector<1x512xf32>
    %433 = vector.broadcast %432 : vector<1x512xf32> to vector<2x512xf32>
    %434 = arith.addf %431, %433 : vector<2x512xf32>
    %435 = vector.extract_strided_slice %434 {offsets = [0, 0], sizes = [2, 128], strides = [1, 1]} : vector<2x512xf32> to vector<2x128xf32>
    %436 = arith.negf %435 : vector<2x128xf32>
    %437 = math.exp %436 : vector<2x128xf32>
    %cst_148 = arith.constant 1.000000e+00 : f32
    %438 = vector.broadcast %cst_148 : f32 to vector<2x128xf32>
    %439 = arith.addf %438, %437 : vector<2x128xf32>
    %440 = arith.divf %438, %439 : vector<2x128xf32>
    %441 = vector.extract_strided_slice %434 {offsets = [0, 128], sizes = [2, 128], strides = [1, 1]} : vector<2x512xf32> to vector<2x128xf32>
    %442 = arith.negf %441 : vector<2x128xf32>
    %443 = math.exp %442 : vector<2x128xf32>
    %cst_149 = arith.constant 1.000000e+00 : f32
    %444 = vector.broadcast %cst_149 : f32 to vector<2x128xf32>
    %445 = arith.addf %444, %443 : vector<2x128xf32>
    %446 = arith.divf %444, %445 : vector<2x128xf32>
    %447 = vector.extract_strided_slice %434 {offsets = [0, 256], sizes = [2, 128], strides = [1, 1]} : vector<2x512xf32> to vector<2x128xf32>
    %448 = math.tanh %447 : vector<2x128xf32>
    %449 = vector.extract_strided_slice %434 {offsets = [0, 384], sizes = [2, 128], strides = [1, 1]} : vector<2x512xf32> to vector<2x128xf32>
    %450 = arith.negf %449 : vector<2x128xf32>
    %451 = math.exp %450 : vector<2x128xf32>
    %cst_150 = arith.constant 1.000000e+00 : f32
    %452 = vector.broadcast %cst_150 : f32 to vector<2x128xf32>
    %453 = arith.addf %452, %451 : vector<2x128xf32>
    %454 = arith.divf %452, %453 : vector<2x128xf32>
    %455 = arith.mulf %446, %391 : vector<2x128xf32>
    %456 = arith.mulf %440, %448 : vector<2x128xf32>
    %457 = arith.addf %455, %456 : vector<2x128xf32>
    %458 = math.tanh %457 : vector<2x128xf32>
    %459 = arith.mulf %454, %458 : vector<2x128xf32>
    %c6_151 = arith.constant 6 : index
    %c0_152 = arith.constant 0 : index
    %c0_153 = arith.constant 0 : index
    %460 = vector.load %arg5[%c6_151, %c0_152, %c0_153] : memref<8x2x128xf32, #tpu.memory_space<vmem>>, vector<1x2x128xf32>
    %461 = vector.shape_cast %460 : vector<1x2x128xf32> to vector<2x128xf32>
    %462 = vector.shape_cast %459 : vector<2x128xf32> to vector<1x2x128xf32>
    tpu.vector_store %arg5[%c6_151, %c0_152, %c0_153], %462 {strides = array<i32>} : memref<8x2x128xf32, #tpu.memory_space<vmem>>, vector<1x2x128xf32>,
    %c7 = arith.constant 7 : index
    %c0_154 = arith.constant 0 : index
    %c0_155 = arith.constant 0 : index
    %463 = vector.load %arg0[%c7, %c0_154, %c0_155] : memref<8x2x512xf32, #tpu.memory_space<vmem>>, vector<1x2x512xf32>
    %464 = vector.shape_cast %463 : vector<1x2x512xf32> to vector<2x512xf32>
    %c0_156 = arith.constant 0 : index
    %c0_157 = arith.constant 0 : index
    %465 = vector.load %arg1[%c0_156, %c0_157] : memref<128x512xf32, #tpu.memory_space<vmem>>, vector<128x512xf32>
    %cst_158 = arith.constant dense<0.000000e+00> : vector<2x512xf32>
    %466 = tpu.matmul %426, %465, %cst_158 {dimension_numbers = #tpu.dot_dimension_numbers<[1], [0], [0], [1], [0, 0, 1, 1], [], []>} : vector<2x128xf32>, vector<128x512xf32>, vector<2x512xf32> -> vector<2x512xf32>
    %467 = arith.addf %464, %466 : vector<2x512xf32>
    %468 = vector.extract_strided_slice %467 {offsets = [0, 0], sizes = [2, 128], strides = [1, 1]} : vector<2x512xf32> to vector<2x128xf32>
    %469 = arith.negf %468 : vector<2x128xf32>
    %470 = math.exp %469 : vector<2x128xf32>
    %cst_159 = arith.constant 1.000000e+00 : f32
    %471 = vector.broadcast %cst_159 : f32 to vector<2x128xf32>
    %472 = arith.addf %471, %470 : vector<2x128xf32>
    %473 = arith.divf %471, %472 : vector<2x128xf32>
    %474 = vector.extract_strided_slice %467 {offsets = [0, 128], sizes = [2, 128], strides = [1, 1]} : vector<2x512xf32> to vector<2x128xf32>
    %475 = arith.negf %474 : vector<2x128xf32>
    %476 = math.exp %475 : vector<2x128xf32>
    %cst_160 = arith.constant 1.000000e+00 : f32
    %477 = vector.broadcast %cst_160 : f32 to vector<2x128xf32>
    %478 = arith.addf %477, %476 : vector<2x128xf32>
    %479 = arith.divf %477, %478 : vector<2x128xf32>
    %480 = vector.extract_strided_slice %467 {offsets = [0, 256], sizes = [2, 128], strides = [1, 1]} : vector<2x512xf32> to vector<2x128xf32>
    %481 = math.tanh %480 : vector<2x128xf32>
    %482 = vector.extract_strided_slice %467 {offsets = [0, 384], sizes = [2, 128], strides = [1, 1]} : vector<2x512xf32> to vector<2x128xf32>
    %483 = arith.negf %482 : vector<2x128xf32>
    %484 = math.exp %483 : vector<2x128xf32>
    %cst_161 = arith.constant 1.000000e+00 : f32
    %485 = vector.broadcast %cst_161 : f32 to vector<2x128xf32>
    %486 = arith.addf %485, %484 : vector<2x128xf32>
    %487 = arith.divf %485, %486 : vector<2x128xf32>
    %488 = arith.mulf %479, %424 : vector<2x128xf32>
    %489 = arith.mulf %473, %481 : vector<2x128xf32>
    %490 = arith.addf %488, %489 : vector<2x128xf32>
    %491 = math.tanh %490 : vector<2x128xf32>
    %492 = arith.mulf %487, %491 : vector<2x128xf32>
    %c0_162 = arith.constant 0 : index
    %c0_163 = arith.constant 0 : index
    %493 = vector.load %arg2[%c0_162, %c0_163] : memref<128x512xf32, #tpu.memory_space<vmem>>, vector<128x512xf32>
    %cst_164 = arith.constant dense<0.000000e+00> : vector<2x512xf32>
    %494 = tpu.matmul %492, %493, %cst_164 {dimension_numbers = #tpu.dot_dimension_numbers<[1], [0], [0], [1], [0, 0, 1, 1], [], []>} : vector<2x128xf32>, vector<128x512xf32>, vector<2x512xf32> -> vector<2x512xf32>
    %c0_165 = arith.constant 0 : index
    %c0_166 = arith.constant 0 : index
    %495 = vector.load %arg3[%c0_165, %c0_166] : memref<128x512xf32, #tpu.memory_space<vmem>>, vector<128x512xf32>
    %cst_167 = arith.constant dense<0.000000e+00> : vector<2x512xf32>
    %496 = tpu.matmul %459, %495, %cst_167 {dimension_numbers = #tpu.dot_dimension_numbers<[1], [0], [0], [1], [0, 0, 1, 1], [], []>} : vector<2x128xf32>, vector<128x512xf32>, vector<2x512xf32> -> vector<2x512xf32>
    %497 = arith.addf %494, %496 : vector<2x512xf32>
    %c0_168 = arith.constant 0 : index
    %c0_169 = arith.constant 0 : index
    %498 = vector.load %arg4[%c0_168, %c0_169] : memref<1x512xf32, #tpu.memory_space<vmem>>, vector<1x512xf32>
    %499 = vector.broadcast %498 : vector<1x512xf32> to vector<2x512xf32>
    %500 = arith.addf %497, %499 : vector<2x512xf32>
    %501 = vector.extract_strided_slice %500 {offsets = [0, 0], sizes = [2, 128], strides = [1, 1]} : vector<2x512xf32> to vector<2x128xf32>
    %502 = arith.negf %501 : vector<2x128xf32>
    %503 = math.exp %502 : vector<2x128xf32>
    %cst_170 = arith.constant 1.000000e+00 : f32
    %504 = vector.broadcast %cst_170 : f32 to vector<2x128xf32>
    %505 = arith.addf %504, %503 : vector<2x128xf32>
    %506 = arith.divf %504, %505 : vector<2x128xf32>
    %507 = vector.extract_strided_slice %500 {offsets = [0, 128], sizes = [2, 128], strides = [1, 1]} : vector<2x512xf32> to vector<2x128xf32>
    %508 = arith.negf %507 : vector<2x128xf32>
    %509 = math.exp %508 : vector<2x128xf32>
    %cst_171 = arith.constant 1.000000e+00 : f32
    %510 = vector.broadcast %cst_171 : f32 to vector<2x128xf32>
    %511 = arith.addf %510, %509 : vector<2x128xf32>
    %512 = arith.divf %510, %511 : vector<2x128xf32>
    %513 = vector.extract_strided_slice %500 {offsets = [0, 256], sizes = [2, 128], strides = [1, 1]} : vector<2x512xf32> to vector<2x128xf32>
    %514 = math.tanh %513 : vector<2x128xf32>
    %515 = vector.extract_strided_slice %500 {offsets = [0, 384], sizes = [2, 128], strides = [1, 1]} : vector<2x512xf32> to vector<2x128xf32>
    %516 = arith.negf %515 : vector<2x128xf32>
    %517 = math.exp %516 : vector<2x128xf32>
    %cst_172 = arith.constant 1.000000e+00 : f32
    %518 = vector.broadcast %cst_172 : f32 to vector<2x128xf32>
    %519 = arith.addf %518, %517 : vector<2x128xf32>
    %520 = arith.divf %518, %519 : vector<2x128xf32>
    %521 = arith.mulf %512, %457 : vector<2x128xf32>
    %522 = arith.mulf %506, %514 : vector<2x128xf32>
    %523 = arith.addf %521, %522 : vector<2x128xf32>
    %524 = math.tanh %523 : vector<2x128xf32>
    %525 = arith.mulf %520, %524 : vector<2x128xf32>
    %c7_173 = arith.constant 7 : index
    %c0_174 = arith.constant 0 : index
    %c0_175 = arith.constant 0 : index
    %526 = vector.load %arg5[%c7_173, %c0_174, %c0_175] : memref<8x2x128xf32, #tpu.memory_space<vmem>>, vector<1x2x128xf32>
    %527 = vector.shape_cast %526 : vector<1x2x128xf32> to vector<2x128xf32>
    %528 = vector.shape_cast %525 : vector<2x128xf32> to vector<1x2x128xf32>
    tpu.vector_store %arg5[%c7_173, %c0_174, %c0_175], %528 {strides = array<i32>} : memref<8x2x128xf32, #tpu.memory_space<vmem>>, vector<1x2x128xf32>,
    %c0_176 = arith.constant 0 : index
    %c0_177 = arith.constant 0 : index
    %c0_178 = arith.constant 0 : index
    %529 = vector.load %arg6[%c0_176, %c0_177, %c0_178] : memref<2x2x128xf32, #tpu.memory_space<vmem>>, vector<1x2x128xf32>
    %530 = vector.shape_cast %529 : vector<1x2x128xf32> to vector<2x128xf32>
    %531 = vector.shape_cast %492 : vector<2x128xf32> to vector<1x2x128xf32>
    tpu.vector_store %arg6[%c0_176, %c0_177, %c0_178], %531 {strides = array<i32>} : memref<2x2x128xf32, #tpu.memory_space<vmem>>, vector<1x2x128xf32>,
    %c0_179 = arith.constant 0 : index
    %c0_180 = arith.constant 0 : index
    %c0_181 = arith.constant 0 : index
    %532 = vector.load %arg7[%c0_179, %c0_180, %c0_181] : memref<2x2x128xf32, #tpu.memory_space<vmem>>, vector<1x2x128xf32>
    %533 = vector.shape_cast %532 : vector<1x2x128xf32> to vector<2x128xf32>
    %534 = vector.shape_cast %490 : vector<2x128xf32> to vector<1x2x128xf32>
    tpu.vector_store %arg7[%c0_179, %c0_180, %c0_181], %534 {strides = array<i32>} : memref<2x2x128xf32, #tpu.memory_space<vmem>>, vector<1x2x128xf32>,
    %c1_182 = arith.constant 1 : index
    %c0_183 = arith.constant 0 : index
    %c0_184 = arith.constant 0 : index
    %535 = vector.load %arg6[%c1_182, %c0_183, %c0_184] : memref<2x2x128xf32, #tpu.memory_space<vmem>>, vector<1x2x128xf32>
    %536 = vector.shape_cast %535 : vector<1x2x128xf32> to vector<2x128xf32>
    %537 = vector.shape_cast %525 : vector<2x128xf32> to vector<1x2x128xf32>
    tpu.vector_store %arg6[%c1_182, %c0_183, %c0_184], %537 {strides = array<i32>} : memref<2x2x128xf32, #tpu.memory_space<vmem>>, vector<1x2x128xf32>,
    %c1_185 = arith.constant 1 : index
    %c0_186 = arith.constant 0 : index
    %c0_187 = arith.constant 0 : index
    %538 = vector.load %arg7[%c1_185, %c0_186, %c0_187] : memref<2x2x128xf32, #tpu.memory_space<vmem>>, vector<1x2x128xf32>
    %539 = vector.shape_cast %538 : vector<1x2x128xf32> to vector<2x128xf32>
    %540 = vector.shape_cast %523 : vector<2x128xf32> to vector<1x2x128xf32>
    tpu.vector_store %arg7[%c1_185, %c0_186, %c0_187], %540 {strides = array<i32>} : memref<2x2x128xf32, #tpu.memory_space<vmem>>, vector<1x2x128xf32>,
    return
  }
}

module attributes {stable_mosaic.version = 11 : i64} {
  func.func @_fc_sigmoid_kernel(%arg0: memref<2x100xf32, #tpu.memory_space<vmem>>, %arg1: memref<100x128xf32, #tpu.memory_space<vmem>>, %arg2: memref<1x128xf32, #tpu.memory_space<vmem>>, %arg3: memref<2x128xf32, #tpu.memory_space<vmem>>) attributes {dimension_semantics = [], scalar_prefetch = 0 : i64, scratch_operands = 0 : i64, tpu.core_type = #tpu.core_type<tc>} {
    %c0 = arith.constant 0 : index
    %c0_0 = arith.constant 0 : index
    %0 = vector.load %arg0[%c0, %c0_0] : memref<2x100xf32, #tpu.memory_space<vmem>>, vector<2x100xf32>
    %c0_1 = arith.constant 0 : index
    %c0_2 = arith.constant 0 : index
    %1 = vector.load %arg1[%c0_1, %c0_2] : memref<100x128xf32, #tpu.memory_space<vmem>>, vector<100x128xf32>
    %cst = arith.constant dense<0.000000e+00> : vector<2x128xf32>
    %2 = tpu.matmul %0, %1, %cst {dimension_numbers = #tpu.dot_dimension_numbers<[1], [0], [0], [1], [0, 0, 1, 1], [], []>} : vector<2x100xf32>, vector<100x128xf32>, vector<2x128xf32> -> vector<2x128xf32>
    %c0_3 = arith.constant 0 : index
    %c0_4 = arith.constant 0 : index
    %3 = vector.load %arg2[%c0_3, %c0_4] : memref<1x128xf32, #tpu.memory_space<vmem>>, vector<1x128xf32>
    %4 = vector.broadcast %3 : vector<1x128xf32> to vector<2x128xf32>
    %5 = arith.addf %2, %4 : vector<2x128xf32>
    %6 = arith.negf %5 : vector<2x128xf32>
    %7 = math.exp %6 : vector<2x128xf32>
    %cst_5 = arith.constant 1.000000e+00 : f32
    %8 = vector.broadcast %cst_5 : f32 to vector<2x128xf32>
    %9 = arith.addf %8, %7 : vector<2x128xf32>
    %10 = arith.divf %8, %9 : vector<2x128xf32>
    %c0_6 = arith.constant 0 : index
    %c0_7 = arith.constant 0 : index
    %11 = vector.load %arg3[%c0_6, %c0_7] : memref<2x128xf32, #tpu.memory_space<vmem>>, vector<2x128xf32>
    tpu.vector_store %arg3[%c0_6, %c0_7], %10 {strides = array<i32>} : memref<2x128xf32, #tpu.memory_space<vmem>>, vector<2x128xf32>,
    return
  }
}

</mosaic_0001>

<llo_original>
// kernel: ast2class2_forward.5
$region0: #{ast2class2_forward.5}
  #allocation0 [shape = 'u32[]', space=smem, size = 0x4, offset = 0x4, fixed_abs, tag = 'smem constant byte address 0x4 - core index']
  #allocation1 [shape = 'u32[72,128]{1,0:T(1,128)}', space=vmem, size = 0x9000, scoped, tag = 'internal scratch']
  %s0 = inlined_call_operand.vmem [shape: f32[2,100], index: 0, kind: input, shape index: {}]
  %s1 = inlined_call_operand.vmem [shape: f32[100,128], index: 1, kind: input, shape index: {}]
  %s2 = inlined_call_operand.vmem [shape: f32[1,128], index: 2, kind: input, shape index: {}]
  %s3 = inlined_call_operand.vmem [shape: f32[2,128], index: 3, kind: output, shape index: {}]
  %s4 = sld [smem:[#allocation0]]
  $region22: #{ast2class2_forward.5} parent=0
    _
  %s6 = ssub.s32 1, %s4
  %s7 = scalar_select 0, %s6, %s4
  // Predicated region
  $region2: #{ast2class2_forward.5} parent=0 // pred_check
    _
  $region3: #{ast2class2_forward.5} parent=0 // pred_check_branch
    %9 = sbr.rel (0) target = $region5
  $region4: #{ast2class2_forward.5} parent=0 // pred_region
    _
  $region5: #{ast2class2_forward.5} parent=0 // pred_fallthru
    _
  // Predicated region
  $region6: #{ast2class2_forward.5} parent=0 // pred_check
    _
  $region7: #{ast2class2_forward.5} parent=0 // pred_check_branch
    %11 = sbr.rel (0) target = $region9
  $region8: #{ast2class2_forward.5} parent=0 // pred_region
    _
  $region9: #{ast2class2_forward.5} parent=0 // pred_fallthru
    _
  // Predicated region
  $region10: #{ast2class2_forward.5} parent=0 // pred_check
    _
  $region11: #{ast2class2_forward.5} parent=0 // pred_check_branch
    %13 = sbr.rel (0) target = $region13
  $region12: #{ast2class2_forward.5} parent=0 // pred_region
    _
  $region13: #{ast2class2_forward.5} parent=0 // pred_fallthru
    _
  %v14 = vld [vmem:[%s0] sm:$0x3]
  %v15 = vld [vmem:[%s1] sm:$0xff]
  %v16 = vld [vmem:[%s1 + $0x8] sm:$0xff]
  %v17 = vld [vmem:[%s1 + $0x10] sm:$0xff]
  %v18 = vld [vmem:[%s1 + $0x18] sm:$0xff]
  %v19 = vld [vmem:[%s1 + $0x20] sm:$0xff]
  %v20 = vld [vmem:[%s1 + $0x28] sm:$0xff]
  %v21 = vld [vmem:[%s1 + $0x30] sm:$0xff]
  %v22 = vld [vmem:[%s1 + $0x38] sm:$0xff]
  %v23 = vld [vmem:[%s1 + $0x40] sm:$0xff]
  %v24 = vld [vmem:[%s1 + $0x48] sm:$0xff]
  %v25 = vld [vmem:[%s1 + $0x50] sm:$0xff]
  %v26 = vld [vmem:[%s1 + $0x58] sm:$0xff]
  %v27 = vld [vmem:[%s1 + $0x60] sm:$0xf]
  %v28 = vld [vmem:[%s2] sm:$0x1]
  %v30 = vperm.slane %v28, 0
  %vm32 = vcmask 818176
  %v34 = vsel %vm32, %v14, 0
  %vm36 = vcmask 1043456
  %v38 = vsel %vm36, %v27, 0
  %40 = vmatpush.msra.mxu0 0.0
  %41 = vmatpush.msra.mxu0 0.0
  %42 = vmatpush.msra.mxu0 0.0
  %43 = vmatpush.msra.mxu0 %v38
  %44 = vmatpush.msra.mxu0 %v26
  %45 = vmatpush.msra.mxu0 %v25
  %46 = vmatpush.msra.mxu0 %v24
  %47 = vmatpush.msra.mxu0 %v23
  %48 = vmatpush.msra.mxu0 %v22
  %49 = vmatpush.msra.mxu0 %v21
  %50 = vmatpush.msra.mxu0 %v20
  %51 = vmatpush.msra.mxu0 %v19
  %52 = vmatpush.msra.mxu0 %v18
  %53 = vmatpush.msra.mxu0 %v17
  %54 = vmatpush.msra.mxu0 %v16
  %55 = vmatpush.msra.mxu0 %v15
  %56 = vmatmul.f32.gmra.mxu0 %v34
  %v57 = vpop.f32.mrf.mxu0
  %v58 = vadd.f32 %v30, %v57
  %59 = vdwg.mxu0
  %v60 = vxor.u32 %v58, 2147483648
  %v61 = vmul.f32 %v60, 1.442695
  %v62 = vpow.pop %v61
  %v63 = vadd.f32 %v62, 1.0
  %v64 = vrcp.pop %v63
  %v65 = vmul.f32 %v63, %v64
  %v66 = vsub.f32 1.0, %v65
  %v67 = vmul.f32 %v64, %v66
  %v68 = vadd.f32 %v64, %v67
  %vm69 = vweird.f32 %v63
  %vm70 = vweird.f32 %v64
  %vm71 = vmor %vm69, %vm70
  %v72 = vsel %vm71, %v64, %v68
  %v73 = vand.u32 2147483647, %v63
  %vm74 = vcmp.eq.f32.partialorder %v73, 8.507059e+37
  %v75 = vand.u32 %v63, 2147483648
  %v76 = vor.u32 1.1754944e-38, %v75
  %v77 = vsel %vm74, %v76, %v72
  %v78 = vmul.f32 1.0, %v77
  %79 = vst [vmem:[%s3] sm:$0x3] %v78
  // Predicated region
  $region14: #{ast2class2_forward.5} parent=0 // pred_check
    _
  $region15: #{ast2class2_forward.5} parent=0 // pred_check_branch
    %81 = sbr.rel (0) target = $region17
  $region16: #{ast2class2_forward.5} parent=0 // pred_region
    _
  $region17: #{ast2class2_forward.5} parent=0 // pred_fallthru
    _
  // Predicated region
  $region18: #{ast2class2_forward.5} parent=0 // pred_check
    _
  $region19: #{ast2class2_forward.5} parent=0 // pred_check_branch
    %83 = sbr.rel (0) target = $region21
  $region20: #{ast2class2_forward.5} parent=0 // pred_region
    _
  $region21: #{ast2class2_forward.5} parent=0 // pred_fallthru
    _

// kernel: ast2class2_forward.3
$region0: #{ast2class2_forward.3}
  #allocation0 [shape = 'u32[]', space=smem, size = 0x4, offset = 0x4, fixed_abs, tag = 'smem constant byte address 0x4 - core index']
  #allocation1 [shape = 'u32[72,128]{1,0:T(1,128)}', space=vmem, size = 0x9000, scoped, tag = 'internal scratch']
  %s0 = inlined_call_operand.vmem [shape: f32[16,1100], index: 0, kind: input, shape index: {}]
  %s1 = inlined_call_operand.vmem [shape: f32[1100,512], index: 1, kind: input, shape index: {}]
  %s2 = inlined_call_operand.vmem [shape: f32[1,512], index: 2, kind: input, shape index: {}]
  %s3 = inlined_call_operand.vmem [shape: f32[16,512], index: 3, kind: output, shape index: {}]
  %s4 = sld [smem:[#allocation0]]
  $region45: #{ast2class2_forward.3} parent=0
    _
  %s6 = ssub.s32 1, %s4
  %s7 = scalar_select 0, %s6, %s4
  loop: start=0, step=1, limit=4
  $region2: #{ast2class2_forward.3} parent=0 // loop_pre_header
    _
  $region3: #{ast2class2_forward.3} parent=0 // loop_header
    %s9 = sphi 0, %s13
    %p10 = scmp.ge.s32.totalorder %s9, 4
    %s19 = sphi 0, %s21
    %s22 = sphi 0, %s19
    %s23 = sphi 0, %s22
    %s39 = sphi 0, %s23
    %s43 = sphi 0, %s43
    %s45 = sphi 0, %s43
    %s46 = sphi 0, %s45
    %s60 = sphi 0, %s46
    %s64 = sphi 0, %s64
    %s66 = sphi 0, %s64
    %s67 = sphi 0, %s66
    %s81 = sphi 0, %s67
    %s87 = sphi 0, %s89
    %s90 = sphi 0, %s87
    %s91 = sphi 0, %s90
    %s107 = sphi 0, %s91
  $region4: #{ast2class2_forward.3} parent=0 // loop_header_branch
    %12 = sbr.rel (%p10) target = $region8
  $region5: #{ast2class2_forward.3} parent=0 // loop_body
    %s14 = ssub.s32 %s9, 1
    %s15 = ssub.s32 %s9, 2
    %s16 = sadd.s32 %s9, 1
    %s17 = ssub.s32 %s9, %s16
    %p18 = scmp.eq.s32.totalorder %s17, 0
    %s20 = sadd.s32 %s19, 1
    %s21 = scalar_select %p18, %s19, %s20
    %p24 = pneg %p18
    %p25 = scmp.eq.s32.totalorder %s9, 1
    %p26 = por %p24, %p25
    %p27 = scmp.ne.s32.totalorder %s19, %s22
    %p28 = scmp.eq.s32.totalorder %s9, 0
    %p29 = por %p27, %p28
    %p30 = scmp.ne.s32.totalorder %s19, %s22
    %p31 = scmp.eq.s32.totalorder %s14, 1
    %p32 = por %p30, %p31
    %p33 = scmp.ne.s32.totalorder %s22, %s23
    %p34 = scmp.eq.s32.totalorder %s14, 0
    %p35 = por %p33, %p34
    %p36 = scmp.ne.s32.totalorder %s22, %s23
    %p37 = scmp.eq.s32.totalorder %s15, 1
    %p38 = por %p36, %p37
    %p40 = scmp.ne.s32.totalorder %s23, %s39
    %p41 = scmp.eq.s32.totalorder %s15, 0
    %p42 = por %p40, %p41
    %s44 = sadd.s32 %s43, 1
    %p47 = scmp.eq.s32.totalorder %s9, 1
    %p48 = scmp.ne.s32.totalorder %s43, %s45
    %p49 = scmp.eq.s32.totalorder %s9, 0
    %p50 = por %p48, %p49
    %p51 = scmp.ne.s32.totalorder %s43, %s45
    %p52 = scmp.eq.s32.totalorder %s14, 1
    %p53 = por %p51, %p52
    %p54 = scmp.ne.s32.totalorder %s45, %s46
    %p55 = scmp.eq.s32.totalorder %s14, 0
    %p56 = por %p54, %p55
    %p57 = scmp.ne.s32.totalorder %s45, %s46
    %p58 = scmp.eq.s32.totalorder %s15, 1
    %p59 = por %p57, %p58
    %p61 = scmp.ne.s32.totalorder %s46, %s60
    %p62 = scmp.eq.s32.totalorder %s15, 0
    %p63 = por %p61, %p62
    %s65 = sadd.s32 %s64, 1
    %p68 = scmp.eq.s32.totalorder %s9, 1
    %p69 = scmp.ne.s32.totalorder %s64, %s66
    %p70 = scmp.eq.s32.totalorder %s9, 0
    %p71 = por %p69, %p70
    %p72 = scmp.ne.s32.totalorder %s64, %s66
    %p73 = scmp.eq.s32.totalorder %s14, 1
    %p74 = por %p72, %p73
    %p75 = scmp.ne.s32.totalorder %s66, %s67
    %p76 = scmp.eq.s32.totalorder %s14, 0
    %p77 = por %p75, %p76
    %p78 = scmp.ne.s32.totalorder %s66, %s67
    %p79 = scmp.eq.s32.totalorder %s15, 1
    %p80 = por %p78, %p79
    %p82 = scmp.ne.s32.totalorder %s67, %s81
    %p83 = scmp.eq.s32.totalorder %s15, 0
    %p84 = por %p82, %p83
    %s85 = ssub.s32 %s9, %s16
    %p86 = scmp.eq.s32.totalorder %s85, 0
    %s88 = sadd.s32 %s87, 1
    %s89 = scalar_select %p86, %s87, %s88
    %p92 = pneg %p86
    %p93 = scmp.eq.s32.totalorder %s9, 1
    %p94 = por %p92, %p93
    %p95 = scmp.ne.s32.totalorder %s87, %s90
    %p96 = scmp.eq.s32.totalorder %s9, 0
    %p97 = por %p95, %p96
    %p98 = scmp.ne.s32.totalorder %s87, %s90
    %p99 = scmp.eq.s32.totalorder %s14, 1
    %p100 = por %p98, %p99
    %p101 = scmp.ne.s32.totalorder %s90, %s91
    %p102 = scmp.eq.s32.totalorder %s14, 0
    %p103 = por %p101, %p102
    %p104 = scmp.ne.s32.totalorder %s90, %s91
    %p105 = scmp.eq.s32.totalorder %s15, 1
    %p106 = por %p104, %p105
    %p108 = scmp.ne.s32.totalorder %s91, %s107
    %p109 = scmp.eq.s32.totalorder %s15, 0
    %p110 = por %p108, %p109
    %p111 = scmp.le.s32.totalorder 1, %s9
    %p112 = scmp.lt.s32.totalorder %s9, 3
    %p113 = pnand %p111, %p112
    %p114 = pneg %p113
    // Predicated region
    $region9: #{ast2class2_forward.3} parent=5 // pred_check
      _
    $region10: #{ast2class2_forward.3} parent=5 // pred_check_branch
      %116 = sbr.rel (%p113) target = $region12
    $region11: #{ast2class2_forward.3} parent=5 // pred_region
      %s117 = ssub.s32 %s9, 1
      // Predicated region
      $region13: #{ast2class2_forward.3} parent=11 // pred_check
        %p118 = pneg %p56
      $region14: #{ast2class2_forward.3} parent=11 // pred_check_branch
        %120 = sbr.rel (%p118) target = $region16
      $region15: #{ast2class2_forward.3} parent=11 // pred_region
        _
      $region16: #{ast2class2_forward.3} parent=11 // pred_fallthru
        _
      // Predicated region
      $region17: #{ast2class2_forward.3} parent=11 // pred_check
        %p121 = pneg %p77
      $region18: #{ast2class2_forward.3} parent=11 // pred_check_branch
        %123 = sbr.rel (%p121) target = $region20
      $region19: #{ast2class2_forward.3} parent=11 // pred_region
        _
      $region20: #{ast2class2_forward.3} parent=11 // pred_fallthru
        _
    $region12: #{ast2class2_forward.3} parent=5 // pred_fallthru
      _
    %p124 = scmp.lt.s32.totalorder %s9, 2
    // Predicated region
    $region21: #{ast2class2_forward.3} parent=5 // pred_check
      %p125 = pneg %p124
    $region22: #{ast2class2_forward.3} parent=5 // pred_check_branch
      %127 = sbr.rel (%p125) target = $region24
    $region23: #{ast2class2_forward.3} parent=5 // pred_region
      // Predicated region
      $region25: #{ast2class2_forward.3} parent=23 // pred_check
        %p128 = pneg %p29
      $region26: #{ast2class2_forward.3} parent=23 // pred_check_branch
        %130 = sbr.rel (%p128) target = $region28
      $region27: #{ast2class2_forward.3} parent=23 // pred_region
        %p131 = scmp.lt.s32.totalorder %s9, 1
        %s132 = scalar_select %p131, %s9, 1
        %s133 = smul.addr %s132, 9
        %s134 = smul.addr %s133, 8
        %s135 = scalar_lea.vmem %s0, %s134
      $region28: #{ast2class2_forward.3} parent=23 // pred_fallthru
        _
    $region24: #{ast2class2_forward.3} parent=5 // pred_fallthru
      _
    %p136 = scmp.le.s32.totalorder 1, %s9
    %p137 = scmp.lt.s32.totalorder %s9, 3
    %p138 = pnand %p136, %p137
    %p139 = pneg %p138
    // Predicated region
    $region29: #{ast2class2_forward.3} parent=5 // pred_check
      _
    $region30: #{ast2class2_forward.3} parent=5 // pred_check_branch
      %141 = sbr.rel (%p138) target = $region32
    $region31: #{ast2class2_forward.3} parent=5 // pred_region
      %s142 = ssub.s32 %s9, 1
      %p143 = scmp.lt.s32.totalorder %s14, 1
      %s144 = scalar_select %p143, %s14, 1
      %s145 = smul.addr %s144, 9
      %s146 = smul.addr %s145, 8
      %s147 = scalar_lea.vmem %s0, %s146
      %p148 = pneg %p35
      %p149 = pneg %p32
      %p150 = pneg %p56
      %p151 = pneg %p53
      %p152 = pneg %p77
      %p153 = pneg %p74
      %p154 = pneg %p103
      %p155 = pneg %p100
      %p156 = scmp.lt.s32.totalorder %s14, 1
      %s157 = scalar_select %p156, %s14, 1
      %s158 = smul.addr %s157, 4
      %s159 = smul.addr %s158, 8
      %s160 = scalar_lea.vmem %s3, %s159
      %p161 = scmp.lt.s32.totalorder %s14, 1
      %s162 = scalar_select %p161, %s14, 1
      %s163 = smul.addr %s162, 9
      %s164 = smul.addr %s163, 8
      %s165 = scalar_lea.vmem %s0, %s164
      %p166 = scmp.lt.s32.totalorder %s14, 1
      %s167 = scalar_select %p166, %s14, 1
      %s168 = smul.addr %s167, 4
      %s169 = smul.addr %s168, 8
      %s170 = scalar_lea.vmem %s3, %s169
      %v171 = vld [vmem:[%s165] sm:$0xff]
      %v172 = vld [vmem:[%s165 + $0x8] sm:$0xff]
      %v173 = vld [vmem:[%s165 + $0x10] sm:$0xff]
      %v174 = vld [vmem:[%s165 + $0x18] sm:$0xff]
      %v175 = vld [vmem:[%s165 + $0x20] sm:$0xff]
      %v176 = vld [vmem:[%s165 + $0x28] sm:$0xff]
      %v177 = vld [vmem:[%s165 + $0x30] sm:$0xff]
      %v178 = vld [vmem:[%s165 + $0x38] sm:$0xff]
      %v179 = vld [vmem:[%s165 + $0x40] sm:$0xff]
      %v180 = vld [vmem:[%s1] sm:$0xff]
      %v181 = vld [vmem:[%s1 + $0x8] sm:$0xff]
      %v182 = vld [vmem:[%s1 + $0x10] sm:$0xff]
      %v183 = vld [vmem:[%s1 + $0x18] sm:$0xff]
      %v184 = vld [vmem:[%s1 + $0x20] sm:$0xff]
      %v185 = vld [vmem:[%s1 + $0x28] sm:$0xff]
      %v186 = vld [vmem:[%s1 + $0x30] sm:$0xff]
      %v187 = vld [vmem:[%s1 + $0x38] sm:$0xff]
      %v188 = vld [vmem:[%s1 + $0x40] sm:$0xff]
      %v189 = vld [vmem:[%s1 + $0x48] sm:$0xff]
      %v190 = vld [vmem:[%s1 + $0x50] sm:$0xff]
      %v191 = vld [vmem:[%s1 + $0x58] sm:$0xff]
      %v192 = vld [vmem:[%s1 + $0x60] sm:$0xff]
      %v193 = vld [vmem:[%s1 + $0x68] sm:$0xff]
      %v194 = vld [vmem:[%s1 + $0x70] sm:$0xff]
      %v195 = vld [vmem:[%s1 + $0x78] sm:$0xff]
      %v196 = vld [vmem:[%s1 + $0x80] sm:$0xff]
      %v197 = vld [vmem:[%s1 + $0x88] sm:$0xff]
      %v198 = vld [vmem:[%s1 + $0x90] sm:$0xff]
      %v199 = vld [vmem:[%s1 + $0x98] sm:$0xff]
      %v200 = vld [vmem:[%s1 + $0xa0] sm:$0xff]
      %v201 = vld [vmem:[%s1 + $0xa8] sm:$0xff]
      %v202 = vld [vmem:[%s1 + $0xb0] sm:$0xff]
      %v203 = vld [vmem:[%s1 + $0xb8] sm:$0xff]
      %v204 = vld [vmem:[%s1 + $0xc0] sm:$0xff]
      %v205 = vld [vmem:[%s1 + $0xc8] sm:$0xff]
      %v206 = vld [vmem:[%s1 + $0xd0] sm:$0xff]
      %v207 = vld [vmem:[%s1 + $0xd8] sm:$0xff]
      %v208 = vld [vmem:[%s1 + $0xe0] sm:$0xff]
      %v209 = vld [vmem:[%s1 + $0xe8] sm:$0xff]
      %v210 = vld [vmem:[%s1 + $0xf0] sm:$0xff]
      %v211 = vld [vmem:[%s1 + $0xf8] sm:$0xff]
      %v212 = vld [vmem:[%s1 + $0x100] sm:$0xff]
      %v213 = vld [vmem:[%s1 + $0x108] sm:$0xff]
      %v214 = vld [vmem:[%s1 + $0x110] sm:$0xff]
      %v215 = vld [vmem:[%s1 + $0x118] sm:$0xff]
      %v216 = vld [vmem:[%s1 + $0x120] sm:$0xff]
      %v217 = vld [vmem:[%s1 + $0x128] sm:$0xff]
      %v218 = vld [vmem:[%s1 + $0x130] sm:$0xff]
      %v219 = vld [vmem:[%s1 + $0x138] sm:$0xff]
      %v220 = vld [vmem:[%s1 + $0x140] sm:$0xff]
      %v221 = vld [vmem:[%s1 + $0x148] sm:$0xff]
      %v222 = vld [vmem:[%s1 + $0x150] sm:$0xff]
      %v223 = vld [vmem:[%s1 + $0x158] sm:$0xff]
      %v224 = vld [vmem:[%s1 + $0x160] sm:$0xff]
      %v225 = vld [vmem:[%s1 + $0x168] sm:$0xff]
      %v226 = vld [vmem:[%s1 + $0x170] sm:$0xff]
      %v227 = vld [vmem:[%s1 + $0x178] sm:$0xff]
      %v228 = vld [vmem:[%s1 + $0x180] sm:$0xff]
      %v229 = vld [vmem:[%s1 + $0x188] sm:$0xff]
      %v230 = vld [vmem:[%s1 + $0x190] sm:$0xff]
      %v231 = vld [vmem:[%s1 + $0x198] sm:$0xff]
      %v232 = vld [vmem:[%s1 + $0x1a0] sm:$0xff]
      %v233 = vld [vmem:[%s1 + $0x1a8] sm:$0xff]
      %v234 = vld [vmem:[%s1 + $0x1b0] sm:$0xff]
      %v235 = vld [vmem:[%s1 + $0x1b8] sm:$0xff]
      %v236 = vld [vmem:[%s1 + $0x1c0] sm:$0xff]
      %v237 = vld [vmem:[%s1 + $0x1c8] sm:$0xff]
      %v238 = vld [vmem:[%s1 + $0x1d0] sm:$0xff]
      %v239 = vld [vmem:[%s1 + $0x1d8] sm:$0xff]
      %v240 = vld [vmem:[%s1 + $0x1e0] sm:$0xff]
      %v241 = vld [vmem:[%s1 + $0x1e8] sm:$0xff]
      %v242 = vld [vmem:[%s1 + $0x1f0] sm:$0xff]
      %v243 = vld [vmem:[%s1 + $0x1f8] sm:$0xff]
      %v244 = vld [vmem:[%s1 + $0x200] sm:$0xff]
      %v245 = vld [vmem:[%s1 + $0x208] sm:$0xff]
      %v246 = vld [vmem:[%s1 + $0x210] sm:$0xff]
      %v247 = vld [vmem:[%s1 + $0x218] sm:$0xff]
      %v248 = vld [vmem:[%s1 + $0x220] sm:$0xff]
      %v249 = vld [vmem:[%s1 + $0x228] sm:$0xff]
      %v250 = vld [vmem:[%s1 + $0x230] sm:$0xff]
      %v251 = vld [vmem:[%s1 + $0x238] sm:$0xff]
      %v252 = vld [vmem:[%s1 + $0x240] sm:$0xff]
      %v253 = vld [vmem:[%s1 + $0x248] sm:$0xff]
      %v254 = vld [vmem:[%s1 + $0x250] sm:$0xff]
      %v255 = vld [vmem:[%s1 + $0x258] sm:$0xff]
      %v256 = vld [vmem:[%s1 + $0x260] sm:$0xff]
      %v257 = vld [vmem:[%s1 + $0x268] sm:$0xff]
      %v258 = vld [vmem:[%s1 + $0x270] sm:$0xff]
      %v259 = vld [vmem:[%s1 + $0x278] sm:$0xff]
      %v260 = vld [vmem:[%s1 + $0x280] sm:$0xff]
      %v261 = vld [vmem:[%s1 + $0x288] sm:$0xff]
      %v262 = vld [vmem:[%s1 + $0x290] sm:$0xff]
      %v263 = vld [vmem:[%s1 + $0x298] sm:$0xff]
      %v264 = vld [vmem:[%s1 + $0x2a0] sm:$0xff]
      %v265 = vld [vmem:[%s1 + $0x2a8] sm:$0xff]
      %v266 = vld [vmem:[%s1 + $0x2b0] sm:$0xff]
      %v267 = vld [vmem:[%s1 + $0x2b8] sm:$0xff]
      %v268 = vld [vmem:[%s1 + $0x2c0] sm:$0xff]
      %v269 = vld [vmem:[%s1 + $0x2c8] sm:$0xff]
      %v270 = vld [vmem:[%s1 + $0x2d0] sm:$0xff]
      %v271 = vld [vmem:[%s1 + $0x2d8] sm:$0xff]
      %v272 = vld [vmem:[%s1 + $0x2e0] sm:$0xff]
      %v273 = vld [vmem:[%s1 + $0x2e8] sm:$0xff]
      %v274 = vld [vmem:[%s1 + $0x2f0] sm:$0xff]
      %v275 = vld [vmem:[%s1 + $0x2f8] sm:$0xff]
      %v276 = vld [vmem:[%s1 + $0x300] sm:$0xff]
      %v277 = vld [vmem:[%s1 + $0x308] sm:$0xff]
      %v278 = vld [vmem:[%s1 + $0x310] sm:$0xff]
      %v279 = vld [vmem:[%s1 + $0x318] sm:$0xff]
      %v280 = vld [vmem:[%s1 + $0x320] sm:$0xff]
      %v281 = vld [vmem:[%s1 + $0x328] sm:$0xff]
      %v282 = vld [vmem:[%s1 + $0x330] sm:$0xff]
      %v283 = vld [vmem:[%s1 + $0x338] sm:$0xff]
      %v284 = vld [vmem:[%s1 + $0x340] sm:$0xff]
      %v285 = vld [vmem:[%s1 + $0x348] sm:$0xff]
      %v286 = vld [vmem:[%s1 + $0x350] sm:$0xff]
      %v287 = vld [vmem:[%s1 + $0x358] sm:$0xff]
      %v288 = vld [vmem:[%s1 + $0x360] sm:$0xff]
      %v289 = vld [vmem:[%s1 + $0x368] sm:$0xff]
      %v290 = vld [vmem:[%s1 + $0x370] sm:$0xff]
      %v291 = vld [vmem:[%s1 + $0x378] sm:$0xff]
      %v292 = vld [vmem:[%s1 + $0x380] sm:$0xff]
      %v293 = vld [vmem:[%s1 + $0x388] sm:$0xff]
      %v294 = vld [vmem:[%s1 + $0x390] sm:$0xff]
      %v295 = vld [vmem:[%s1 + $0x398] sm:$0xff]
      %v296 = vld [vmem:[%s1 + $0x3a0] sm:$0xff]
      %v297 = vld [vmem:[%s1 + $0x3a8] sm:$0xff]
      %v298 = vld [vmem:[%s1 + $0x3b0] sm:$0xff]
      %v299 = vld [vmem:[%s1 + $0x3b8] sm:$0xff]
      %v300 = vld [vmem:[%s1 + $0x3c0] sm:$0xff]
      %v301 = vld [vmem:[%s1 + $0x3c8] sm:$0xff]
      %v302 = vld [vmem:[%s1 + $0x3d0] sm:$0xff]
      %v303 = vld [vmem:[%s1 + $0x3d8] sm:$0xff]
      %v304 = vld [vmem:[%s1 + $0x3e0] sm:$0xff]
      %v305 = vld [vmem:[%s1 + $0x3e8] sm:$0xff]
      %v306 = vld [vmem:[%s1 + $0x3f0] sm:$0xff]
      %v307 = vld [vmem:[%s1 + $0x3f8] sm:$0xff]
      %v308 = vld [vmem:[%s1 + $0x400] sm:$0xff]
      %v309 = vld [vmem:[%s1 + $0x408] sm:$0xff]
      %v310 = vld [vmem:[%s1 + $0x410] sm:$0xff]
      %v311 = vld [vmem:[%s1 + $0x418] sm:$0xff]
      %v312 = vld [vmem:[%s1 + $0x420] sm:$0xff]
      %v313 = vld [vmem:[%s1 + $0x428] sm:$0xff]
      %v314 = vld [vmem:[%s1 + $0x430] sm:$0xff]
      %v315 = vld [vmem:[%s1 + $0x438] sm:$0xff]
      %v316 = vld [vmem:[%s1 + $0x440] sm:$0xff]
      %v317 = vld [vmem:[%s1 + $0x448] sm:$0xff]
      %v318 = vld [vmem:[%s1 + $0x450] sm:$0xff]
      %v319 = vld [vmem:[%s1 + $0x458] sm:$0xff]
      %v320 = vld [vmem:[%s1 + $0x460] sm:$0xff]
      %v321 = vld [vmem:[%s1 + $0x468] sm:$0xff]
      %v322 = vld [vmem:[%s1 + $0x470] sm:$0xff]
      %v323 = vld [vmem:[%s1 + $0x478] sm:$0xff]
      %v324 = vld [vmem:[%s1 + $0x480] sm:$0xff]
      %v325 = vld [vmem:[%s1 + $0x488] sm:$0xff]
      %v326 = vld [vmem:[%s1 + $0x490] sm:$0xff]
      %v327 = vld [vmem:[%s1 + $0x498] sm:$0xff]
      %v328 = vld [vmem:[%s1 + $0x4a0] sm:$0xff]
      %v329 = vld [vmem:[%s1 + $0x4a8] sm:$0xff]
      %v330 = vld [vmem:[%s1 + $0x4b0] sm:$0xff]
      %v331 = vld [vmem:[%s1 + $0x4b8] sm:$0xff]
      %v332 = vld [vmem:[%s1 + $0x4c0] sm:$0xff]
      %v333 = vld [vmem:[%s1 + $0x4c8] sm:$0xff]
      %v334 = vld [vmem:[%s1 + $0x4d0] sm:$0xff]
      %v335 = vld [vmem:[%s1 + $0x4d8] sm:$0xff]
      %v336 = vld [vmem:[%s1 + $0x4e0] sm:$0xff]
      %v337 = vld [vmem:[%s1 + $0x4e8] sm:$0xff]
      %v338 = vld [vmem:[%s1 + $0x4f0] sm:$0xff]
      %v339 = vld [vmem:[%s1 + $0x4f8] sm:$0xff]
      %v340 = vld [vmem:[%s1 + $0x500] sm:$0xff]
      %v341 = vld [vmem:[%s1 + $0x508] sm:$0xff]
      %v342 = vld [vmem:[%s1 + $0x510] sm:$0xff]
      %v343 = vld [vmem:[%s1 + $0x518] sm:$0xff]
      %v344 = vld [vmem:[%s1 + $0x520] sm:$0xff]
      %v345 = vld [vmem:[%s1 + $0x528] sm:$0xff]
      %v346 = vld [vmem:[%s1 + $0x530] sm:$0xff]
      %v347 = vld [vmem:[%s1 + $0x538] sm:$0xff]
      %v348 = vld [vmem:[%s1 + $0x540] sm:$0xff]
      %v349 = vld [vmem:[%s1 + $0x548] sm:$0xff]
      %v350 = vld [vmem:[%s1 + $0x550] sm:$0xff]
      %v351 = vld [vmem:[%s1 + $0x558] sm:$0xff]
      %v352 = vld [vmem:[%s1 + $0x560] sm:$0xff]
      %v353 = vld [vmem:[%s1 + $0x568] sm:$0xff]
      %v354 = vld [vmem:[%s1 + $0x570] sm:$0xff]
      %v355 = vld [vmem:[%s1 + $0x578] sm:$0xff]
      %v356 = vld [vmem:[%s1 + $0x580] sm:$0xff]
      %v357 = vld [vmem:[%s1 + $0x588] sm:$0xff]
      %v358 = vld [vmem:[%s1 + $0x590] sm:$0xff]
      %v359 = vld [vmem:[%s1 + $0x598] sm:$0xff]
      %v360 = vld [vmem:[%s1 + $0x5a0] sm:$0xff]
      %v361 = vld [vmem:[%s1 + $0x5a8] sm:$0xff]
      %v362 = vld [vmem:[%s1 + $0x5b0] sm:$0xff]
      %v363 = vld [vmem:[%s1 + $0x5b8] sm:$0xff]
      %v364 = vld [vmem:[%s1 + $0x5c0] sm:$0xff]
      %v365 = vld [vmem:[%s1 + $0x5c8] sm:$0xff]
      %v366 = vld [vmem:[%s1 + $0x5d0] sm:$0xff]
      %v367 = vld [vmem:[%s1 + $0x5d8] sm:$0xff]
      %v368 = vld [vmem:[%s1 + $0x5e0] sm:$0xff]
      %v369 = vld [vmem:[%s1 + $0x5e8] sm:$0xff]
      %v370 = vld [vmem:[%s1 + $0x5f0] sm:$0xff]
      %v371 = vld [vmem:[%s1 + $0x5f8] sm:$0xff]
      %v372 = vld [vmem:[%s1 + $0x600] sm:$0xff]
      %v373 = vld [vmem:[%s1 + $0x608] sm:$0xff]
      %v374 = vld [vmem:[%s1 + $0x610] sm:$0xff]
      %v375 = vld [vmem:[%s1 + $0x618] sm:$0xff]
      %v376 = vld [vmem:[%s1 + $0x620] sm:$0xff]
      %v377 = vld [vmem:[%s1 + $0x628] sm:$0xff]
      %v378 = vld [vmem:[%s1 + $0x630] sm:$0xff]
      %v379 = vld [vmem:[%s1 + $0x638] sm:$0xff]
      %v380 = vld [vmem:[%s1 + $0x640] sm:$0xff]
      %v381 = vld [vmem:[%s1 + $0x648] sm:$0xff]
      %v382 = vld [vmem:[%s1 + $0x650] sm:$0xff]
      %v383 = vld [vmem:[%s1 + $0x658] sm:$0xff]
      %v384 = vld [vmem:[%s1 + $0x660] sm:$0xff]
      %v385 = vld [vmem:[%s1 + $0x668] sm:$0xff]
      %v386 = vld [vmem:[%s1 + $0x670] sm:$0xff]
      %v387 = vld [vmem:[%s1 + $0x678] sm:$0xff]
      %v388 = vld [vmem:[%s1 + $0x680] sm:$0xff]
      %v389 = vld [vmem:[%s1 + $0x688] sm:$0xff]
      %v390 = vld [vmem:[%s1 + $0x690] sm:$0xff]
      %v391 = vld [vmem:[%s1 + $0x698] sm:$0xff]
      %v392 = vld [vmem:[%s1 + $0x6a0] sm:$0xff]
      %v393 = vld [vmem:[%s1 + $0x6a8] sm:$0xff]
      %v394 = vld [vmem:[%s1 + $0x6b0] sm:$0xff]
      %v395 = vld [vmem:[%s1 + $0x6b8] sm:$0xff]
      %v396 = vld [vmem:[%s1 + $0x6c0] sm:$0xff]
      %v397 = vld [vmem:[%s1 + $0x6c8] sm:$0xff]
      %v398 = vld [vmem:[%s1 + $0x6d0] sm:$0xff]
      %v399 = vld [vmem:[%s1 + $0x6d8] sm:$0xff]
      %v400 = vld [vmem:[%s1 + $0x6e0] sm:$0xff]
      %v401 = vld [vmem:[%s1 + $0x6e8] sm:$0xff]
      %v402 = vld [vmem:[%s1 + $0x6f0] sm:$0xff]
      %v403 = vld [vmem:[%s1 + $0x6f8] sm:$0xff]
      %v404 = vld [vmem:[%s1 + $0x700] sm:$0xff]
      %v405 = vld [vmem:[%s1 + $0x708] sm:$0xff]
      %v406 = vld [vmem:[%s1 + $0x710] sm:$0xff]
      %v407 = vld [vmem:[%s1 + $0x718] sm:$0xff]
      %v408 = vld [vmem:[%s1 + $0x720] sm:$0xff]
      %v409 = vld [vmem:[%s1 + $0x728] sm:$0xff]
      %v410 = vld [vmem:[%s1 + $0x730] sm:$0xff]
      %v411 = vld [vmem:[%s1 + $0x738] sm:$0xff]
      %v412 = vld [vmem:[%s1 + $0x740] sm:$0xff]
      %v413 = vld [vmem:[%s1 + $0x748] sm:$0xff]
      %v414 = vld [vmem:[%s1 + $0x750] sm:$0xff]
      %v415 = vld [vmem:[%s1 + $0x758] sm:$0xff]
      %v416 = vld [vmem:[%s1 + $0x760] sm:$0xff]
      %v417 = vld [vmem:[%s1 + $0x768] sm:$0xff]
      %v418 = vld [vmem:[%s1 + $0x770] sm:$0xff]
      %v419 = vld [vmem:[%s1 + $0x778] sm:$0xff]
      %v420 = vld [vmem:[%s1 + $0x780] sm:$0xff]
      %v421 = vld [vmem:[%s1 + $0x788] sm:$0xff]
      %v422 = vld [vmem:[%s1 + $0x790] sm:$0xff]
      %v423 = vld [vmem:[%s1 + $0x798] sm:$0xff]
      %v424 = vld [vmem:[%s1 + $0x7a0] sm:$0xff]
      %v425 = vld [vmem:[%s1 + $0x7a8] sm:$0xff]
      %v426 = vld [vmem:[%s1 + $0x7b0] sm:$0xff]
      %v427 = vld [vmem:[%s1 + $0x7b8] sm:$0xff]
      %v428 = vld [vmem:[%s1 + $0x7c0] sm:$0xff]
      %v429 = vld [vmem:[%s1 + $0x7c8] sm:$0xff]
      %v430 = vld [vmem:[%s1 + $0x7d0] sm:$0xff]
      %v431 = vld [vmem:[%s1 + $0x7d8] sm:$0xff]
      %v432 = vld [vmem:[%s1 + $0x7e0] sm:$0xff]
      %v433 = vld [vmem:[%s1 + $0x7e8] sm:$0xff]
      %v434 = vld [vmem:[%s1 + $0x7f0] sm:$0xff]
      %v435 = vld [vmem:[%s1 + $0x7f8] sm:$0xff]
      %v436 = vld [vmem:[%s1 + $0x800] sm:$0xff]
      %v437 = vld [vmem:[%s1 + $0x808] sm:$0xff]
      %v438 = vld [vmem:[%s1 + $0x810] sm:$0xff]
      %v439 = vld [vmem:[%s1 + $0x818] sm:$0xff]
      %v440 = vld [vmem:[%s1 + $0x820] sm:$0xff]
      %v441 = vld [vmem:[%s1 + $0x828] sm:$0xff]
      %v442 = vld [vmem:[%s1 + $0x830] sm:$0xff]
      %v443 = vld [vmem:[%s1 + $0x838] sm:$0xff]
      %v444 = vld [vmem:[%s1 + $0x840] sm:$0xff]
      %v445 = vld [vmem:[%s1 + $0x848] sm:$0xff]
      %v446 = vld [vmem:[%s1 + $0x850] sm:$0xff]
      %v447 = vld [vmem:[%s1 + $0x858] sm:$0xff]
      %v448 = vld [vmem:[%s1 + $0x860] sm:$0xff]
      %v449 = vld [vmem:[%s1 + $0x868] sm:$0xff]
      %v450 = vld [vmem:[%s1 + $0x870] sm:$0xff]
      %v451 = vld [vmem:[%s1 + $0x878] sm:$0xff]
      %v452 = vld [vmem:[%s1 + $0x880] sm:$0xff]
      %v453 = vld [vmem:[%s1 + $0x888] sm:$0xff]
      %v454 = vld [vmem:[%s1 + $0x890] sm:$0xff]
      %v455 = vld [vmem:[%s1 + $0x898] sm:$0xff]
      %v456 = vld [vmem:[%s1 + $0x8a0] sm:$0xff]
      %v457 = vld [vmem:[%s1 + $0x8a8] sm:$0xff]
      %v458 = vld [vmem:[%s1 + $0x8b0] sm:$0xff]
      %v459 = vld [vmem:[%s1 + $0x8b8] sm:$0xff]
      %v460 = vld [vmem:[%s1 + $0x8c0] sm:$0xff]
      %v461 = vld [vmem:[%s1 + $0x8c8] sm:$0xff]
      %v462 = vld [vmem:[%s1 + $0x8d0] sm:$0xff]
      %v463 = vld [vmem:[%s1 + $0x8d8] sm:$0xff]
      %v464 = vld [vmem:[%s1 + $0x8e0] sm:$0xff]
      %v465 = vld [vmem:[%s1 + $0x8e8] sm:$0xff]
      %v466 = vld [vmem:[%s1 + $0x8f0] sm:$0xff]
      %v467 = vld [vmem:[%s1 + $0x8f8] sm:$0xff]
      %v468 = vld [vmem:[%s1 + $0x900] sm:$0xff]
      %v469 = vld [vmem:[%s1 + $0x908] sm:$0xff]
      %v470 = vld [vmem:[%s1 + $0x910] sm:$0xff]
      %v471 = vld [vmem:[%s1 + $0x918] sm:$0xff]
      %v472 = vld [vmem:[%s1 + $0x920] sm:$0xff]
      %v473 = vld [vmem:[%s1 + $0x928] sm:$0xff]
      %v474 = vld [vmem:[%s1 + $0x930] sm:$0xff]
      %v475 = vld [vmem:[%s1 + $0x938] sm:$0xff]
      %v476 = vld [vmem:[%s1 + $0x940] sm:$0xff]
      %v477 = vld [vmem:[%s1 + $0x948] sm:$0xff]
      %v478 = vld [vmem:[%s1 + $0x950] sm:$0xff]
      %v479 = vld [vmem:[%s1 + $0x958] sm:$0xff]
      %v480 = vld [vmem:[%s1 + $0x960] sm:$0xff]
      %v481 = vld [vmem:[%s1 + $0x968] sm:$0xff]
      %v482 = vld [vmem:[%s1 + $0x970] sm:$0xff]
      %v483 = vld [vmem:[%s1 + $0x978] sm:$0xff]
      %v484 = vld [vmem:[%s1 + $0x980] sm:$0xff]
      %v485 = vld [vmem:[%s1 + $0x988] sm:$0xff]
      %v486 = vld [vmem:[%s1 + $0x990] sm:$0xff]
      %v487 = vld [vmem:[%s1 + $0x998] sm:$0xff]
      %v488 = vld [vmem:[%s1 + $0x9a0] sm:$0xff]
      %v489 = vld [vmem:[%s1 + $0x9a8] sm:$0xff]
      %v490 = vld [vmem:[%s1 + $0x9b0] sm:$0xff]
      %v491 = vld [vmem:[%s1 + $0x9b8] sm:$0xff]
      %v492 = vld [vmem:[%s1 + $0x9c0] sm:$0xff]
      %v493 = vld [vmem:[%s1 + $0x9c8] sm:$0xff]
      %v494 = vld [vmem:[%s1 + $0x9d0] sm:$0xff]
      %v495 = vld [vmem:[%s1 + $0x9d8] sm:$0xff]
      %v496 = vld [vmem:[%s1 + $0x9e0] sm:$0xff]
      %v497 = vld [vmem:[%s1 + $0x9e8] sm:$0xff]
      %v498 = vld [vmem:[%s1 + $0x9f0] sm:$0xff]
      %v499 = vld [vmem:[%s1 + $0x9f8] sm:$0xff]
      %v500 = vld [vmem:[%s1 + $0xa00] sm:$0xff]
      %v501 = vld [vmem:[%s1 + $0xa08] sm:$0xff]
      %v502 = vld [vmem:[%s1 + $0xa10] sm:$0xff]
      %v503 = vld [vmem:[%s1 + $0xa18] sm:$0xff]
      %v504 = vld [vmem:[%s1 + $0xa20] sm:$0xff]
      %v505 = vld [vmem:[%s1 + $0xa28] sm:$0xff]
      %v506 = vld [vmem:[%s1 + $0xa30] sm:$0xff]
      %v507 = vld [vmem:[%s1 + $0xa38] sm:$0xff]
      %v508 = vld [vmem:[%s1 + $0xa40] sm:$0xff]
      %v509 = vld [vmem:[%s1 + $0xa48] sm:$0xff]
      %v510 = vld [vmem:[%s1 + $0xa50] sm:$0xff]
      %v511 = vld [vmem:[%s1 + $0xa58] sm:$0xff]
      %v512 = vld [vmem:[%s1 + $0xa60] sm:$0xff]
      %v513 = vld [vmem:[%s1 + $0xa68] sm:$0xff]
      %v514 = vld [vmem:[%s1 + $0xa70] sm:$0xff]
      %v515 = vld [vmem:[%s1 + $0xa78] sm:$0xff]
      %v516 = vld [vmem:[%s1 + $0xa80] sm:$0xff]
      %v517 = vld [vmem:[%s1 + $0xa88] sm:$0xff]
      %v518 = vld [vmem:[%s1 + $0xa90] sm:$0xff]
      %v519 = vld [vmem:[%s1 + $0xa98] sm:$0xff]
      %v520 = vld [vmem:[%s1 + $0xaa0] sm:$0xff]
      %v521 = vld [vmem:[%s1 + $0xaa8] sm:$0xff]
      %v522 = vld [vmem:[%s1 + $0xab0] sm:$0xff]
      %v523 = vld [vmem:[%s1 + $0xab8] sm:$0xff]
      %v524 = vld [vmem:[%s1 + $0xac0] sm:$0xff]
      %v525 = vld [vmem:[%s1 + $0xac8] sm:$0xff]
      %v526 = vld [vmem:[%s1 + $0xad0] sm:$0xff]
      %v527 = vld [vmem:[%s1 + $0xad8] sm:$0xff]
      %v528 = vld [vmem:[%s1 + $0xae0] sm:$0xff]
      %v529 = vld [vmem:[%s1 + $0xae8] sm:$0xff]
      %v530 = vld [vmem:[%s1 + $0xaf0] sm:$0xff]
      %v531 = vld [vmem:[%s1 + $0xaf8] sm:$0xff]
      %v532 = vld [vmem:[%s1 + $0xb00] sm:$0xff]
      %v533 = vld [vmem:[%s1 + $0xb08] sm:$0xff]
      %v534 = vld [vmem:[%s1 + $0xb10] sm:$0xff]
      %v535 = vld [vmem:[%s1 + $0xb18] sm:$0xff]
      %v536 = vld [vmem:[%s1 + $0xb20] sm:$0xff]
      %v537 = vld [vmem:[%s1 + $0xb28] sm:$0xff]
      %v538 = vld [vmem:[%s1 + $0xb30] sm:$0xff]
      %v539 = vld [vmem:[%s1 + $0xb38] sm:$0xff]
      %v540 = vld [vmem:[%s1 + $0xb40] sm:$0xff]
      %v541 = vld [vmem:[%s1 + $0xb48] sm:$0xff]
      %v542 = vld [vmem:[%s1 + $0xb50] sm:$0xff]
      %v543 = vld [vmem:[%s1 + $0xb58] sm:$0xff]
      %v544 = vld [vmem:[%s1 + $0xb60] sm:$0xff]
      %v545 = vld [vmem:[%s1 + $0xb68] sm:$0xff]
      %v546 = vld [vmem:[%s1 + $0xb70] sm:$0xff]
      %v547 = vld [vmem:[%s1 + $0xb78] sm:$0xff]
      %v548 = vld [vmem:[%s1 + $0xb80] sm:$0xff]
      %v549 = vld [vmem:[%s1 + $0xb88] sm:$0xff]
      %v550 = vld [vmem:[%s1 + $0xb90] sm:$0xff]
      %v551 = vld [vmem:[%s1 + $0xb98] sm:$0xff]
      %v552 = vld [vmem:[%s1 + $0xba0] sm:$0xff]
      %v553 = vld [vmem:[%s1 + $0xba8] sm:$0xff]
      %v554 = vld [vmem:[%s1 + $0xbb0] sm:$0xff]
      %v555 = vld [vmem:[%s1 + $0xbb8] sm:$0xff]
      %v556 = vld [vmem:[%s1 + $0xbc0] sm:$0xff]
      %v557 = vld [vmem:[%s1 + $0xbc8] sm:$0xff]
      %v558 = vld [vmem:[%s1 + $0xbd0] sm:$0xff]
      %v559 = vld [vmem:[%s1 + $0xbd8] sm:$0xff]
      %v560 = vld [vmem:[%s1 + $0xbe0] sm:$0xff]
      %v561 = vld [vmem:[%s1 + $0xbe8] sm:$0xff]
      %v562 = vld [vmem:[%s1 + $0xbf0] sm:$0xff]
      %v563 = vld [vmem:[%s1 + $0xbf8] sm:$0xff]
      %v564 = vld [vmem:[%s1 + $0xc00] sm:$0xff]
      %v565 = vld [vmem:[%s1 + $0xc08] sm:$0xff]
      %v566 = vld [vmem:[%s1 + $0xc10] sm:$0xff]
      %v567 = vld [vmem:[%s1 + $0xc18] sm:$0xff]
      %v568 = vld [vmem:[%s1 + $0xc20] sm:$0xff]
      %v569 = vld [vmem:[%s1 + $0xc28] sm:$0xff]
      %v570 = vld [vmem:[%s1 + $0xc30] sm:$0xff]
      %v571 = vld [vmem:[%s1 + $0xc38] sm:$0xff]
      %v572 = vld [vmem:[%s1 + $0xc40] sm:$0xff]
      %v573 = vld [vmem:[%s1 + $0xc48] sm:$0xff]
      %v574 = vld [vmem:[%s1 + $0xc50] sm:$0xff]
      %v575 = vld [vmem:[%s1 + $0xc58] sm:$0xff]
      %v576 = vld [vmem:[%s1 + $0xc60] sm:$0xff]
      %v577 = vld [vmem:[%s1 + $0xc68] sm:$0xff]
      %v578 = vld [vmem:[%s1 + $0xc70] sm:$0xff]
      %v579 = vld [vmem:[%s1 + $0xc78] sm:$0xff]
      %v580 = vld [vmem:[%s1 + $0xc80] sm:$0xff]
      %v581 = vld [vmem:[%s1 + $0xc88] sm:$0xff]
      %v582 = vld [vmem:[%s1 + $0xc90] sm:$0xff]
      %v583 = vld [vmem:[%s1 + $0xc98] sm:$0xff]
      %v584 = vld [vmem:[%s1 + $0xca0] sm:$0xff]
      %v585 = vld [vmem:[%s1 + $0xca8] sm:$0xff]
      %v586 = vld [vmem:[%s1 + $0xcb0] sm:$0xff]
      %v587 = vld [vmem:[%s1 + $0xcb8] sm:$0xff]
      %v588 = vld [vmem:[%s1 + $0xcc0] sm:$0xff]
      %v589 = vld [vmem:[%s1 + $0xcc8] sm:$0xff]
      %v590 = vld [vmem:[%s1 + $0xcd0] sm:$0xff]
      %v591 = vld [vmem:[%s1 + $0xcd8] sm:$0xff]
      %v592 = vld [vmem:[%s1 + $0xce0] sm:$0xff]
      %v593 = vld [vmem:[%s1 + $0xce8] sm:$0xff]
      %v594 = vld [vmem:[%s1 + $0xcf0] sm:$0xff]
      %v595 = vld [vmem:[%s1 + $0xcf8] sm:$0xff]
      %v596 = vld [vmem:[%s1 + $0xd00] sm:$0xff]
      %v597 = vld [vmem:[%s1 + $0xd08] sm:$0xff]
      %v598 = vld [vmem:[%s1 + $0xd10] sm:$0xff]
      %v599 = vld [vmem:[%s1 + $0xd18] sm:$0xff]
      %v600 = vld [vmem:[%s1 + $0xd20] sm:$0xff]
      %v601 = vld [vmem:[%s1 + $0xd28] sm:$0xff]
      %v602 = vld [vmem:[%s1 + $0xd30] sm:$0xff]
      %v603 = vld [vmem:[%s1 + $0xd38] sm:$0xff]
      %v604 = vld [vmem:[%s1 + $0xd40] sm:$0xff]
      %v605 = vld [vmem:[%s1 + $0xd48] sm:$0xff]
      %v606 = vld [vmem:[%s1 + $0xd50] sm:$0xff]
      %v607 = vld [vmem:[%s1 + $0xd58] sm:$0xff]
      %v608 = vld [vmem:[%s1 + $0xd60] sm:$0xff]
      %v609 = vld [vmem:[%s1 + $0xd68] sm:$0xff]
      %v610 = vld [vmem:[%s1 + $0xd70] sm:$0xff]
      %v611 = vld [vmem:[%s1 + $0xd78] sm:$0xff]
      %v612 = vld [vmem:[%s1 + $0xd80] sm:$0xff]
      %v613 = vld [vmem:[%s1 + $0xd88] sm:$0xff]
      %v614 = vld [vmem:[%s1 + $0xd90] sm:$0xff]
      %v615 = vld [vmem:[%s1 + $0xd98] sm:$0xff]
      %v616 = vld [vmem:[%s1 + $0xda0] sm:$0xff]
      %v617 = vld [vmem:[%s1 + $0xda8] sm:$0xff]
      %v618 = vld [vmem:[%s1 + $0xdb0] sm:$0xff]
      %v619 = vld [vmem:[%s1 + $0xdb8] sm:$0xff]
      %v620 = vld [vmem:[%s1 + $0xdc0] sm:$0xff]
      %v621 = vld [vmem:[%s1 + $0xdc8] sm:$0xff]
      %v622 = vld [vmem:[%s1 + $0xdd0] sm:$0xff]
      %v623 = vld [vmem:[%s1 + $0xdd8] sm:$0xff]
      %v624 = vld [vmem:[%s1 + $0xde0] sm:$0xff]
      %v625 = vld [vmem:[%s1 + $0xde8] sm:$0xff]
      %v626 = vld [vmem:[%s1 + $0xdf0] sm:$0xff]
      %v627 = vld [vmem:[%s1 + $0xdf8] sm:$0xff]
      %v628 = vld [vmem:[%s1 + $0xe00] sm:$0xff]
      %v629 = vld [vmem:[%s1 + $0xe08] sm:$0xff]
      %v630 = vld [vmem:[%s1 + $0xe10] sm:$0xff]
      %v631 = vld [vmem:[%s1 + $0xe18] sm:$0xff]
      %v632 = vld [vmem:[%s1 + $0xe20] sm:$0xff]
      %v633 = vld [vmem:[%s1 + $0xe28] sm:$0xff]
      %v634 = vld [vmem:[%s1 + $0xe30] sm:$0xff]
      %v635 = vld [vmem:[%s1 + $0xe38] sm:$0xff]
      %v636 = vld [vmem:[%s1 + $0xe40] sm:$0xff]
      %v637 = vld [vmem:[%s1 + $0xe48] sm:$0xff]
      %v638 = vld [vmem:[%s1 + $0xe50] sm:$0xff]
      %v639 = vld [vmem:[%s1 + $0xe58] sm:$0xff]
      %v640 = vld [vmem:[%s1 + $0xe60] sm:$0xff]
      %v641 = vld [vmem:[%s1 + $0xe68] sm:$0xff]
      %v642 = vld [vmem:[%s1 + $0xe70] sm:$0xff]
      %v643 = vld [vmem:[%s1 + $0xe78] sm:$0xff]
      %v644 = vld [vmem:[%s1 + $0xe80] sm:$0xff]
      %v645 = vld [vmem:[%s1 + $0xe88] sm:$0xff]
      %v646 = vld [vmem:[%s1 + $0xe90] sm:$0xff]
      %v647 = vld [vmem:[%s1 + $0xe98] sm:$0xff]
      %v648 = vld [vmem:[%s1 + $0xea0] sm:$0xff]
      %v649 = vld [vmem:[%s1 + $0xea8] sm:$0xff]
      %v650 = vld [vmem:[%s1 + $0xeb0] sm:$0xff]
      %v651 = vld [vmem:[%s1 + $0xeb8] sm:$0xff]
      %v652 = vld [vmem:[%s1 + $0xec0] sm:$0xff]
      %v653 = vld [vmem:[%s1 + $0xec8] sm:$0xff]
      %v654 = vld [vmem:[%s1 + $0xed0] sm:$0xff]
      %v655 = vld [vmem:[%s1 + $0xed8] sm:$0xff]
      %v656 = vld [vmem:[%s1 + $0xee0] sm:$0xff]
      %v657 = vld [vmem:[%s1 + $0xee8] sm:$0xff]
      %v658 = vld [vmem:[%s1 + $0xef0] sm:$0xff]
      %v659 = vld [vmem:[%s1 + $0xef8] sm:$0xff]
      %v660 = vld [vmem:[%s1 + $0xf00] sm:$0xff]
      %v661 = vld [vmem:[%s1 + $0xf08] sm:$0xff]
      %v662 = vld [vmem:[%s1 + $0xf10] sm:$0xff]
      %v663 = vld [vmem:[%s1 + $0xf18] sm:$0xff]
      %v664 = vld [vmem:[%s1 + $0xf20] sm:$0xff]
      %v665 = vld [vmem:[%s1 + $0xf28] sm:$0xff]
      %v666 = vld [vmem:[%s1 + $0xf30] sm:$0xff]
      %v667 = vld [vmem:[%s1 + $0xf38] sm:$0xff]
      %v668 = vld [vmem:[%s1 + $0xf40] sm:$0xff]
      %v669 = vld [vmem:[%s1 + $0xf48] sm:$0xff]
      %v670 = vld [vmem:[%s1 + $0xf50] sm:$0xff]
      %v671 = vld [vmem:[%s1 + $0xf58] sm:$0xff]
      %v672 = vld [vmem:[%s1 + $0xf60] sm:$0xff]
      %v673 = vld [vmem:[%s1 + $0xf68] sm:$0xff]
      %v674 = vld [vmem:[%s1 + $0xf70] sm:$0xff]
      %v675 = vld [vmem:[%s1 + $0xf78] sm:$0xff]
      %v676 = vld [vmem:[%s1 + $0xf80] sm:$0xff]
      %v677 = vld [vmem:[%s1 + $0xf88] sm:$0xff]
      %v678 = vld [vmem:[%s1 + $0xf90] sm:$0xff]
      %v679 = vld [vmem:[%s1 + $0xf98] sm:$0xff]
      %v680 = vld [vmem:[%s1 + $0xfa0] sm:$0xff]
      %v681 = vld [vmem:[%s1 + $0xfa8] sm:$0xff]
      %v682 = vld [vmem:[%s1 + $0xfb0] sm:$0xff]
      %v683 = vld [vmem:[%s1 + $0xfb8] sm:$0xff]
      %v684 = vld [vmem:[%s1 + $0xfc0] sm:$0xff]
      %v685 = vld [vmem:[%s1 + $0xfc8] sm:$0xff]
      %v686 = vld [vmem:[%s1 + $0xfd0] sm:$0xff]
      %v687 = vld [vmem:[%s1 + $0xfd8] sm:$0xff]
      %v688 = vld [vmem:[%s1 + $0xfe0] sm:$0xff]
      %v689 = vld [vmem:[%s1 + $0xfe8] sm:$0xff]
      %v690 = vld [vmem:[%s1 + $0xff0] sm:$0xff]
      %v691 = vld [vmem:[%s1 + $0xff8] sm:$0xff]
      %v692 = vld [vmem:[%s1 + $0x1000] sm:$0xff]
      %v693 = vld [vmem:[%s1 + $0x1008] sm:$0xff]
      %v694 = vld [vmem:[%s1 + $0x1010] sm:$0xff]
      %v695 = vld [vmem:[%s1 + $0x1018] sm:$0xff]
      %v696 = vld [vmem:[%s1 + $0x1020] sm:$0xff]
      %v697 = vld [vmem:[%s1 + $0x1028] sm:$0xff]
      %v698 = vld [vmem:[%s1 + $0x1030] sm:$0xff]
      %v699 = vld [vmem:[%s1 + $0x1038] sm:$0xff]
      %v700 = vld [vmem:[%s1 + $0x1040] sm:$0xff]
      %v701 = vld [vmem:[%s1 + $0x1048] sm:$0xff]
      %v702 = vld [vmem:[%s1 + $0x1050] sm:$0xff]
      %v703 = vld [vmem:[%s1 + $0x1058] sm:$0xff]
      %v704 = vld [vmem:[%s1 + $0x1060] sm:$0xff]
      %v705 = vld [vmem:[%s1 + $0x1068] sm:$0xff]
      %v706 = vld [vmem:[%s1 + $0x1070] sm:$0xff]
      %v707 = vld [vmem:[%s1 + $0x1078] sm:$0xff]
      %v708 = vld [vmem:[%s1 + $0x1080] sm:$0xff]
      %v709 = vld [vmem:[%s1 + $0x1088] sm:$0xff]
      %v710 = vld [vmem:[%s1 + $0x1090] sm:$0xff]
      %v711 = vld [vmem:[%s1 + $0x1098] sm:$0xff]
      %v712 = vld [vmem:[%s1 + $0x10a0] sm:$0xff]
      %v713 = vld [vmem:[%s1 + $0x10a8] sm:$0xff]
      %v714 = vld [vmem:[%s1 + $0x10b0] sm:$0xff]
      %v715 = vld [vmem:[%s1 + $0x10b8] sm:$0xff]
      %v716 = vld [vmem:[%s1 + $0x10c0] sm:$0xff]
      %v717 = vld [vmem:[%s1 + $0x10c8] sm:$0xff]
      %v718 = vld [vmem:[%s1 + $0x10d0] sm:$0xff]
      %v719 = vld [vmem:[%s1 + $0x10d8] sm:$0xff]
      %v720 = vld [vmem:[%s1 + $0x10e0] sm:$0xff]
      %v721 = vld [vmem:[%s1 + $0x10e8] sm:$0xff]
      %v722 = vld [vmem:[%s1 + $0x10f0] sm:$0xff]
      %v723 = vld [vmem:[%s1 + $0x10f8] sm:$0xff]
      %v724 = vld [vmem:[%s1 + $0x1100] sm:$0xff]
      %v725 = vld [vmem:[%s1 + $0x1108] sm:$0xff]
      %v726 = vld [vmem:[%s1 + $0x1110] sm:$0xff]
      %v727 = vld [vmem:[%s1 + $0x1118] sm:$0xff]
      %v728 = vld [vmem:[%s1 + $0x1120] sm:$0xf]
      %v729 = vld [vmem:[%s1 + $0x1128] sm:$0xf]
      %v730 = vld [vmem:[%s1 + $0x1130] sm:$0xf]
      %v731 = vld [vmem:[%s1 + $0x1138] sm:$0xf]
      %v732 = vld [vmem:[%s2] sm:$0xf]
      %v734 = vperm.slane %v732, 0
      %v735 = vperm.slane %v732, 1
      %v736 = vperm.slane %v732, 2
      %v737 = vperm.slane %v732, 3
      %vm742 = vcmask 621568
      %v744 = vsel %vm742, %v179, 0
      %vm746 = vcmask 1043456
      %v748 = vsel %vm746, %v728, 0
      %v751 = vsel %vm746, %v729, 0
      %v754 = vsel %vm746, %v730, 0
      %v757 = vsel %vm746, %v731, 0
      %759 = vmatpush.msra.mxu0 %v240
      %760 = vmatpush.msra.mxu0 %v236
      %761 = vmatpush.msra.mxu0 %v232
      %762 = vmatpush.msra.mxu0 %v228
      %763 = vmatpush.msra.mxu0 %v224
      %764 = vmatpush.msra.mxu0 %v220
      %765 = vmatpush.msra.mxu0 %v216
      %766 = vmatpush.msra.mxu0 %v212
      %767 = vmatpush.msra.mxu0 %v208
      %768 = vmatpush.msra.mxu0 %v204
      %769 = vmatpush.msra.mxu0 %v200
      %770 = vmatpush.msra.mxu0 %v196
      %771 = vmatpush.msra.mxu0 %v192
      %772 = vmatpush.msra.mxu0 %v188
      %773 = vmatpush.msra.mxu0 %v184
      %774 = vmatpush.msra.mxu0 %v180
      %775 = vmatmul.f32.gmra.mxu0 %v171
      %v776 = vpop.f32.mrf.mxu0
      %v777 = vadd.f32 %v734, %v776
      %778 = vdwg.mxu0
      %779 = vmatpush.msra.mxu0 %v304
      %780 = vmatpush.msra.mxu0 %v300
      %781 = vmatpush.msra.mxu0 %v296
      %782 = vmatpush.msra.mxu0 %v292
      %783 = vmatpush.msra.mxu0 %v288
      %784 = vmatpush.msra.mxu0 %v284
      %785 = vmatpush.msra.mxu0 %v280
      %786 = vmatpush.msra.mxu0 %v276
      %787 = vmatpush.msra.mxu0 %v272
      %788 = vmatpush.msra.mxu0 %v268
      %789 = vmatpush.msra.mxu0 %v264
      %790 = vmatpush.msra.mxu0 %v260
      %791 = vmatpush.msra.mxu0 %v256
      %792 = vmatpush.msra.mxu0 %v252
      %793 = vmatpush.msra.mxu0 %v248
      %794 = vmatpush.msra.mxu0 %v244
      %795 = vmatmul.f32.gmra.mxu0 %v172
      %v796 = vpop.f32.mrf.mxu0
      %v797 = vadd.f32 %v777, %v796
      %798 = vdwg.mxu0
      %799 = vmatpush.msra.mxu0 %v368
      %800 = vmatpush.msra.mxu0 %v364
      %801 = vmatpush.msra.mxu0 %v360
      %802 = vmatpush.msra.mxu0 %v356
      %803 = vmatpush.msra.mxu0 %v352
      %804 = vmatpush.msra.mxu0 %v348
      %805 = vmatpush.msra.mxu0 %v344
      %806 = vmatpush.msra.mxu0 %v340
      %807 = vmatpush.msra.mxu0 %v336
      %808 = vmatpush.msra.mxu0 %v332
      %809 = vmatpush.msra.mxu0 %v328
      %810 = vmatpush.msra.mxu0 %v324
      %811 = vmatpush.msra.mxu0 %v320
      %812 = vmatpush.msra.mxu0 %v316
      %813 = vmatpush.msra.mxu0 %v312
      %814 = vmatpush.msra.mxu0 %v308
      %815 = vmatmul.f32.gmra.mxu0 %v173
      %v816 = vpop.f32.mrf.mxu0
      %v817 = vadd.f32 %v797, %v816
      %818 = vdwg.mxu0
      %819 = vmatpush.msra.mxu0 %v432
      %820 = vmatpush.msra.mxu0 %v428
      %821 = vmatpush.msra.mxu0 %v424
      %822 = vmatpush.msra.mxu0 %v420
      %823 = vmatpush.msra.mxu0 %v416
      %824 = vmatpush.msra.mxu0 %v412
      %825 = vmatpush.msra.mxu0 %v408
      %826 = vmatpush.msra.mxu0 %v404
      %827 = vmatpush.msra.mxu0 %v400
      %828 = vmatpush.msra.mxu0 %v396
      %829 = vmatpush.msra.mxu0 %v392
      %830 = vmatpush.msra.mxu0 %v388
      %831 = vmatpush.msra.mxu0 %v384
      %832 = vmatpush.msra.mxu0 %v380
      %833 = vmatpush.msra.mxu0 %v376
      %834 = vmatpush.msra.mxu0 %v372
      %835 = vmatmul.f32.gmra.mxu0 %v174
      %v836 = vpop.f32.mrf.mxu0
      %v837 = vadd.f32 %v817, %v836
      %838 = vdwg.mxu0
      %839 = vmatpush.msra.mxu0 %v496
      %840 = vmatpush.msra.mxu0 %v492
      %841 = vmatpush.msra.mxu0 %v488
      %842 = vmatpush.msra.mxu0 %v484
      %843 = vmatpush.msra.mxu0 %v480
      %844 = vmatpush.msra.mxu0 %v476
      %845 = vmatpush.msra.mxu0 %v472
      %846 = vmatpush.msra.mxu0 %v468
      %847 = vmatpush.msra.mxu0 %v464
      %848 = vmatpush.msra.mxu0 %v460
      %849 = vmatpush.msra.mxu0 %v456
      %850 = vmatpush.msra.mxu0 %v452
      %851 = vmatpush.msra.mxu0 %v448
      %852 = vmatpush.msra.mxu0 %v444
      %853 = vmatpush.msra.mxu0 %v440
      %854 = vmatpush.msra.mxu0 %v436
      %855 = vmatmul.f32.gmra.mxu0 %v175
      %v856 = vpop.f32.mrf.mxu0
      %v857 = vadd.f32 %v837, %v856
      %858 = vdwg.mxu0
      %859 = vmatpush.msra.mxu0 %v560
      %860 = vmatpush.msra.mxu0 %v556
      %861 = vmatpush.msra.mxu0 %v552
      %862 = vmatpush.msra.mxu0 %v548
      %863 = vmatpush.msra.mxu0 %v544
      %864 = vmatpush.msra.mxu0 %v540
      %865 = vmatpush.msra.mxu0 %v536
      %866 = vmatpush.msra.mxu0 %v532
      %867 = vmatpush.msra.mxu0 %v528
      %868 = vmatpush.msra.mxu0 %v524
      %869 = vmatpush.msra.mxu0 %v520
      %870 = vmatpush.msra.mxu0 %v516
      %871 = vmatpush.msra.mxu0 %v512
      %872 = vmatpush.msra.mxu0 %v508
      %873 = vmatpush.msra.mxu0 %v504
      %874 = vmatpush.msra.mxu0 %v500
      %875 = vmatmul.f32.gmra.mxu0 %v176
      %v876 = vpop.f32.mrf.mxu0
      %v877 = vadd.f32 %v857, %v876
      %878 = vdwg.mxu0
      %879 = vmatpush.msra.mxu0 %v624
      %880 = vmatpush.msra.mxu0 %v620
      %881 = vmatpush.msra.mxu0 %v616
      %882 = vmatpush.msra.mxu0 %v612
      %883 = vmatpush.msra.mxu0 %v608
      %884 = vmatpush.msra.mxu0 %v604
      %885 = vmatpush.msra.mxu0 %v600
      %886 = vmatpush.msra.mxu0 %v596
      %887 = vmatpush.msra.mxu0 %v592
      %888 = vmatpush.msra.mxu0 %v588
      %889 = vmatpush.msra.mxu0 %v584
      %890 = vmatpush.msra.mxu0 %v580
      %891 = vmatpush.msra.mxu0 %v576
      %892 = vmatpush.msra.mxu0 %v572
      %893 = vmatpush.msra.mxu0 %v568
      %894 = vmatpush.msra.mxu0 %v564
      %895 = vmatmul.f32.gmra.mxu0 %v177
      %v896 = vpop.f32.mrf.mxu0
      %v897 = vadd.f32 %v877, %v896
      %898 = vdwg.mxu0
      %899 = vmatpush.msra.mxu0 %v688
      %900 = vmatpush.msra.mxu0 %v684
      %901 = vmatpush.msra.mxu0 %v680
      %902 = vmatpush.msra.mxu0 %v676
      %903 = vmatpush.msra.mxu0 %v672
      %904 = vmatpush.msra.mxu0 %v668
      %905 = vmatpush.msra.mxu0 %v664
      %906 = vmatpush.msra.mxu0 %v660
      %907 = vmatpush.msra.mxu0 %v656
      %908 = vmatpush.msra.mxu0 %v652
      %909 = vmatpush.msra.mxu0 %v648
      %910 = vmatpush.msra.mxu0 %v644
      %911 = vmatpush.msra.mxu0 %v640
      %912 = vmatpush.msra.mxu0 %v636
      %913 = vmatpush.msra.mxu0 %v632
      %914 = vmatpush.msra.mxu0 %v628
      %915 = vmatmul.f32.gmra.mxu0 %v178
      %v916 = vpop.f32.mrf.mxu0
      %v917 = vadd.f32 %v897, %v916
      %918 = vdwg.mxu0
      %919 = vmatpush.msra.mxu0 0.0
      %920 = vmatpush.msra.mxu0 0.0
      %921 = vmatpush.msra.mxu0 0.0
      %922 = vmatpush.msra.mxu0 0.0
      %923 = vmatpush.msra.mxu0 0.0
      %924 = vmatpush.msra.mxu0 0.0
      %925 = vmatpush.msra.mxu0 %v748
      %926 = vmatpush.msra.mxu0 %v724
      %927 = vmatpush.msra.mxu0 %v720
      %928 = vmatpush.msra.mxu0 %v716
      %929 = vmatpush.msra.mxu0 %v712
      %930 = vmatpush.msra.mxu0 %v708
      %931 = vmatpush.msra.mxu0 %v704
      %932 = vmatpush.msra.mxu0 %v700
      %933 = vmatpush.msra.mxu0 %v696
      %934 = vmatpush.msra.mxu0 %v692
      %935 = vmatmul.f32.gmra.mxu0 %v744
      %v936 = vpop.f32.mrf.mxu0
      %v937 = vadd.f32 %v917, %v936
      %938 = vdwg.mxu0
      %939 = vmatpush.msra.mxu0 %v241
      %940 = vmatpush.msra.mxu0 %v237
      %941 = vmatpush.msra.mxu0 %v233
      %942 = vmatpush.msra.mxu0 %v229
      %943 = vmatpush.msra.mxu0 %v225
      %944 = vmatpush.msra.mxu0 %v221
      %945 = vmatpush.msra.mxu0 %v217
      %946 = vmatpush.msra.mxu0 %v213
      %947 = vmatpush.msra.mxu0 %v209
      %948 = vmatpush.msra.mxu0 %v205
      %949 = vmatpush.msra.mxu0 %v201
      %950 = vmatpush.msra.mxu0 %v197
      %951 = vmatpush.msra.mxu0 %v193
      %952 = vmatpush.msra.mxu0 %v189
      %953 = vmatpush.msra.mxu0 %v185
      %954 = vmatpush.msra.mxu0 %v181
      %955 = vmatmul.f32.gmra.mxu0 %v171
      %v956 = vpop.f32.mrf.mxu0
      %v957 = vadd.f32 %v735, %v956
      %958 = vdwg.mxu0
      %959 = vmatpush.msra.mxu0 %v305
      %960 = vmatpush.msra.mxu0 %v301
      %961 = vmatpush.msra.mxu0 %v297
      %962 = vmatpush.msra.mxu0 %v293
      %963 = vmatpush.msra.mxu0 %v289
      %964 = vmatpush.msra.mxu0 %v285
      %965 = vmatpush.msra.mxu0 %v281
      %966 = vmatpush.msra.mxu0 %v277
      %967 = vmatpush.msra.mxu0 %v273
      %968 = vmatpush.msra.mxu0 %v269
      %969 = vmatpush.msra.mxu0 %v265
      %970 = vmatpush.msra.mxu0 %v261
      %971 = vmatpush.msra.mxu0 %v257
      %972 = vmatpush.msra.mxu0 %v253
      %973 = vmatpush.msra.mxu0 %v249
      %974 = vmatpush.msra.mxu0 %v245
      %975 = vmatmul.f32.gmra.mxu0 %v172
      %v976 = vpop.f32.mrf.mxu0
      %v977 = vadd.f32 %v957, %v976
      %978 = vdwg.mxu0
      %979 = vmatpush.msra.mxu0 %v369
      %980 = vmatpush.msra.mxu0 %v365
      %981 = vmatpush.msra.mxu0 %v361
      %982 = vmatpush.msra.mxu0 %v357
      %983 = vmatpush.msra.mxu0 %v353
      %984 = vmatpush.msra.mxu0 %v349
      %985 = vmatpush.msra.mxu0 %v345
      %986 = vmatpush.msra.mxu0 %v341
      %987 = vmatpush.msra.mxu0 %v337
      %988 = vmatpush.msra.mxu0 %v333
      %989 = vmatpush.msra.mxu0 %v329
      %990 = vmatpush.msra.mxu0 %v325
      %991 = vmatpush.msra.mxu0 %v321
      %992 = vmatpush.msra.mxu0 %v317
      %993 = vmatpush.msra.mxu0 %v313
      %994 = vmatpush.msra.mxu0 %v309
      %995 = vmatmul.f32.gmra.mxu0 %v173
      %v996 = vpop.f32.mrf.mxu0
      %v997 = vadd.f32 %v977, %v996
      %998 = vdwg.mxu0
      %999 = vmatpush.msra.mxu0 %v433
      %1000 = vmatpush.msra.mxu0 %v429
      %1001 = vmatpush.msra.mxu0 %v425
      %1002 = vmatpush.msra.mxu0 %v421
      %1003 = vmatpush.msra.mxu0 %v417
      %1004 = vmatpush.msra.mxu0 %v413
      %1005 = vmatpush.msra.mxu0 %v409
      %1006 = vmatpush.msra.mxu0 %v405
      %1007 = vmatpush.msra.mxu0 %v401
      %1008 = vmatpush.msra.mxu0 %v397
      %1009 = vmatpush.msra.mxu0 %v393
      %1010 = vmatpush.msra.mxu0 %v389
      %1011 = vmatpush.msra.mxu0 %v385
      %1012 = vmatpush.msra.mxu0 %v381
      %1013 = vmatpush.msra.mxu0 %v377
      %1014 = vmatpush.msra.mxu0 %v373
      %1015 = vmatmul.f32.gmra.mxu0 %v174
      %v1016 = vpop.f32.mrf.mxu0
      %v1017 = vadd.f32 %v997, %v1016
      %1018 = vdwg.mxu0
      %1019 = vmatpush.msra.mxu0 %v497
      %1020 = vmatpush.msra.mxu0 %v493
      %1021 = vmatpush.msra.mxu0 %v489
      %1022 = vmatpush.msra.mxu0 %v485
      %1023 = vmatpush.msra.mxu0 %v481
      %1024 = vmatpush.msra.mxu0 %v477
      %1025 = vmatpush.msra.mxu0 %v473
      %1026 = vmatpush.msra.mxu0 %v469
      %1027 = vmatpush.msra.mxu0 %v465
      %1028 = vmatpush.msra.mxu0 %v461
      %1029 = vmatpush.msra.mxu0 %v457
      %1030 = vmatpush.msra.mxu0 %v453
      %1031 = vmatpush.msra.mxu0 %v449
      %1032 = vmatpush.msra.mxu0 %v445
      %1033 = vmatpush.msra.mxu0 %v441
      %1034 = vmatpush.msra.mxu0 %v437
      %1035 = vmatmul.f32.gmra.mxu0 %v175
      %v1036 = vpop.f32.mrf.mxu0
      %v1037 = vadd.f32 %v1017, %v1036
      %1038 = vdwg.mxu0
      %1039 = vmatpush.msra.mxu0 %v561
      %1040 = vmatpush.msra.mxu0 %v557
      %1041 = vmatpush.msra.mxu0 %v553
      %1042 = vmatpush.msra.mxu0 %v549
      %1043 = vmatpush.msra.mxu0 %v545
      %1044 = vmatpush.msra.mxu0 %v541
      %1045 = vmatpush.msra.mxu0 %v537
      %1046 = vmatpush.msra.mxu0 %v533
      %1047 = vmatpush.msra.mxu0 %v529
      %1048 = vmatpush.msra.mxu0 %v525
      %1049 = vmatpush.msra.mxu0 %v521
      %1050 = vmatpush.msra.mxu0 %v517
      %1051 = vmatpush.msra.mxu0 %v513
      %1052 = vmatpush.msra.mxu0 %v509
      %1053 = vmatpush.msra.mxu0 %v505
      %1054 = vmatpush.msra.mxu0 %v501
      %1055 = vmatmul.f32.gmra.mxu0 %v176
      %v1056 = vpop.f32.mrf.mxu0
      %v1057 = vadd.f32 %v1037, %v1056
      %1058 = vdwg.mxu0
      %1059 = vmatpush.msra.mxu0 %v625
      %1060 = vmatpush.msra.mxu0 %v621
      %1061 = vmatpush.msra.mxu0 %v617
      %1062 = vmatpush.msra.mxu0 %v613
      %1063 = vmatpush.msra.mxu0 %v609
      %1064 = vmatpush.msra.mxu0 %v605
      %1065 = vmatpush.msra.mxu0 %v601
      %1066 = vmatpush.msra.mxu0 %v597
      %1067 = vmatpush.msra.mxu0 %v593
      %1068 = vmatpush.msra.mxu0 %v589
      %1069 = vmatpush.msra.mxu0 %v585
      %1070 = vmatpush.msra.mxu0 %v581
      %1071 = vmatpush.msra.mxu0 %v577
      %1072 = vmatpush.msra.mxu0 %v573
      %1073 = vmatpush.msra.mxu0 %v569
      %1074 = vmatpush.msra.mxu0 %v565
      %1075 = vmatmul.f32.gmra.mxu0 %v177
      %v1076 = vpop.f32.mrf.mxu0
      %v1077 = vadd.f32 %v1057, %v1076
      %1078 = vdwg.mxu0
      %1079 = vmatpush.msra.mxu0 %v689
      %1080 = vmatpush.msra.mxu0 %v685
      %1081 = vmatpush.msra.mxu0 %v681
      %1082 = vmatpush.msra.mxu0 %v677
      %1083 = vmatpush.msra.mxu0 %v673
      %1084 = vmatpush.msra.mxu0 %v669
      %1085 = vmatpush.msra.mxu0 %v665
      %1086 = vmatpush.msra.mxu0 %v661
      %1087 = vmatpush.msra.mxu0 %v657
      %1088 = vmatpush.msra.mxu0 %v653
      %1089 = vmatpush.msra.mxu0 %v649
      %1090 = vmatpush.msra.mxu0 %v645
      %1091 = vmatpush.msra.mxu0 %v641
      %1092 = vmatpush.msra.mxu0 %v637
      %1093 = vmatpush.msra.mxu0 %v633
      %1094 = vmatpush.msra.mxu0 %v629
      %1095 = vmatmul.f32.gmra.mxu0 %v178
      %v1096 = vpop.f32.mrf.mxu0
      %v1097 = vadd.f32 %v1077, %v1096
      %1098 = vdwg.mxu0
      %1099 = vmatpush.msra.mxu0 0.0
      %1100 = vmatpush.msra.mxu0 0.0
      %1101 = vmatpush.msra.mxu0 0.0
      %1102 = vmatpush.msra.mxu0 0.0
      %1103 = vmatpush.msra.mxu0 0.0
      %1104 = vmatpush.msra.mxu0 0.0
      %1105 = vmatpush.msra.mxu0 %v751
      %1106 = vmatpush.msra.mxu0 %v725
      %1107 = vmatpush.msra.mxu0 %v721
      %1108 = vmatpush.msra.mxu0 %v717
      %1109 = vmatpush.msra.mxu0 %v713
      %1110 = vmatpush.msra.mxu0 %v709
      %1111 = vmatpush.msra.mxu0 %v705
      %1112 = vmatpush.msra.mxu0 %v701
      %1113 = vmatpush.msra.mxu0 %v697
      %1114 = vmatpush.msra.mxu0 %v693
      %1115 = vmatmul.f32.gmra.mxu0 %v744
      %v1116 = vpop.f32.mrf.mxu0
      %v1117 = vadd.f32 %v1097, %v1116
      %1118 = vdwg.mxu0
      %1119 = vmatpush.msra.mxu0 %v242
      %1120 = vmatpush.msra.mxu0 %v238
      %1121 = vmatpush.msra.mxu0 %v234
      %1122 = vmatpush.msra.mxu0 %v230
      %1123 = vmatpush.msra.mxu0 %v226
      %1124 = vmatpush.msra.mxu0 %v222
      %1125 = vmatpush.msra.mxu0 %v218
      %1126 = vmatpush.msra.mxu0 %v214
      %1127 = vmatpush.msra.mxu0 %v210
      %1128 = vmatpush.msra.mxu0 %v206
      %1129 = vmatpush.msra.mxu0 %v202
      %1130 = vmatpush.msra.mxu0 %v198
      %1131 = vmatpush.msra.mxu0 %v194
      %1132 = vmatpush.msra.mxu0 %v190
      %1133 = vmatpush.msra.mxu0 %v186
      %1134 = vmatpush.msra.mxu0 %v182
      %1135 = vmatmul.f32.gmra.mxu0 %v171
      %v1136 = vpop.f32.mrf.mxu0
      %v1137 = vadd.f32 %v736, %v1136
      %1138 = vdwg.mxu0
      %1139 = vmatpush.msra.mxu0 %v306
      %1140 = vmatpush.msra.mxu0 %v302
      %1141 = vmatpush.msra.mxu0 %v298
      %1142 = vmatpush.msra.mxu0 %v294
      %1143 = vmatpush.msra.mxu0 %v290
      %1144 = vmatpush.msra.mxu0 %v286
      %1145 = vmatpush.msra.mxu0 %v282
      %1146 = vmatpush.msra.mxu0 %v278
      %1147 = vmatpush.msra.mxu0 %v274
      %1148 = vmatpush.msra.mxu0 %v270
      %1149 = vmatpush.msra.mxu0 %v266
      %1150 = vmatpush.msra.mxu0 %v262
      %1151 = vmatpush.msra.mxu0 %v258
      %1152 = vmatpush.msra.mxu0 %v254
      %1153 = vmatpush.msra.mxu0 %v250
      %1154 = vmatpush.msra.mxu0 %v246
      %1155 = vmatmul.f32.gmra.mxu0 %v172
      %v1156 = vpop.f32.mrf.mxu0
      %v1157 = vadd.f32 %v1137, %v1156
      %1158 = vdwg.mxu0
      %1159 = vmatpush.msra.mxu0 %v370
      %1160 = vmatpush.msra.mxu0 %v366
      %1161 = vmatpush.msra.mxu0 %v362
      %1162 = vmatpush.msra.mxu0 %v358
      %1163 = vmatpush.msra.mxu0 %v354
      %1164 = vmatpush.msra.mxu0 %v350
      %1165 = vmatpush.msra.mxu0 %v346
      %1166 = vmatpush.msra.mxu0 %v342
      %1167 = vmatpush.msra.mxu0 %v338
      %1168 = vmatpush.msra.mxu0 %v334
      %1169 = vmatpush.msra.mxu0 %v330
      %1170 = vmatpush.msra.mxu0 %v326
      %1171 = vmatpush.msra.mxu0 %v322
      %1172 = vmatpush.msra.mxu0 %v318
      %1173 = vmatpush.msra.mxu0 %v314
      %1174 = vmatpush.msra.mxu0 %v310
      %1175 = vmatmul.f32.gmra.mxu0 %v173
      %v1176 = vpop.f32.mrf.mxu0
      %v1177 = vadd.f32 %v1157, %v1176
      %1178 = vdwg.mxu0
      %1179 = vmatpush.msra.mxu0 %v434
      %1180 = vmatpush.msra.mxu0 %v430
      %1181 = vmatpush.msra.mxu0 %v426
      %1182 = vmatpush.msra.mxu0 %v422
      %1183 = vmatpush.msra.mxu0 %v418
      %1184 = vmatpush.msra.mxu0 %v414
      %1185 = vmatpush.msra.mxu0 %v410
      %1186 = vmatpush.msra.mxu0 %v406
      %1187 = vmatpush.msra.mxu0 %v402
      %1188 = vmatpush.msra.mxu0 %v398
      %1189 = vmatpush.msra.mxu0 %v394
      %1190 = vmatpush.msra.mxu0 %v390
      %1191 = vmatpush.msra.mxu0 %v386
      %1192 = vmatpush.msra.mxu0 %v382
      %1193 = vmatpush.msra.mxu0 %v378
      %1194 = vmatpush.msra.mxu0 %v374
      %1195 = vmatmul.f32.gmra.mxu0 %v174
      %v1196 = vpop.f32.mrf.mxu0
      %v1197 = vadd.f32 %v1177, %v1196
      %1198 = vdwg.mxu0
      %1199 = vmatpush.msra.mxu0 %v498
      %1200 = vmatpush.msra.mxu0 %v494
      %1201 = vmatpush.msra.mxu0 %v490
      %1202 = vmatpush.msra.mxu0 %v486
      %1203 = vmatpush.msra.mxu0 %v482
      %1204 = vmatpush.msra.mxu0 %v478
      %1205 = vmatpush.msra.mxu0 %v474
      %1206 = vmatpush.msra.mxu0 %v470
      %1207 = vmatpush.msra.mxu0 %v466
      %1208 = vmatpush.msra.mxu0 %v462
      %1209 = vmatpush.msra.mxu0 %v458
      %1210 = vmatpush.msra.mxu0 %v454
      %1211 = vmatpush.msra.mxu0 %v450
      %1212 = vmatpush.msra.mxu0 %v446
      %1213 = vmatpush.msra.mxu0 %v442
      %1214 = vmatpush.msra.mxu0 %v438
      %1215 = vmatmul.f32.gmra.mxu0 %v175
      %v1216 = vpop.f32.mrf.mxu0
      %v1217 = vadd.f32 %v1197, %v1216
      %1218 = vdwg.mxu0
      %1219 = vmatpush.msra.mxu0 %v562
      %1220 = vmatpush.msra.mxu0 %v558
      %1221 = vmatpush.msra.mxu0 %v554
      %1222 = vmatpush.msra.mxu0 %v550
      %1223 = vmatpush.msra.mxu0 %v546
      %1224 = vmatpush.msra.mxu0 %v542
      %1225 = vmatpush.msra.mxu0 %v538
      %1226 = vmatpush.msra.mxu0 %v534
      %1227 = vmatpush.msra.mxu0 %v530
      %1228 = vmatpush.msra.mxu0 %v526
      %1229 = vmatpush.msra.mxu0 %v522
      %1230 = vmatpush.msra.mxu0 %v518
      %1231 = vmatpush.msra.mxu0 %v514
      %1232 = vmatpush.msra.mxu0 %v510
      %1233 = vmatpush.msra.mxu0 %v506
      %1234 = vmatpush.msra.mxu0 %v502
      %1235 = vmatmul.f32.gmra.mxu0 %v176
      %v1236 = vpop.f32.mrf.mxu0
      %v1237 = vadd.f32 %v1217, %v1236
      %1238 = vdwg.mxu0
      %1239 = vmatpush.msra.mxu0 %v626
      %1240 = vmatpush.msra.mxu0 %v622
      %1241 = vmatpush.msra.mxu0 %v618
      %1242 = vmatpush.msra.mxu0 %v614
      %1243 = vmatpush.msra.mxu0 %v610
      %1244 = vmatpush.msra.mxu0 %v606
      %1245 = vmatpush.msra.mxu0 %v602
      %1246 = vmatpush.msra.mxu0 %v598
      %1247 = vmatpush.msra.mxu0 %v594
      %1248 = vmatpush.msra.mxu0 %v590
      %1249 = vmatpush.msra.mxu0 %v586
      %1250 = vmatpush.msra.mxu0 %v582
      %1251 = vmatpush.msra.mxu0 %v578
      %1252 = vmatpush.msra.mxu0 %v574
      %1253 = vmatpush.msra.mxu0 %v570
      %1254 = vmatpush.msra.mxu0 %v566
      %1255 = vmatmul.f32.gmra.mxu0 %v177
      %v1256 = vpop.f32.mrf.mxu0
      %v1257 = vadd.f32 %v1237, %v1256
      %1258 = vdwg.mxu0
      %1259 = vmatpush.msra.mxu0 %v690
      %1260 = vmatpush.msra.mxu0 %v686
      %1261 = vmatpush.msra.mxu0 %v682
      %1262 = vmatpush.msra.mxu0 %v678
      %1263 = vmatpush.msra.mxu0 %v674
      %1264 = vmatpush.msra.mxu0 %v670
      %1265 = vmatpush.msra.mxu0 %v666
      %1266 = vmatpush.msra.mxu0 %v662
      %1267 = vmatpush.msra.mxu0 %v658
      %1268 = vmatpush.msra.mxu0 %v654
      %1269 = vmatpush.msra.mxu0 %v650
      %1270 = vmatpush.msra.mxu0 %v646
      %1271 = vmatpush.msra.mxu0 %v642
      %1272 = vmatpush.msra.mxu0 %v638
      %1273 = vmatpush.msra.mxu0 %v634
      %1274 = vmatpush.msra.mxu0 %v630
      %1275 = vmatmul.f32.gmra.mxu0 %v178
      %v1276 = vpop.f32.mrf.mxu0
      %v1277 = vadd.f32 %v1257, %v1276
      %1278 = vdwg.mxu0
      %1279 = vmatpush.msra.mxu0 0.0
      %1280 = vmatpush.msra.mxu0 0.0
      %1281 = vmatpush.msra.mxu0 0.0
      %1282 = vmatpush.msra.mxu0 0.0
      %1283 = vmatpush.msra.mxu0 0.0
      %1284 = vmatpush.msra.mxu0 0.0
      %1285 = vmatpush.msra.mxu0 %v754
      %1286 = vmatpush.msra.mxu0 %v726
      %1287 = vmatpush.msra.mxu0 %v722
      %1288 = vmatpush.msra.mxu0 %v718
      %1289 = vmatpush.msra.mxu0 %v714
      %1290 = vmatpush.msra.mxu0 %v710
      %1291 = vmatpush.msra.mxu0 %v706
      %1292 = vmatpush.msra.mxu0 %v702
      %1293 = vmatpush.msra.mxu0 %v698
      %1294 = vmatpush.msra.mxu0 %v694
      %1295 = vmatmul.f32.gmra.mxu0 %v744
      %v1296 = vpop.f32.mrf.mxu0
      %v1297 = vadd.f32 %v1277, %v1296
      %1298 = vdwg.mxu0
      %1299 = vmatpush.msra.mxu0 %v243
      %1300 = vmatpush.msra.mxu0 %v239
      %1301 = vmatpush.msra.mxu0 %v235
      %1302 = vmatpush.msra.mxu0 %v231
      %1303 = vmatpush.msra.mxu0 %v227
      %1304 = vmatpush.msra.mxu0 %v223
      %1305 = vmatpush.msra.mxu0 %v219
      %1306 = vmatpush.msra.mxu0 %v215
      %1307 = vmatpush.msra.mxu0 %v211
      %1308 = vmatpush.msra.mxu0 %v207
      %1309 = vmatpush.msra.mxu0 %v203
      %1310 = vmatpush.msra.mxu0 %v199
      %1311 = vmatpush.msra.mxu0 %v195
      %1312 = vmatpush.msra.mxu0 %v191
      %1313 = vmatpush.msra.mxu0 %v187
      %1314 = vmatpush.msra.mxu0 %v183
      %1315 = vmatmul.f32.gmra.mxu0 %v171
      %v1316 = vpop.f32.mrf.mxu0
      %v1317 = vadd.f32 %v737, %v1316
      %1318 = vdwg.mxu0
      %1319 = vmatpush.msra.mxu0 %v307
      %1320 = vmatpush.msra.mxu0 %v303
      %1321 = vmatpush.msra.mxu0 %v299
      %1322 = vmatpush.msra.mxu0 %v295
      %1323 = vmatpush.msra.mxu0 %v291
      %1324 = vmatpush.msra.mxu0 %v287
      %1325 = vmatpush.msra.mxu0 %v283
      %1326 = vmatpush.msra.mxu0 %v279
      %1327 = vmatpush.msra.mxu0 %v275
      %1328 = vmatpush.msra.mxu0 %v271
      %1329 = vmatpush.msra.mxu0 %v267
      %1330 = vmatpush.msra.mxu0 %v263
      %1331 = vmatpush.msra.mxu0 %v259
      %1332 = vmatpush.msra.mxu0 %v255
      %1333 = vmatpush.msra.mxu0 %v251
      %1334 = vmatpush.msra.mxu0 %v247
      %1335 = vmatmul.f32.gmra.mxu0 %v172
      %v1336 = vpop.f32.mrf.mxu0
      %v1337 = vadd.f32 %v1317, %v1336
      %1338 = vdwg.mxu0
      %1339 = vmatpush.msra.mxu0 %v371
      %1340 = vmatpush.msra.mxu0 %v367
      %1341 = vmatpush.msra.mxu0 %v363
      %1342 = vmatpush.msra.mxu0 %v359
      %1343 = vmatpush.msra.mxu0 %v355
      %1344 = vmatpush.msra.mxu0 %v351
      %1345 = vmatpush.msra.mxu0 %v347
      %1346 = vmatpush.msra.mxu0 %v343
      %1347 = vmatpush.msra.mxu0 %v339
      %1348 = vmatpush.msra.mxu0 %v335
      %1349 = vmatpush.msra.mxu0 %v331
      %1350 = vmatpush.msra.mxu0 %v327
      %1351 = vmatpush.msra.mxu0 %v323
      %1352 = vmatpush.msra.mxu0 %v319
      %1353 = vmatpush.msra.mxu0 %v315
      %1354 = vmatpush.msra.mxu0 %v311
      %1355 = vmatmul.f32.gmra.mxu0 %v173
      %v1356 = vpop.f32.mrf.mxu0
      %v1357 = vadd.f32 %v1337, %v1356
      %1358 = vdwg.mxu0
      %1359 = vmatpush.msra.mxu0 %v435
      %1360 = vmatpush.msra.mxu0 %v431
      %1361 = vmatpush.msra.mxu0 %v427
      %1362 = vmatpush.msra.mxu0 %v423
      %1363 = vmatpush.msra.mxu0 %v419
      %1364 = vmatpush.msra.mxu0 %v415
      %1365 = vmatpush.msra.mxu0 %v411
      %1366 = vmatpush.msra.mxu0 %v407
      %1367 = vmatpush.msra.mxu0 %v403
      %1368 = vmatpush.msra.mxu0 %v399
      %1369 = vmatpush.msra.mxu0 %v395
      %1370 = vmatpush.msra.mxu0 %v391
      %1371 = vmatpush.msra.mxu0 %v387
      %1372 = vmatpush.msra.mxu0 %v383
      %1373 = vmatpush.msra.mxu0 %v379
      %1374 = vmatpush.msra.mxu0 %v375
      %1375 = vmatmul.f32.gmra.mxu0 %v174
      %v1376 = vpop.f32.mrf.mxu0
      %v1377 = vadd.f32 %v1357, %v1376
      %1378 = vdwg.mxu0
      %1379 = vmatpush.msra.mxu0 %v499
      %1380 = vmatpush.msra.mxu0 %v495
      %1381 = vmatpush.msra.mxu0 %v491
      %1382 = vmatpush.msra.mxu0 %v487
      %1383 = vmatpush.msra.mxu0 %v483
      %1384 = vmatpush.msra.mxu0 %v479
      %1385 = vmatpush.msra.mxu0 %v475
      %1386 = vmatpush.msra.mxu0 %v471
      %1387 = vmatpush.msra.mxu0 %v467
      %1388 = vmatpush.msra.mxu0 %v463
      %1389 = vmatpush.msra.mxu0 %v459
      %1390 = vmatpush.msra.mxu0 %v455
      %1391 = vmatpush.msra.mxu0 %v451
      %1392 = vmatpush.msra.mxu0 %v447
      %1393 = vmatpush.msra.mxu0 %v443
      %1394 = vmatpush.msra.mxu0 %v439
      %1395 = vmatmul.f32.gmra.mxu0 %v175
      %v1396 = vpop.f32.mrf.mxu0
      %v1397 = vadd.f32 %v1377, %v1396
      %1398 = vdwg.mxu0
      %1399 = vmatpush.msra.mxu0 %v563
      %1400 = vmatpush.msra.mxu0 %v559
      %1401 = vmatpush.msra.mxu0 %v555
      %1402 = vmatpush.msra.mxu0 %v551
      %1403 = vmatpush.msra.mxu0 %v547
      %1404 = vmatpush.msra.mxu0 %v543
      %1405 = vmatpush.msra.mxu0 %v539
      %1406 = vmatpush.msra.mxu0 %v535
      %1407 = vmatpush.msra.mxu0 %v531
      %1408 = vmatpush.msra.mxu0 %v527
      %1409 = vmatpush.msra.mxu0 %v523
      %1410 = vmatpush.msra.mxu0 %v519
      %1411 = vmatpush.msra.mxu0 %v515
      %1412 = vmatpush.msra.mxu0 %v511
      %1413 = vmatpush.msra.mxu0 %v507
      %1414 = vmatpush.msra.mxu0 %v503
      %1415 = vmatmul.f32.gmra.mxu0 %v176
      %v1416 = vpop.f32.mrf.mxu0
      %v1417 = vadd.f32 %v1397, %v1416
      %1418 = vdwg.mxu0
      %1419 = vmatpush.msra.mxu0 %v627
      %1420 = vmatpush.msra.mxu0 %v623
      %1421 = vmatpush.msra.mxu0 %v619
      %1422 = vmatpush.msra.mxu0 %v615
      %1423 = vmatpush.msra.mxu0 %v611
      %1424 = vmatpush.msra.mxu0 %v607
      %1425 = vmatpush.msra.mxu0 %v603
      %1426 = vmatpush.msra.mxu0 %v599
      %1427 = vmatpush.msra.mxu0 %v595
      %1428 = vmatpush.msra.mxu0 %v591
      %1429 = vmatpush.msra.mxu0 %v587
      %1430 = vmatpush.msra.mxu0 %v583
      %1431 = vmatpush.msra.mxu0 %v579
      %1432 = vmatpush.msra.mxu0 %v575
      %1433 = vmatpush.msra.mxu0 %v571
      %1434 = vmatpush.msra.mxu0 %v567
      %1435 = vmatmul.f32.gmra.mxu0 %v177
      %v1436 = vpop.f32.mrf.mxu0
      %v1437 = vadd.f32 %v1417, %v1436
      %1438 = vdwg.mxu0
      %1439 = vmatpush.msra.mxu0 %v691
      %1440 = vmatpush.msra.mxu0 %v687
      %1441 = vmatpush.msra.mxu0 %v683
      %1442 = vmatpush.msra.mxu0 %v679
      %1443 = vmatpush.msra.mxu0 %v675
      %1444 = vmatpush.msra.mxu0 %v671
      %1445 = vmatpush.msra.mxu0 %v667
      %1446 = vmatpush.msra.mxu0 %v663
      %1447 = vmatpush.msra.mxu0 %v659
      %1448 = vmatpush.msra.mxu0 %v655
      %1449 = vmatpush.msra.mxu0 %v651
      %1450 = vmatpush.msra.mxu0 %v647
      %1451 = vmatpush.msra.mxu0 %v643
      %1452 = vmatpush.msra.mxu0 %v639
      %1453 = vmatpush.msra.mxu0 %v635
      %1454 = vmatpush.msra.mxu0 %v631
      %1455 = vmatmul.f32.gmra.mxu0 %v178
      %v1456 = vpop.f32.mrf.mxu0
      %v1457 = vadd.f32 %v1437, %v1456
      %1458 = vdwg.mxu0
      %1459 = vmatpush.msra.mxu0 0.0
      %1460 = vmatpush.msra.mxu0 0.0
      %1461 = vmatpush.msra.mxu0 0.0
      %1462 = vmatpush.msra.mxu0 0.0
      %1463 = vmatpush.msra.mxu0 0.0
      %1464 = vmatpush.msra.mxu0 0.0
      %1465 = vmatpush.msra.mxu0 %v757
      %1466 = vmatpush.msra.mxu0 %v727
      %1467 = vmatpush.msra.mxu0 %v723
      %1468 = vmatpush.msra.mxu0 %v719
      %1469 = vmatpush.msra.mxu0 %v715
      %1470 = vmatpush.msra.mxu0 %v711
      %1471 = vmatpush.msra.mxu0 %v707
      %1472 = vmatpush.msra.mxu0 %v703
      %1473 = vmatpush.msra.mxu0 %v699
      %1474 = vmatpush.msra.mxu0 %v695
      %1475 = vmatmul.f32.gmra.mxu0 %v744
      %v1476 = vpop.f32.mrf.mxu0
      %v1477 = vadd.f32 %v1457, %v1476
      %1478 = vdwg.mxu0
      %1479 = vst [vmem:[%s170] sm:$0xff] %v937
      %1480 = vst [vmem:[%s170 + $0x8] sm:$0xff] %v1117
      %1481 = vst [vmem:[%s170 + $0x10] sm:$0xff] %v1297
      %1482 = vst [vmem:[%s170 + $0x18] sm:$0xff] %v1477
      %p1483 = scmp.lt.s32.totalorder %s14, 1
      %s1484 = scalar_select %p1483, %s14, 1
      %s1485 = smul.addr %s1484, 4
      %s1486 = smul.addr %s1485, 8
      %s1487 = scalar_lea.vmem %s3, %s1486
      // Predicated region
      $region33: #{ast2class2_forward.3} parent=31 // pred_check
        %p1488 = pneg %p100
      $region34: #{ast2class2_forward.3} parent=31 // pred_check_branch
        %1490 = sbr.rel (%p1488) target = $region36
      $region35: #{ast2class2_forward.3} parent=31 // pred_region
        _
      $region36: #{ast2class2_forward.3} parent=31 // pred_fallthru
        _
    $region32: #{ast2class2_forward.3} parent=5 // pred_fallthru
      _
    %p1491 = scmp.le.s32.totalorder 2, %s9
    // Predicated region
    $region37: #{ast2class2_forward.3} parent=5 // pred_check
      %p1492 = pneg %p1491
    $region38: #{ast2class2_forward.3} parent=5 // pred_check_branch
      %1494 = sbr.rel (%p1492) target = $region40
    $region39: #{ast2class2_forward.3} parent=5 // pred_region
      %s1495 = ssub.s32 %s9, 2
      // Predicated region
      $region41: #{ast2class2_forward.3} parent=39 // pred_check
        %p1496 = pneg %p106
      $region42: #{ast2class2_forward.3} parent=39 // pred_check_branch
        %1498 = sbr.rel (%p1496) target = $region44
      $region43: #{ast2class2_forward.3} parent=39 // pred_region
        %p1499 = scmp.lt.s32.totalorder %s15, 1
        %s1500 = scalar_select %p1499, %s15, 1
        %s1501 = smul.addr %s1500, 4
        %s1502 = smul.addr %s1501, 8
        %s1503 = scalar_lea.vmem %s3, %s1502
      $region44: #{ast2class2_forward.3} parent=39 // pred_fallthru
        _
    $region40: #{ast2class2_forward.3} parent=5 // pred_fallthru
      _
  $region6: #{ast2class2_forward.3} parent=0 // loop_footer
    %s13 = sadd.s32 1, %s9
  $region7: #{ast2class2_forward.3} parent=0 // loop_footer_branch
    %8 = sbr.rel target = $region3
  $region8: #{ast2class2_forward.3} parent=0 // loop_exit
    _

// kernel: ast2class2_forward.4
$region0: #{ast2class2_forward.4}
  #allocation0 [shape = 'u32[]', space=smem, size = 0x4, offset = 0x4, fixed_abs, tag = 'smem constant byte address 0x4 - core index']
  #allocation1 [shape = 'u32[72,128]{1,0:T(1,128)}', space=vmem, size = 0x9000, scoped, tag = 'internal scratch']
  %s0 = inlined_call_operand.vmem [shape: f32[8,2,512], index: 0, kind: input, shape index: {}]
  %s1 = inlined_call_operand.vmem [shape: f32[128,512], index: 1, kind: input, shape index: {}]
  %s2 = inlined_call_operand.vmem [shape: f32[128,512], index: 2, kind: input, shape index: {}]
  %s3 = inlined_call_operand.vmem [shape: f32[128,512], index: 3, kind: input, shape index: {}]
  %s4 = inlined_call_operand.vmem [shape: f32[1,512], index: 4, kind: input, shape index: {}]
  %s5 = inlined_call_operand.vmem [shape: f32[8,2,128], index: 5, kind: output, shape index: {0}]
  %s6 = inlined_call_operand.hbm [shape: f32[2,2,128], index: 6, kind: output, shape index: {1}]
  %s7 = inlined_call_operand.hbm [shape: f32[2,2,128], index: 7, kind: output, shape index: {2}]
  %8 = xla_tuple %s5, %s6, %s7
  %s9 = sld [smem:[#allocation0]]
  $region46: #{ast2class2_forward.4} parent=0
    _
  %s11 = ssub.s32 1, %s9
  %s12 = scalar_select 0, %s11, %s9
  $region1: #{ast2class2_forward.4} parent=0
    #allocation2 [shape = 'u8[2048]{0}', space=vmem, size = 0x800, scoped, tag = 'output window, operand 1, single buffered']
    #allocation3 [shape = 's32[1]{0}', space=sflag, size = 0x4, scoped, tag = 'scoped memory for ast2class2_forward.4']
    #allocation4 [shape = 'u8[2048]{0}', space=vmem, size = 0x800, scoped, tag = 'output window, operand 2, single buffered']
    #allocation5 [shape = 's32[1]{0}', space=sflag, size = 0x4, scoped, tag = 'scoped memory for ast2class2_forward.4']
    %13 = vsyncpa [#allocation3], 0
    %14 = vsyncpa [#allocation5], 0
    // Predicated region
    $region2: #{ast2class2_forward.4} parent=1 // pred_check
      _
    $region3: #{ast2class2_forward.4} parent=1 // pred_check_branch
      %16 = sbr.rel (0) target = $region5
    $region4: #{ast2class2_forward.4} parent=1 // pred_region
      _
    $region5: #{ast2class2_forward.4} parent=1 // pred_fallthru
      _
    // Predicated region
    $region6: #{ast2class2_forward.4} parent=1 // pred_check
      _
    $region7: #{ast2class2_forward.4} parent=1 // pred_check_branch
      %18 = sbr.rel (0) target = $region9
    $region8: #{ast2class2_forward.4} parent=1 // pred_region
      _
    $region9: #{ast2class2_forward.4} parent=1 // pred_fallthru
      _
    // Predicated region
    $region10: #{ast2class2_forward.4} parent=1 // pred_check
      _
    $region11: #{ast2class2_forward.4} parent=1 // pred_check_branch
      %20 = sbr.rel (0) target = $region13
    $region12: #{ast2class2_forward.4} parent=1 // pred_region
      _
    $region13: #{ast2class2_forward.4} parent=1 // pred_fallthru
      _
    // Predicated region
    $region14: #{ast2class2_forward.4} parent=1 // pred_check
      _
    $region15: #{ast2class2_forward.4} parent=1 // pred_check_branch
      %22 = sbr.rel (0) target = $region17
    $region16: #{ast2class2_forward.4} parent=1 // pred_region
      _
    $region17: #{ast2class2_forward.4} parent=1 // pred_fallthru
      _
    // Predicated region
    $region18: #{ast2class2_forward.4} parent=1 // pred_check
      _
    $region19: #{ast2class2_forward.4} parent=1 // pred_check_branch
      %24 = sbr.rel (0) target = $region21
    $region20: #{ast2class2_forward.4} parent=1 // pred_region
      _
    $region21: #{ast2class2_forward.4} parent=1 // pred_fallthru
      _
    %v25 = vld [vmem:[%s0] sm:$0xff]
    %v26 = vld [vmem:[%s1] sm:$0xff]
    %v27 = vld [vmem:[%s1 + $0x8] sm:$0xff]
    %v28 = vld [vmem:[%s1 + $0x10] sm:$0xff]
    %v29 = vld [vmem:[%s1 + $0x18] sm:$0xff]
    %v30 = vld [vmem:[%s1 + $0x20] sm:$0xff]
    %v31 = vld [vmem:[%s1 + $0x28] sm:$0xff]
    %v32 = vld [vmem:[%s1 + $0x30] sm:$0xff]
    %v33 = vld [vmem:[%s1 + $0x38] sm:$0xff]
    %v34 = vld [vmem:[%s1 + $0x40] sm:$0xff]
    %v35 = vld [vmem:[%s1 + $0x48] sm:$0xff]
    %v36 = vld [vmem:[%s1 + $0x50] sm:$0xff]
    %v37 = vld [vmem:[%s1 + $0x58] sm:$0xff]
    %v38 = vld [vmem:[%s1 + $0x60] sm:$0xff]
    %v39 = vld [vmem:[%s1 + $0x68] sm:$0xff]
    %v40 = vld [vmem:[%s1 + $0x70] sm:$0xff]
    %v41 = vld [vmem:[%s1 + $0x78] sm:$0xff]
    %v42 = vld [vmem:[%s1 + $0x80] sm:$0xff]
    %v43 = vld [vmem:[%s1 + $0x88] sm:$0xff]
    %v44 = vld [vmem:[%s1 + $0x90] sm:$0xff]
    %v45 = vld [vmem:[%s1 + $0x98] sm:$0xff]
    %v46 = vld [vmem:[%s1 + $0xa0] sm:$0xff]
    %v47 = vld [vmem:[%s1 + $0xa8] sm:$0xff]
    %v48 = vld [vmem:[%s1 + $0xb0] sm:$0xff]
    %v49 = vld [vmem:[%s1 + $0xb8] sm:$0xff]
    %v50 = vld [vmem:[%s1 + $0xc0] sm:$0xff]
    %v51 = vld [vmem:[%s1 + $0xc8] sm:$0xff]
    %v52 = vld [vmem:[%s1 + $0xd0] sm:$0xff]
    %v53 = vld [vmem:[%s1 + $0xd8] sm:$0xff]
    %v54 = vld [vmem:[%s1 + $0xe0] sm:$0xff]
    %v55 = vld [vmem:[%s1 + $0xe8] sm:$0xff]
    %v56 = vld [vmem:[%s1 + $0xf0] sm:$0xff]
    %v57 = vld [vmem:[%s1 + $0xf8] sm:$0xff]
    %v58 = vld [vmem:[%s1 + $0x100] sm:$0xff]
    %v59 = vld [vmem:[%s1 + $0x108] sm:$0xff]
    %v60 = vld [vmem:[%s1 + $0x110] sm:$0xff]
    %v61 = vld [vmem:[%s1 + $0x118] sm:$0xff]
    %v62 = vld [vmem:[%s1 + $0x120] sm:$0xff]
    %v63 = vld [vmem:[%s1 + $0x128] sm:$0xff]
    %v64 = vld [vmem:[%s1 + $0x130] sm:$0xff]
    %v65 = vld [vmem:[%s1 + $0x138] sm:$0xff]
    %v66 = vld [vmem:[%s1 + $0x140] sm:$0xff]
    %v67 = vld [vmem:[%s1 + $0x148] sm:$0xff]
    %v68 = vld [vmem:[%s1 + $0x150] sm:$0xff]
    %v69 = vld [vmem:[%s1 + $0x158] sm:$0xff]
    %v70 = vld [vmem:[%s1 + $0x160] sm:$0xff]
    %v71 = vld [vmem:[%s1 + $0x168] sm:$0xff]
    %v72 = vld [vmem:[%s1 + $0x170] sm:$0xff]
    %v73 = vld [vmem:[%s1 + $0x178] sm:$0xff]
    %v74 = vld [vmem:[%s1 + $0x180] sm:$0xff]
    %v75 = vld [vmem:[%s1 + $0x188] sm:$0xff]
    %v76 = vld [vmem:[%s1 + $0x190] sm:$0xff]
    %v77 = vld [vmem:[%s1 + $0x198] sm:$0xff]
    %v78 = vld [vmem:[%s1 + $0x1a0] sm:$0xff]
    %v79 = vld [vmem:[%s1 + $0x1a8] sm:$0xff]
    %v80 = vld [vmem:[%s1 + $0x1b0] sm:$0xff]
    %v81 = vld [vmem:[%s1 + $0x1b8] sm:$0xff]
    %v82 = vld [vmem:[%s1 + $0x1c0] sm:$0xff]
    %v83 = vld [vmem:[%s1 + $0x1c8] sm:$0xff]
    %v84 = vld [vmem:[%s1 + $0x1d0] sm:$0xff]
    %v85 = vld [vmem:[%s1 + $0x1d8] sm:$0xff]
    %v86 = vld [vmem:[%s1 + $0x1e0] sm:$0xff]
    %v87 = vld [vmem:[%s1 + $0x1e8] sm:$0xff]
    %v88 = vld [vmem:[%s1 + $0x1f0] sm:$0xff]
    %v89 = vld [vmem:[%s1 + $0x1f8] sm:$0xff]
    %90 = vmatpush.msra.mxu0 %v86
    %91 = vmatpush.msra.mxu0 %v82
    %92 = vmatpush.msra.mxu0 %v78
    %93 = vmatpush.msra.mxu0 %v74
    %94 = vmatpush.msra.mxu0 %v70
    %95 = vmatpush.msra.mxu0 %v66
    %96 = vmatpush.msra.mxu0 %v62
    %97 = vmatpush.msra.mxu0 %v58
    %98 = vmatpush.msra.mxu0 %v54
    %99 = vmatpush.msra.mxu0 %v50
    %100 = vmatpush.msra.mxu0 %v46
    %101 = vmatpush.msra.mxu0 %v42
    %102 = vmatpush.msra.mxu0 %v38
    %103 = vmatpush.msra.mxu0 %v34
    %104 = vmatpush.msra.mxu0 %v30
    %105 = vmatpush.msra.mxu0 %v26
    %106 = vmatmul.f32.gmra.mxu0 0.0
    %v107 = vpop.f32.mrf.mxu0
    %v108 = vadd.f32 0.0, %v107
    %109 = vdwg.mxu0
    %110 = vmatpush.msra.mxu0 %v87
    %111 = vmatpush.msra.mxu0 %v83
    %112 = vmatpush.msra.mxu0 %v79
    %113 = vmatpush.msra.mxu0 %v75
    %114 = vmatpush.msra.mxu0 %v71
    %115 = vmatpush.msra.mxu0 %v67
    %116 = vmatpush.msra.mxu0 %v63
    %117 = vmatpush.msra.mxu0 %v59
    %118 = vmatpush.msra.mxu0 %v55
    %119 = vmatpush.msra.mxu0 %v51
    %120 = vmatpush.msra.mxu0 %v47
    %121 = vmatpush.msra.mxu0 %v43
    %122 = vmatpush.msra.mxu0 %v39
    %123 = vmatpush.msra.mxu0 %v35
    %124 = vmatpush.msra.mxu0 %v31
    %125 = vmatpush.msra.mxu0 %v27
    %126 = vmatmul.f32.gmra.mxu0 0.0
    %v127 = vpop.f32.mrf.mxu0
    %v128 = vadd.f32 0.0, %v127
    %129 = vdwg.mxu0
    %130 = vmatpush.msra.mxu0 %v88
    %131 = vmatpush.msra.mxu0 %v84
    %132 = vmatpush.msra.mxu0 %v80
    %133 = vmatpush.msra.mxu0 %v76
    %134 = vmatpush.msra.mxu0 %v72
    %135 = vmatpush.msra.mxu0 %v68
    %136 = vmatpush.msra.mxu0 %v64
    %137 = vmatpush.msra.mxu0 %v60
    %138 = vmatpush.msra.mxu0 %v56
    %139 = vmatpush.msra.mxu0 %v52
    %140 = vmatpush.msra.mxu0 %v48
    %141 = vmatpush.msra.mxu0 %v44
    %142 = vmatpush.msra.mxu0 %v40
    %143 = vmatpush.msra.mxu0 %v36
    %144 = vmatpush.msra.mxu0 %v32
    %145 = vmatpush.msra.mxu0 %v28
    %146 = vmatmul.f32.gmra.mxu0 0.0
    %v147 = vpop.f32.mrf.mxu0
    %v148 = vadd.f32 0.0, %v147
    %149 = vdwg.mxu0
    %150 = vmatpush.msra.mxu0 %v89
    %151 = vmatpush.msra.mxu0 %v85
    %152 = vmatpush.msra.mxu0 %v81
    %153 = vmatpush.msra.mxu0 %v77
    %154 = vmatpush.msra.mxu0 %v73
    %155 = vmatpush.msra.mxu0 %v69
    %156 = vmatpush.msra.mxu0 %v65
    %157 = vmatpush.msra.mxu0 %v61
    %158 = vmatpush.msra.mxu0 %v57
    %159 = vmatpush.msra.mxu0 %v53
    %160 = vmatpush.msra.mxu0 %v49
    %161 = vmatpush.msra.mxu0 %v45
    %162 = vmatpush.msra.mxu0 %v41
    %163 = vmatpush.msra.mxu0 %v37
    %164 = vmatpush.msra.mxu0 %v33
    %165 = vmatpush.msra.mxu0 %v29
    %166 = vmatmul.f32.gmra.mxu0 0.0
    %v167 = vpop.f32.mrf.mxu0
    %v168 = vadd.f32 0.0, %v167
    %169 = vdwg.mxu0
    %v174 = vrot.slane %v128, 6
    %v175 = vrot.slane %v148, 4
    %v176 = vrot.slane %v168, 2
    %vm177 = vcmask 1041408
    %v178 = vsel %vm177, %v108, %v174
    %vm179 = vcmask 1045508
    %v180 = vsel %vm179, %v175, %v176
    %vm181 = vcmask 1043456
    %v182 = vsel %vm181, %v178, %v180
    %v184 = vadd.f32 %v25, %v182
    %v185 = vxor.u32 %v184, 2147483648
    %v186 = vmul.f32 %v185, 1.442695
    %v187 = vpow.pop %v186
    %v188 = vadd.f32 %v187, 1.0
    %v189 = vrcp.pop %v188
    %v190 = vmul.f32 %v188, %v189
    %v191 = vsub.f32 1.0, %v190
    %v192 = vmul.f32 %v189, %v191
    %v193 = vadd.f32 %v189, %v192
    %vm194 = vweird.f32 %v188
    %vm195 = vweird.f32 %v189
    %vm196 = vmor %vm194, %vm195
    %v197 = vsel %vm196, %v189, %v193
    %v198 = vand.u32 2147483647, %v188
    %vm199 = vcmp.eq.f32.partialorder %v198, 8.507059e+37
    %v200 = vand.u32 %v188, 2147483648
    %v201 = vor.u32 1.1754944e-38, %v200
    %v202 = vsel %vm199, %v201, %v197
    %v203 = vmul.f32 1.0, %v202
    %v205 = vrot.slane %v184, 2
    %v207 = vxor.u32 %v205, 2147483648
    %v208 = vmul.f32 %v207, 1.442695
    %v209 = vpow.pop %v208
    %v210 = vadd.f32 %v209, 1.0
    %v211 = vrcp.pop %v210
    %v212 = vmul.f32 %v210, %v211
    %v213 = vsub.f32 1.0, %v212
    %v214 = vmul.f32 %v211, %v213
    %v215 = vadd.f32 %v211, %v214
    %vm216 = vweird.f32 %v210
    %vm217 = vweird.f32 %v211
    %vm218 = vmor %vm216, %vm217
    %v219 = vsel %vm218, %v211, %v215
    %v220 = vand.u32 2147483647, %v210
    %vm221 = vcmp.eq.f32.partialorder %v220, 8.507059e+37
    %v222 = vand.u32 %v210, 2147483648
    %v223 = vor.u32 1.1754944e-38, %v222
    %v224 = vsel %vm221, %v223, %v219
    %v225 = vmul.f32 1.0, %v224
    %v226 = vrot.slane %v184, 4
    %v228 = vtanh.pop %v226
    %v229 = vrot.slane %v184, 6
    %v231 = vxor.u32 %v229, 2147483648
    %v232 = vmul.f32 %v231, 1.442695
    %v233 = vpow.pop %v232
    %v234 = vadd.f32 %v233, 1.0
    %v235 = vrcp.pop %v234
    %v236 = vmul.f32 %v234, %v235
    %v237 = vsub.f32 1.0, %v236
    %v238 = vmul.f32 %v235, %v237
    %v239 = vadd.f32 %v235, %v238
    %vm240 = vweird.f32 %v234
    %vm241 = vweird.f32 %v235
    %vm242 = vmor %vm240, %vm241
    %v243 = vsel %vm242, %v235, %v239
    %v244 = vand.u32 2147483647, %v234
    %vm245 = vcmp.eq.f32.partialorder %v244, 8.507059e+37
    %v246 = vand.u32 %v234, 2147483648
    %v247 = vor.u32 1.1754944e-38, %v246
    %v248 = vsel %vm245, %v247, %v243
    %v249 = vmul.f32 1.0, %v248
    %v250 = vmul.f32 %v225, 0.0
    %v251 = vmul.f32 %v203, %v228
    %v252 = vadd.f32 %v250, %v251
    %v253 = vtanh.pop %v252
    %v254 = vmul.f32 %v249, %v253
    %v255 = vld [vmem:[%s2] sm:$0xff]
    %v256 = vld [vmem:[%s2 + $0x8] sm:$0xff]
    %v257 = vld [vmem:[%s2 + $0x10] sm:$0xff]
    %v258 = vld [vmem:[%s2 + $0x18] sm:$0xff]
    %v259 = vld [vmem:[%s2 + $0x20] sm:$0xff]
    %v260 = vld [vmem:[%s2 + $0x28] sm:$0xff]
    %v261 = vld [vmem:[%s2 + $0x30] sm:$0xff]
    %v262 = vld [vmem:[%s2 + $0x38] sm:$0xff]
    %v263 = vld [vmem:[%s2 + $0x40] sm:$0xff]
    %v264 = vld [vmem:[%s2 + $0x48] sm:$0xff]
    %v265 = vld [vmem:[%s2 + $0x50] sm:$0xff]
    %v266 = vld [vmem:[%s2 + $0x58] sm:$0xff]
    %v267 = vld [vmem:[%s2 + $0x60] sm:$0xff]
    %v268 = vld [vmem:[%s2 + $0x68] sm:$0xff]
    %v269 = vld [vmem:[%s2 + $0x70] sm:$0xff]
    %v270 = vld [vmem:[%s2 + $0x78] sm:$0xff]
    %v271 = vld [vmem:[%s2 + $0x80] sm:$0xff]
    %v272 = vld [vmem:[%s2 + $0x88] sm:$0xff]
    %v273 = vld [vmem:[%s2 + $0x90] sm:$0xff]
    %v274 = vld [vmem:[%s2 + $0x98] sm:$0xff]
    %v275 = vld [vmem:[%s2 + $0xa0] sm:$0xff]
    %v276 = vld [vmem:[%s2 + $0xa8] sm:$0xff]
    %v277 = vld [vmem:[%s2 + $0xb0] sm:$0xff]
    %v278 = vld [vmem:[%s2 + $0xb8] sm:$0xff]
    %v279 = vld [vmem:[%s2 + $0xc0] sm:$0xff]
    %v280 = vld [vmem:[%s2 + $0xc8] sm:$0xff]
    %v281 = vld [vmem:[%s2 + $0xd0] sm:$0xff]
    %v282 = vld [vmem:[%s2 + $0xd8] sm:$0xff]
    %v283 = vld [vmem:[%s2 + $0xe0] sm:$0xff]
    %v284 = vld [vmem:[%s2 + $0xe8] sm:$0xff]
    %v285 = vld [vmem:[%s2 + $0xf0] sm:$0xff]
    %v286 = vld [vmem:[%s2 + $0xf8] sm:$0xff]
    %v287 = vld [vmem:[%s2 + $0x100] sm:$0xff]
    %v288 = vld [vmem:[%s2 + $0x108] sm:$0xff]
    %v289 = vld [vmem:[%s2 + $0x110] sm:$0xff]
    %v290 = vld [vmem:[%s2 + $0x118] sm:$0xff]
    %v291 = vld [vmem:[%s2 + $0x120] sm:$0xff]
    %v292 = vld [vmem:[%s2 + $0x128] sm:$0xff]
    %v293 = vld [vmem:[%s2 + $0x130] sm:$0xff]
    %v294 = vld [vmem:[%s2 + $0x138] sm:$0xff]
    %v295 = vld [vmem:[%s2 + $0x140] sm:$0xff]
    %v296 = vld [vmem:[%s2 + $0x148] sm:$0xff]
    %v297 = vld [vmem:[%s2 + $0x150] sm:$0xff]
    %v298 = vld [vmem:[%s2 + $0x158] sm:$0xff]
    %v299 = vld [vmem:[%s2 + $0x160] sm:$0xff]
    %v300 = vld [vmem:[%s2 + $0x168] sm:$0xff]
    %v301 = vld [vmem:[%s2 + $0x170] sm:$0xff]
    %v302 = vld [vmem:[%s2 + $0x178] sm:$0xff]
    %v303 = vld [vmem:[%s2 + $0x180] sm:$0xff]
    %v304 = vld [vmem:[%s2 + $0x188] sm:$0xff]
    %v305 = vld [vmem:[%s2 + $0x190] sm:$0xff]
    %v306 = vld [vmem:[%s2 + $0x198] sm:$0xff]
    %v307 = vld [vmem:[%s2 + $0x1a0] sm:$0xff]
    %v308 = vld [vmem:[%s2 + $0x1a8] sm:$0xff]
    %v309 = vld [vmem:[%s2 + $0x1b0] sm:$0xff]
    %v310 = vld [vmem:[%s2 + $0x1b8] sm:$0xff]
    %v311 = vld [vmem:[%s2 + $0x1c0] sm:$0xff]
    %v312 = vld [vmem:[%s2 + $0x1c8] sm:$0xff]
    %v313 = vld [vmem:[%s2 + $0x1d0] sm:$0xff]
    %v314 = vld [vmem:[%s2 + $0x1d8] sm:$0xff]
    %v315 = vld [vmem:[%s2 + $0x1e0] sm:$0xff]
    %v316 = vld [vmem:[%s2 + $0x1e8] sm:$0xff]
    %v317 = vld [vmem:[%s2 + $0x1f0] sm:$0xff]
    %v318 = vld [vmem:[%s2 + $0x1f8] sm:$0xff]
    %v319 = vld [vmem:[%s3] sm:$0xff]
    %v320 = vld [vmem:[%s3 + $0x8] sm:$0xff]
    %v321 = vld [vmem:[%s3 + $0x10] sm:$0xff]
    %v322 = vld [vmem:[%s3 + $0x18] sm:$0xff]
    %v323 = vld [vmem:[%s3 + $0x20] sm:$0xff]
    %v324 = vld [vmem:[%s3 + $0x28] sm:$0xff]
    %v325 = vld [vmem:[%s3 + $0x30] sm:$0xff]
    %v326 = vld [vmem:[%s3 + $0x38] sm:$0xff]
    %v327 = vld [vmem:[%s3 + $0x40] sm:$0xff]
    %v328 = vld [vmem:[%s3 + $0x48] sm:$0xff]
    %v329 = vld [vmem:[%s3 + $0x50] sm:$0xff]
    %v330 = vld [vmem:[%s3 + $0x58] sm:$0xff]
    %v331 = vld [vmem:[%s3 + $0x60] sm:$0xff]
    %v332 = vld [vmem:[%s3 + $0x68] sm:$0xff]
    %v333 = vld [vmem:[%s3 + $0x70] sm:$0xff]
    %v334 = vld [vmem:[%s3 + $0x78] sm:$0xff]
    %v335 = vld [vmem:[%s3 + $0x80] sm:$0xff]
    %v336 = vld [vmem:[%s3 + $0x88] sm:$0xff]
    %v337 = vld [vmem:[%s3 + $0x90] sm:$0xff]
    %v338 = vld [vmem:[%s3 + $0x98] sm:$0xff]
    %v339 = vld [vmem:[%s3 + $0xa0] sm:$0xff]
    %v340 = vld [vmem:[%s3 + $0xa8] sm:$0xff]
    %v341 = vld [vmem:[%s3 + $0xb0] sm:$0xff]
    %v342 = vld [vmem:[%s3 + $0xb8] sm:$0xff]
    %v343 = vld [vmem:[%s3 + $0xc0] sm:$0xff]
    %v344 = vld [vmem:[%s3 + $0xc8] sm:$0xff]
    %v345 = vld [vmem:[%s3 + $0xd0] sm:$0xff]
    %v346 = vld [vmem:[%s3 + $0xd8] sm:$0xff]
    %v347 = vld [vmem:[%s3 + $0xe0] sm:$0xff]
    %v348 = vld [vmem:[%s3 + $0xe8] sm:$0xff]
    %v349 = vld [vmem:[%s3 + $0xf0] sm:$0xff]
    %v350 = vld [vmem:[%s3 + $0xf8] sm:$0xff]
    %v351 = vld [vmem:[%s3 + $0x100] sm:$0xff]
    %v352 = vld [vmem:[%s3 + $0x108] sm:$0xff]
    %v353 = vld [vmem:[%s3 + $0x110] sm:$0xff]
    %v354 = vld [vmem:[%s3 + $0x118] sm:$0xff]
    %v355 = vld [vmem:[%s3 + $0x120] sm:$0xff]
    %v356 = vld [vmem:[%s3 + $0x128] sm:$0xff]
    %v357 = vld [vmem:[%s3 + $0x130] sm:$0xff]
    %v358 = vld [vmem:[%s3 + $0x138] sm:$0xff]
    %v359 = vld [vmem:[%s3 + $0x140] sm:$0xff]
    %v360 = vld [vmem:[%s3 + $0x148] sm:$0xff]
    %v361 = vld [vmem:[%s3 + $0x150] sm:$0xff]
    %v362 = vld [vmem:[%s3 + $0x158] sm:$0xff]
    %v363 = vld [vmem:[%s3 + $0x160] sm:$0xff]
    %v364 = vld [vmem:[%s3 + $0x168] sm:$0xff]
    %v365 = vld [vmem:[%s3 + $0x170] sm:$0xff]
    %v366 = vld [vmem:[%s3 + $0x178] sm:$0xff]
    %v367 = vld [vmem:[%s3 + $0x180] sm:$0xff]
    %v368 = vld [vmem:[%s3 + $0x188] sm:$0xff]
    %v369 = vld [vmem:[%s3 + $0x190] sm:$0xff]
    %v370 = vld [vmem:[%s3 + $0x198] sm:$0xff]
    %v371 = vld [vmem:[%s3 + $0x1a0] sm:$0xff]
    %v372 = vld [vmem:[%s3 + $0x1a8] sm:$0xff]
    %v373 = vld [vmem:[%s3 + $0x1b0] sm:$0xff]
    %v374 = vld [vmem:[%s3 + $0x1b8] sm:$0xff]
    %v375 = vld [vmem:[%s3 + $0x1c0] sm:$0xff]
    %v376 = vld [vmem:[%s3 + $0x1c8] sm:$0xff]
    %v377 = vld [vmem:[%s3 + $0x1d0] sm:$0xff]
    %v378 = vld [vmem:[%s3 + $0x1d8] sm:$0xff]
    %v379 = vld [vmem:[%s3 + $0x1e0] sm:$0xff]
    %v380 = vld [vmem:[%s3 + $0x1e8] sm:$0xff]
    %v381 = vld [vmem:[%s3 + $0x1f0] sm:$0xff]
    %v382 = vld [vmem:[%s3 + $0x1f8] sm:$0xff]
    %383 = vmatpush.msra.mxu0 %v379
    %384 = vmatpush.msra.mxu0 %v375
    %385 = vmatpush.msra.mxu0 %v371
    %386 = vmatpush.msra.mxu0 %v367
    %387 = vmatpush.msra.mxu0 %v363
    %388 = vmatpush.msra.mxu0 %v359
    %389 = vmatpush.msra.mxu0 %v355
    %390 = vmatpush.msra.mxu0 %v351
    %391 = vmatpush.msra.mxu0 %v347
    %392 = vmatpush.msra.mxu0 %v343
    %393 = vmatpush.msra.mxu0 %v339
    %394 = vmatpush.msra.mxu0 %v335
    %395 = vmatpush.msra.mxu0 %v331
    %396 = vmatpush.msra.mxu0 %v327
    %397 = vmatpush.msra.mxu0 %v323
    %398 = vmatpush.msra.mxu0 %v319
    %399 = vmatmul.f32.gmra.mxu0 0.0
    %v400 = vpop.f32.mrf.mxu0
    %v401 = vadd.f32 0.0, %v400
    %402 = vdwg.mxu0
    %403 = vmatpush.msra.mxu0 %v380
    %404 = vmatpush.msra.mxu0 %v376
    %405 = vmatpush.msra.mxu0 %v372
    %406 = vmatpush.msra.mxu0 %v368
    %407 = vmatpush.msra.mxu0 %v364
    %408 = vmatpush.msra.mxu0 %v360
    %409 = vmatpush.msra.mxu0 %v356
    %410 = vmatpush.msra.mxu0 %v352
    %411 = vmatpush.msra.mxu0 %v348
    %412 = vmatpush.msra.mxu0 %v344
    %413 = vmatpush.msra.mxu0 %v340
    %414 = vmatpush.msra.mxu0 %v336
    %415 = vmatpush.msra.mxu0 %v332
    %416 = vmatpush.msra.mxu0 %v328
    %417 = vmatpush.msra.mxu0 %v324
    %418 = vmatpush.msra.mxu0 %v320
    %419 = vmatmul.f32.gmra.mxu0 0.0
    %v420 = vpop.f32.mrf.mxu0
    %v421 = vadd.f32 0.0, %v420
    %422 = vdwg.mxu0
    %423 = vmatpush.msra.mxu0 %v381
    %424 = vmatpush.msra.mxu0 %v377
    %425 = vmatpush.msra.mxu0 %v373
    %426 = vmatpush.msra.mxu0 %v369
    %427 = vmatpush.msra.mxu0 %v365
    %428 = vmatpush.msra.mxu0 %v361
    %429 = vmatpush.msra.mxu0 %v357
    %430 = vmatpush.msra.mxu0 %v353
    %431 = vmatpush.msra.mxu0 %v349
    %432 = vmatpush.msra.mxu0 %v345
    %433 = vmatpush.msra.mxu0 %v341
    %434 = vmatpush.msra.mxu0 %v337
    %435 = vmatpush.msra.mxu0 %v333
    %436 = vmatpush.msra.mxu0 %v329
    %437 = vmatpush.msra.mxu0 %v325
    %438 = vmatpush.msra.mxu0 %v321
    %439 = vmatmul.f32.gmra.mxu0 0.0
    %v440 = vpop.f32.mrf.mxu0
    %v441 = vadd.f32 0.0, %v440
    %442 = vdwg.mxu0
    %443 = vmatpush.msra.mxu0 %v382
    %444 = vmatpush.msra.mxu0 %v378
    %445 = vmatpush.msra.mxu0 %v374
    %446 = vmatpush.msra.mxu0 %v370
    %447 = vmatpush.msra.mxu0 %v366
    %448 = vmatpush.msra.mxu0 %v362
    %449 = vmatpush.msra.mxu0 %v358
    %450 = vmatpush.msra.mxu0 %v354
    %451 = vmatpush.msra.mxu0 %v350
    %452 = vmatpush.msra.mxu0 %v346
    %453 = vmatpush.msra.mxu0 %v342
    %454 = vmatpush.msra.mxu0 %v338
    %455 = vmatpush.msra.mxu0 %v334
    %456 = vmatpush.msra.mxu0 %v330
    %457 = vmatpush.msra.mxu0 %v326
    %458 = vmatpush.msra.mxu0 %v322
    %459 = vmatmul.f32.gmra.mxu0 0.0
    %v460 = vpop.f32.mrf.mxu0
    %v461 = vadd.f32 0.0, %v460
    %462 = vdwg.mxu0
    %463 = vmatpush.msra.mxu0 %v315
    %464 = vmatpush.msra.mxu0 %v311
    %465 = vmatpush.msra.mxu0 %v307
    %466 = vmatpush.msra.mxu0 %v303
    %467 = vmatpush.msra.mxu0 %v299
    %468 = vmatpush.msra.mxu0 %v295
    %469 = vmatpush.msra.mxu0 %v291
    %470 = vmatpush.msra.mxu0 %v287
    %471 = vmatpush.msra.mxu0 %v283
    %472 = vmatpush.msra.mxu0 %v279
    %473 = vmatpush.msra.mxu0 %v275
    %474 = vmatpush.msra.mxu0 %v271
    %475 = vmatpush.msra.mxu0 %v267
    %476 = vmatpush.msra.mxu0 %v263
    %477 = vmatpush.msra.mxu0 %v259
    %478 = vmatpush.msra.mxu0 %v255
    %479 = vmatmul.f32.gmra.mxu0 %v254
    %v480 = vpop.f32.mrf.mxu0
    %v481 = vadd.f32 %v401, %v480
    %482 = vdwg.mxu0
    %483 = vmatpush.msra.mxu0 %v316
    %484 = vmatpush.msra.mxu0 %v312
    %485 = vmatpush.msra.mxu0 %v308
    %486 = vmatpush.msra.mxu0 %v304
    %487 = vmatpush.msra.mxu0 %v300
    %488 = vmatpush.msra.mxu0 %v296
    %489 = vmatpush.msra.mxu0 %v292
    %490 = vmatpush.msra.mxu0 %v288
    %491 = vmatpush.msra.mxu0 %v284
    %492 = vmatpush.msra.mxu0 %v280
    %493 = vmatpush.msra.mxu0 %v276
    %494 = vmatpush.msra.mxu0 %v272
    %495 = vmatpush.msra.mxu0 %v268
    %496 = vmatpush.msra.mxu0 %v264
    %497 = vmatpush.msra.mxu0 %v260
    %498 = vmatpush.msra.mxu0 %v256
    %499 = vmatmul.f32.gmra.mxu0 %v254
    %v500 = vpop.f32.mrf.mxu0
    %v501 = vadd.f32 %v421, %v500
    %502 = vdwg.mxu0
    %503 = vmatpush.msra.mxu0 %v317
    %504 = vmatpush.msra.mxu0 %v313
    %505 = vmatpush.msra.mxu0 %v309
    %506 = vmatpush.msra.mxu0 %v305
    %507 = vmatpush.msra.mxu0 %v301
    %508 = vmatpush.msra.mxu0 %v297
    %509 = vmatpush.msra.mxu0 %v293
    %510 = vmatpush.msra.mxu0 %v289
    %511 = vmatpush.msra.mxu0 %v285
    %512 = vmatpush.msra.mxu0 %v281
    %513 = vmatpush.msra.mxu0 %v277
    %514 = vmatpush.msra.mxu0 %v273
    %515 = vmatpush.msra.mxu0 %v269
    %516 = vmatpush.msra.mxu0 %v265
    %517 = vmatpush.msra.mxu0 %v261
    %518 = vmatpush.msra.mxu0 %v257
    %519 = vmatmul.f32.gmra.mxu0 %v254
    %v520 = vpop.f32.mrf.mxu0
    %v521 = vadd.f32 %v441, %v520
    %522 = vdwg.mxu0
    %523 = vmatpush.msra.mxu0 %v318
    %524 = vmatpush.msra.mxu0 %v314
    %525 = vmatpush.msra.mxu0 %v310
    %526 = vmatpush.msra.mxu0 %v306
    %527 = vmatpush.msra.mxu0 %v302
    %528 = vmatpush.msra.mxu0 %v298
    %529 = vmatpush.msra.mxu0 %v294
    %530 = vmatpush.msra.mxu0 %v290
    %531 = vmatpush.msra.mxu0 %v286
    %532 = vmatpush.msra.mxu0 %v282
    %533 = vmatpush.msra.mxu0 %v278
    %534 = vmatpush.msra.mxu0 %v274
    %535 = vmatpush.msra.mxu0 %v270
    %536 = vmatpush.msra.mxu0 %v266
    %537 = vmatpush.msra.mxu0 %v262
    %538 = vmatpush.msra.mxu0 %v258
    %539 = vmatmul.f32.gmra.mxu0 %v254
    %v540 = vpop.f32.mrf.mxu0
    %v541 = vadd.f32 %v461, %v540
    %542 = vdwg.mxu0
    %v543 = vld [vmem:[%s4] sm:$0xf]
    %v545 = vperm.slane %v543, 0
    %v546 = vperm.slane %v543, 1
    %v547 = vperm.slane %v543, 2
    %v548 = vperm.slane %v543, 3
    %v553 = vadd.f32 %v481, %v545
    %v554 = vadd.f32 %v501, %v546
    %v555 = vadd.f32 %v521, %v547
    %v556 = vadd.f32 %v541, %v548
    %v557 = vxor.u32 %v553, 2147483648
    %v558 = vmul.f32 %v557, 1.442695
    %v559 = vpow.pop %v558
    %v560 = vadd.f32 %v559, 1.0
    %v561 = vrcp.pop %v560
    %v562 = vmul.f32 %v560, %v561
    %v563 = vsub.f32 1.0, %v562
    %v564 = vmul.f32 %v561, %v563
    %v565 = vadd.f32 %v561, %v564
    %vm566 = vweird.f32 %v560
    %vm567 = vweird.f32 %v561
    %vm568 = vmor %vm566, %vm567
    %v569 = vsel %vm568, %v561, %v565
    %v570 = vand.u32 2147483647, %v560
    %vm571 = vcmp.eq.f32.partialorder %v570, 8.507059e+37
    %v572 = vand.u32 %v560, 2147483648
    %v573 = vor.u32 1.1754944e-38, %v572
    %v574 = vsel %vm571, %v573, %v569
    %v575 = vmul.f32 1.0, %v574
    %v576 = vxor.u32 %v554, 2147483648
    %v577 = vmul.f32 %v576, 1.442695
    %v578 = vpow.pop %v577
    %v579 = vadd.f32 %v578, 1.0
    %v580 = vrcp.pop %v579
    %v581 = vmul.f32 %v579, %v580
    %v582 = vsub.f32 1.0, %v581
    %v583 = vmul.f32 %v580, %v582
    %v584 = vadd.f32 %v580, %v583
    %vm585 = vweird.f32 %v579
    %vm586 = vweird.f32 %v580
    %vm587 = vmor %vm585, %vm586
    %v588 = vsel %vm587, %v580, %v584
    %v589 = vand.u32 2147483647, %v579
    %vm590 = vcmp.eq.f32.partialorder %v589, 8.507059e+37
    %v591 = vand.u32 %v579, 2147483648
    %v592 = vor.u32 1.1754944e-38, %v591
    %v593 = vsel %vm590, %v592, %v588
    %v594 = vmul.f32 1.0, %v593
    %v595 = vtanh.pop %v555
    %v596 = vxor.u32 %v556, 2147483648
    %v597 = vmul.f32 %v596, 1.442695
    %v598 = vpow.pop %v597
    %v599 = vadd.f32 %v598, 1.0
    %v600 = vrcp.pop %v599
    %v601 = vmul.f32 %v599, %v600
    %v602 = vsub.f32 1.0, %v601
    %v603 = vmul.f32 %v600, %v602
    %v604 = vadd.f32 %v600, %v603
    %vm605 = vweird.f32 %v599
    %vm606 = vweird.f32 %v600
    %vm607 = vmor %vm605, %vm606
    %v608 = vsel %vm607, %v600, %v604
    %v609 = vand.u32 2147483647, %v599
    %vm610 = vcmp.eq.f32.partialorder %v609, 8.507059e+37
    %v611 = vand.u32 %v599, 2147483648
    %v612 = vor.u32 1.1754944e-38, %v611
    %v613 = vsel %vm610, %v612, %v608
    %v614 = vmul.f32 1.0, %v613
    %v615 = vmul.f32 %v594, 0.0
    %v616 = vmul.f32 %v575, %v595
    %v617 = vadd.f32 %v615, %v616
    %v618 = vtanh.pop %v617
    %v619 = vmul.f32 %v614, %v618
    %620 = vst [vmem:[%s5] sm:$0x3] %v619
    %s621 = scalar_lea.vmem %s0, 8
    %v622 = vld [vmem:[%s621] sm:$0xff]
    %v623 = vld [vmem:[%s1] sm:$0xff]
    %v624 = vld [vmem:[%s1 + $0x8] sm:$0xff]
    %v625 = vld [vmem:[%s1 + $0x10] sm:$0xff]
    %v626 = vld [vmem:[%s1 + $0x18] sm:$0xff]
    %v627 = vld [vmem:[%s1 + $0x20] sm:$0xff]
    %v628 = vld [vmem:[%s1 + $0x28] sm:$0xff]
    %v629 = vld [vmem:[%s1 + $0x30] sm:$0xff]
    %v630 = vld [vmem:[%s1 + $0x38] sm:$0xff]
    %v631 = vld [vmem:[%s1 + $0x40] sm:$0xff]
    %v632 = vld [vmem:[%s1 + $0x48] sm:$0xff]
    %v633 = vld [vmem:[%s1 + $0x50] sm:$0xff]
    %v634 = vld [vmem:[%s1 + $0x58] sm:$0xff]
    %v635 = vld [vmem:[%s1 + $0x60] sm:$0xff]
    %v636 = vld [vmem:[%s1 + $0x68] sm:$0xff]
    %v637 = vld [vmem:[%s1 + $0x70] sm:$0xff]
    %v638 = vld [vmem:[%s1 + $0x78] sm:$0xff]
    %v639 = vld [vmem:[%s1 + $0x80] sm:$0xff]
    %v640 = vld [vmem:[%s1 + $0x88] sm:$0xff]
    %v641 = vld [vmem:[%s1 + $0x90] sm:$0xff]
    %v642 = vld [vmem:[%s1 + $0x98] sm:$0xff]
    %v643 = vld [vmem:[%s1 + $0xa0] sm:$0xff]
    %v644 = vld [vmem:[%s1 + $0xa8] sm:$0xff]
    %v645 = vld [vmem:[%s1 + $0xb0] sm:$0xff]
    %v646 = vld [vmem:[%s1 + $0xb8] sm:$0xff]
    %v647 = vld [vmem:[%s1 + $0xc0] sm:$0xff]
    %v648 = vld [vmem:[%s1 + $0xc8] sm:$0xff]
    %v649 = vld [vmem:[%s1 + $0xd0] sm:$0xff]
    %v650 = vld [vmem:[%s1 + $0xd8] sm:$0xff]
    %v651 = vld [vmem:[%s1 + $0xe0] sm:$0xff]
    %v652 = vld [vmem:[%s1 + $0xe8] sm:$0xff]
    %v653 = vld [vmem:[%s1 + $0xf0] sm:$0xff]
    %v654 = vld [vmem:[%s1 + $0xf8] sm:$0xff]
    %v655 = vld [vmem:[%s1 + $0x100] sm:$0xff]
    %v656 = vld [vmem:[%s1 + $0x108] sm:$0xff]
    %v657 = vld [vmem:[%s1 + $0x110] sm:$0xff]
    %v658 = vld [vmem:[%s1 + $0x118] sm:$0xff]
    %v659 = vld [vmem:[%s1 + $0x120] sm:$0xff]
    %v660 = vld [vmem:[%s1 + $0x128] sm:$0xff]
    %v661 = vld [vmem:[%s1 + $0x130] sm:$0xff]
    %v662 = vld [vmem:[%s1 + $0x138] sm:$0xff]
    %v663 = vld [vmem:[%s1 + $0x140] sm:$0xff]
    %v664 = vld [vmem:[%s1 + $0x148] sm:$0xff]
    %v665 = vld [vmem:[%s1 + $0x150] sm:$0xff]
    %v666 = vld [vmem:[%s1 + $0x158] sm:$0xff]
    %v667 = vld [vmem:[%s1 + $0x160] sm:$0xff]
    %v668 = vld [vmem:[%s1 + $0x168] sm:$0xff]
    %v669 = vld [vmem:[%s1 + $0x170] sm:$0xff]
    %v670 = vld [vmem:[%s1 + $0x178] sm:$0xff]
    %v671 = vld [vmem:[%s1 + $0x180] sm:$0xff]
    %v672 = vld [vmem:[%s1 + $0x188] sm:$0xff]
    %v673 = vld [vmem:[%s1 + $0x190] sm:$0xff]
    %v674 = vld [vmem:[%s1 + $0x198] sm:$0xff]
    %v675 = vld [vmem:[%s1 + $0x1a0] sm:$0xff]
    %v676 = vld [vmem:[%s1 + $0x1a8] sm:$0xff]
    %v677 = vld [vmem:[%s1 + $0x1b0] sm:$0xff]
    %v678 = vld [vmem:[%s1 + $0x1b8] sm:$0xff]
    %v679 = vld [vmem:[%s1 + $0x1c0] sm:$0xff]
    %v680 = vld [vmem:[%s1 + $0x1c8] sm:$0xff]
    %v681 = vld [vmem:[%s1 + $0x1d0] sm:$0xff]
    %v682 = vld [vmem:[%s1 + $0x1d8] sm:$0xff]
    %v683 = vld [vmem:[%s1 + $0x1e0] sm:$0xff]
    %v684 = vld [vmem:[%s1 + $0x1e8] sm:$0xff]
    %v685 = vld [vmem:[%s1 + $0x1f0] sm:$0xff]
    %v686 = vld [vmem:[%s1 + $0x1f8] sm:$0xff]
    %687 = vmatpush.msra.mxu0 %v683
    %688 = vmatpush.msra.mxu0 %v679
    %689 = vmatpush.msra.mxu0 %v675
    %690 = vmatpush.msra.mxu0 %v671
    %691 = vmatpush.msra.mxu0 %v667
    %692 = vmatpush.msra.mxu0 %v663
    %693 = vmatpush.msra.mxu0 %v659
    %694 = vmatpush.msra.mxu0 %v655
    %695 = vmatpush.msra.mxu0 %v651
    %696 = vmatpush.msra.mxu0 %v647
    %697 = vmatpush.msra.mxu0 %v643
    %698 = vmatpush.msra.mxu0 %v639
    %699 = vmatpush.msra.mxu0 %v635
    %700 = vmatpush.msra.mxu0 %v631
    %701 = vmatpush.msra.mxu0 %v627
    %702 = vmatpush.msra.mxu0 %v623
    %703 = vmatmul.f32.gmra.mxu0 %v254
    %v704 = vpop.f32.mrf.mxu0
    %v705 = vadd.f32 0.0, %v704
    %706 = vdwg.mxu0
    %707 = vmatpush.msra.mxu0 %v684
    %708 = vmatpush.msra.mxu0 %v680
    %709 = vmatpush.msra.mxu0 %v676
    %710 = vmatpush.msra.mxu0 %v672
    %711 = vmatpush.msra.mxu0 %v668
    %712 = vmatpush.msra.mxu0 %v664
    %713 = vmatpush.msra.mxu0 %v660
    %714 = vmatpush.msra.mxu0 %v656
    %715 = vmatpush.msra.mxu0 %v652
    %716 = vmatpush.msra.mxu0 %v648
    %717 = vmatpush.msra.mxu0 %v644
    %718 = vmatpush.msra.mxu0 %v640
    %719 = vmatpush.msra.mxu0 %v636
    %720 = vmatpush.msra.mxu0 %v632
    %721 = vmatpush.msra.mxu0 %v628
    %722 = vmatpush.msra.mxu0 %v624
    %723 = vmatmul.f32.gmra.mxu0 %v254
    %v724 = vpop.f32.mrf.mxu0
    %v725 = vadd.f32 0.0, %v724
    %726 = vdwg.mxu0
    %727 = vmatpush.msra.mxu0 %v685
    %728 = vmatpush.msra.mxu0 %v681
    %729 = vmatpush.msra.mxu0 %v677
    %730 = vmatpush.msra.mxu0 %v673
    %731 = vmatpush.msra.mxu0 %v669
    %732 = vmatpush.msra.mxu0 %v665
    %733 = vmatpush.msra.mxu0 %v661
    %734 = vmatpush.msra.mxu0 %v657
    %735 = vmatpush.msra.mxu0 %v653
    %736 = vmatpush.msra.mxu0 %v649
    %737 = vmatpush.msra.mxu0 %v645
    %738 = vmatpush.msra.mxu0 %v641
    %739 = vmatpush.msra.mxu0 %v637
    %740 = vmatpush.msra.mxu0 %v633
    %741 = vmatpush.msra.mxu0 %v629
    %742 = vmatpush.msra.mxu0 %v625
    %743 = vmatmul.f32.gmra.mxu0 %v254
    %v744 = vpop.f32.mrf.mxu0
    %v745 = vadd.f32 0.0, %v744
    %746 = vdwg.mxu0
    %747 = vmatpush.msra.mxu0 %v686
    %748 = vmatpush.msra.mxu0 %v682
    %749 = vmatpush.msra.mxu0 %v678
    %750 = vmatpush.msra.mxu0 %v674
    %751 = vmatpush.msra.mxu0 %v670
    %752 = vmatpush.msra.mxu0 %v666
    %753 = vmatpush.msra.mxu0 %v662
    %754 = vmatpush.msra.mxu0 %v658
    %755 = vmatpush.msra.mxu0 %v654
    %756 = vmatpush.msra.mxu0 %v650
    %757 = vmatpush.msra.mxu0 %v646
    %758 = vmatpush.msra.mxu0 %v642
    %759 = vmatpush.msra.mxu0 %v638
    %760 = vmatpush.msra.mxu0 %v634
    %761 = vmatpush.msra.mxu0 %v630
    %762 = vmatpush.msra.mxu0 %v626
    %763 = vmatmul.f32.gmra.mxu0 %v254
    %v764 = vpop.f32.mrf.mxu0
    %v765 = vadd.f32 0.0, %v764
    %766 = vdwg.mxu0
    %v771 = vrot.slane %v725, 6
    %v772 = vrot.slane %v745, 4
    %v773 = vrot.slane %v765, 2
    %v774 = vsel %vm177, %v705, %v771
    %v775 = vsel %vm179, %v772, %v773
    %v776 = vsel %vm181, %v774, %v775
    %v778 = vadd.f32 %v622, %v776
    %v779 = vxor.u32 %v778, 2147483648
    %v780 = vmul.f32 %v779, 1.442695
    %v781 = vpow.pop %v780
    %v782 = vadd.f32 %v781, 1.0
    %v783 = vrcp.pop %v782
    %v784 = vmul.f32 %v782, %v783
    %v785 = vsub.f32 1.0, %v784
    %v786 = vmul.f32 %v783, %v785
    %v787 = vadd.f32 %v783, %v786
    %vm788 = vweird.f32 %v782
    %vm789 = vweird.f32 %v783
    %vm790 = vmor %vm788, %vm789
    %v791 = vsel %vm790, %v783, %v787
    %v792 = vand.u32 2147483647, %v782
    %vm793 = vcmp.eq.f32.partialorder %v792, 8.507059e+37
    %v794 = vand.u32 %v782, 2147483648
    %v795 = vor.u32 1.1754944e-38, %v794
    %v796 = vsel %vm793, %v795, %v791
    %v797 = vmul.f32 1.0, %v796
    %v799 = vrot.slane %v778, 2
    %v801 = vxor.u32 %v799, 2147483648
    %v802 = vmul.f32 %v801, 1.442695
    %v803 = vpow.pop %v802
    %v804 = vadd.f32 %v803, 1.0
    %v805 = vrcp.pop %v804
    %v806 = vmul.f32 %v804, %v805
    %v807 = vsub.f32 1.0, %v806
    %v808 = vmul.f32 %v805, %v807
    %v809 = vadd.f32 %v805, %v808
    %vm810 = vweird.f32 %v804
    %vm811 = vweird.f32 %v805
    %vm812 = vmor %vm810, %vm811
    %v813 = vsel %vm812, %v805, %v809
    %v814 = vand.u32 2147483647, %v804
    %vm815 = vcmp.eq.f32.partialorder %v814, 8.507059e+37
    %v816 = vand.u32 %v804, 2147483648
    %v817 = vor.u32 1.1754944e-38, %v816
    %v818 = vsel %vm815, %v817, %v813
    %v819 = vmul.f32 1.0, %v818
    %v820 = vrot.slane %v778, 4
    %v822 = vtanh.pop %v820
    %v823 = vrot.slane %v778, 6
    %v825 = vxor.u32 %v823, 2147483648
    %v826 = vmul.f32 %v825, 1.442695
    %v827 = vpow.pop %v826
    %v828 = vadd.f32 %v827, 1.0
    %v829 = vrcp.pop %v828
    %v830 = vmul.f32 %v828, %v829
    %v831 = vsub.f32 1.0, %v830
    %v832 = vmul.f32 %v829, %v831
    %v833 = vadd.f32 %v829, %v832
    %vm834 = vweird.f32 %v828
    %vm835 = vweird.f32 %v829
    %vm836 = vmor %vm834, %vm835
    %v837 = vsel %vm836, %v829, %v833
    %v838 = vand.u32 2147483647, %v828
    %vm839 = vcmp.eq.f32.partialorder %v838, 8.507059e+37
    %v840 = vand.u32 %v828, 2147483648
    %v841 = vor.u32 1.1754944e-38, %v840
    %v842 = vsel %vm839, %v841, %v837
    %v843 = vmul.f32 1.0, %v842
    %v844 = vmul.f32 %v819, %v252
    %v845 = vmul.f32 %v797, %v822
    %v846 = vadd.f32 %v844, %v845
    %v847 = vtanh.pop %v846
    %v848 = vmul.f32 %v843, %v847
    %v849 = vld [vmem:[%s2] sm:$0xff]
    %v850 = vld [vmem:[%s2 + $0x8] sm:$0xff]
    %v851 = vld [vmem:[%s2 + $0x10] sm:$0xff]
    %v852 = vld [vmem:[%s2 + $0x18] sm:$0xff]
    %v853 = vld [vmem:[%s2 + $0x20] sm:$0xff]
    %v854 = vld [vmem:[%s2 + $0x28] sm:$0xff]
    %v855 = vld [vmem:[%s2 + $0x30] sm:$0xff]
    %v856 = vld [vmem:[%s2 + $0x38] sm:$0xff]
    %v857 = vld [vmem:[%s2 + $0x40] sm:$0xff]
    %v858 = vld [vmem:[%s2 + $0x48] sm:$0xff]
    %v859 = vld [vmem:[%s2 + $0x50] sm:$0xff]
    %v860 = vld [vmem:[%s2 + $0x58] sm:$0xff]
    %v861 = vld [vmem:[%s2 + $0x60] sm:$0xff]
    %v862 = vld [vmem:[%s2 + $0x68] sm:$0xff]
    %v863 = vld [vmem:[%s2 + $0x70] sm:$0xff]
    %v864 = vld [vmem:[%s2 + $0x78] sm:$0xff]
    %v865 = vld [vmem:[%s2 + $0x80] sm:$0xff]
    %v866 = vld [vmem:[%s2 + $0x88] sm:$0xff]
    %v867 = vld [vmem:[%s2 + $0x90] sm:$0xff]
    %v868 = vld [vmem:[%s2 + $0x98] sm:$0xff]
    %v869 = vld [vmem:[%s2 + $0xa0] sm:$0xff]
    %v870 = vld [vmem:[%s2 + $0xa8] sm:$0xff]
    %v871 = vld [vmem:[%s2 + $0xb0] sm:$0xff]
    %v872 = vld [vmem:[%s2 + $0xb8] sm:$0xff]
    %v873 = vld [vmem:[%s2 + $0xc0] sm:$0xff]
    %v874 = vld [vmem:[%s2 + $0xc8] sm:$0xff]
    %v875 = vld [vmem:[%s2 + $0xd0] sm:$0xff]
    %v876 = vld [vmem:[%s2 + $0xd8] sm:$0xff]
    %v877 = vld [vmem:[%s2 + $0xe0] sm:$0xff]
    %v878 = vld [vmem:[%s2 + $0xe8] sm:$0xff]
    %v879 = vld [vmem:[%s2 + $0xf0] sm:$0xff]
    %v880 = vld [vmem:[%s2 + $0xf8] sm:$0xff]
    %v881 = vld [vmem:[%s2 + $0x100] sm:$0xff]
    %v882 = vld [vmem:[%s2 + $0x108] sm:$0xff]
    %v883 = vld [vmem:[%s2 + $0x110] sm:$0xff]
    %v884 = vld [vmem:[%s2 + $0x118] sm:$0xff]
    %v885 = vld [vmem:[%s2 + $0x120] sm:$0xff]
    %v886 = vld [vmem:[%s2 + $0x128] sm:$0xff]
    %v887 = vld [vmem:[%s2 + $0x130] sm:$0xff]
    %v888 = vld [vmem:[%s2 + $0x138] sm:$0xff]
    %v889 = vld [vmem:[%s2 + $0x140] sm:$0xff]
    %v890 = vld [vmem:[%s2 + $0x148] sm:$0xff]
    %v891 = vld [vmem:[%s2 + $0x150] sm:$0xff]
    %v892 = vld [vmem:[%s2 + $0x158] sm:$0xff]
    %v893 = vld [vmem:[%s2 + $0x160] sm:$0xff]
    %v894 = vld [vmem:[%s2 + $0x168] sm:$0xff]
    %v895 = vld [vmem:[%s2 + $0x170] sm:$0xff]
    %v896 = vld [vmem:[%s2 + $0x178] sm:$0xff]
    %v897 = vld [vmem:[%s2 + $0x180] sm:$0xff]
    %v898 = vld [vmem:[%s2 + $0x188] sm:$0xff]
    %v899 = vld [vmem:[%s2 + $0x190] sm:$0xff]
    %v900 = vld [vmem:[%s2 + $0x198] sm:$0xff]
    %v901 = vld [vmem:[%s2 + $0x1a0] sm:$0xff]
    %v902 = vld [vmem:[%s2 + $0x1a8] sm:$0xff]
    %v903 = vld [vmem:[%s2 + $0x1b0] sm:$0xff]
    %v904 = vld [vmem:[%s2 + $0x1b8] sm:$0xff]
    %v905 = vld [vmem:[%s2 + $0x1c0] sm:$0xff]
    %v906 = vld [vmem:[%s2 + $0x1c8] sm:$0xff]
    %v907 = vld [vmem:[%s2 + $0x1d0] sm:$0xff]
    %v908 = vld [vmem:[%s2 + $0x1d8] sm:$0xff]
    %v909 = vld [vmem:[%s2 + $0x1e0] sm:$0xff]
    %v910 = vld [vmem:[%s2 + $0x1e8] sm:$0xff]
    %v911 = vld [vmem:[%s2 + $0x1f0] sm:$0xff]
    %v912 = vld [vmem:[%s2 + $0x1f8] sm:$0xff]
    %v913 = vld [vmem:[%s3] sm:$0xff]
    %v914 = vld [vmem:[%s3 + $0x8] sm:$0xff]
    %v915 = vld [vmem:[%s3 + $0x10] sm:$0xff]
    %v916 = vld [vmem:[%s3 + $0x18] sm:$0xff]
    %v917 = vld [vmem:[%s3 + $0x20] sm:$0xff]
    %v918 = vld [vmem:[%s3 + $0x28] sm:$0xff]
    %v919 = vld [vmem:[%s3 + $0x30] sm:$0xff]
    %v920 = vld [vmem:[%s3 + $0x38] sm:$0xff]
    %v921 = vld [vmem:[%s3 + $0x40] sm:$0xff]
    %v922 = vld [vmem:[%s3 + $0x48] sm:$0xff]
    %v923 = vld [vmem:[%s3 + $0x50] sm:$0xff]
    %v924 = vld [vmem:[%s3 + $0x58] sm:$0xff]
    %v925 = vld [vmem:[%s3 + $0x60] sm:$0xff]
    %v926 = vld [vmem:[%s3 + $0x68] sm:$0xff]
    %v927 = vld [vmem:[%s3 + $0x70] sm:$0xff]
    %v928 = vld [vmem:[%s3 + $0x78] sm:$0xff]
    %v929 = vld [vmem:[%s3 + $0x80] sm:$0xff]
    %v930 = vld [vmem:[%s3 + $0x88] sm:$0xff]
    %v931 = vld [vmem:[%s3 + $0x90] sm:$0xff]
    %v932 = vld [vmem:[%s3 + $0x98] sm:$0xff]
    %v933 = vld [vmem:[%s3 + $0xa0] sm:$0xff]
    %v934 = vld [vmem:[%s3 + $0xa8] sm:$0xff]
    %v935 = vld [vmem:[%s3 + $0xb0] sm:$0xff]
    %v936 = vld [vmem:[%s3 + $0xb8] sm:$0xff]
    %v937 = vld [vmem:[%s3 + $0xc0] sm:$0xff]
    %v938 = vld [vmem:[%s3 + $0xc8] sm:$0xff]
    %v939 = vld [vmem:[%s3 + $0xd0] sm:$0xff]
    %v940 = vld [vmem:[%s3 + $0xd8] sm:$0xff]
    %v941 = vld [vmem:[%s3 + $0xe0] sm:$0xff]
    %v942 = vld [vmem:[%s3 + $0xe8] sm:$0xff]
    %v943 = vld [vmem:[%s3 + $0xf0] sm:$0xff]
    %v944 = vld [vmem:[%s3 + $0xf8] sm:$0xff]
    %v945 = vld [vmem:[%s3 + $0x100] sm:$0xff]
    %v946 = vld [vmem:[%s3 + $0x108] sm:$0xff]
    %v947 = vld [vmem:[%s3 + $0x110] sm:$0xff]
    %v948 = vld [vmem:[%s3 + $0x118] sm:$0xff]
    %v949 = vld [vmem:[%s3 + $0x120] sm:$0xff]
    %v950 = vld [vmem:[%s3 + $0x128] sm:$0xff]
    %v951 = vld [vmem:[%s3 + $0x130] sm:$0xff]
    %v952 = vld [vmem:[%s3 + $0x138] sm:$0xff]
    %v953 = vld [vmem:[%s3 + $0x140] sm:$0xff]
    %v954 = vld [vmem:[%s3 + $0x148] sm:$0xff]
    %v955 = vld [vmem:[%s3 + $0x150] sm:$0xff]
    %v956 = vld [vmem:[%s3 + $0x158] sm:$0xff]
    %v957 = vld [vmem:[%s3 + $0x160] sm:$0xff]
    %v958 = vld [vmem:[%s3 + $0x168] sm:$0xff]
    %v959 = vld [vmem:[%s3 + $0x170] sm:$0xff]
    %v960 = vld [vmem:[%s3 + $0x178] sm:$0xff]
    %v961 = vld [vmem:[%s3 + $0x180] sm:$0xff]
    %v962 = vld [vmem:[%s3 + $0x188] sm:$0xff]
    %v963 = vld [vmem:[%s3 + $0x190] sm:$0xff]
    %v964 = vld [vmem:[%s3 + $0x198] sm:$0xff]
    %v965 = vld [vmem:[%s3 + $0x1a0] sm:$0xff]
    %v966 = vld [vmem:[%s3 + $0x1a8] sm:$0xff]
    %v967 = vld [vmem:[%s3 + $0x1b0] sm:$0xff]
    %v968 = vld [vmem:[%s3 + $0x1b8] sm:$0xff]
    %v969 = vld [vmem:[%s3 + $0x1c0] sm:$0xff]
    %v970 = vld [vmem:[%s3 + $0x1c8] sm:$0xff]
    %v971 = vld [vmem:[%s3 + $0x1d0] sm:$0xff]
    %v972 = vld [vmem:[%s3 + $0x1d8] sm:$0xff]
    %v973 = vld [vmem:[%s3 + $0x1e0] sm:$0xff]
    %v974 = vld [vmem:[%s3 + $0x1e8] sm:$0xff]
    %v975 = vld [vmem:[%s3 + $0x1f0] sm:$0xff]
    %v976 = vld [vmem:[%s3 + $0x1f8] sm:$0xff]
    %977 = vmatpush.msra.mxu0 %v973
    %978 = vmatpush.msra.mxu0 %v969
    %979 = vmatpush.msra.mxu0 %v965
    %980 = vmatpush.msra.mxu0 %v961
    %981 = vmatpush.msra.mxu0 %v957
    %982 = vmatpush.msra.mxu0 %v953
    %983 = vmatpush.msra.mxu0 %v949
    %984 = vmatpush.msra.mxu0 %v945
    %985 = vmatpush.msra.mxu0 %v941
    %986 = vmatpush.msra.mxu0 %v937
    %987 = vmatpush.msra.mxu0 %v933
    %988 = vmatpush.msra.mxu0 %v929
    %989 = vmatpush.msra.mxu0 %v925
    %990 = vmatpush.msra.mxu0 %v921
    %991 = vmatpush.msra.mxu0 %v917
    %992 = vmatpush.msra.mxu0 %v913
    %993 = vmatmul.f32.gmra.mxu0 %v619
    %v994 = vpop.f32.mrf.mxu0
    %v995 = vadd.f32 0.0, %v994
    %996 = vdwg.mxu0
    %997 = vmatpush.msra.mxu0 %v974
    %998 = vmatpush.msra.mxu0 %v970
    %999 = vmatpush.msra.mxu0 %v966
    %1000 = vmatpush.msra.mxu0 %v962
    %1001 = vmatpush.msra.mxu0 %v958
    %1002 = vmatpush.msra.mxu0 %v954
    %1003 = vmatpush.msra.mxu0 %v950
    %1004 = vmatpush.msra.mxu0 %v946
    %1005 = vmatpush.msra.mxu0 %v942
    %1006 = vmatpush.msra.mxu0 %v938
    %1007 = vmatpush.msra.mxu0 %v934
    %1008 = vmatpush.msra.mxu0 %v930
    %1009 = vmatpush.msra.mxu0 %v926
    %1010 = vmatpush.msra.mxu0 %v922
    %1011 = vmatpush.msra.mxu0 %v918
    %1012 = vmatpush.msra.mxu0 %v914
    %1013 = vmatmul.f32.gmra.mxu0 %v619
    %v1014 = vpop.f32.mrf.mxu0
    %v1015 = vadd.f32 0.0, %v1014
    %1016 = vdwg.mxu0
    %1017 = vmatpush.msra.mxu0 %v975
    %1018 = vmatpush.msra.mxu0 %v971
    %1019 = vmatpush.msra.mxu0 %v967
    %1020 = vmatpush.msra.mxu0 %v963
    %1021 = vmatpush.msra.mxu0 %v959
    %1022 = vmatpush.msra.mxu0 %v955
    %1023 = vmatpush.msra.mxu0 %v951
    %1024 = vmatpush.msra.mxu0 %v947
    %1025 = vmatpush.msra.mxu0 %v943
    %1026 = vmatpush.msra.mxu0 %v939
    %1027 = vmatpush.msra.mxu0 %v935
    %1028 = vmatpush.msra.mxu0 %v931
    %1029 = vmatpush.msra.mxu0 %v927
    %1030 = vmatpush.msra.mxu0 %v923
    %1031 = vmatpush.msra.mxu0 %v919
    %1032 = vmatpush.msra.mxu0 %v915
    %1033 = vmatmul.f32.gmra.mxu0 %v619
    %v1034 = vpop.f32.mrf.mxu0
    %v1035 = vadd.f32 0.0, %v1034
    %1036 = vdwg.mxu0
    %1037 = vmatpush.msra.mxu0 %v976
    %1038 = vmatpush.msra.mxu0 %v972
    %1039 = vmatpush.msra.mxu0 %v968
    %1040 = vmatpush.msra.mxu0 %v964
    %1041 = vmatpush.msra.mxu0 %v960
    %1042 = vmatpush.msra.mxu0 %v956
    %1043 = vmatpush.msra.mxu0 %v952
    %1044 = vmatpush.msra.mxu0 %v948
    %1045 = vmatpush.msra.mxu0 %v944
    %1046 = vmatpush.msra.mxu0 %v940
    %1047 = vmatpush.msra.mxu0 %v936
    %1048 = vmatpush.msra.mxu0 %v932
    %1049 = vmatpush.msra.mxu0 %v928
    %1050 = vmatpush.msra.mxu0 %v924
    %1051 = vmatpush.msra.mxu0 %v920
    %1052 = vmatpush.msra.mxu0 %v916
    %1053 = vmatmul.f32.gmra.mxu0 %v619
    %v1054 = vpop.f32.mrf.mxu0
    %v1055 = vadd.f32 0.0, %v1054
    %1056 = vdwg.mxu0
    %1057 = vmatpush.msra.mxu0 %v909
    %1058 = vmatpush.msra.mxu0 %v905
    %1059 = vmatpush.msra.mxu0 %v901
    %1060 = vmatpush.msra.mxu0 %v897
    %1061 = vmatpush.msra.mxu0 %v893
    %1062 = vmatpush.msra.mxu0 %v889
    %1063 = vmatpush.msra.mxu0 %v885
    %1064 = vmatpush.msra.mxu0 %v881
    %1065 = vmatpush.msra.mxu0 %v877
    %1066 = vmatpush.msra.mxu0 %v873
    %1067 = vmatpush.msra.mxu0 %v869
    %1068 = vmatpush.msra.mxu0 %v865
    %1069 = vmatpush.msra.mxu0 %v861
    %1070 = vmatpush.msra.mxu0 %v857
    %1071 = vmatpush.msra.mxu0 %v853
    %1072 = vmatpush.msra.mxu0 %v849
    %1073 = vmatmul.f32.gmra.mxu0 %v848
    %v1074 = vpop.f32.mrf.mxu0
    %v1075 = vadd.f32 %v995, %v1074
    %1076 = vdwg.mxu0
    %1077 = vmatpush.msra.mxu0 %v910
    %1078 = vmatpush.msra.mxu0 %v906
    %1079 = vmatpush.msra.mxu0 %v902
    %1080 = vmatpush.msra.mxu0 %v898
    %1081 = vmatpush.msra.mxu0 %v894
    %1082 = vmatpush.msra.mxu0 %v890
    %1083 = vmatpush.msra.mxu0 %v886
    %1084 = vmatpush.msra.mxu0 %v882
    %1085 = vmatpush.msra.mxu0 %v878
    %1086 = vmatpush.msra.mxu0 %v874
    %1087 = vmatpush.msra.mxu0 %v870
    %1088 = vmatpush.msra.mxu0 %v866
    %1089 = vmatpush.msra.mxu0 %v862
    %1090 = vmatpush.msra.mxu0 %v858
    %1091 = vmatpush.msra.mxu0 %v854
    %1092 = vmatpush.msra.mxu0 %v850
    %1093 = vmatmul.f32.gmra.mxu0 %v848
    %v1094 = vpop.f32.mrf.mxu0
    %v1095 = vadd.f32 %v1015, %v1094
    %1096 = vdwg.mxu0
    %1097 = vmatpush.msra.mxu0 %v911
    %1098 = vmatpush.msra.mxu0 %v907
    %1099 = vmatpush.msra.mxu0 %v903
    %1100 = vmatpush.msra.mxu0 %v899
    %1101 = vmatpush.msra.mxu0 %v895
    %1102 = vmatpush.msra.mxu0 %v891
    %1103 = vmatpush.msra.mxu0 %v887
    %1104 = vmatpush.msra.mxu0 %v883
    %1105 = vmatpush.msra.mxu0 %v879
    %1106 = vmatpush.msra.mxu0 %v875
    %1107 = vmatpush.msra.mxu0 %v871
    %1108 = vmatpush.msra.mxu0 %v867
    %1109 = vmatpush.msra.mxu0 %v863
    %1110 = vmatpush.msra.mxu0 %v859
    %1111 = vmatpush.msra.mxu0 %v855
    %1112 = vmatpush.msra.mxu0 %v851
    %1113 = vmatmul.f32.gmra.mxu0 %v848
    %v1114 = vpop.f32.mrf.mxu0
    %v1115 = vadd.f32 %v1035, %v1114
    %1116 = vdwg.mxu0
    %1117 = vmatpush.msra.mxu0 %v912
    %1118 = vmatpush.msra.mxu0 %v908
    %1119 = vmatpush.msra.mxu0 %v904
    %1120 = vmatpush.msra.mxu0 %v900
    %1121 = vmatpush.msra.mxu0 %v896
    %1122 = vmatpush.msra.mxu0 %v892
    %1123 = vmatpush.msra.mxu0 %v888
    %1124 = vmatpush.msra.mxu0 %v884
    %1125 = vmatpush.msra.mxu0 %v880
    %1126 = vmatpush.msra.mxu0 %v876
    %1127 = vmatpush.msra.mxu0 %v872
    %1128 = vmatpush.msra.mxu0 %v868
    %1129 = vmatpush.msra.mxu0 %v864
    %1130 = vmatpush.msra.mxu0 %v860
    %1131 = vmatpush.msra.mxu0 %v856
    %1132 = vmatpush.msra.mxu0 %v852
    %1133 = vmatmul.f32.gmra.mxu0 %v848
    %v1134 = vpop.f32.mrf.mxu0
    %v1135 = vadd.f32 %v1055, %v1134
    %1136 = vdwg.mxu0
    %v1137 = vld [vmem:[%s4] sm:$0xf]
    %v1139 = vperm.slane %v1137, 0
    %v1140 = vperm.slane %v1137, 1
    %v1141 = vperm.slane %v1137, 2
    %v1142 = vperm.slane %v1137, 3
    %v1147 = vadd.f32 %v1075, %v1139
    %v1148 = vadd.f32 %v1095, %v1140
    %v1149 = vadd.f32 %v1115, %v1141
    %v1150 = vadd.f32 %v1135, %v1142
    %v1151 = vxor.u32 %v1147, 2147483648
    %v1152 = vmul.f32 %v1151, 1.442695
    %v1153 = vpow.pop %v1152
    %v1154 = vadd.f32 %v1153, 1.0
    %v1155 = vrcp.pop %v1154
    %v1156 = vmul.f32 %v1154, %v1155
    %v1157 = vsub.f32 1.0, %v1156
    %v1158 = vmul.f32 %v1155, %v1157
    %v1159 = vadd.f32 %v1155, %v1158
    %vm1160 = vweird.f32 %v1154
    %vm1161 = vweird.f32 %v1155
    %vm1162 = vmor %vm1160, %vm1161
    %v1163 = vsel %vm1162, %v1155, %v1159
    %v1164 = vand.u32 2147483647, %v1154
    %vm1165 = vcmp.eq.f32.partialorder %v1164, 8.507059e+37
    %v1166 = vand.u32 %v1154, 2147483648
    %v1167 = vor.u32 1.1754944e-38, %v1166
    %v1168 = vsel %vm1165, %v1167, %v1163
    %v1169 = vmul.f32 1.0, %v1168
    %v1170 = vxor.u32 %v1148, 2147483648
    %v1171 = vmul.f32 %v1170, 1.442695
    %v1172 = vpow.pop %v1171
    %v1173 = vadd.f32 %v1172, 1.0
    %v1174 = vrcp.pop %v1173
    %v1175 = vmul.f32 %v1173, %v1174
    %v1176 = vsub.f32 1.0, %v1175
    %v1177 = vmul.f32 %v1174, %v1176
    %v1178 = vadd.f32 %v1174, %v1177
    %vm1179 = vweird.f32 %v1173
    %vm1180 = vweird.f32 %v1174
    %vm1181 = vmor %vm1179, %vm1180
    %v1182 = vsel %vm1181, %v1174, %v1178
    %v1183 = vand.u32 2147483647, %v1173
    %vm1184 = vcmp.eq.f32.partialorder %v1183, 8.507059e+37
    %v1185 = vand.u32 %v1173, 2147483648
    %v1186 = vor.u32 1.1754944e-38, %v1185
    %v1187 = vsel %vm1184, %v1186, %v1182
    %v1188 = vmul.f32 1.0, %v1187
    %v1189 = vtanh.pop %v1149
    %v1190 = vxor.u32 %v1150, 2147483648
    %v1191 = vmul.f32 %v1190, 1.442695
    %v1192 = vpow.pop %v1191
    %v1193 = vadd.f32 %v1192, 1.0
    %v1194 = vrcp.pop %v1193
    %v1195 = vmul.f32 %v1193, %v1194
    %v1196 = vsub.f32 1.0, %v1195
    %v1197 = vmul.f32 %v1194, %v1196
    %v1198 = vadd.f32 %v1194, %v1197
    %vm1199 = vweird.f32 %v1193
    %vm1200 = vweird.f32 %v1194
    %vm1201 = vmor %vm1199, %vm1200
    %v1202 = vsel %vm1201, %v1194, %v1198
    %v1203 = vand.u32 2147483647, %v1193
    %vm1204 = vcmp.eq.f32.partialorder %v1203, 8.507059e+37
    %v1205 = vand.u32 %v1193, 2147483648
    %v1206 = vor.u32 1.1754944e-38, %v1205
    %v1207 = vsel %vm1204, %v1206, %v1202
    %v1208 = vmul.f32 1.0, %v1207
    %v1209 = vmul.f32 %v1188, %v617
    %v1210 = vmul.f32 %v1169, %v1189
    %v1211 = vadd.f32 %v1209, %v1210
    %v1212 = vtanh.pop %v1211
    %v1213 = vmul.f32 %v1208, %v1212
    %s1214 = scalar_lea.vmem %s5, 2
    %1215 = vst [vmem:[%s1214] sm:$0x3] %v1213
    %s1216 = scalar_lea.vmem %s0, 16
    %v1217 = vld [vmem:[%s1216] sm:$0xff]
    %v1218 = vld [vmem:[%s1] sm:$0xff]
    %v1219 = vld [vmem:[%s1 + $0x8] sm:$0xff]
    %v1220 = vld [vmem:[%s1 + $0x10] sm:$0xff]
    %v1221 = vld [vmem:[%s1 + $0x18] sm:$0xff]
    %v1222 = vld [vmem:[%s1 + $0x20] sm:$0xff]
    %v1223 = vld [vmem:[%s1 + $0x28] sm:$0xff]
    %v1224 = vld [vmem:[%s1 + $0x30] sm:$0xff]
    %v1225 = vld [vmem:[%s1 + $0x38] sm:$0xff]
    %v1226 = vld [vmem:[%s1 + $0x40] sm:$0xff]
    %v1227 = vld [vmem:[%s1 + $0x48] sm:$0xff]
    %v1228 = vld [vmem:[%s1 + $0x50] sm:$0xff]
    %v1229 = vld [vmem:[%s1 + $0x58] sm:$0xff]
    %v1230 = vld [vmem:[%s1 + $0x60] sm:$0xff]
    %v1231 = vld [vmem:[%s1 + $0x68] sm:$0xff]
    %v1232 = vld [vmem:[%s1 + $0x70] sm:$0xff]
    %v1233 = vld [vmem:[%s1 + $0x78] sm:$0xff]
    %v1234 = vld [vmem:[%s1 + $0x80] sm:$0xff]
    %v1235 = vld [vmem:[%s1 + $0x88] sm:$0xff]
    %v1236 = vld [vmem:[%s1 + $0x90] sm:$0xff]
    %v1237 = vld [vmem:[%s1 + $0x98] sm:$0xff]
    %v1238 = vld [vmem:[%s1 + $0xa0] sm:$0xff]
    %v1239 = vld [vmem:[%s1 + $0xa8] sm:$0xff]
    %v1240 = vld [vmem:[%s1 + $0xb0] sm:$0xff]
    %v1241 = vld [vmem:[%s1 + $0xb8] sm:$0xff]
    %v1242 = vld [vmem:[%s1 + $0xc0] sm:$0xff]
    %v1243 = vld [vmem:[%s1 + $0xc8] sm:$0xff]
    %v1244 = vld [vmem:[%s1 + $0xd0] sm:$0xff]
    %v1245 = vld [vmem:[%s1 + $0xd8] sm:$0xff]
    %v1246 = vld [vmem:[%s1 + $0xe0] sm:$0xff]
    %v1247 = vld [vmem:[%s1 + $0xe8] sm:$0xff]
    %v1248 = vld [vmem:[%s1 + $0xf0] sm:$0xff]
    %v1249 = vld [vmem:[%s1 + $0xf8] sm:$0xff]
    %v1250 = vld [vmem:[%s1 + $0x100] sm:$0xff]
    %v1251 = vld [vmem:[%s1 + $0x108] sm:$0xff]
    %v1252 = vld [vmem:[%s1 + $0x110] sm:$0xff]
    %v1253 = vld [vmem:[%s1 + $0x118] sm:$0xff]
    %v1254 = vld [vmem:[%s1 + $0x120] sm:$0xff]
    %v1255 = vld [vmem:[%s1 + $0x128] sm:$0xff]
    %v1256 = vld [vmem:[%s1 + $0x130] sm:$0xff]
    %v1257 = vld [vmem:[%s1 + $0x138] sm:$0xff]
    %v1258 = vld [vmem:[%s1 + $0x140] sm:$0xff]
    %v1259 = vld [vmem:[%s1 + $0x148] sm:$0xff]
    %v1260 = vld [vmem:[%s1 + $0x150] sm:$0xff]
    %v1261 = vld [vmem:[%s1 + $0x158] sm:$0xff]
    %v1262 = vld [vmem:[%s1 + $0x160] sm:$0xff]
    %v1263 = vld [vmem:[%s1 + $0x168] sm:$0xff]
    %v1264 = vld [vmem:[%s1 + $0x170] sm:$0xff]
    %v1265 = vld [vmem:[%s1 + $0x178] sm:$0xff]
    %v1266 = vld [vmem:[%s1 + $0x180] sm:$0xff]
    %v1267 = vld [vmem:[%s1 + $0x188] sm:$0xff]
    %v1268 = vld [vmem:[%s1 + $0x190] sm:$0xff]
    %v1269 = vld [vmem:[%s1 + $0x198] sm:$0xff]
    %v1270 = vld [vmem:[%s1 + $0x1a0] sm:$0xff]
    %v1271 = vld [vmem:[%s1 + $0x1a8] sm:$0xff]
    %v1272 = vld [vmem:[%s1 + $0x1b0] sm:$0xff]
    %v1273 = vld [vmem:[%s1 + $0x1b8] sm:$0xff]
    %v1274 = vld [vmem:[%s1 + $0x1c0] sm:$0xff]
    %v1275 = vld [vmem:[%s1 + $0x1c8] sm:$0xff]
    %v1276 = vld [vmem:[%s1 + $0x1d0] sm:$0xff]
    %v1277 = vld [vmem:[%s1 + $0x1d8] sm:$0xff]
    %v1278 = vld [vmem:[%s1 + $0x1e0] sm:$0xff]
    %v1279 = vld [vmem:[%s1 + $0x1e8] sm:$0xff]
    %v1280 = vld [vmem:[%s1 + $0x1f0] sm:$0xff]
    %v1281 = vld [vmem:[%s1 + $0x1f8] sm:$0xff]
    %1282 = vmatpush.msra.mxu0 %v1278
    %1283 = vmatpush.msra.mxu0 %v1274
    %1284 = vmatpush.msra.mxu0 %v1270
    %1285 = vmatpush.msra.mxu0 %v1266
    %1286 = vmatpush.msra.mxu0 %v1262
    %1287 = vmatpush.msra.mxu0 %v1258
    %1288 = vmatpush.msra.mxu0 %v1254
    %1289 = vmatpush.msra.mxu0 %v1250
    %1290 = vmatpush.msra.mxu0 %v1246
    %1291 = vmatpush.msra.mxu0 %v1242
    %1292 = vmatpush.msra.mxu0 %v1238
    %1293 = vmatpush.msra.mxu0 %v1234
    %1294 = vmatpush.msra.mxu0 %v1230
    %1295 = vmatpush.msra.mxu0 %v1226
    %1296 = vmatpush.msra.mxu0 %v1222
    %1297 = vmatpush.msra.mxu0 %v1218
    %1298 = vmatmul.f32.gmra.mxu0 %v848
    %v1299 = vpop.f32.mrf.mxu0
    %v1300 = vadd.f32 0.0, %v1299
    %1301 = vdwg.mxu0
    %1302 = vmatpush.msra.mxu0 %v1279
    %1303 = vmatpush.msra.mxu0 %v1275
    %1304 = vmatpush.msra.mxu0 %v1271
    %1305 = vmatpush.msra.mxu0 %v1267
    %1306 = vmatpush.msra.mxu0 %v1263
    %1307 = vmatpush.msra.mxu0 %v1259
    %1308 = vmatpush.msra.mxu0 %v1255
    %1309 = vmatpush.msra.mxu0 %v1251
    %1310 = vmatpush.msra.mxu0 %v1247
    %1311 = vmatpush.msra.mxu0 %v1243
    %1312 = vmatpush.msra.mxu0 %v1239
    %1313 = vmatpush.msra.mxu0 %v1235
    %1314 = vmatpush.msra.mxu0 %v1231
    %1315 = vmatpush.msra.mxu0 %v1227
    %1316 = vmatpush.msra.mxu0 %v1223
    %1317 = vmatpush.msra.mxu0 %v1219
    %1318 = vmatmul.f32.gmra.mxu0 %v848
    %v1319 = vpop.f32.mrf.mxu0
    %v1320 = vadd.f32 0.0, %v1319
    %1321 = vdwg.mxu0
    %1322 = vmatpush.msra.mxu0 %v1280
    %1323 = vmatpush.msra.mxu0 %v1276
    %1324 = vmatpush.msra.mxu0 %v1272
    %1325 = vmatpush.msra.mxu0 %v1268
    %1326 = vmatpush.msra.mxu0 %v1264
    %1327 = vmatpush.msra.mxu0 %v1260
    %1328 = vmatpush.msra.mxu0 %v1256
    %1329 = vmatpush.msra.mxu0 %v1252
    %1330 = vmatpush.msra.mxu0 %v1248
    %1331 = vmatpush.msra.mxu0 %v1244
    %1332 = vmatpush.msra.mxu0 %v1240
    %1333 = vmatpush.msra.mxu0 %v1236
    %1334 = vmatpush.msra.mxu0 %v1232
    %1335 = vmatpush.msra.mxu0 %v1228
    %1336 = vmatpush.msra.mxu0 %v1224
    %1337 = vmatpush.msra.mxu0 %v1220
    %1338 = vmatmul.f32.gmra.mxu0 %v848
    %v1339 = vpop.f32.mrf.mxu0
    %v1340 = vadd.f32 0.0, %v1339
    %1341 = vdwg.mxu0
    %1342 = vmatpush.msra.mxu0 %v1281
    %1343 = vmatpush.msra.mxu0 %v1277
    %1344 = vmatpush.msra.mxu0 %v1273
    %1345 = vmatpush.msra.mxu0 %v1269
    %1346 = vmatpush.msra.mxu0 %v1265
    %1347 = vmatpush.msra.mxu0 %v1261
    %1348 = vmatpush.msra.mxu0 %v1257
    %1349 = vmatpush.msra.mxu0 %v1253
    %1350 = vmatpush.msra.mxu0 %v1249
    %1351 = vmatpush.msra.mxu0 %v1245
    %1352 = vmatpush.msra.mxu0 %v1241
    %1353 = vmatpush.msra.mxu0 %v1237
    %1354 = vmatpush.msra.mxu0 %v1233
    %1355 = vmatpush.msra.mxu0 %v1229
    %1356 = vmatpush.msra.mxu0 %v1225
    %1357 = vmatpush.msra.mxu0 %v1221
    %1358 = vmatmul.f32.gmra.mxu0 %v848
    %v1359 = vpop.f32.mrf.mxu0
    %v1360 = vadd.f32 0.0, %v1359
    %1361 = vdwg.mxu0
    %v1366 = vrot.slane %v1320, 6
    %v1367 = vrot.slane %v1340, 4
    %v1368 = vrot.slane %v1360, 2
    %v1369 = vsel %vm177, %v1300, %v1366
    %v1370 = vsel %vm179, %v1367, %v1368
    %v1371 = vsel %vm181, %v1369, %v1370
    %v1373 = vadd.f32 %v1217, %v1371
    %v1374 = vxor.u32 %v1373, 2147483648
    %v1375 = vmul.f32 %v1374, 1.442695
    %v1376 = vpow.pop %v1375
    %v1377 = vadd.f32 %v1376, 1.0
    %v1378 = vrcp.pop %v1377
    %v1379 = vmul.f32 %v1377, %v1378
    %v1380 = vsub.f32 1.0, %v1379
    %v1381 = vmul.f32 %v1378, %v1380
    %v1382 = vadd.f32 %v1378, %v1381
    %vm1383 = vweird.f32 %v1377
    %vm1384 = vweird.f32 %v1378
    %vm1385 = vmor %vm1383, %vm1384
    %v1386 = vsel %vm1385, %v1378, %v1382
    %v1387 = vand.u32 2147483647, %v1377
    %vm1388 = vcmp.eq.f32.partialorder %v1387, 8.507059e+37
    %v1389 = vand.u32 %v1377, 2147483648
    %v1390 = vor.u32 1.1754944e-38, %v1389
    %v1391 = vsel %vm1388, %v1390, %v1386
    %v1392 = vmul.f32 1.0, %v1391
    %v1394 = vrot.slane %v1373, 2
    %v1396 = vxor.u32 %v1394, 2147483648
    %v1397 = vmul.f32 %v1396, 1.442695
    %v1398 = vpow.pop %v1397
    %v1399 = vadd.f32 %v1398, 1.0
    %v1400 = vrcp.pop %v1399
    %v1401 = vmul.f32 %v1399, %v1400
    %v1402 = vsub.f32 1.0, %v1401
    %v1403 = vmul.f32 %v1400, %v1402
    %v1404 = vadd.f32 %v1400, %v1403
    %vm1405 = vweird.f32 %v1399
    %vm1406 = vweird.f32 %v1400
    %vm1407 = vmor %vm1405, %vm1406
    %v1408 = vsel %vm1407, %v1400, %v1404
    %v1409 = vand.u32 2147483647, %v1399
    %vm1410 = vcmp.eq.f32.partialorder %v1409, 8.507059e+37
    %v1411 = vand.u32 %v1399, 2147483648
    %v1412 = vor.u32 1.1754944e-38, %v1411
    %v1413 = vsel %vm1410, %v1412, %v1408
    %v1414 = vmul.f32 1.0, %v1413
    %v1415 = vrot.slane %v1373, 4
    %v1417 = vtanh.pop %v1415
    %v1418 = vrot.slane %v1373, 6
    %v1420 = vxor.u32 %v1418, 2147483648
    %v1421 = vmul.f32 %v1420, 1.442695
    %v1422 = vpow.pop %v1421
    %v1423 = vadd.f32 %v1422, 1.0
    %v1424 = vrcp.pop %v1423
    %v1425 = vmul.f32 %v1423, %v1424
    %v1426 = vsub.f32 1.0, %v1425
    %v1427 = vmul.f32 %v1424, %v1426
    %v1428 = vadd.f32 %v1424, %v1427
    %vm1429 = vweird.f32 %v1423
    %vm1430 = vweird.f32 %v1424
    %vm1431 = vmor %vm1429, %vm1430
    %v1432 = vsel %vm1431, %v1424, %v1428
    %v1433 = vand.u32 2147483647, %v1423
    %vm1434 = vcmp.eq.f32.partialorder %v1433, 8.507059e+37
    %v1435 = vand.u32 %v1423, 2147483648
    %v1436 = vor.u32 1.1754944e-38, %v1435
    %v1437 = vsel %vm1434, %v1436, %v1432
    %v1438 = vmul.f32 1.0, %v1437
    %v1439 = vmul.f32 %v1414, %v846
    %v1440 = vmul.f32 %v1392, %v1417
    %v1441 = vadd.f32 %v1439, %v1440
    %v1442 = vtanh.pop %v1441
    %v1443 = vmul.f32 %v1438, %v1442
    %v1444 = vld [vmem:[%s2] sm:$0xff]
    %v1445 = vld [vmem:[%s2 + $0x8] sm:$0xff]
    %v1446 = vld [vmem:[%s2 + $0x10] sm:$0xff]
    %v1447 = vld [vmem:[%s2 + $0x18] sm:$0xff]
    %v1448 = vld [vmem:[%s2 + $0x20] sm:$0xff]
    %v1449 = vld [vmem:[%s2 + $0x28] sm:$0xff]
    %v1450 = vld [vmem:[%s2 + $0x30] sm:$0xff]
    %v1451 = vld [vmem:[%s2 + $0x38] sm:$0xff]
    %v1452 = vld [vmem:[%s2 + $0x40] sm:$0xff]
    %v1453 = vld [vmem:[%s2 + $0x48] sm:$0xff]
    %v1454 = vld [vmem:[%s2 + $0x50] sm:$0xff]
    %v1455 = vld [vmem:[%s2 + $0x58] sm:$0xff]
    %v1456 = vld [vmem:[%s2 + $0x60] sm:$0xff]
    %v1457 = vld [vmem:[%s2 + $0x68] sm:$0xff]
    %v1458 = vld [vmem:[%s2 + $0x70] sm:$0xff]
    %v1459 = vld [vmem:[%s2 + $0x78] sm:$0xff]
    %v1460 = vld [vmem:[%s2 + $0x80] sm:$0xff]
    %v1461 = vld [vmem:[%s2 + $0x88] sm:$0xff]
    %v1462 = vld [vmem:[%s2 + $0x90] sm:$0xff]
    %v1463 = vld [vmem:[%s2 + $0x98] sm:$0xff]
    %v1464 = vld [vmem:[%s2 + $0xa0] sm:$0xff]
    %v1465 = vld [vmem:[%s2 + $0xa8] sm:$0xff]
    %v1466 = vld [vmem:[%s2 + $0xb0] sm:$0xff]
    %v1467 = vld [vmem:[%s2 + $0xb8] sm:$0xff]
    %v1468 = vld [vmem:[%s2 + $0xc0] sm:$0xff]
    %v1469 = vld [vmem:[%s2 + $0xc8] sm:$0xff]
    %v1470 = vld [vmem:[%s2 + $0xd0] sm:$0xff]
    %v1471 = vld [vmem:[%s2 + $0xd8] sm:$0xff]
    %v1472 = vld [vmem:[%s2 + $0xe0] sm:$0xff]
    %v1473 = vld [vmem:[%s2 + $0xe8] sm:$0xff]
    %v1474 = vld [vmem:[%s2 + $0xf0] sm:$0xff]
    %v1475 = vld [vmem:[%s2 + $0xf8] sm:$0xff]
    %v1476 = vld [vmem:[%s2 + $0x100] sm:$0xff]
    %v1477 = vld [vmem:[%s2 + $0x108] sm:$0xff]
    %v1478 = vld [vmem:[%s2 + $0x110] sm:$0xff]
    %v1479 = vld [vmem:[%s2 + $0x118] sm:$0xff]
    %v1480 = vld [vmem:[%s2 + $0x120] sm:$0xff]
    %v1481 = vld [vmem:[%s2 + $0x128] sm:$0xff]
    %v1482 = vld [vmem:[%s2 + $0x130] sm:$0xff]
    %v1483 = vld [vmem:[%s2 + $0x138] sm:$0xff]
    %v1484 = vld [vmem:[%s2 + $0x140] sm:$0xff]
    %v1485 = vld [vmem:[%s2 + $0x148] sm:$0xff]
    %v1486 = vld [vmem:[%s2 + $0x150] sm:$0xff]
    %v1487 = vld [vmem:[%s2 + $0x158] sm:$0xff]
    %v1488 = vld [vmem:[%s2 + $0x160] sm:$0xff]
    %v1489 = vld [vmem:[%s2 + $0x168] sm:$0xff]
    %v1490 = vld [vmem:[%s2 + $0x170] sm:$0xff]
    %v1491 = vld [vmem:[%s2 + $0x178] sm:$0xff]
    %v1492 = vld [vmem:[%s2 + $0x180] sm:$0xff]
    %v1493 = vld [vmem:[%s2 + $0x188] sm:$0xff]
    %v1494 = vld [vmem:[%s2 + $0x190] sm:$0xff]
    %v1495 = vld [vmem:[%s2 + $0x198] sm:$0xff]
    %v1496 = vld [vmem:[%s2 + $0x1a0] sm:$0xff]
    %v1497 = vld [vmem:[%s2 + $0x1a8] sm:$0xff]
    %v1498 = vld [vmem:[%s2 + $0x1b0] sm:$0xff]
    %v1499 = vld [vmem:[%s2 + $0x1b8] sm:$0xff]
    %v1500 = vld [vmem:[%s2 + $0x1c0] sm:$0xff]
    %v1501 = vld [vmem:[%s2 + $0x1c8] sm:$0xff]
    %v1502 = vld [vmem:[%s2 + $0x1d0] sm:$0xff]
    %v1503 = vld [vmem:[%s2 + $0x1d8] sm:$0xff]
    %v1504 = vld [vmem:[%s2 + $0x1e0] sm:$0xff]
    %v1505 = vld [vmem:[%s2 + $0x1e8] sm:$0xff]
    %v1506 = vld [vmem:[%s2 + $0x1f0] sm:$0xff]
    %v1507 = vld [vmem:[%s2 + $0x1f8] sm:$0xff]
    %v1508 = vld [vmem:[%s3] sm:$0xff]
    %v1509 = vld [vmem:[%s3 + $0x8] sm:$0xff]
    %v1510 = vld [vmem:[%s3 + $0x10] sm:$0xff]
    %v1511 = vld [vmem:[%s3 + $0x18] sm:$0xff]
    %v1512 = vld [vmem:[%s3 + $0x20] sm:$0xff]
    %v1513 = vld [vmem:[%s3 + $0x28] sm:$0xff]
    %v1514 = vld [vmem:[%s3 + $0x30] sm:$0xff]
    %v1515 = vld [vmem:[%s3 + $0x38] sm:$0xff]
    %v1516 = vld [vmem:[%s3 + $0x40] sm:$0xff]
    %v1517 = vld [vmem:[%s3 + $0x48] sm:$0xff]
    %v1518 = vld [vmem:[%s3 + $0x50] sm:$0xff]
    %v1519 = vld [vmem:[%s3 + $0x58] sm:$0xff]
    %v1520 = vld [vmem:[%s3 + $0x60] sm:$0xff]
    %v1521 = vld [vmem:[%s3 + $0x68] sm:$0xff]
    %v1522 = vld [vmem:[%s3 + $0x70] sm:$0xff]
    %v1523 = vld [vmem:[%s3 + $0x78] sm:$0xff]
    %v1524 = vld [vmem:[%s3 + $0x80] sm:$0xff]
    %v1525 = vld [vmem:[%s3 + $0x88] sm:$0xff]
    %v1526 = vld [vmem:[%s3 + $0x90] sm:$0xff]
    %v1527 = vld [vmem:[%s3 + $0x98] sm:$0xff]
    %v1528 = vld [vmem:[%s3 + $0xa0] sm:$0xff]
    %v1529 = vld [vmem:[%s3 + $0xa8] sm:$0xff]
    %v1530 = vld [vmem:[%s3 + $0xb0] sm:$0xff]
    %v1531 = vld [vmem:[%s3 + $0xb8] sm:$0xff]
    %v1532 = vld [vmem:[%s3 + $0xc0] sm:$0xff]
    %v1533 = vld [vmem:[%s3 + $0xc8] sm:$0xff]
    %v1534 = vld [vmem:[%s3 + $0xd0] sm:$0xff]
    %v1535 = vld [vmem:[%s3 + $0xd8] sm:$0xff]
    %v1536 = vld [vmem:[%s3 + $0xe0] sm:$0xff]
    %v1537 = vld [vmem:[%s3 + $0xe8] sm:$0xff]
    %v1538 = vld [vmem:[%s3 + $0xf0] sm:$0xff]
    %v1539 = vld [vmem:[%s3 + $0xf8] sm:$0xff]
    %v1540 = vld [vmem:[%s3 + $0x100] sm:$0xff]
    %v1541 = vld [vmem:[%s3 + $0x108] sm:$0xff]
    %v1542 = vld [vmem:[%s3 + $0x110] sm:$0xff]
    %v1543 = vld [vmem:[%s3 + $0x118] sm:$0xff]
    %v1544 = vld [vmem:[%s3 + $0x120] sm:$0xff]
    %v1545 = vld [vmem:[%s3 + $0x128] sm:$0xff]
    %v1546 = vld [vmem:[%s3 + $0x130] sm:$0xff]
    %v1547 = vld [vmem:[%s3 + $0x138] sm:$0xff]
    %v1548 = vld [vmem:[%s3 + $0x140] sm:$0xff]
    %v1549 = vld [vmem:[%s3 + $0x148] sm:$0xff]
    %v1550 = vld [vmem:[%s3 + $0x150] sm:$0xff]
    %v1551 = vld [vmem:[%s3 + $0x158] sm:$0xff]
    %v1552 = vld [vmem:[%s3 + $0x160] sm:$0xff]
    %v1553 = vld [vmem:[%s3 + $0x168] sm:$0xff]
    %v1554 = vld [vmem:[%s3 + $0x170] sm:$0xff]
    %v1555 = vld [vmem:[%s3 + $0x178] sm:$0xff]
    %v1556 = vld [vmem:[%s3 + $0x180] sm:$0xff]
    %v1557 = vld [vmem:[%s3 + $0x188] sm:$0xff]
    %v1558 = vld [vmem:[%s3 + $0x190] sm:$0xff]
    %v1559 = vld [vmem:[%s3 + $0x198] sm:$0xff]
    %v1560 = vld [vmem:[%s3 + $0x1a0] sm:$0xff]
    %v1561 = vld [vmem:[%s3 + $0x1a8] sm:$0xff]
    %v1562 = vld [vmem:[%s3 + $0x1b0] sm:$0xff]
    %v1563 = vld [vmem:[%s3 + $0x1b8] sm:$0xff]
    %v1564 = vld [vmem:[%s3 + $0x1c0] sm:$0xff]
    %v1565 = vld [vmem:[%s3 + $0x1c8] sm:$0xff]
    %v1566 = vld [vmem:[%s3 + $0x1d0] sm:$0xff]
    %v1567 = vld [vmem:[%s3 + $0x1d8] sm:$0xff]
    %v1568 = vld [vmem:[%s3 + $0x1e0] sm:$0xff]
    %v1569 = vld [vmem:[%s3 + $0x1e8] sm:$0xff]
    %v1570 = vld [vmem:[%s3 + $0x1f0] sm:$0xff]
    %v1571 = vld [vmem:[%s3 + $0x1f8] sm:$0xff]
    %1572 = vmatpush.msra.mxu0 %v1568
    %1573 = vmatpush.msra.mxu0 %v1564
    %1574 = vmatpush.msra.mxu0 %v1560
    %1575 = vmatpush.msra.mxu0 %v1556
    %1576 = vmatpush.msra.mxu0 %v1552
    %1577 = vmatpush.msra.mxu0 %v1548
    %1578 = vmatpush.msra.mxu0 %v1544
    %1579 = vmatpush.msra.mxu0 %v1540
    %1580 = vmatpush.msra.mxu0 %v1536
    %1581 = vmatpush.msra.mxu0 %v1532
    %1582 = vmatpush.msra.mxu0 %v1528
    %1583 = vmatpush.msra.mxu0 %v1524
    %1584 = vmatpush.msra.mxu0 %v1520
    %1585 = vmatpush.msra.mxu0 %v1516
    %1586 = vmatpush.msra.mxu0 %v1512
    %1587 = vmatpush.msra.mxu0 %v1508
    %1588 = vmatmul.f32.gmra.mxu0 %v1213
    %v1589 = vpop.f32.mrf.mxu0
    %v1590 = vadd.f32 0.0, %v1589
    %1591 = vdwg.mxu0
    %1592 = vmatpush.msra.mxu0 %v1569
    %1593 = vmatpush.msra.mxu0 %v1565
    %1594 = vmatpush.msra.mxu0 %v1561
    %1595 = vmatpush.msra.mxu0 %v1557
    %1596 = vmatpush.msra.mxu0 %v1553
    %1597 = vmatpush.msra.mxu0 %v1549
    %1598 = vmatpush.msra.mxu0 %v1545
    %1599 = vmatpush.msra.mxu0 %v1541
    %1600 = vmatpush.msra.mxu0 %v1537
    %1601 = vmatpush.msra.mxu0 %v1533
    %1602 = vmatpush.msra.mxu0 %v1529
    %1603 = vmatpush.msra.mxu0 %v1525
    %1604 = vmatpush.msra.mxu0 %v1521
    %1605 = vmatpush.msra.mxu0 %v1517
    %1606 = vmatpush.msra.mxu0 %v1513
    %1607 = vmatpush.msra.mxu0 %v1509
    %1608 = vmatmul.f32.gmra.mxu0 %v1213
    %v1609 = vpop.f32.mrf.mxu0
    %v1610 = vadd.f32 0.0, %v1609
    %1611 = vdwg.mxu0
    %1612 = vmatpush.msra.mxu0 %v1570
    %1613 = vmatpush.msra.mxu0 %v1566
    %1614 = vmatpush.msra.mxu0 %v1562
    %1615 = vmatpush.msra.mxu0 %v1558
    %1616 = vmatpush.msra.mxu0 %v1554
    %1617 = vmatpush.msra.mxu0 %v1550
    %1618 = vmatpush.msra.mxu0 %v1546
    %1619 = vmatpush.msra.mxu0 %v1542
    %1620 = vmatpush.msra.mxu0 %v1538
    %1621 = vmatpush.msra.mxu0 %v1534
    %1622 = vmatpush.msra.mxu0 %v1530
    %1623 = vmatpush.msra.mxu0 %v1526
    %1624 = vmatpush.msra.mxu0 %v1522
    %1625 = vmatpush.msra.mxu0 %v1518
    %1626 = vmatpush.msra.mxu0 %v1514
    %1627 = vmatpush.msra.mxu0 %v1510
    %1628 = vmatmul.f32.gmra.mxu0 %v1213
    %v1629 = vpop.f32.mrf.mxu0
    %v1630 = vadd.f32 0.0, %v1629
    %1631 = vdwg.mxu0
    %1632 = vmatpush.msra.mxu0 %v1571
    %1633 = vmatpush.msra.mxu0 %v1567
    %1634 = vmatpush.msra.mxu0 %v1563
    %1635 = vmatpush.msra.mxu0 %v1559
    %1636 = vmatpush.msra.mxu0 %v1555
    %1637 = vmatpush.msra.mxu0 %v1551
    %1638 = vmatpush.msra.mxu0 %v1547
    %1639 = vmatpush.msra.mxu0 %v1543
    %1640 = vmatpush.msra.mxu0 %v1539
    %1641 = vmatpush.msra.mxu0 %v1535
    %1642 = vmatpush.msra.mxu0 %v1531
    %1643 = vmatpush.msra.mxu0 %v1527
    %1644 = vmatpush.msra.mxu0 %v1523
    %1645 = vmatpush.msra.mxu0 %v1519
    %1646 = vmatpush.msra.mxu0 %v1515
    %1647 = vmatpush.msra.mxu0 %v1511
    %1648 = vmatmul.f32.gmra.mxu0 %v1213
    %v1649 = vpop.f32.mrf.mxu0
    %v1650 = vadd.f32 0.0, %v1649
    %1651 = vdwg.mxu0
    %1652 = vmatpush.msra.mxu0 %v1504
    %1653 = vmatpush.msra.mxu0 %v1500
    %1654 = vmatpush.msra.mxu0 %v1496
    %1655 = vmatpush.msra.mxu0 %v1492
    %1656 = vmatpush.msra.mxu0 %v1488
    %1657 = vmatpush.msra.mxu0 %v1484
    %1658 = vmatpush.msra.mxu0 %v1480
    %1659 = vmatpush.msra.mxu0 %v1476
    %1660 = vmatpush.msra.mxu0 %v1472
    %1661 = vmatpush.msra.mxu0 %v1468
    %1662 = vmatpush.msra.mxu0 %v1464
    %1663 = vmatpush.msra.mxu0 %v1460
    %1664 = vmatpush.msra.mxu0 %v1456
    %1665 = vmatpush.msra.mxu0 %v1452
    %1666 = vmatpush.msra.mxu0 %v1448
    %1667 = vmatpush.msra.mxu0 %v1444
    %1668 = vmatmul.f32.gmra.mxu0 %v1443
    %v1669 = vpop.f32.mrf.mxu0
    %v1670 = vadd.f32 %v1590, %v1669
    %1671 = vdwg.mxu0
    %1672 = vmatpush.msra.mxu0 %v1505
    %1673 = vmatpush.msra.mxu0 %v1501
    %1674 = vmatpush.msra.mxu0 %v1497
    %1675 = vmatpush.msra.mxu0 %v1493
    %1676 = vmatpush.msra.mxu0 %v1489
    %1677 = vmatpush.msra.mxu0 %v1485
    %1678 = vmatpush.msra.mxu0 %v1481
    %1679 = vmatpush.msra.mxu0 %v1477
    %1680 = vmatpush.msra.mxu0 %v1473
    %1681 = vmatpush.msra.mxu0 %v1469
    %1682 = vmatpush.msra.mxu0 %v1465
    %1683 = vmatpush.msra.mxu0 %v1461
    %1684 = vmatpush.msra.mxu0 %v1457
    %1685 = vmatpush.msra.mxu0 %v1453
    %1686 = vmatpush.msra.mxu0 %v1449
    %1687 = vmatpush.msra.mxu0 %v1445
    %1688 = vmatmul.f32.gmra.mxu0 %v1443
    %v1689 = vpop.f32.mrf.mxu0
    %v1690 = vadd.f32 %v1610, %v1689
    %1691 = vdwg.mxu0
    %1692 = vmatpush.msra.mxu0 %v1506
    %1693 = vmatpush.msra.mxu0 %v1502
    %1694 = vmatpush.msra.mxu0 %v1498
    %1695 = vmatpush.msra.mxu0 %v1494
    %1696 = vmatpush.msra.mxu0 %v1490
    %1697 = vmatpush.msra.mxu0 %v1486
    %1698 = vmatpush.msra.mxu0 %v1482
    %1699 = vmatpush.msra.mxu0 %v1478
    %1700 = vmatpush.msra.mxu0 %v1474
    %1701 = vmatpush.msra.mxu0 %v1470
    %1702 = vmatpush.msra.mxu0 %v1466
    %1703 = vmatpush.msra.mxu0 %v1462
    %1704 = vmatpush.msra.mxu0 %v1458
    %1705 = vmatpush.msra.mxu0 %v1454
    %1706 = vmatpush.msra.mxu0 %v1450
    %1707 = vmatpush.msra.mxu0 %v1446
    %1708 = vmatmul.f32.gmra.mxu0 %v1443
    %v1709 = vpop.f32.mrf.mxu0
    %v1710 = vadd.f32 %v1630, %v1709
    %1711 = vdwg.mxu0
    %1712 = vmatpush.msra.mxu0 %v1507
    %1713 = vmatpush.msra.mxu0 %v1503
    %1714 = vmatpush.msra.mxu0 %v1499
    %1715 = vmatpush.msra.mxu0 %v1495
    %1716 = vmatpush.msra.mxu0 %v1491
    %1717 = vmatpush.msra.mxu0 %v1487
    %1718 = vmatpush.msra.mxu0 %v1483
    %1719 = vmatpush.msra.mxu0 %v1479
    %1720 = vmatpush.msra.mxu0 %v1475
    %1721 = vmatpush.msra.mxu0 %v1471
    %1722 = vmatpush.msra.mxu0 %v1467
    %1723 = vmatpush.msra.mxu0 %v1463
    %1724 = vmatpush.msra.mxu0 %v1459
    %1725 = vmatpush.msra.mxu0 %v1455
    %1726 = vmatpush.msra.mxu0 %v1451
    %1727 = vmatpush.msra.mxu0 %v1447
    %1728 = vmatmul.f32.gmra.mxu0 %v1443
    %v1729 = vpop.f32.mrf.mxu0
    %v1730 = vadd.f32 %v1650, %v1729
    %1731 = vdwg.mxu0
    %v1732 = vld [vmem:[%s4] sm:$0xf]
    %v1734 = vperm.slane %v1732, 0
    %v1735 = vperm.slane %v1732, 1
    %v1736 = vperm.slane %v1732, 2
    %v1737 = vperm.slane %v1732, 3
    %v1742 = vadd.f32 %v1670, %v1734
    %v1743 = vadd.f32 %v1690, %v1735
    %v1744 = vadd.f32 %v1710, %v1736
    %v1745 = vadd.f32 %v1730, %v1737
    %v1746 = vxor.u32 %v1742, 2147483648
    %v1747 = vmul.f32 %v1746, 1.442695
    %v1748 = vpow.pop %v1747
    %v1749 = vadd.f32 %v1748, 1.0
    %v1750 = vrcp.pop %v1749
    %v1751 = vmul.f32 %v1749, %v1750
    %v1752 = vsub.f32 1.0, %v1751
    %v1753 = vmul.f32 %v1750, %v1752
    %v1754 = vadd.f32 %v1750, %v1753
    %vm1755 = vweird.f32 %v1749
    %vm1756 = vweird.f32 %v1750
    %vm1757 = vmor %vm1755, %vm1756
    %v1758 = vsel %vm1757, %v1750, %v1754
    %v1759 = vand.u32 2147483647, %v1749
    %vm1760 = vcmp.eq.f32.partialorder %v1759, 8.507059e+37
    %v1761 = vand.u32 %v1749, 2147483648
    %v1762 = vor.u32 1.1754944e-38, %v1761
    %v1763 = vsel %vm1760, %v1762, %v1758
    %v1764 = vmul.f32 1.0, %v1763
    %v1765 = vxor.u32 %v1743, 2147483648
    %v1766 = vmul.f32 %v1765, 1.442695
    %v1767 = vpow.pop %v1766
    %v1768 = vadd.f32 %v1767, 1.0
    %v1769 = vrcp.pop %v1768
    %v1770 = vmul.f32 %v1768, %v1769
    %v1771 = vsub.f32 1.0, %v1770
    %v1772 = vmul.f32 %v1769, %v1771
    %v1773 = vadd.f32 %v1769, %v1772
    %vm1774 = vweird.f32 %v1768
    %vm1775 = vweird.f32 %v1769
    %vm1776 = vmor %vm1774, %vm1775
    %v1777 = vsel %vm1776, %v1769, %v1773
    %v1778 = vand.u32 2147483647, %v1768
    %vm1779 = vcmp.eq.f32.partialorder %v1778, 8.507059e+37
    %v1780 = vand.u32 %v1768, 2147483648
    %v1781 = vor.u32 1.1754944e-38, %v1780
    %v1782 = vsel %vm1779, %v1781, %v1777
    %v1783 = vmul.f32 1.0, %v1782
    %v1784 = vtanh.pop %v1744
    %v1785 = vxor.u32 %v1745, 2147483648
    %v1786 = vmul.f32 %v1785, 1.442695
    %v1787 = vpow.pop %v1786
    %v1788 = vadd.f32 %v1787, 1.0
    %v1789 = vrcp.pop %v1788
    %v1790 = vmul.f32 %v1788, %v1789
    %v1791 = vsub.f32 1.0, %v1790
    %v1792 = vmul.f32 %v1789, %v1791
    %v1793 = vadd.f32 %v1789, %v1792
    %vm1794 = vweird.f32 %v1788
    %vm1795 = vweird.f32 %v1789
    %vm1796 = vmor %vm1794, %vm1795
    %v1797 = vsel %vm1796, %v1789, %v1793
    %v1798 = vand.u32 2147483647, %v1788
    %vm1799 = vcmp.eq.f32.partialorder %v1798, 8.507059e+37
    %v1800 = vand.u32 %v1788, 2147483648
    %v1801 = vor.u32 1.1754944e-38, %v1800
    %v1802 = vsel %vm1799, %v1801, %v1797
    %v1803 = vmul.f32 1.0, %v1802
    %v1804 = vmul.f32 %v1783, %v1211
    %v1805 = vmul.f32 %v1764, %v1784
    %v1806 = vadd.f32 %v1804, %v1805
    %v1807 = vtanh.pop %v1806
    %v1808 = vmul.f32 %v1803, %v1807
    %s1809 = scalar_lea.vmem %s5, 4
    %1810 = vst [vmem:[%s1809] sm:$0x3] %v1808
    %s1811 = scalar_lea.vmem %s0, 24
    %v1812 = vld [vmem:[%s1811] sm:$0xff]
    %v1813 = vld [vmem:[%s1] sm:$0xff]
    %v1814 = vld [vmem:[%s1 + $0x8] sm:$0xff]
    %v1815 = vld [vmem:[%s1 + $0x10] sm:$0xff]
    %v1816 = vld [vmem:[%s1 + $0x18] sm:$0xff]
    %v1817 = vld [vmem:[%s1 + $0x20] sm:$0xff]
    %v1818 = vld [vmem:[%s1 + $0x28] sm:$0xff]
    %v1819 = vld [vmem:[%s1 + $0x30] sm:$0xff]
    %v1820 = vld [vmem:[%s1 + $0x38] sm:$0xff]
    %v1821 = vld [vmem:[%s1 + $0x40] sm:$0xff]
    %v1822 = vld [vmem:[%s1 + $0x48] sm:$0xff]
    %v1823 = vld [vmem:[%s1 + $0x50] sm:$0xff]
    %v1824 = vld [vmem:[%s1 + $0x58] sm:$0xff]
    %v1825 = vld [vmem:[%s1 + $0x60] sm:$0xff]
    %v1826 = vld [vmem:[%s1 + $0x68] sm:$0xff]
    %v1827 = vld [vmem:[%s1 + $0x70] sm:$0xff]
    %v1828 = vld [vmem:[%s1 + $0x78] sm:$0xff]
    %v1829 = vld [vmem:[%s1 + $0x80] sm:$0xff]
    %v1830 = vld [vmem:[%s1 + $0x88] sm:$0xff]
    %v1831 = vld [vmem:[%s1 + $0x90] sm:$0xff]
    %v1832 = vld [vmem:[%s1 + $0x98] sm:$0xff]
    %v1833 = vld [vmem:[%s1 + $0xa0] sm:$0xff]
    %v1834 = vld [vmem:[%s1 + $0xa8] sm:$0xff]
    %v1835 = vld [vmem:[%s1 + $0xb0] sm:$0xff]
    %v1836 = vld [vmem:[%s1 + $0xb8] sm:$0xff]
    %v1837 = vld [vmem:[%s1 + $0xc0] sm:$0xff]
    %v1838 = vld [vmem:[%s1 + $0xc8] sm:$0xff]
    %v1839 = vld [vmem:[%s1 + $0xd0] sm:$0xff]
    %v1840 = vld [vmem:[%s1 + $0xd8] sm:$0xff]
    %v1841 = vld [vmem:[%s1 + $0xe0] sm:$0xff]
    %v1842 = vld [vmem:[%s1 + $0xe8] sm:$0xff]
    %v1843 = vld [vmem:[%s1 + $0xf0] sm:$0xff]
    %v1844 = vld [vmem:[%s1 + $0xf8] sm:$0xff]
    %v1845 = vld [vmem:[%s1 + $0x100] sm:$0xff]
    %v1846 = vld [vmem:[%s1 + $0x108] sm:$0xff]
    %v1847 = vld [vmem:[%s1 + $0x110] sm:$0xff]
    %v1848 = vld [vmem:[%s1 + $0x118] sm:$0xff]
    %v1849 = vld [vmem:[%s1 + $0x120] sm:$0xff]
    %v1850 = vld [vmem:[%s1 + $0x128] sm:$0xff]
    %v1851 = vld [vmem:[%s1 + $0x130] sm:$0xff]
    %v1852 = vld [vmem:[%s1 + $0x138] sm:$0xff]
    %v1853 = vld [vmem:[%s1 + $0x140] sm:$0xff]
    %v1854 = vld [vmem:[%s1 + $0x148] sm:$0xff]
    %v1855 = vld [vmem:[%s1 + $0x150] sm:$0xff]
    %v1856 = vld [vmem:[%s1 + $0x158] sm:$0xff]
    %v1857 = vld [vmem:[%s1 + $0x160] sm:$0xff]
    %v1858 = vld [vmem:[%s1 + $0x168] sm:$0xff]
    %v1859 = vld [vmem:[%s1 + $0x170] sm:$0xff]
    %v1860 = vld [vmem:[%s1 + $0x178] sm:$0xff]
    %v1861 = vld [vmem:[%s1 + $0x180] sm:$0xff]
    %v1862 = vld [vmem:[%s1 + $0x188] sm:$0xff]
    %v1863 = vld [vmem:[%s1 + $0x190] sm:$0xff]
    %v1864 = vld [vmem:[%s1 + $0x198] sm:$0xff]
    %v1865 = vld [vmem:[%s1 + $0x1a0] sm:$0xff]
    %v1866 = vld [vmem:[%s1 + $0x1a8] sm:$0xff]
    %v1867 = vld [vmem:[%s1 + $0x1b0] sm:$0xff]
    %v1868 = vld [vmem:[%s1 + $0x1b8] sm:$0xff]
    %v1869 = vld [vmem:[%s1 + $0x1c0] sm:$0xff]
    %v1870 = vld [vmem:[%s1 + $0x1c8] sm:$0xff]
    %v1871 = vld [vmem:[%s1 + $0x1d0] sm:$0xff]
    %v1872 = vld [vmem:[%s1 + $0x1d8] sm:$0xff]
    %v1873 = vld [vmem:[%s1 + $0x1e0] sm:$0xff]
    %v1874 = vld [vmem:[%s1 + $0x1e8] sm:$0xff]
    %v1875 = vld [vmem:[%s1 + $0x1f0] sm:$0xff]
    %v1876 = vld [vmem:[%s1 + $0x1f8] sm:$0xff]
    %1877 = vmatpush.msra.mxu0 %v1873
    %1878 = vmatpush.msra.mxu0 %v1869
    %1879 = vmatpush.msra.mxu0 %v1865
    %1880 = vmatpush.msra.mxu0 %v1861
    %1881 = vmatpush.msra.mxu0 %v1857
    %1882 = vmatpush.msra.mxu0 %v1853
    %1883 = vmatpush.msra.mxu0 %v1849
    %1884 = vmatpush.msra.mxu0 %v1845
    %1885 = vmatpush.msra.mxu0 %v1841
    %1886 = vmatpush.msra.mxu0 %v1837
    %1887 = vmatpush.msra.mxu0 %v1833
    %1888 = vmatpush.msra.mxu0 %v1829
    %1889 = vmatpush.msra.mxu0 %v1825
    %1890 = vmatpush.msra.mxu0 %v1821
    %1891 = vmatpush.msra.mxu0 %v1817
    %1892 = vmatpush.msra.mxu0 %v1813
    %1893 = vmatmul.f32.gmra.mxu0 %v1443
    %v1894 = vpop.f32.mrf.mxu0
    %v1895 = vadd.f32 0.0, %v1894
    %1896 = vdwg.mxu0
    %1897 = vmatpush.msra.mxu0 %v1874
    %1898 = vmatpush.msra.mxu0 %v1870
    %1899 = vmatpush.msra.mxu0 %v1866
    %1900 = vmatpush.msra.mxu0 %v1862
    %1901 = vmatpush.msra.mxu0 %v1858
    %1902 = vmatpush.msra.mxu0 %v1854
    %1903 = vmatpush.msra.mxu0 %v1850
    %1904 = vmatpush.msra.mxu0 %v1846
    %1905 = vmatpush.msra.mxu0 %v1842
    %1906 = vmatpush.msra.mxu0 %v1838
    %1907 = vmatpush.msra.mxu0 %v1834
    %1908 = vmatpush.msra.mxu0 %v1830
    %1909 = vmatpush.msra.mxu0 %v1826
    %1910 = vmatpush.msra.mxu0 %v1822
    %1911 = vmatpush.msra.mxu0 %v1818
    %1912 = vmatpush.msra.mxu0 %v1814
    %1913 = vmatmul.f32.gmra.mxu0 %v1443
    %v1914 = vpop.f32.mrf.mxu0
    %v1915 = vadd.f32 0.0, %v1914
    %1916 = vdwg.mxu0
    %1917 = vmatpush.msra.mxu0 %v1875
    %1918 = vmatpush.msra.mxu0 %v1871
    %1919 = vmatpush.msra.mxu0 %v1867
    %1920 = vmatpush.msra.mxu0 %v1863
    %1921 = vmatpush.msra.mxu0 %v1859
    %1922 = vmatpush.msra.mxu0 %v1855
    %1923 = vmatpush.msra.mxu0 %v1851
    %1924 = vmatpush.msra.mxu0 %v1847
    %1925 = vmatpush.msra.mxu0 %v1843
    %1926 = vmatpush.msra.mxu0 %v1839
    %1927 = vmatpush.msra.mxu0 %v1835
    %1928 = vmatpush.msra.mxu0 %v1831
    %1929 = vmatpush.msra.mxu0 %v1827
    %1930 = vmatpush.msra.mxu0 %v1823
    %1931 = vmatpush.msra.mxu0 %v1819
    %1932 = vmatpush.msra.mxu0 %v1815
    %1933 = vmatmul.f32.gmra.mxu0 %v1443
    %v1934 = vpop.f32.mrf.mxu0
    %v1935 = vadd.f32 0.0, %v1934
    %1936 = vdwg.mxu0
    %1937 = vmatpush.msra.mxu0 %v1876
    %1938 = vmatpush.msra.mxu0 %v1872
    %1939 = vmatpush.msra.mxu0 %v1868
    %1940 = vmatpush.msra.mxu0 %v1864
    %1941 = vmatpush.msra.mxu0 %v1860
    %1942 = vmatpush.msra.mxu0 %v1856
    %1943 = vmatpush.msra.mxu0 %v1852
    %1944 = vmatpush.msra.mxu0 %v1848
    %1945 = vmatpush.msra.mxu0 %v1844
    %1946 = vmatpush.msra.mxu0 %v1840
    %1947 = vmatpush.msra.mxu0 %v1836
    %1948 = vmatpush.msra.mxu0 %v1832
    %1949 = vmatpush.msra.mxu0 %v1828
    %1950 = vmatpush.msra.mxu0 %v1824
    %1951 = vmatpush.msra.mxu0 %v1820
    %1952 = vmatpush.msra.mxu0 %v1816
    %1953 = vmatmul.f32.gmra.mxu0 %v1443
    %v1954 = vpop.f32.mrf.mxu0
    %v1955 = vadd.f32 0.0, %v1954
    %1956 = vdwg.mxu0
    %v1961 = vrot.slane %v1915, 6
    %v1962 = vrot.slane %v1935, 4
    %v1963 = vrot.slane %v1955, 2
    %v1964 = vsel %vm177, %v1895, %v1961
    %v1965 = vsel %vm179, %v1962, %v1963
    %v1966 = vsel %vm181, %v1964, %v1965
    %v1968 = vadd.f32 %v1812, %v1966
    %v1969 = vxor.u32 %v1968, 2147483648
    %v1970 = vmul.f32 %v1969, 1.442695
    %v1971 = vpow.pop %v1970
    %v1972 = vadd.f32 %v1971, 1.0
    %v1973 = vrcp.pop %v1972
    %v1974 = vmul.f32 %v1972, %v1973
    %v1975 = vsub.f32 1.0, %v1974
    %v1976 = vmul.f32 %v1973, %v1975
    %v1977 = vadd.f32 %v1973, %v1976
    %vm1978 = vweird.f32 %v1972
    %vm1979 = vweird.f32 %v1973
    %vm1980 = vmor %vm1978, %vm1979
    %v1981 = vsel %vm1980, %v1973, %v1977
    %v1982 = vand.u32 2147483647, %v1972
    %vm1983 = vcmp.eq.f32.partialorder %v1982, 8.507059e+37
    %v1984 = vand.u32 %v1972, 2147483648
    %v1985 = vor.u32 1.1754944e-38, %v1984
    %v1986 = vsel %vm1983, %v1985, %v1981
    %v1987 = vmul.f32 1.0, %v1986
    %v1989 = vrot.slane %v1968, 2
    %v1991 = vxor.u32 %v1989, 2147483648
    %v1992 = vmul.f32 %v1991, 1.442695
    %v1993 = vpow.pop %v1992
    %v1994 = vadd.f32 %v1993, 1.0
    %v1995 = vrcp.pop %v1994
    %v1996 = vmul.f32 %v1994, %v1995
    %v1997 = vsub.f32 1.0, %v1996
    %v1998 = vmul.f32 %v1995, %v1997
    %v1999 = vadd.f32 %v1995, %v1998
    %vm2000 = vweird.f32 %v1994
    %vm2001 = vweird.f32 %v1995
    %vm2002 = vmor %vm2000, %vm2001
    %v2003 = vsel %vm2002, %v1995, %v1999
    %v2004 = vand.u32 2147483647, %v1994
    %vm2005 = vcmp.eq.f32.partialorder %v2004, 8.507059e+37
    %v2006 = vand.u32 %v1994, 2147483648
    %v2007 = vor.u32 1.1754944e-38, %v2006
    %v2008 = vsel %vm2005, %v2007, %v2003
    %v2009 = vmul.f32 1.0, %v2008
    %v2010 = vrot.slane %v1968, 4
    %v2012 = vtanh.pop %v2010
    %v2013 = vrot.slane %v1968, 6
    %v2015 = vxor.u32 %v2013, 2147483648
    %v2016 = vmul.f32 %v2015, 1.442695
    %v2017 = vpow.pop %v2016
    %v2018 = vadd.f32 %v2017, 1.0
    %v2019 = vrcp.pop %v2018
    %v2020 = vmul.f32 %v2018, %v2019
    %v2021 = vsub.f32 1.0, %v2020
    %v2022 = vmul.f32 %v2019, %v2021
    %v2023 = vadd.f32 %v2019, %v2022
    %vm2024 = vweird.f32 %v2018
    %vm2025 = vweird.f32 %v2019
    %vm2026 = vmor %vm2024, %vm2025
    %v2027 = vsel %vm2026, %v2019, %v2023
    %v2028 = vand.u32 2147483647, %v2018
    %vm2029 = vcmp.eq.f32.partialorder %v2028, 8.507059e+37
    %v2030 = vand.u32 %v2018, 2147483648
    %v2031 = vor.u32 1.1754944e-38, %v2030
    %v2032 = vsel %vm2029, %v2031, %v2027
    %v2033 = vmul.f32 1.0, %v2032
    %v2034 = vmul.f32 %v2009, %v1441
    %v2035 = vmul.f32 %v1987, %v2012
    %v2036 = vadd.f32 %v2034, %v2035
    %v2037 = vtanh.pop %v2036
    %v2038 = vmul.f32 %v2033, %v2037
    %v2039 = vld [vmem:[%s2] sm:$0xff]
    %v2040 = vld [vmem:[%s2 + $0x8] sm:$0xff]
    %v2041 = vld [vmem:[%s2 + $0x10] sm:$0xff]
    %v2042 = vld [vmem:[%s2 + $0x18] sm:$0xff]
    %v2043 = vld [vmem:[%s2 + $0x20] sm:$0xff]
    %v2044 = vld [vmem:[%s2 + $0x28] sm:$0xff]
    %v2045 = vld [vmem:[%s2 + $0x30] sm:$0xff]
    %v2046 = vld [vmem:[%s2 + $0x38] sm:$0xff]
    %v2047 = vld [vmem:[%s2 + $0x40] sm:$0xff]
    %v2048 = vld [vmem:[%s2 + $0x48] sm:$0xff]
    %v2049 = vld [vmem:[%s2 + $0x50] sm:$0xff]
    %v2050 = vld [vmem:[%s2 + $0x58] sm:$0xff]
    %v2051 = vld [vmem:[%s2 + $0x60] sm:$0xff]
    %v2052 = vld [vmem:[%s2 + $0x68] sm:$0xff]
    %v2053 = vld [vmem:[%s2 + $0x70] sm:$0xff]
    %v2054 = vld [vmem:[%s2 + $0x78] sm:$0xff]
    %v2055 = vld [vmem:[%s2 + $0x80] sm:$0xff]
    %v2056 = vld [vmem:[%s2 + $0x88] sm:$0xff]
    %v2057 = vld [vmem:[%s2 + $0x90] sm:$0xff]
    %v2058 = vld [vmem:[%s2 + $0x98] sm:$0xff]
    %v2059 = vld [vmem:[%s2 + $0xa0] sm:$0xff]
    %v2060 = vld [vmem:[%s2 + $0xa8] sm:$0xff]
    %v2061 = vld [vmem:[%s2 + $0xb0] sm:$0xff]
    %v2062 = vld [vmem:[%s2 + $0xb8] sm:$0xff]
    %v2063 = vld [vmem:[%s2 + $0xc0] sm:$0xff]
    %v2064 = vld [vmem:[%s2 + $0xc8] sm:$0xff]
    %v2065 = vld [vmem:[%s2 + $0xd0] sm:$0xff]
    %v2066 = vld [vmem:[%s2 + $0xd8] sm:$0xff]
    %v2067 = vld [vmem:[%s2 + $0xe0] sm:$0xff]
    %v2068 = vld [vmem:[%s2 + $0xe8] sm:$0xff]
    %v2069 = vld [vmem:[%s2 + $0xf0] sm:$0xff]
    %v2070 = vld [vmem:[%s2 + $0xf8] sm:$0xff]
    %v2071 = vld [vmem:[%s2 + $0x100] sm:$0xff]
    %v2072 = vld [vmem:[%s2 + $0x108] sm:$0xff]
    %v2073 = vld [vmem:[%s2 + $0x110] sm:$0xff]
    %v2074 = vld [vmem:[%s2 + $0x118] sm:$0xff]
    %v2075 = vld [vmem:[%s2 + $0x120] sm:$0xff]
    %v2076 = vld [vmem:[%s2 + $0x128] sm:$0xff]
    %v2077 = vld [vmem:[%s2 + $0x130] sm:$0xff]
    %v2078 = vld [vmem:[%s2 + $0x138] sm:$0xff]
    %v2079 = vld [vmem:[%s2 + $0x140] sm:$0xff]
    %v2080 = vld [vmem:[%s2 + $0x148] sm:$0xff]
    %v2081 = vld [vmem:[%s2 + $0x150] sm:$0xff]
    %v2082 = vld [vmem:[%s2 + $0x158] sm:$0xff]
    %v2083 = vld [vmem:[%s2 + $0x160] sm:$0xff]
    %v2084 = vld [vmem:[%s2 + $0x168] sm:$0xff]
    %v2085 = vld [vmem:[%s2 + $0x170] sm:$0xff]
    %v2086 = vld [vmem:[%s2 + $0x178] sm:$0xff]
    %v2087 = vld [vmem:[%s2 + $0x180] sm:$0xff]
    %v2088 = vld [vmem:[%s2 + $0x188] sm:$0xff]
    %v2089 = vld [vmem:[%s2 + $0x190] sm:$0xff]
    %v2090 = vld [vmem:[%s2 + $0x198] sm:$0xff]
    %v2091 = vld [vmem:[%s2 + $0x1a0] sm:$0xff]
    %v2092 = vld [vmem:[%s2 + $0x1a8] sm:$0xff]
    %v2093 = vld [vmem:[%s2 + $0x1b0] sm:$0xff]
    %v2094 = vld [vmem:[%s2 + $0x1b8] sm:$0xff]
    %v2095 = vld [vmem:[%s2 + $0x1c0] sm:$0xff]
    %v2096 = vld [vmem:[%s2 + $0x1c8] sm:$0xff]
    %v2097 = vld [vmem:[%s2 + $0x1d0] sm:$0xff]
    %v2098 = vld [vmem:[%s2 + $0x1d8] sm:$0xff]
    %v2099 = vld [vmem:[%s2 + $0x1e0] sm:$0xff]
    %v2100 = vld [vmem:[%s2 + $0x1e8] sm:$0xff]
    %v2101 = vld [vmem:[%s2 + $0x1f0] sm:$0xff]
    %v2102 = vld [vmem:[%s2 + $0x1f8] sm:$0xff]
    %v2103 = vld [vmem:[%s3] sm:$0xff]
    %v2104 = vld [vmem:[%s3 + $0x8] sm:$0xff]
    %v2105 = vld [vmem:[%s3 + $0x10] sm:$0xff]
    %v2106 = vld [vmem:[%s3 + $0x18] sm:$0xff]
    %v2107 = vld [vmem:[%s3 + $0x20] sm:$0xff]
    %v2108 = vld [vmem:[%s3 + $0x28] sm:$0xff]
    %v2109 = vld [vmem:[%s3 + $0x30] sm:$0xff]
    %v2110 = vld [vmem:[%s3 + $0x38] sm:$0xff]
    %v2111 = vld [vmem:[%s3 + $0x40] sm:$0xff]
    %v2112 = vld [vmem:[%s3 + $0x48] sm:$0xff]
    %v2113 = vld [vmem:[%s3 + $0x50] sm:$0xff]
    %v2114 = vld [vmem:[%s3 + $0x58] sm:$0xff]
    %v2115 = vld [vmem:[%s3 + $0x60] sm:$0xff]
    %v2116 = vld [vmem:[%s3 + $0x68] sm:$0xff]
    %v2117 = vld [vmem:[%s3 + $0x70] sm:$0xff]
    %v2118 = vld [vmem:[%s3 + $0x78] sm:$0xff]
    %v2119 = vld [vmem:[%s3 + $0x80] sm:$0xff]
    %v2120 = vld [vmem:[%s3 + $0x88] sm:$0xff]
    %v2121 = vld [vmem:[%s3 + $0x90] sm:$0xff]
    %v2122 = vld [vmem:[%s3 + $0x98] sm:$0xff]
    %v2123 = vld [vmem:[%s3 + $0xa0] sm:$0xff]
    %v2124 = vld [vmem:[%s3 + $0xa8] sm:$0xff]
    %v2125 = vld [vmem:[%s3 + $0xb0] sm:$0xff]
    %v2126 = vld [vmem:[%s3 + $0xb8] sm:$0xff]
    %v2127 = vld [vmem:[%s3 + $0xc0] sm:$0xff]
    %v2128 = vld [vmem:[%s3 + $0xc8] sm:$0xff]
    %v2129 = vld [vmem:[%s3 + $0xd0] sm:$0xff]
    %v2130 = vld [vmem:[%s3 + $0xd8] sm:$0xff]
    %v2131 = vld [vmem:[%s3 + $0xe0] sm:$0xff]
    %v2132 = vld [vmem:[%s3 + $0xe8] sm:$0xff]
    %v2133 = vld [vmem:[%s3 + $0xf0] sm:$0xff]
    %v2134 = vld [vmem:[%s3 + $0xf8] sm:$0xff]
    %v2135 = vld [vmem:[%s3 + $0x100] sm:$0xff]
    %v2136 = vld [vmem:[%s3 + $0x108] sm:$0xff]
    %v2137 = vld [vmem:[%s3 + $0x110] sm:$0xff]
    %v2138 = vld [vmem:[%s3 + $0x118] sm:$0xff]
    %v2139 = vld [vmem:[%s3 + $0x120] sm:$0xff]
    %v2140 = vld [vmem:[%s3 + $0x128] sm:$0xff]
    %v2141 = vld [vmem:[%s3 + $0x130] sm:$0xff]
    %v2142 = vld [vmem:[%s3 + $0x138] sm:$0xff]
    %v2143 = vld [vmem:[%s3 + $0x140] sm:$0xff]
    %v2144 = vld [vmem:[%s3 + $0x148] sm:$0xff]
    %v2145 = vld [vmem:[%s3 + $0x150] sm:$0xff]
    %v2146 = vld [vmem:[%s3 + $0x158] sm:$0xff]
    %v2147 = vld [vmem:[%s3 + $0x160] sm:$0xff]
    %v2148 = vld [vmem:[%s3 + $0x168] sm:$0xff]
    %v2149 = vld [vmem:[%s3 + $0x170] sm:$0xff]
    %v2150 = vld [vmem:[%s3 + $0x178] sm:$0xff]
    %v2151 = vld [vmem:[%s3 + $0x180] sm:$0xff]
    %v2152 = vld [vmem:[%s3 + $0x188] sm:$0xff]
    %v2153 = vld [vmem:[%s3 + $0x190] sm:$0xff]
    %v2154 = vld [vmem:[%s3 + $0x198] sm:$0xff]
    %v2155 = vld [vmem:[%s3 + $0x1a0] sm:$0xff]
    %v2156 = vld [vmem:[%s3 + $0x1a8] sm:$0xff]
    %v2157 = vld [vmem:[%s3 + $0x1b0] sm:$0xff]
    %v2158 = vld [vmem:[%s3 + $0x1b8] sm:$0xff]
    %v2159 = vld [vmem:[%s3 + $0x1c0] sm:$0xff]
    %v2160 = vld [vmem:[%s3 + $0x1c8] sm:$0xff]
    %v2161 = vld [vmem:[%s3 + $0x1d0] sm:$0xff]
    %v2162 = vld [vmem:[%s3 + $0x1d8] sm:$0xff]
    %v2163 = vld [vmem:[%s3 + $0x1e0] sm:$0xff]
    %v2164 = vld [vmem:[%s3 + $0x1e8] sm:$0xff]
    %v2165 = vld [vmem:[%s3 + $0x1f0] sm:$0xff]
    %v2166 = vld [vmem:[%s3 + $0x1f8] sm:$0xff]
    %2167 = vmatpush.msra.mxu0 %v2163
    %2168 = vmatpush.msra.mxu0 %v2159
    %2169 = vmatpush.msra.mxu0 %v2155
    %2170 = vmatpush.msra.mxu0 %v2151
    %2171 = vmatpush.msra.mxu0 %v2147
    %2172 = vmatpush.msra.mxu0 %v2143
    %2173 = vmatpush.msra.mxu0 %v2139
    %2174 = vmatpush.msra.mxu0 %v2135
    %2175 = vmatpush.msra.mxu0 %v2131
    %2176 = vmatpush.msra.mxu0 %v2127
    %2177 = vmatpush.msra.mxu0 %v2123
    %2178 = vmatpush.msra.mxu0 %v2119
    %2179 = vmatpush.msra.mxu0 %v2115
    %2180 = vmatpush.msra.mxu0 %v2111
    %2181 = vmatpush.msra.mxu0 %v2107
    %2182 = vmatpush.msra.mxu0 %v2103
    %2183 = vmatmul.f32.gmra.mxu0 %v1808
    %v2184 = vpop.f32.mrf.mxu0
    %v2185 = vadd.f32 0.0, %v2184
    %2186 = vdwg.mxu0
    %2187 = vmatpush.msra.mxu0 %v2164
    %2188 = vmatpush.msra.mxu0 %v2160
    %2189 = vmatpush.msra.mxu0 %v2156
    %2190 = vmatpush.msra.mxu0 %v2152
    %2191 = vmatpush.msra.mxu0 %v2148
    %2192 = vmatpush.msra.mxu0 %v2144
    %2193 = vmatpush.msra.mxu0 %v2140
    %2194 = vmatpush.msra.mxu0 %v2136
    %2195 = vmatpush.msra.mxu0 %v2132
    %2196 = vmatpush.msra.mxu0 %v2128
    %2197 = vmatpush.msra.mxu0 %v2124
    %2198 = vmatpush.msra.mxu0 %v2120
    %2199 = vmatpush.msra.mxu0 %v2116
    %2200 = vmatpush.msra.mxu0 %v2112
    %2201 = vmatpush.msra.mxu0 %v2108
    %2202 = vmatpush.msra.mxu0 %v2104
    %2203 = vmatmul.f32.gmra.mxu0 %v1808
    %v2204 = vpop.f32.mrf.mxu0
    %v2205 = vadd.f32 0.0, %v2204
    %2206 = vdwg.mxu0
    %2207 = vmatpush.msra.mxu0 %v2165
    %2208 = vmatpush.msra.mxu0 %v2161
    %2209 = vmatpush.msra.mxu0 %v2157
    %2210 = vmatpush.msra.mxu0 %v2153
    %2211 = vmatpush.msra.mxu0 %v2149
    %2212 = vmatpush.msra.mxu0 %v2145
    %2213 = vmatpush.msra.mxu0 %v2141
    %2214 = vmatpush.msra.mxu0 %v2137
    %2215 = vmatpush.msra.mxu0 %v2133
    %2216 = vmatpush.msra.mxu0 %v2129
    %2217 = vmatpush.msra.mxu0 %v2125
    %2218 = vmatpush.msra.mxu0 %v2121
    %2219 = vmatpush.msra.mxu0 %v2117
    %2220 = vmatpush.msra.mxu0 %v2113
    %2221 = vmatpush.msra.mxu0 %v2109
    %2222 = vmatpush.msra.mxu0 %v2105
    %2223 = vmatmul.f32.gmra.mxu0 %v1808
    %v2224 = vpop.f32.mrf.mxu0
    %v2225 = vadd.f32 0.0, %v2224
    %2226 = vdwg.mxu0
    %2227 = vmatpush.msra.mxu0 %v2166
    %2228 = vmatpush.msra.mxu0 %v2162
    %2229 = vmatpush.msra.mxu0 %v2158
    %2230 = vmatpush.msra.mxu0 %v2154
    %2231 = vmatpush.msra.mxu0 %v2150
    %2232 = vmatpush.msra.mxu0 %v2146
    %2233 = vmatpush.msra.mxu0 %v2142
    %2234 = vmatpush.msra.mxu0 %v2138
    %2235 = vmatpush.msra.mxu0 %v2134
    %2236 = vmatpush.msra.mxu0 %v2130
    %2237 = vmatpush.msra.mxu0 %v2126
    %2238 = vmatpush.msra.mxu0 %v2122
    %2239 = vmatpush.msra.mxu0 %v2118
    %2240 = vmatpush.msra.mxu0 %v2114
    %2241 = vmatpush.msra.mxu0 %v2110
    %2242 = vmatpush.msra.mxu0 %v2106
    %2243 = vmatmul.f32.gmra.mxu0 %v1808
    %v2244 = vpop.f32.mrf.mxu0
    %v2245 = vadd.f32 0.0, %v2244
    %2246 = vdwg.mxu0
    %2247 = vmatpush.msra.mxu0 %v2099
    %2248 = vmatpush.msra.mxu0 %v2095
    %2249 = vmatpush.msra.mxu0 %v2091
    %2250 = vmatpush.msra.mxu0 %v2087
    %2251 = vmatpush.msra.mxu0 %v2083
    %2252 = vmatpush.msra.mxu0 %v2079
    %2253 = vmatpush.msra.mxu0 %v2075
    %2254 = vmatpush.msra.mxu0 %v2071
    %2255 = vmatpush.msra.mxu0 %v2067
    %2256 = vmatpush.msra.mxu0 %v2063
    %2257 = vmatpush.msra.mxu0 %v2059
    %2258 = vmatpush.msra.mxu0 %v2055
    %2259 = vmatpush.msra.mxu0 %v2051
    %2260 = vmatpush.msra.mxu0 %v2047
    %2261 = vmatpush.msra.mxu0 %v2043
    %2262 = vmatpush.msra.mxu0 %v2039
    %2263 = vmatmul.f32.gmra.mxu0 %v2038
    %v2264 = vpop.f32.mrf.mxu0
    %v2265 = vadd.f32 %v2185, %v2264
    %2266 = vdwg.mxu0
    %2267 = vmatpush.msra.mxu0 %v2100
    %2268 = vmatpush.msra.mxu0 %v2096
    %2269 = vmatpush.msra.mxu0 %v2092
    %2270 = vmatpush.msra.mxu0 %v2088
    %2271 = vmatpush.msra.mxu0 %v2084
    %2272 = vmatpush.msra.mxu0 %v2080
    %2273 = vmatpush.msra.mxu0 %v2076
    %2274 = vmatpush.msra.mxu0 %v2072
    %2275 = vmatpush.msra.mxu0 %v2068
    %2276 = vmatpush.msra.mxu0 %v2064
    %2277 = vmatpush.msra.mxu0 %v2060
    %2278 = vmatpush.msra.mxu0 %v2056
    %2279 = vmatpush.msra.mxu0 %v2052
    %2280 = vmatpush.msra.mxu0 %v2048
    %2281 = vmatpush.msra.mxu0 %v2044
    %2282 = vmatpush.msra.mxu0 %v2040
    %2283 = vmatmul.f32.gmra.mxu0 %v2038
    %v2284 = vpop.f32.mrf.mxu0
    %v2285 = vadd.f32 %v2205, %v2284
    %2286 = vdwg.mxu0
    %2287 = vmatpush.msra.mxu0 %v2101
    %2288 = vmatpush.msra.mxu0 %v2097
    %2289 = vmatpush.msra.mxu0 %v2093
    %2290 = vmatpush.msra.mxu0 %v2089
    %2291 = vmatpush.msra.mxu0 %v2085
    %2292 = vmatpush.msra.mxu0 %v2081
    %2293 = vmatpush.msra.mxu0 %v2077
    %2294 = vmatpush.msra.mxu0 %v2073
    %2295 = vmatpush.msra.mxu0 %v2069
    %2296 = vmatpush.msra.mxu0 %v2065
    %2297 = vmatpush.msra.mxu0 %v2061
    %2298 = vmatpush.msra.mxu0 %v2057
    %2299 = vmatpush.msra.mxu0 %v2053
    %2300 = vmatpush.msra.mxu0 %v2049
    %2301 = vmatpush.msra.mxu0 %v2045
    %2302 = vmatpush.msra.mxu0 %v2041
    %2303 = vmatmul.f32.gmra.mxu0 %v2038
    %v2304 = vpop.f32.mrf.mxu0
    %v2305 = vadd.f32 %v2225, %v2304
    %2306 = vdwg.mxu0
    %2307 = vmatpush.msra.mxu0 %v2102
    %2308 = vmatpush.msra.mxu0 %v2098
    %2309 = vmatpush.msra.mxu0 %v2094
    %2310 = vmatpush.msra.mxu0 %v2090
    %2311 = vmatpush.msra.mxu0 %v2086
    %2312 = vmatpush.msra.mxu0 %v2082
    %2313 = vmatpush.msra.mxu0 %v2078
    %2314 = vmatpush.msra.mxu0 %v2074
    %2315 = vmatpush.msra.mxu0 %v2070
    %2316 = vmatpush.msra.mxu0 %v2066
    %2317 = vmatpush.msra.mxu0 %v2062
    %2318 = vmatpush.msra.mxu0 %v2058
    %2319 = vmatpush.msra.mxu0 %v2054
    %2320 = vmatpush.msra.mxu0 %v2050
    %2321 = vmatpush.msra.mxu0 %v2046
    %2322 = vmatpush.msra.mxu0 %v2042
    %2323 = vmatmul.f32.gmra.mxu0 %v2038
    %v2324 = vpop.f32.mrf.mxu0
    %v2325 = vadd.f32 %v2245, %v2324
    %2326 = vdwg.mxu0
    %v2327 = vld [vmem:[%s4] sm:$0xf]
    %v2329 = vperm.slane %v2327, 0
    %v2330 = vperm.slane %v2327, 1
    %v2331 = vperm.slane %v2327, 2
    %v2332 = vperm.slane %v2327, 3
    %v2337 = vadd.f32 %v2265, %v2329
    %v2338 = vadd.f32 %v2285, %v2330
    %v2339 = vadd.f32 %v2305, %v2331
    %v2340 = vadd.f32 %v2325, %v2332
    %v2341 = vxor.u32 %v2337, 2147483648
    %v2342 = vmul.f32 %v2341, 1.442695
    %v2343 = vpow.pop %v2342
    %v2344 = vadd.f32 %v2343, 1.0
    %v2345 = vrcp.pop %v2344
    %v2346 = vmul.f32 %v2344, %v2345
    %v2347 = vsub.f32 1.0, %v2346
    %v2348 = vmul.f32 %v2345, %v2347
    %v2349 = vadd.f32 %v2345, %v2348
    %vm2350 = vweird.f32 %v2344
    %vm2351 = vweird.f32 %v2345
    %vm2352 = vmor %vm2350, %vm2351
    %v2353 = vsel %vm2352, %v2345, %v2349
    %v2354 = vand.u32 2147483647, %v2344
    %vm2355 = vcmp.eq.f32.partialorder %v2354, 8.507059e+37
    %v2356 = vand.u32 %v2344, 2147483648
    %v2357 = vor.u32 1.1754944e-38, %v2356
    %v2358 = vsel %vm2355, %v2357, %v2353
    %v2359 = vmul.f32 1.0, %v2358
    %v2360 = vxor.u32 %v2338, 2147483648
    %v2361 = vmul.f32 %v2360, 1.442695
    %v2362 = vpow.pop %v2361
    %v2363 = vadd.f32 %v2362, 1.0
    %v2364 = vrcp.pop %v2363
    %v2365 = vmul.f32 %v2363, %v2364
    %v2366 = vsub.f32 1.0, %v2365
    %v2367 = vmul.f32 %v2364, %v2366
    %v2368 = vadd.f32 %v2364, %v2367
    %vm2369 = vweird.f32 %v2363
    %vm2370 = vweird.f32 %v2364
    %vm2371 = vmor %vm2369, %vm2370
    %v2372 = vsel %vm2371, %v2364, %v2368
    %v2373 = vand.u32 2147483647, %v2363
    %vm2374 = vcmp.eq.f32.partialorder %v2373, 8.507059e+37
    %v2375 = vand.u32 %v2363, 2147483648
    %v2376 = vor.u32 1.1754944e-38, %v2375
    %v2377 = vsel %vm2374, %v2376, %v2372
    %v2378 = vmul.f32 1.0, %v2377
    %v2379 = vtanh.pop %v2339
    %v2380 = vxor.u32 %v2340, 2147483648
    %v2381 = vmul.f32 %v2380, 1.442695
    %v2382 = vpow.pop %v2381
    %v2383 = vadd.f32 %v2382, 1.0
    %v2384 = vrcp.pop %v2383
    %v2385 = vmul.f32 %v2383, %v2384
    %v2386 = vsub.f32 1.0, %v2385
    %v2387 = vmul.f32 %v2384, %v2386
    %v2388 = vadd.f32 %v2384, %v2387
    %vm2389 = vweird.f32 %v2383
    %vm2390 = vweird.f32 %v2384
    %vm2391 = vmor %vm2389, %vm2390
    %v2392 = vsel %vm2391, %v2384, %v2388
    %v2393 = vand.u32 2147483647, %v2383
    %vm2394 = vcmp.eq.f32.partialorder %v2393, 8.507059e+37
    %v2395 = vand.u32 %v2383, 2147483648
    %v2396 = vor.u32 1.1754944e-38, %v2395
    %v2397 = vsel %vm2394, %v2396, %v2392
    %v2398 = vmul.f32 1.0, %v2397
    %v2399 = vmul.f32 %v2378, %v1806
    %v2400 = vmul.f32 %v2359, %v2379
    %v2401 = vadd.f32 %v2399, %v2400
    %v2402 = vtanh.pop %v2401
    %v2403 = vmul.f32 %v2398, %v2402
    %s2404 = scalar_lea.vmem %s5, 6
    %2405 = vst [vmem:[%s2404] sm:$0x3] %v2403
    %s2406 = scalar_lea.vmem %s0, 32
    %v2407 = vld [vmem:[%s2406] sm:$0xff]
    %v2408 = vld [vmem:[%s1] sm:$0xff]
    %v2409 = vld [vmem:[%s1 + $0x8] sm:$0xff]
    %v2410 = vld [vmem:[%s1 + $0x10] sm:$0xff]
    %v2411 = vld [vmem:[%s1 + $0x18] sm:$0xff]
    %v2412 = vld [vmem:[%s1 + $0x20] sm:$0xff]
    %v2413 = vld [vmem:[%s1 + $0x28] sm:$0xff]
    %v2414 = vld [vmem:[%s1 + $0x30] sm:$0xff]
    %v2415 = vld [vmem:[%s1 + $0x38] sm:$0xff]
    %v2416 = vld [vmem:[%s1 + $0x40] sm:$0xff]
    %v2417 = vld [vmem:[%s1 + $0x48] sm:$0xff]
    %v2418 = vld [vmem:[%s1 + $0x50] sm:$0xff]
    %v2419 = vld [vmem:[%s1 + $0x58] sm:$0xff]
    %v2420 = vld [vmem:[%s1 + $0x60] sm:$0xff]
    %v2421 = vld [vmem:[%s1 + $0x68] sm:$0xff]
    %v2422 = vld [vmem:[%s1 + $0x70] sm:$0xff]
    %v2423 = vld [vmem:[%s1 + $0x78] sm:$0xff]
    %v2424 = vld [vmem:[%s1 + $0x80] sm:$0xff]
    %v2425 = vld [vmem:[%s1 + $0x88] sm:$0xff]
    %v2426 = vld [vmem:[%s1 + $0x90] sm:$0xff]
    %v2427 = vld [vmem:[%s1 + $0x98] sm:$0xff]
    %v2428 = vld [vmem:[%s1 + $0xa0] sm:$0xff]
    %v2429 = vld [vmem:[%s1 + $0xa8] sm:$0xff]
    %v2430 = vld [vmem:[%s1 + $0xb0] sm:$0xff]
    %v2431 = vld [vmem:[%s1 + $0xb8] sm:$0xff]
    %v2432 = vld [vmem:[%s1 + $0xc0] sm:$0xff]
    %v2433 = vld [vmem:[%s1 + $0xc8] sm:$0xff]
    %v2434 = vld [vmem:[%s1 + $0xd0] sm:$0xff]
    %v2435 = vld [vmem:[%s1 + $0xd8] sm:$0xff]
    %v2436 = vld [vmem:[%s1 + $0xe0] sm:$0xff]
    %v2437 = vld [vmem:[%s1 + $0xe8] sm:$0xff]
    %v2438 = vld [vmem:[%s1 + $0xf0] sm:$0xff]
    %v2439 = vld [vmem:[%s1 + $0xf8] sm:$0xff]
    %v2440 = vld [vmem:[%s1 + $0x100] sm:$0xff]
    %v2441 = vld [vmem:[%s1 + $0x108] sm:$0xff]
    %v2442 = vld [vmem:[%s1 + $0x110] sm:$0xff]
    %v2443 = vld [vmem:[%s1 + $0x118] sm:$0xff]
    %v2444 = vld [vmem:[%s1 + $0x120] sm:$0xff]
    %v2445 = vld [vmem:[%s1 + $0x128] sm:$0xff]
    %v2446 = vld [vmem:[%s1 + $0x130] sm:$0xff]
    %v2447 = vld [vmem:[%s1 + $0x138] sm:$0xff]
    %v2448 = vld [vmem:[%s1 + $0x140] sm:$0xff]
    %v2449 = vld [vmem:[%s1 + $0x148] sm:$0xff]
    %v2450 = vld [vmem:[%s1 + $0x150] sm:$0xff]
    %v2451 = vld [vmem:[%s1 + $0x158] sm:$0xff]
    %v2452 = vld [vmem:[%s1 + $0x160] sm:$0xff]
    %v2453 = vld [vmem:[%s1 + $0x168] sm:$0xff]
    %v2454 = vld [vmem:[%s1 + $0x170] sm:$0xff]
    %v2455 = vld [vmem:[%s1 + $0x178] sm:$0xff]
    %v2456 = vld [vmem:[%s1 + $0x180] sm:$0xff]
    %v2457 = vld [vmem:[%s1 + $0x188] sm:$0xff]
    %v2458 = vld [vmem:[%s1 + $0x190] sm:$0xff]
    %v2459 = vld [vmem:[%s1 + $0x198] sm:$0xff]
    %v2460 = vld [vmem:[%s1 + $0x1a0] sm:$0xff]
    %v2461 = vld [vmem:[%s1 + $0x1a8] sm:$0xff]
    %v2462 = vld [vmem:[%s1 + $0x1b0] sm:$0xff]
    %v2463 = vld [vmem:[%s1 + $0x1b8] sm:$0xff]
    %v2464 = vld [vmem:[%s1 + $0x1c0] sm:$0xff]
    %v2465 = vld [vmem:[%s1 + $0x1c8] sm:$0xff]
    %v2466 = vld [vmem:[%s1 + $0x1d0] sm:$0xff]
    %v2467 = vld [vmem:[%s1 + $0x1d8] sm:$0xff]
    %v2468 = vld [vmem:[%s1 + $0x1e0] sm:$0xff]
    %v2469 = vld [vmem:[%s1 + $0x1e8] sm:$0xff]
    %v2470 = vld [vmem:[%s1 + $0x1f0] sm:$0xff]
    %v2471 = vld [vmem:[%s1 + $0x1f8] sm:$0xff]
    %2472 = vmatpush.msra.mxu0 %v2468
    %2473 = vmatpush.msra.mxu0 %v2464
    %2474 = vmatpush.msra.mxu0 %v2460
    %2475 = vmatpush.msra.mxu0 %v2456
    %2476 = vmatpush.msra.mxu0 %v2452
    %2477 = vmatpush.msra.mxu0 %v2448
    %2478 = vmatpush.msra.mxu0 %v2444
    %2479 = vmatpush.msra.mxu0 %v2440
    %2480 = vmatpush.msra.mxu0 %v2436
    %2481 = vmatpush.msra.mxu0 %v2432
    %2482 = vmatpush.msra.mxu0 %v2428
    %2483 = vmatpush.msra.mxu0 %v2424
    %2484 = vmatpush.msra.mxu0 %v2420
    %2485 = vmatpush.msra.mxu0 %v2416
    %2486 = vmatpush.msra.mxu0 %v2412
    %2487 = vmatpush.msra.mxu0 %v2408
    %2488 = vmatmul.f32.gmra.mxu0 %v2038
    %v2489 = vpop.f32.mrf.mxu0
    %v2490 = vadd.f32 0.0, %v2489
    %2491 = vdwg.mxu0
    %2492 = vmatpush.msra.mxu0 %v2469
    %2493 = vmatpush.msra.mxu0 %v2465
    %2494 = vmatpush.msra.mxu0 %v2461
    %2495 = vmatpush.msra.mxu0 %v2457
    %2496 = vmatpush.msra.mxu0 %v2453
    %2497 = vmatpush.msra.mxu0 %v2449
    %2498 = vmatpush.msra.mxu0 %v2445
    %2499 = vmatpush.msra.mxu0 %v2441
    %2500 = vmatpush.msra.mxu0 %v2437
    %2501 = vmatpush.msra.mxu0 %v2433
    %2502 = vmatpush.msra.mxu0 %v2429
    %2503 = vmatpush.msra.mxu0 %v2425
    %2504 = vmatpush.msra.mxu0 %v2421
    %2505 = vmatpush.msra.mxu0 %v2417
    %2506 = vmatpush.msra.mxu0 %v2413
    %2507 = vmatpush.msra.mxu0 %v2409
    %2508 = vmatmul.f32.gmra.mxu0 %v2038
    %v2509 = vpop.f32.mrf.mxu0
    %v2510 = vadd.f32 0.0, %v2509
    %2511 = vdwg.mxu0
    %2512 = vmatpush.msra.mxu0 %v2470
    %2513 = vmatpush.msra.mxu0 %v2466
    %2514 = vmatpush.msra.mxu0 %v2462
    %2515 = vmatpush.msra.mxu0 %v2458
    %2516 = vmatpush.msra.mxu0 %v2454
    %2517 = vmatpush.msra.mxu0 %v2450
    %2518 = vmatpush.msra.mxu0 %v2446
    %2519 = vmatpush.msra.mxu0 %v2442
    %2520 = vmatpush.msra.mxu0 %v2438
    %2521 = vmatpush.msra.mxu0 %v2434
    %2522 = vmatpush.msra.mxu0 %v2430
    %2523 = vmatpush.msra.mxu0 %v2426
    %2524 = vmatpush.msra.mxu0 %v2422
    %2525 = vmatpush.msra.mxu0 %v2418
    %2526 = vmatpush.msra.mxu0 %v2414
    %2527 = vmatpush.msra.mxu0 %v2410
    %2528 = vmatmul.f32.gmra.mxu0 %v2038
    %v2529 = vpop.f32.mrf.mxu0
    %v2530 = vadd.f32 0.0, %v2529
    %2531 = vdwg.mxu0
    %2532 = vmatpush.msra.mxu0 %v2471
    %2533 = vmatpush.msra.mxu0 %v2467
    %2534 = vmatpush.msra.mxu0 %v2463
    %2535 = vmatpush.msra.mxu0 %v2459
    %2536 = vmatpush.msra.mxu0 %v2455
    %2537 = vmatpush.msra.mxu0 %v2451
    %2538 = vmatpush.msra.mxu0 %v2447
    %2539 = vmatpush.msra.mxu0 %v2443
    %2540 = vmatpush.msra.mxu0 %v2439
    %2541 = vmatpush.msra.mxu0 %v2435
    %2542 = vmatpush.msra.mxu0 %v2431
    %2543 = vmatpush.msra.mxu0 %v2427
    %2544 = vmatpush.msra.mxu0 %v2423
    %2545 = vmatpush.msra.mxu0 %v2419
    %2546 = vmatpush.msra.mxu0 %v2415
    %2547 = vmatpush.msra.mxu0 %v2411
    %2548 = vmatmul.f32.gmra.mxu0 %v2038
    %v2549 = vpop.f32.mrf.mxu0
    %v2550 = vadd.f32 0.0, %v2549
    %2551 = vdwg.mxu0
    %v2556 = vrot.slane %v2510, 6
    %v2557 = vrot.slane %v2530, 4
    %v2558 = vrot.slane %v2550, 2
    %v2559 = vsel %vm177, %v2490, %v2556
    %v2560 = vsel %vm179, %v2557, %v2558
    %v2561 = vsel %vm181, %v2559, %v2560
    %v2563 = vadd.f32 %v2407, %v2561
    %v2564 = vxor.u32 %v2563, 2147483648
    %v2565 = vmul.f32 %v2564, 1.442695
    %v2566 = vpow.pop %v2565
    %v2567 = vadd.f32 %v2566, 1.0
    %v2568 = vrcp.pop %v2567
    %v2569 = vmul.f32 %v2567, %v2568
    %v2570 = vsub.f32 1.0, %v2569
    %v2571 = vmul.f32 %v2568, %v2570
    %v2572 = vadd.f32 %v2568, %v2571
    %vm2573 = vweird.f32 %v2567
    %vm2574 = vweird.f32 %v2568
    %vm2575 = vmor %vm2573, %vm2574
    %v2576 = vsel %vm2575, %v2568, %v2572
    %v2577 = vand.u32 2147483647, %v2567
    %vm2578 = vcmp.eq.f32.partialorder %v2577, 8.507059e+37
    %v2579 = vand.u32 %v2567, 2147483648
    %v2580 = vor.u32 1.1754944e-38, %v2579
    %v2581 = vsel %vm2578, %v2580, %v2576
    %v2582 = vmul.f32 1.0, %v2581
    %v2584 = vrot.slane %v2563, 2
    %v2586 = vxor.u32 %v2584, 2147483648
    %v2587 = vmul.f32 %v2586, 1.442695
    %v2588 = vpow.pop %v2587
    %v2589 = vadd.f32 %v2588, 1.0
    %v2590 = vrcp.pop %v2589
    %v2591 = vmul.f32 %v2589, %v2590
    %v2592 = vsub.f32 1.0, %v2591
    %v2593 = vmul.f32 %v2590, %v2592
    %v2594 = vadd.f32 %v2590, %v2593
    %vm2595 = vweird.f32 %v2589
    %vm2596 = vweird.f32 %v2590
    %vm2597 = vmor %vm2595, %vm2596
    %v2598 = vsel %vm2597, %v2590, %v2594
    %v2599 = vand.u32 2147483647, %v2589
    %vm2600 = vcmp.eq.f32.partialorder %v2599, 8.507059e+37
    %v2601 = vand.u32 %v2589, 2147483648
    %v2602 = vor.u32 1.1754944e-38, %v2601
    %v2603 = vsel %vm2600, %v2602, %v2598
    %v2604 = vmul.f32 1.0, %v2603
    %v2605 = vrot.slane %v2563, 4
    %v2607 = vtanh.pop %v2605
    %v2608 = vrot.slane %v2563, 6
    %v2610 = vxor.u32 %v2608, 2147483648
    %v2611 = vmul.f32 %v2610, 1.442695
    %v2612 = vpow.pop %v2611
    %v2613 = vadd.f32 %v2612, 1.0
    %v2614 = vrcp.pop %v2613
    %v2615 = vmul.f32 %v2613, %v2614
    %v2616 = vsub.f32 1.0, %v2615
    %v2617 = vmul.f32 %v2614, %v2616
    %v2618 = vadd.f32 %v2614, %v2617
    %vm2619 = vweird.f32 %v2613
    %vm2620 = vweird.f32 %v2614
    %vm2621 = vmor %vm2619, %vm2620
    %v2622 = vsel %vm2621, %v2614, %v2618
    %v2623 = vand.u32 2147483647, %v2613
    %vm2624 = vcmp.eq.f32.partialorder %v2623, 8.507059e+37
    %v2625 = vand.u32 %v2613, 2147483648
    %v2626 = vor.u32 1.1754944e-38, %v2625
    %v2627 = vsel %vm2624, %v2626, %v2622
    %v2628 = vmul.f32 1.0, %v2627
    %v2629 = vmul.f32 %v2604, %v2036
    %v2630 = vmul.f32 %v2582, %v2607
    %v2631 = vadd.f32 %v2629, %v2630
    %v2632 = vtanh.pop %v2631
    %v2633 = vmul.f32 %v2628, %v2632
    %v2634 = vld [vmem:[%s2] sm:$0xff]
    %v2635 = vld [vmem:[%s2 + $0x8] sm:$0xff]
    %v2636 = vld [vmem:[%s2 + $0x10] sm:$0xff]
    %v2637 = vld [vmem:[%s2 + $0x18] sm:$0xff]
    %v2638 = vld [vmem:[%s2 + $0x20] sm:$0xff]
    %v2639 = vld [vmem:[%s2 + $0x28] sm:$0xff]
    %v2640 = vld [vmem:[%s2 + $0x30] sm:$0xff]
    %v2641 = vld [vmem:[%s2 + $0x38] sm:$0xff]
    %v2642 = vld [vmem:[%s2 + $0x40] sm:$0xff]
    %v2643 = vld [vmem:[%s2 + $0x48] sm:$0xff]
    %v2644 = vld [vmem:[%s2 + $0x50] sm:$0xff]
    %v2645 = vld [vmem:[%s2 + $0x58] sm:$0xff]
    %v2646 = vld [vmem:[%s2 + $0x60] sm:$0xff]
    %v2647 = vld [vmem:[%s2 + $0x68] sm:$0xff]
    %v2648 = vld [vmem:[%s2 + $0x70] sm:$0xff]
    %v2649 = vld [vmem:[%s2 + $0x78] sm:$0xff]
    %v2650 = vld [vmem:[%s2 + $0x80] sm:$0xff]
    %v2651 = vld [vmem:[%s2 + $0x88] sm:$0xff]
    %v2652 = vld [vmem:[%s2 + $0x90] sm:$0xff]
    %v2653 = vld [vmem:[%s2 + $0x98] sm:$0xff]
    %v2654 = vld [vmem:[%s2 + $0xa0] sm:$0xff]
    %v2655 = vld [vmem:[%s2 + $0xa8] sm:$0xff]
    %v2656 = vld [vmem:[%s2 + $0xb0] sm:$0xff]
    %v2657 = vld [vmem:[%s2 + $0xb8] sm:$0xff]
    %v2658 = vld [vmem:[%s2 + $0xc0] sm:$0xff]
    %v2659 = vld [vmem:[%s2 + $0xc8] sm:$0xff]
    %v2660 = vld [vmem:[%s2 + $0xd0] sm:$0xff]
    %v2661 = vld [vmem:[%s2 + $0xd8] sm:$0xff]
    %v2662 = vld [vmem:[%s2 + $0xe0] sm:$0xff]
    %v2663 = vld [vmem:[%s2 + $0xe8] sm:$0xff]
    %v2664 = vld [vmem:[%s2 + $0xf0] sm:$0xff]
    %v2665 = vld [vmem:[%s2 + $0xf8] sm:$0xff]
    %v2666 = vld [vmem:[%s2 + $0x100] sm:$0xff]
    %v2667 = vld [vmem:[%s2 + $0x108] sm:$0xff]
    %v2668 = vld [vmem:[%s2 + $0x110] sm:$0xff]
    %v2669 = vld [vmem:[%s2 + $0x118] sm:$0xff]
    %v2670 = vld [vmem:[%s2 + $0x120] sm:$0xff]
    %v2671 = vld [vmem:[%s2 + $0x128] sm:$0xff]
    %v2672 = vld [vmem:[%s2 + $0x130] sm:$0xff]
    %v2673 = vld [vmem:[%s2 + $0x138] sm:$0xff]
    %v2674 = vld [vmem:[%s2 + $0x140] sm:$0xff]
    %v2675 = vld [vmem:[%s2 + $0x148] sm:$0xff]
    %v2676 = vld [vmem:[%s2 + $0x150] sm:$0xff]
    %v2677 = vld [vmem:[%s2 + $0x158] sm:$0xff]
    %v2678 = vld [vmem:[%s2 + $0x160] sm:$0xff]
    %v2679 = vld [vmem:[%s2 + $0x168] sm:$0xff]
    %v2680 = vld [vmem:[%s2 + $0x170] sm:$0xff]
    %v2681 = vld [vmem:[%s2 + $0x178] sm:$0xff]
    %v2682 = vld [vmem:[%s2 + $0x180] sm:$0xff]
    %v2683 = vld [vmem:[%s2 + $0x188] sm:$0xff]
    %v2684 = vld [vmem:[%s2 + $0x190] sm:$0xff]
    %v2685 = vld [vmem:[%s2 + $0x198] sm:$0xff]
    %v2686 = vld [vmem:[%s2 + $0x1a0] sm:$0xff]
    %v2687 = vld [vmem:[%s2 + $0x1a8] sm:$0xff]
    %v2688 = vld [vmem:[%s2 + $0x1b0] sm:$0xff]
    %v2689 = vld [vmem:[%s2 + $0x1b8] sm:$0xff]
    %v2690 = vld [vmem:[%s2 + $0x1c0] sm:$0xff]
    %v2691 = vld [vmem:[%s2 + $0x1c8] sm:$0xff]
    %v2692 = vld [vmem:[%s2 + $0x1d0] sm:$0xff]
    %v2693 = vld [vmem:[%s2 + $0x1d8] sm:$0xff]
    %v2694 = vld [vmem:[%s2 + $0x1e0] sm:$0xff]
    %v2695 = vld [vmem:[%s2 + $0x1e8] sm:$0xff]
    %v2696 = vld [vmem:[%s2 + $0x1f0] sm:$0xff]
    %v2697 = vld [vmem:[%s2 + $0x1f8] sm:$0xff]
    %v2698 = vld [vmem:[%s3] sm:$0xff]
    %v2699 = vld [vmem:[%s3 + $0x8] sm:$0xff]
    %v2700 = vld [vmem:[%s3 + $0x10] sm:$0xff]
    %v2701 = vld [vmem:[%s3 + $0x18] sm:$0xff]
    %v2702 = vld [vmem:[%s3 + $0x20] sm:$0xff]
    %v2703 = vld [vmem:[%s3 + $0x28] sm:$0xff]
    %v2704 = vld [vmem:[%s3 + $0x30] sm:$0xff]
    %v2705 = vld [vmem:[%s3 + $0x38] sm:$0xff]
    %v2706 = vld [vmem:[%s3 + $0x40] sm:$0xff]
    %v2707 = vld [vmem:[%s3 + $0x48] sm:$0xff]
    %v2708 = vld [vmem:[%s3 + $0x50] sm:$0xff]
    %v2709 = vld [vmem:[%s3 + $0x58] sm:$0xff]
    %v2710 = vld [vmem:[%s3 + $0x60] sm:$0xff]
    %v2711 = vld [vmem:[%s3 + $0x68] sm:$0xff]
    %v2712 = vld [vmem:[%s3 + $0x70] sm:$0xff]
    %v2713 = vld [vmem:[%s3 + $0x78] sm:$0xff]
    %v2714 = vld [vmem:[%s3 + $0x80] sm:$0xff]
    %v2715 = vld [vmem:[%s3 + $0x88] sm:$0xff]
    %v2716 = vld [vmem:[%s3 + $0x90] sm:$0xff]
    %v2717 = vld [vmem:[%s3 + $0x98] sm:$0xff]
    %v2718 = vld [vmem:[%s3 + $0xa0] sm:$0xff]
    %v2719 = vld [vmem:[%s3 + $0xa8] sm:$0xff]
    %v2720 = vld [vmem:[%s3 + $0xb0] sm:$0xff]
    %v2721 = vld [vmem:[%s3 + $0xb8] sm:$0xff]
    %v2722 = vld [vmem:[%s3 + $0xc0] sm:$0xff]
    %v2723 = vld [vmem:[%s3 + $0xc8] sm:$0xff]
    %v2724 = vld [vmem:[%s3 + $0xd0] sm:$0xff]
    %v2725 = vld [vmem:[%s3 + $0xd8] sm:$0xff]
    %v2726 = vld [vmem:[%s3 + $0xe0] sm:$0xff]
    %v2727 = vld [vmem:[%s3 + $0xe8] sm:$0xff]
    %v2728 = vld [vmem:[%s3 + $0xf0] sm:$0xff]
    %v2729 = vld [vmem:[%s3 + $0xf8] sm:$0xff]
    %v2730 = vld [vmem:[%s3 + $0x100] sm:$0xff]
    %v2731 = vld [vmem:[%s3 + $0x108] sm:$0xff]
    %v2732 = vld [vmem:[%s3 + $0x110] sm:$0xff]
    %v2733 = vld [vmem:[%s3 + $0x118] sm:$0xff]
    %v2734 = vld [vmem:[%s3 + $0x120] sm:$0xff]
    %v2735 = vld [vmem:[%s3 + $0x128] sm:$0xff]
    %v2736 = vld [vmem:[%s3 + $0x130] sm:$0xff]
    %v2737 = vld [vmem:[%s3 + $0x138] sm:$0xff]
    %v2738 = vld [vmem:[%s3 + $0x140] sm:$0xff]
    %v2739 = vld [vmem:[%s3 + $0x148] sm:$0xff]
    %v2740 = vld [vmem:[%s3 + $0x150] sm:$0xff]
    %v2741 = vld [vmem:[%s3 + $0x158] sm:$0xff]
    %v2742 = vld [vmem:[%s3 + $0x160] sm:$0xff]
    %v2743 = vld [vmem:[%s3 + $0x168] sm:$0xff]
    %v2744 = vld [vmem:[%s3 + $0x170] sm:$0xff]
    %v2745 = vld [vmem:[%s3 + $0x178] sm:$0xff]
    %v2746 = vld [vmem:[%s3 + $0x180] sm:$0xff]
    %v2747 = vld [vmem:[%s3 + $0x188] sm:$0xff]
    %v2748 = vld [vmem:[%s3 + $0x190] sm:$0xff]
    %v2749 = vld [vmem:[%s3 + $0x198] sm:$0xff]
    %v2750 = vld [vmem:[%s3 + $0x1a0] sm:$0xff]
    %v2751 = vld [vmem:[%s3 + $0x1a8] sm:$0xff]
    %v2752 = vld [vmem:[%s3 + $0x1b0] sm:$0xff]
    %v2753 = vld [vmem:[%s3 + $0x1b8] sm:$0xff]
    %v2754 = vld [vmem:[%s3 + $0x1c0] sm:$0xff]
    %v2755 = vld [vmem:[%s3 + $0x1c8] sm:$0xff]
    %v2756 = vld [vmem:[%s3 + $0x1d0] sm:$0xff]
    %v2757 = vld [vmem:[%s3 + $0x1d8] sm:$0xff]
    %v2758 = vld [vmem:[%s3 + $0x1e0] sm:$0xff]
    %v2759 = vld [vmem:[%s3 + $0x1e8] sm:$0xff]
    %v2760 = vld [vmem:[%s3 + $0x1f0] sm:$0xff]
    %v2761 = vld [vmem:[%s3 + $0x1f8] sm:$0xff]
    %2762 = vmatpush.msra.mxu0 %v2758
    %2763 = vmatpush.msra.mxu0 %v2754
    %2764 = vmatpush.msra.mxu0 %v2750
    %2765 = vmatpush.msra.mxu0 %v2746
    %2766 = vmatpush.msra.mxu0 %v2742
    %2767 = vmatpush.msra.mxu0 %v2738
    %2768 = vmatpush.msra.mxu0 %v2734
    %2769 = vmatpush.msra.mxu0 %v2730
    %2770 = vmatpush.msra.mxu0 %v2726
    %2771 = vmatpush.msra.mxu0 %v2722
    %2772 = vmatpush.msra.mxu0 %v2718
    %2773 = vmatpush.msra.mxu0 %v2714
    %2774 = vmatpush.msra.mxu0 %v2710
    %2775 = vmatpush.msra.mxu0 %v2706
    %2776 = vmatpush.msra.mxu0 %v2702
    %2777 = vmatpush.msra.mxu0 %v2698
    %2778 = vmatmul.f32.gmra.mxu0 %v2403
    %v2779 = vpop.f32.mrf.mxu0
    %v2780 = vadd.f32 0.0, %v2779
    %2781 = vdwg.mxu0
    %2782 = vmatpush.msra.mxu0 %v2759
    %2783 = vmatpush.msra.mxu0 %v2755
    %2784 = vmatpush.msra.mxu0 %v2751
    %2785 = vmatpush.msra.mxu0 %v2747
    %2786 = vmatpush.msra.mxu0 %v2743
    %2787 = vmatpush.msra.mxu0 %v2739
    %2788 = vmatpush.msra.mxu0 %v2735
    %2789 = vmatpush.msra.mxu0 %v2731
    %2790 = vmatpush.msra.mxu0 %v2727
    %2791 = vmatpush.msra.mxu0 %v2723
    %2792 = vmatpush.msra.mxu0 %v2719
    %2793 = vmatpush.msra.mxu0 %v2715
    %2794 = vmatpush.msra.mxu0 %v2711
    %2795 = vmatpush.msra.mxu0 %v2707
    %2796 = vmatpush.msra.mxu0 %v2703
    %2797 = vmatpush.msra.mxu0 %v2699
    %2798 = vmatmul.f32.gmra.mxu0 %v2403
    %v2799 = vpop.f32.mrf.mxu0
    %v2800 = vadd.f32 0.0, %v2799
    %2801 = vdwg.mxu0
    %2802 = vmatpush.msra.mxu0 %v2760
    %2803 = vmatpush.msra.mxu0 %v2756
    %2804 = vmatpush.msra.mxu0 %v2752
    %2805 = vmatpush.msra.mxu0 %v2748
    %2806 = vmatpush.msra.mxu0 %v2744
    %2807 = vmatpush.msra.mxu0 %v2740
    %2808 = vmatpush.msra.mxu0 %v2736
    %2809 = vmatpush.msra.mxu0 %v2732
    %2810 = vmatpush.msra.mxu0 %v2728
    %2811 = vmatpush.msra.mxu0 %v2724
    %2812 = vmatpush.msra.mxu0 %v2720
    %2813 = vmatpush.msra.mxu0 %v2716
    %2814 = vmatpush.msra.mxu0 %v2712
    %2815 = vmatpush.msra.mxu0 %v2708
    %2816 = vmatpush.msra.mxu0 %v2704
    %2817 = vmatpush.msra.mxu0 %v2700
    %2818 = vmatmul.f32.gmra.mxu0 %v2403
    %v2819 = vpop.f32.mrf.mxu0
    %v2820 = vadd.f32 0.0, %v2819
    %2821 = vdwg.mxu0
    %2822 = vmatpush.msra.mxu0 %v2761
    %2823 = vmatpush.msra.mxu0 %v2757
    %2824 = vmatpush.msra.mxu0 %v2753
    %2825 = vmatpush.msra.mxu0 %v2749
    %2826 = vmatpush.msra.mxu0 %v2745
    %2827 = vmatpush.msra.mxu0 %v2741
    %2828 = vmatpush.msra.mxu0 %v2737
    %2829 = vmatpush.msra.mxu0 %v2733
    %2830 = vmatpush.msra.mxu0 %v2729
    %2831 = vmatpush.msra.mxu0 %v2725
    %2832 = vmatpush.msra.mxu0 %v2721
    %2833 = vmatpush.msra.mxu0 %v2717
    %2834 = vmatpush.msra.mxu0 %v2713
    %2835 = vmatpush.msra.mxu0 %v2709
    %2836 = vmatpush.msra.mxu0 %v2705
    %2837 = vmatpush.msra.mxu0 %v2701
    %2838 = vmatmul.f32.gmra.mxu0 %v2403
    %v2839 = vpop.f32.mrf.mxu0
    %v2840 = vadd.f32 0.0, %v2839
    %2841 = vdwg.mxu0
    %2842 = vmatpush.msra.mxu0 %v2694
    %2843 = vmatpush.msra.mxu0 %v2690
    %2844 = vmatpush.msra.mxu0 %v2686
    %2845 = vmatpush.msra.mxu0 %v2682
    %2846 = vmatpush.msra.mxu0 %v2678
    %2847 = vmatpush.msra.mxu0 %v2674
    %2848 = vmatpush.msra.mxu0 %v2670
    %2849 = vmatpush.msra.mxu0 %v2666
    %2850 = vmatpush.msra.mxu0 %v2662
    %2851 = vmatpush.msra.mxu0 %v2658
    %2852 = vmatpush.msra.mxu0 %v2654
    %2853 = vmatpush.msra.mxu0 %v2650
    %2854 = vmatpush.msra.mxu0 %v2646
    %2855 = vmatpush.msra.mxu0 %v2642
    %2856 = vmatpush.msra.mxu0 %v2638
    %2857 = vmatpush.msra.mxu0 %v2634
    %2858 = vmatmul.f32.gmra.mxu0 %v2633
    %v2859 = vpop.f32.mrf.mxu0
    %v2860 = vadd.f32 %v2780, %v2859
    %2861 = vdwg.mxu0
    %2862 = vmatpush.msra.mxu0 %v2695
    %2863 = vmatpush.msra.mxu0 %v2691
    %2864 = vmatpush.msra.mxu0 %v2687
    %2865 = vmatpush.msra.mxu0 %v2683
    %2866 = vmatpush.msra.mxu0 %v2679
    %2867 = vmatpush.msra.mxu0 %v2675
    %2868 = vmatpush.msra.mxu0 %v2671
    %2869 = vmatpush.msra.mxu0 %v2667
    %2870 = vmatpush.msra.mxu0 %v2663
    %2871 = vmatpush.msra.mxu0 %v2659
    %2872 = vmatpush.msra.mxu0 %v2655
    %2873 = vmatpush.msra.mxu0 %v2651
    %2874 = vmatpush.msra.mxu0 %v2647
    %2875 = vmatpush.msra.mxu0 %v2643
    %2876 = vmatpush.msra.mxu0 %v2639
    %2877 = vmatpush.msra.mxu0 %v2635
    %2878 = vmatmul.f32.gmra.mxu0 %v2633
    %v2879 = vpop.f32.mrf.mxu0
    %v2880 = vadd.f32 %v2800, %v2879
    %2881 = vdwg.mxu0
    %2882 = vmatpush.msra.mxu0 %v2696
    %2883 = vmatpush.msra.mxu0 %v2692
    %2884 = vmatpush.msra.mxu0 %v2688
    %2885 = vmatpush.msra.mxu0 %v2684
    %2886 = vmatpush.msra.mxu0 %v2680
    %2887 = vmatpush.msra.mxu0 %v2676
    %2888 = vmatpush.msra.mxu0 %v2672
    %2889 = vmatpush.msra.mxu0 %v2668
    %2890 = vmatpush.msra.mxu0 %v2664
    %2891 = vmatpush.msra.mxu0 %v2660
    %2892 = vmatpush.msra.mxu0 %v2656
    %2893 = vmatpush.msra.mxu0 %v2652
    %2894 = vmatpush.msra.mxu0 %v2648
    %2895 = vmatpush.msra.mxu0 %v2644
    %2896 = vmatpush.msra.mxu0 %v2640
    %2897 = vmatpush.msra.mxu0 %v2636
    %2898 = vmatmul.f32.gmra.mxu0 %v2633
    %v2899 = vpop.f32.mrf.mxu0
    %v2900 = vadd.f32 %v2820, %v2899
    %2901 = vdwg.mxu0
    %2902 = vmatpush.msra.mxu0 %v2697
    %2903 = vmatpush.msra.mxu0 %v2693
    %2904 = vmatpush.msra.mxu0 %v2689
    %2905 = vmatpush.msra.mxu0 %v2685
    %2906 = vmatpush.msra.mxu0 %v2681
    %2907 = vmatpush.msra.mxu0 %v2677
    %2908 = vmatpush.msra.mxu0 %v2673
    %2909 = vmatpush.msra.mxu0 %v2669
    %2910 = vmatpush.msra.mxu0 %v2665
    %2911 = vmatpush.msra.mxu0 %v2661
    %2912 = vmatpush.msra.mxu0 %v2657
    %2913 = vmatpush.msra.mxu0 %v2653
    %2914 = vmatpush.msra.mxu0 %v2649
    %2915 = vmatpush.msra.mxu0 %v2645
    %2916 = vmatpush.msra.mxu0 %v2641
    %2917 = vmatpush.msra.mxu0 %v2637
    %2918 = vmatmul.f32.gmra.mxu0 %v2633
    %v2919 = vpop.f32.mrf.mxu0
    %v2920 = vadd.f32 %v2840, %v2919
    %2921 = vdwg.mxu0
    %v2922 = vld [vmem:[%s4] sm:$0xf]
    %v2924 = vperm.slane %v2922, 0
    %v2925 = vperm.slane %v2922, 1
    %v2926 = vperm.slane %v2922, 2
    %v2927 = vperm.slane %v2922, 3
    %v2932 = vadd.f32 %v2860, %v2924
    %v2933 = vadd.f32 %v2880, %v2925
    %v2934 = vadd.f32 %v2900, %v2926
    %v2935 = vadd.f32 %v2920, %v2927
    %v2936 = vxor.u32 %v2932, 2147483648
    %v2937 = vmul.f32 %v2936, 1.442695
    %v2938 = vpow.pop %v2937
    %v2939 = vadd.f32 %v2938, 1.0
    %v2940 = vrcp.pop %v2939
    %v2941 = vmul.f32 %v2939, %v2940
    %v2942 = vsub.f32 1.0, %v2941
    %v2943 = vmul.f32 %v2940, %v2942
    %v2944 = vadd.f32 %v2940, %v2943
    %vm2945 = vweird.f32 %v2939
    %vm2946 = vweird.f32 %v2940
    %vm2947 = vmor %vm2945, %vm2946
    %v2948 = vsel %vm2947, %v2940, %v2944
    %v2949 = vand.u32 2147483647, %v2939
    %vm2950 = vcmp.eq.f32.partialorder %v2949, 8.507059e+37
    %v2951 = vand.u32 %v2939, 2147483648
    %v2952 = vor.u32 1.1754944e-38, %v2951
    %v2953 = vsel %vm2950, %v2952, %v2948
    %v2954 = vmul.f32 1.0, %v2953
    %v2955 = vxor.u32 %v2933, 2147483648
    %v2956 = vmul.f32 %v2955, 1.442695
    %v2957 = vpow.pop %v2956
    %v2958 = vadd.f32 %v2957, 1.0
    %v2959 = vrcp.pop %v2958
    %v2960 = vmul.f32 %v2958, %v2959
    %v2961 = vsub.f32 1.0, %v2960
    %v2962 = vmul.f32 %v2959, %v2961
    %v2963 = vadd.f32 %v2959, %v2962
    %vm2964 = vweird.f32 %v2958
    %vm2965 = vweird.f32 %v2959
    %vm2966 = vmor %vm2964, %vm2965
    %v2967 = vsel %vm2966, %v2959, %v2963
    %v2968 = vand.u32 2147483647, %v2958
    %vm2969 = vcmp.eq.f32.partialorder %v2968, 8.507059e+37
    %v2970 = vand.u32 %v2958, 2147483648
    %v2971 = vor.u32 1.1754944e-38, %v2970
    %v2972 = vsel %vm2969, %v2971, %v2967
    %v2973 = vmul.f32 1.0, %v2972
    %v2974 = vtanh.pop %v2934
    %v2975 = vxor.u32 %v2935, 2147483648
    %v2976 = vmul.f32 %v2975, 1.442695
    %v2977 = vpow.pop %v2976
    %v2978 = vadd.f32 %v2977, 1.0
    %v2979 = vrcp.pop %v2978
    %v2980 = vmul.f32 %v2978, %v2979
    %v2981 = vsub.f32 1.0, %v2980
    %v2982 = vmul.f32 %v2979, %v2981
    %v2983 = vadd.f32 %v2979, %v2982
    %vm2984 = vweird.f32 %v2978
    %vm2985 = vweird.f32 %v2979
    %vm2986 = vmor %vm2984, %vm2985
    %v2987 = vsel %vm2986, %v2979, %v2983
    %v2988 = vand.u32 2147483647, %v2978
    %vm2989 = vcmp.eq.f32.partialorder %v2988, 8.507059e+37
    %v2990 = vand.u32 %v2978, 2147483648
    %v2991 = vor.u32 1.1754944e-38, %v2990
    %v2992 = vsel %vm2989, %v2991, %v2987
    %v2993 = vmul.f32 1.0, %v2992
    %v2994 = vmul.f32 %v2973, %v2401
    %v2995 = vmul.f32 %v2954, %v2974
    %v2996 = vadd.f32 %v2994, %v2995
    %v2997 = vtanh.pop %v2996
    %v2998 = vmul.f32 %v2993, %v2997
    %s2999 = scalar_lea.vmem %s5, 8
    %3000 = vst [vmem:[%s2999] sm:$0x3] %v2998
    %s3001 = scalar_lea.vmem %s0, 40
    %v3002 = vld [vmem:[%s3001] sm:$0xff]
    %v3003 = vld [vmem:[%s1] sm:$0xff]
    %v3004 = vld [vmem:[%s1 + $0x8] sm:$0xff]
    %v3005 = vld [vmem:[%s1 + $0x10] sm:$0xff]
    %v3006 = vld [vmem:[%s1 + $0x18] sm:$0xff]
    %v3007 = vld [vmem:[%s1 + $0x20] sm:$0xff]
    %v3008 = vld [vmem:[%s1 + $0x28] sm:$0xff]
    %v3009 = vld [vmem:[%s1 + $0x30] sm:$0xff]
    %v3010 = vld [vmem:[%s1 + $0x38] sm:$0xff]
    %v3011 = vld [vmem:[%s1 + $0x40] sm:$0xff]
    %v3012 = vld [vmem:[%s1 + $0x48] sm:$0xff]
    %v3013 = vld [vmem:[%s1 + $0x50] sm:$0xff]
    %v3014 = vld [vmem:[%s1 + $0x58] sm:$0xff]
    %v3015 = vld [vmem:[%s1 + $0x60] sm:$0xff]
    %v3016 = vld [vmem:[%s1 + $0x68] sm:$0xff]
    %v3017 = vld [vmem:[%s1 + $0x70] sm:$0xff]
    %v3018 = vld [vmem:[%s1 + $0x78] sm:$0xff]
    %v3019 = vld [vmem:[%s1 + $0x80] sm:$0xff]
    %v3020 = vld [vmem:[%s1 + $0x88] sm:$0xff]
    %v3021 = vld [vmem:[%s1 + $0x90] sm:$0xff]
    %v3022 = vld [vmem:[%s1 + $0x98] sm:$0xff]
    %v3023 = vld [vmem:[%s1 + $0xa0] sm:$0xff]
    %v3024 = vld [vmem:[%s1 + $0xa8] sm:$0xff]
    %v3025 = vld [vmem:[%s1 + $0xb0] sm:$0xff]
    %v3026 = vld [vmem:[%s1 + $0xb8] sm:$0xff]
    %v3027 = vld [vmem:[%s1 + $0xc0] sm:$0xff]
    %v3028 = vld [vmem:[%s1 + $0xc8] sm:$0xff]
    %v3029 = vld [vmem:[%s1 + $0xd0] sm:$0xff]
    %v3030 = vld [vmem:[%s1 + $0xd8] sm:$0xff]
    %v3031 = vld [vmem:[%s1 + $0xe0] sm:$0xff]
    %v3032 = vld [vmem:[%s1 + $0xe8] sm:$0xff]
    %v3033 = vld [vmem:[%s1 + $0xf0] sm:$0xff]
    %v3034 = vld [vmem:[%s1 + $0xf8] sm:$0xff]
    %v3035 = vld [vmem:[%s1 + $0x100] sm:$0xff]
    %v3036 = vld [vmem:[%s1 + $0x108] sm:$0xff]
    %v3037 = vld [vmem:[%s1 + $0x110] sm:$0xff]
    %v3038 = vld [vmem:[%s1 + $0x118] sm:$0xff]
    %v3039 = vld [vmem:[%s1 + $0x120] sm:$0xff]
    %v3040 = vld [vmem:[%s1 + $0x128] sm:$0xff]
    %v3041 = vld [vmem:[%s1 + $0x130] sm:$0xff]
    %v3042 = vld [vmem:[%s1 + $0x138] sm:$0xff]
    %v3043 = vld [vmem:[%s1 + $0x140] sm:$0xff]
    %v3044 = vld [vmem:[%s1 + $0x148] sm:$0xff]
    %v3045 = vld [vmem:[%s1 + $0x150] sm:$0xff]
    %v3046 = vld [vmem:[%s1 + $0x158] sm:$0xff]
    %v3047 = vld [vmem:[%s1 + $0x160] sm:$0xff]
    %v3048 = vld [vmem:[%s1 + $0x168] sm:$0xff]
    %v3049 = vld [vmem:[%s1 + $0x170] sm:$0xff]
    %v3050 = vld [vmem:[%s1 + $0x178] sm:$0xff]
    %v3051 = vld [vmem:[%s1 + $0x180] sm:$0xff]
    %v3052 = vld [vmem:[%s1 + $0x188] sm:$0xff]
    %v3053 = vld [vmem:[%s1 + $0x190] sm:$0xff]
    %v3054 = vld [vmem:[%s1 + $0x198] sm:$0xff]
    %v3055 = vld [vmem:[%s1 + $0x1a0] sm:$0xff]
    %v3056 = vld [vmem:[%s1 + $0x1a8] sm:$0xff]
    %v3057 = vld [vmem:[%s1 + $0x1b0] sm:$0xff]
    %v3058 = vld [vmem:[%s1 + $0x1b8] sm:$0xff]
    %v3059 = vld [vmem:[%s1 + $0x1c0] sm:$0xff]
    %v3060 = vld [vmem:[%s1 + $0x1c8] sm:$0xff]
    %v3061 = vld [vmem:[%s1 + $0x1d0] sm:$0xff]
    %v3062 = vld [vmem:[%s1 + $0x1d8] sm:$0xff]
    %v3063 = vld [vmem:[%s1 + $0x1e0] sm:$0xff]
    %v3064 = vld [vmem:[%s1 + $0x1e8] sm:$0xff]
    %v3065 = vld [vmem:[%s1 + $0x1f0] sm:$0xff]
    %v3066 = vld [vmem:[%s1 + $0x1f8] sm:$0xff]
    %3067 = vmatpush.msra.mxu0 %v3063
    %3068 = vmatpush.msra.mxu0 %v3059
    %3069 = vmatpush.msra.mxu0 %v3055
    %3070 = vmatpush.msra.mxu0 %v3051
    %3071 = vmatpush.msra.mxu0 %v3047
    %3072 = vmatpush.msra.mxu0 %v3043
    %3073 = vmatpush.msra.mxu0 %v3039
    %3074 = vmatpush.msra.mxu0 %v3035
    %3075 = vmatpush.msra.mxu0 %v3031
    %3076 = vmatpush.msra.mxu0 %v3027
    %3077 = vmatpush.msra.mxu0 %v3023
    %3078 = vmatpush.msra.mxu0 %v3019
    %3079 = vmatpush.msra.mxu0 %v3015
    %3080 = vmatpush.msra.mxu0 %v3011
    %3081 = vmatpush.msra.mxu0 %v3007
    %3082 = vmatpush.msra.mxu0 %v3003
    %3083 = vmatmul.f32.gmra.mxu0 %v2633
    %v3084 = vpop.f32.mrf.mxu0
    %v3085 = vadd.f32 0.0, %v3084
    %3086 = vdwg.mxu0
    %3087 = vmatpush.msra.mxu0 %v3064
    %3088 = vmatpush.msra.mxu0 %v3060
    %3089 = vmatpush.msra.mxu0 %v3056
    %3090 = vmatpush.msra.mxu0 %v3052
    %3091 = vmatpush.msra.mxu0 %v3048
    %3092 = vmatpush.msra.mxu0 %v3044
    %3093 = vmatpush.msra.mxu0 %v3040
    %3094 = vmatpush.msra.mxu0 %v3036
    %3095 = vmatpush.msra.mxu0 %v3032
    %3096 = vmatpush.msra.mxu0 %v3028
    %3097 = vmatpush.msra.mxu0 %v3024
    %3098 = vmatpush.msra.mxu0 %v3020
    %3099 = vmatpush.msra.mxu0 %v3016
    %3100 = vmatpush.msra.mxu0 %v3012
    %3101 = vmatpush.msra.mxu0 %v3008
    %3102 = vmatpush.msra.mxu0 %v3004
    %3103 = vmatmul.f32.gmra.mxu0 %v2633
    %v3104 = vpop.f32.mrf.mxu0
    %v3105 = vadd.f32 0.0, %v3104
    %3106 = vdwg.mxu0
    %3107 = vmatpush.msra.mxu0 %v3065
    %3108 = vmatpush.msra.mxu0 %v3061
    %3109 = vmatpush.msra.mxu0 %v3057
    %3110 = vmatpush.msra.mxu0 %v3053
    %3111 = vmatpush.msra.mxu0 %v3049
    %3112 = vmatpush.msra.mxu0 %v3045
    %3113 = vmatpush.msra.mxu0 %v3041
    %3114 = vmatpush.msra.mxu0 %v3037
    %3115 = vmatpush.msra.mxu0 %v3033
    %3116 = vmatpush.msra.mxu0 %v3029
    %3117 = vmatpush.msra.mxu0 %v3025
    %3118 = vmatpush.msra.mxu0 %v3021
    %3119 = vmatpush.msra.mxu0 %v3017
    %3120 = vmatpush.msra.mxu0 %v3013
    %3121 = vmatpush.msra.mxu0 %v3009
    %3122 = vmatpush.msra.mxu0 %v3005
    %3123 = vmatmul.f32.gmra.mxu0 %v2633
    %v3124 = vpop.f32.mrf.mxu0
    %v3125 = vadd.f32 0.0, %v3124
    %3126 = vdwg.mxu0
    %3127 = vmatpush.msra.mxu0 %v3066
    %3128 = vmatpush.msra.mxu0 %v3062
    %3129 = vmatpush.msra.mxu0 %v3058
    %3130 = vmatpush.msra.mxu0 %v3054
    %3131 = vmatpush.msra.mxu0 %v3050
    %3132 = vmatpush.msra.mxu0 %v3046
    %3133 = vmatpush.msra.mxu0 %v3042
    %3134 = vmatpush.msra.mxu0 %v3038
    %3135 = vmatpush.msra.mxu0 %v3034
    %3136 = vmatpush.msra.mxu0 %v3030
    %3137 = vmatpush.msra.mxu0 %v3026
    %3138 = vmatpush.msra.mxu0 %v3022
    %3139 = vmatpush.msra.mxu0 %v3018
    %3140 = vmatpush.msra.mxu0 %v3014
    %3141 = vmatpush.msra.mxu0 %v3010
    %3142 = vmatpush.msra.mxu0 %v3006
    %3143 = vmatmul.f32.gmra.mxu0 %v2633
    %v3144 = vpop.f32.mrf.mxu0
    %v3145 = vadd.f32 0.0, %v3144
    %3146 = vdwg.mxu0
    %v3151 = vrot.slane %v3105, 6
    %v3152 = vrot.slane %v3125, 4
    %v3153 = vrot.slane %v3145, 2
    %v3154 = vsel %vm177, %v3085, %v3151
    %v3155 = vsel %vm179, %v3152, %v3153
    %v3156 = vsel %vm181, %v3154, %v3155
    %v3158 = vadd.f32 %v3002, %v3156
    %v3159 = vxor.u32 %v3158, 2147483648
    %v3160 = vmul.f32 %v3159, 1.442695
    %v3161 = vpow.pop %v3160
    %v3162 = vadd.f32 %v3161, 1.0
    %v3163 = vrcp.pop %v3162
    %v3164 = vmul.f32 %v3162, %v3163
    %v3165 = vsub.f32 1.0, %v3164
    %v3166 = vmul.f32 %v3163, %v3165
    %v3167 = vadd.f32 %v3163, %v3166
    %vm3168 = vweird.f32 %v3162
    %vm3169 = vweird.f32 %v3163
    %vm3170 = vmor %vm3168, %vm3169
    %v3171 = vsel %vm3170, %v3163, %v3167
    %v3172 = vand.u32 2147483647, %v3162
    %vm3173 = vcmp.eq.f32.partialorder %v3172, 8.507059e+37
    %v3174 = vand.u32 %v3162, 2147483648
    %v3175 = vor.u32 1.1754944e-38, %v3174
    %v3176 = vsel %vm3173, %v3175, %v3171
    %v3177 = vmul.f32 1.0, %v3176
    %v3179 = vrot.slane %v3158, 2
    %v3181 = vxor.u32 %v3179, 2147483648
    %v3182 = vmul.f32 %v3181, 1.442695
    %v3183 = vpow.pop %v3182
    %v3184 = vadd.f32 %v3183, 1.0
    %v3185 = vrcp.pop %v3184
    %v3186 = vmul.f32 %v3184, %v3185
    %v3187 = vsub.f32 1.0, %v3186
    %v3188 = vmul.f32 %v3185, %v3187
    %v3189 = vadd.f32 %v3185, %v3188
    %vm3190 = vweird.f32 %v3184
    %vm3191 = vweird.f32 %v3185
    %vm3192 = vmor %vm3190, %vm3191
    %v3193 = vsel %vm3192, %v3185, %v3189
    %v3194 = vand.u32 2147483647, %v3184
    %vm3195 = vcmp.eq.f32.partialorder %v3194, 8.507059e+37
    %v3196 = vand.u32 %v3184, 2147483648
    %v3197 = vor.u32 1.1754944e-38, %v3196
    %v3198 = vsel %vm3195, %v3197, %v3193
    %v3199 = vmul.f32 1.0, %v3198
    %v3200 = vrot.slane %v3158, 4
    %v3202 = vtanh.pop %v3200
    %v3203 = vrot.slane %v3158, 6
    %v3205 = vxor.u32 %v3203, 2147483648
    %v3206 = vmul.f32 %v3205, 1.442695
    %v3207 = vpow.pop %v3206
    %v3208 = vadd.f32 %v3207, 1.0
    %v3209 = vrcp.pop %v3208
    %v3210 = vmul.f32 %v3208, %v3209
    %v3211 = vsub.f32 1.0, %v3210
    %v3212 = vmul.f32 %v3209, %v3211
    %v3213 = vadd.f32 %v3209, %v3212
    %vm3214 = vweird.f32 %v3208
    %vm3215 = vweird.f32 %v3209
    %vm3216 = vmor %vm3214, %vm3215
    %v3217 = vsel %vm3216, %v3209, %v3213
    %v3218 = vand.u32 2147483647, %v3208
    %vm3219 = vcmp.eq.f32.partialorder %v3218, 8.507059e+37
    %v3220 = vand.u32 %v3208, 2147483648
    %v3221 = vor.u32 1.1754944e-38, %v3220
    %v3222 = vsel %vm3219, %v3221, %v3217
    %v3223 = vmul.f32 1.0, %v3222
    %v3224 = vmul.f32 %v3199, %v2631
    %v3225 = vmul.f32 %v3177, %v3202
    %v3226 = vadd.f32 %v3224, %v3225
    %v3227 = vtanh.pop %v3226
    %v3228 = vmul.f32 %v3223, %v3227
    %v3229 = vld [vmem:[%s2] sm:$0xff]
    %v3230 = vld [vmem:[%s2 + $0x8] sm:$0xff]
    %v3231 = vld [vmem:[%s2 + $0x10] sm:$0xff]
    %v3232 = vld [vmem:[%s2 + $0x18] sm:$0xff]
    %v3233 = vld [vmem:[%s2 + $0x20] sm:$0xff]
    %v3234 = vld [vmem:[%s2 + $0x28] sm:$0xff]
    %v3235 = vld [vmem:[%s2 + $0x30] sm:$0xff]
    %v3236 = vld [vmem:[%s2 + $0x38] sm:$0xff]
    %v3237 = vld [vmem:[%s2 + $0x40] sm:$0xff]
    %v3238 = vld [vmem:[%s2 + $0x48] sm:$0xff]
    %v3239 = vld [vmem:[%s2 + $0x50] sm:$0xff]
    %v3240 = vld [vmem:[%s2 + $0x58] sm:$0xff]
    %v3241 = vld [vmem:[%s2 + $0x60] sm:$0xff]
    %v3242 = vld [vmem:[%s2 + $0x68] sm:$0xff]
    %v3243 = vld [vmem:[%s2 + $0x70] sm:$0xff]
    %v3244 = vld [vmem:[%s2 + $0x78] sm:$0xff]
    %v3245 = vld [vmem:[%s2 + $0x80] sm:$0xff]
    %v3246 = vld [vmem:[%s2 + $0x88] sm:$0xff]
    %v3247 = vld [vmem:[%s2 + $0x90] sm:$0xff]
    %v3248 = vld [vmem:[%s2 + $0x98] sm:$0xff]
    %v3249 = vld [vmem:[%s2 + $0xa0] sm:$0xff]
    %v3250 = vld [vmem:[%s2 + $0xa8] sm:$0xff]
    %v3251 = vld [vmem:[%s2 + $0xb0] sm:$0xff]
    %v3252 = vld [vmem:[%s2 + $0xb8] sm:$0xff]
    %v3253 = vld [vmem:[%s2 + $0xc0] sm:$0xff]
    %v3254 = vld [vmem:[%s2 + $0xc8] sm:$0xff]
    %v3255 = vld [vmem:[%s2 + $0xd0] sm:$0xff]
    %v3256 = vld [vmem:[%s2 + $0xd8] sm:$0xff]
    %v3257 = vld [vmem:[%s2 + $0xe0] sm:$0xff]
    %v3258 = vld [vmem:[%s2 + $0xe8] sm:$0xff]
    %v3259 = vld [vmem:[%s2 + $0xf0] sm:$0xff]
    %v3260 = vld [vmem:[%s2 + $0xf8] sm:$0xff]
    %v3261 = vld [vmem:[%s2 + $0x100] sm:$0xff]
    %v3262 = vld [vmem:[%s2 + $0x108] sm:$0xff]
    %v3263 = vld [vmem:[%s2 + $0x110] sm:$0xff]
    %v3264 = vld [vmem:[%s2 + $0x118] sm:$0xff]
    %v3265 = vld [vmem:[%s2 + $0x120] sm:$0xff]
    %v3266 = vld [vmem:[%s2 + $0x128] sm:$0xff]
    %v3267 = vld [vmem:[%s2 + $0x130] sm:$0xff]
    %v3268 = vld [vmem:[%s2 + $0x138] sm:$0xff]
    %v3269 = vld [vmem:[%s2 + $0x140] sm:$0xff]
    %v3270 = vld [vmem:[%s2 + $0x148] sm:$0xff]
    %v3271 = vld [vmem:[%s2 + $0x150] sm:$0xff]
    %v3272 = vld [vmem:[%s2 + $0x158] sm:$0xff]
    %v3273 = vld [vmem:[%s2 + $0x160] sm:$0xff]
    %v3274 = vld [vmem:[%s2 + $0x168] sm:$0xff]
    %v3275 = vld [vmem:[%s2 + $0x170] sm:$0xff]
    %v3276 = vld [vmem:[%s2 + $0x178] sm:$0xff]
    %v3277 = vld [vmem:[%s2 + $0x180] sm:$0xff]
    %v3278 = vld [vmem:[%s2 + $0x188] sm:$0xff]
    %v3279 = vld [vmem:[%s2 + $0x190] sm:$0xff]
    %v3280 = vld [vmem:[%s2 + $0x198] sm:$0xff]
    %v3281 = vld [vmem:[%s2 + $0x1a0] sm:$0xff]
    %v3282 = vld [vmem:[%s2 + $0x1a8] sm:$0xff]
    %v3283 = vld [vmem:[%s2 + $0x1b0] sm:$0xff]
    %v3284 = vld [vmem:[%s2 + $0x1b8] sm:$0xff]
    %v3285 = vld [vmem:[%s2 + $0x1c0] sm:$0xff]
    %v3286 = vld [vmem:[%s2 + $0x1c8] sm:$0xff]
    %v3287 = vld [vmem:[%s2 + $0x1d0] sm:$0xff]
    %v3288 = vld [vmem:[%s2 + $0x1d8] sm:$0xff]
    %v3289 = vld [vmem:[%s2 + $0x1e0] sm:$0xff]
    %v3290 = vld [vmem:[%s2 + $0x1e8] sm:$0xff]
    %v3291 = vld [vmem:[%s2 + $0x1f0] sm:$0xff]
    %v3292 = vld [vmem:[%s2 + $0x1f8] sm:$0xff]
    %v3293 = vld [vmem:[%s3] sm:$0xff]
    %v3294 = vld [vmem:[%s3 + $0x8] sm:$0xff]
    %v3295 = vld [vmem:[%s3 + $0x10] sm:$0xff]
    %v3296 = vld [vmem:[%s3 + $0x18] sm:$0xff]
    %v3297 = vld [vmem:[%s3 + $0x20] sm:$0xff]
    %v3298 = vld [vmem:[%s3 + $0x28] sm:$0xff]
    %v3299 = vld [vmem:[%s3 + $0x30] sm:$0xff]
    %v3300 = vld [vmem:[%s3 + $0x38] sm:$0xff]
    %v3301 = vld [vmem:[%s3 + $0x40] sm:$0xff]
    %v3302 = vld [vmem:[%s3 + $0x48] sm:$0xff]
    %v3303 = vld [vmem:[%s3 + $0x50] sm:$0xff]
    %v3304 = vld [vmem:[%s3 + $0x58] sm:$0xff]
    %v3305 = vld [vmem:[%s3 + $0x60] sm:$0xff]
    %v3306 = vld [vmem:[%s3 + $0x68] sm:$0xff]
    %v3307 = vld [vmem:[%s3 + $0x70] sm:$0xff]
    %v3308 = vld [vmem:[%s3 + $0x78] sm:$0xff]
    %v3309 = vld [vmem:[%s3 + $0x80] sm:$0xff]
    %v3310 = vld [vmem:[%s3 + $0x88] sm:$0xff]
    %v3311 = vld [vmem:[%s3 + $0x90] sm:$0xff]
    %v3312 = vld [vmem:[%s3 + $0x98] sm:$0xff]
    %v3313 = vld [vmem:[%s3 + $0xa0] sm:$0xff]
    %v3314 = vld [vmem:[%s3 + $0xa8] sm:$0xff]
    %v3315 = vld [vmem:[%s3 + $0xb0] sm:$0xff]
    %v3316 = vld [vmem:[%s3 + $0xb8] sm:$0xff]
    %v3317 = vld [vmem:[%s3 + $0xc0] sm:$0xff]
    %v3318 = vld [vmem:[%s3 + $0xc8] sm:$0xff]
    %v3319 = vld [vmem:[%s3 + $0xd0] sm:$0xff]
    %v3320 = vld [vmem:[%s3 + $0xd8] sm:$0xff]
    %v3321 = vld [vmem:[%s3 + $0xe0] sm:$0xff]
    %v3322 = vld [vmem:[%s3 + $0xe8] sm:$0xff]
    %v3323 = vld [vmem:[%s3 + $0xf0] sm:$0xff]
    %v3324 = vld [vmem:[%s3 + $0xf8] sm:$0xff]
    %v3325 = vld [vmem:[%s3 + $0x100] sm:$0xff]
    %v3326 = vld [vmem:[%s3 + $0x108] sm:$0xff]
    %v3327 = vld [vmem:[%s3 + $0x110] sm:$0xff]
    %v3328 = vld [vmem:[%s3 + $0x118] sm:$0xff]
    %v3329 = vld [vmem:[%s3 + $0x120] sm:$0xff]
    %v3330 = vld [vmem:[%s3 + $0x128] sm:$0xff]
    %v3331 = vld [vmem:[%s3 + $0x130] sm:$0xff]
    %v3332 = vld [vmem:[%s3 + $0x138] sm:$0xff]
    %v3333 = vld [vmem:[%s3 + $0x140] sm:$0xff]
    %v3334 = vld [vmem:[%s3 + $0x148] sm:$0xff]
    %v3335 = vld [vmem:[%s3 + $0x150] sm:$0xff]
    %v3336 = vld [vmem:[%s3 + $0x158] sm:$0xff]
    %v3337 = vld [vmem:[%s3 + $0x160] sm:$0xff]
    %v3338 = vld [vmem:[%s3 + $0x168] sm:$0xff]
    %v3339 = vld [vmem:[%s3 + $0x170] sm:$0xff]
    %v3340 = vld [vmem:[%s3 + $0x178] sm:$0xff]
    %v3341 = vld [vmem:[%s3 + $0x180] sm:$0xff]
    %v3342 = vld [vmem:[%s3 + $0x188] sm:$0xff]
    %v3343 = vld [vmem:[%s3 + $0x190] sm:$0xff]
    %v3344 = vld [vmem:[%s3 + $0x198] sm:$0xff]
    %v3345 = vld [vmem:[%s3 + $0x1a0] sm:$0xff]
    %v3346 = vld [vmem:[%s3 + $0x1a8] sm:$0xff]
    %v3347 = vld [vmem:[%s3 + $0x1b0] sm:$0xff]
    %v3348 = vld [vmem:[%s3 + $0x1b8] sm:$0xff]
    %v3349 = vld [vmem:[%s3 + $0x1c0] sm:$0xff]
    %v3350 = vld [vmem:[%s3 + $0x1c8] sm:$0xff]
    %v3351 = vld [vmem:[%s3 + $0x1d0] sm:$0xff]
    %v3352 = vld [vmem:[%s3 + $0x1d8] sm:$0xff]
    %v3353 = vld [vmem:[%s3 + $0x1e0] sm:$0xff]
    %v3354 = vld [vmem:[%s3 + $0x1e8] sm:$0xff]
    %v3355 = vld [vmem:[%s3 + $0x1f0] sm:$0xff]
    %v3356 = vld [vmem:[%s3 + $0x1f8] sm:$0xff]
    %3357 = vmatpush.msra.mxu0 %v3353
    %3358 = vmatpush.msra.mxu0 %v3349
    %3359 = vmatpush.msra.mxu0 %v3345
    %3360 = vmatpush.msra.mxu0 %v3341
    %3361 = vmatpush.msra.mxu0 %v3337
    %3362 = vmatpush.msra.mxu0 %v3333
    %3363 = vmatpush.msra.mxu0 %v3329
    %3364 = vmatpush.msra.mxu0 %v3325
    %3365 = vmatpush.msra.mxu0 %v3321
    %3366 = vmatpush.msra.mxu0 %v3317
    %3367 = vmatpush.msra.mxu0 %v3313
    %3368 = vmatpush.msra.mxu0 %v3309
    %3369 = vmatpush.msra.mxu0 %v3305
    %3370 = vmatpush.msra.mxu0 %v3301
    %3371 = vmatpush.msra.mxu0 %v3297
    %3372 = vmatpush.msra.mxu0 %v3293
    %3373 = vmatmul.f32.gmra.mxu0 %v2998
    %v3374 = vpop.f32.mrf.mxu0
    %v3375 = vadd.f32 0.0, %v3374
    %3376 = vdwg.mxu0
    %3377 = vmatpush.msra.mxu0 %v3354
    %3378 = vmatpush.msra.mxu0 %v3350
    %3379 = vmatpush.msra.mxu0 %v3346
    %3380 = vmatpush.msra.mxu0 %v3342
    %3381 = vmatpush.msra.mxu0 %v3338
    %3382 = vmatpush.msra.mxu0 %v3334
    %3383 = vmatpush.msra.mxu0 %v3330
    %3384 = vmatpush.msra.mxu0 %v3326
    %3385 = vmatpush.msra.mxu0 %v3322
    %3386 = vmatpush.msra.mxu0 %v3318
    %3387 = vmatpush.msra.mxu0 %v3314
    %3388 = vmatpush.msra.mxu0 %v3310
    %3389 = vmatpush.msra.mxu0 %v3306
    %3390 = vmatpush.msra.mxu0 %v3302
    %3391 = vmatpush.msra.mxu0 %v3298
    %3392 = vmatpush.msra.mxu0 %v3294
    %3393 = vmatmul.f32.gmra.mxu0 %v2998
    %v3394 = vpop.f32.mrf.mxu0
    %v3395 = vadd.f32 0.0, %v3394
    %3396 = vdwg.mxu0
    %3397 = vmatpush.msra.mxu0 %v3355
    %3398 = vmatpush.msra.mxu0 %v3351
    %3399 = vmatpush.msra.mxu0 %v3347
    %3400 = vmatpush.msra.mxu0 %v3343
    %3401 = vmatpush.msra.mxu0 %v3339
    %3402 = vmatpush.msra.mxu0 %v3335
    %3403 = vmatpush.msra.mxu0 %v3331
    %3404 = vmatpush.msra.mxu0 %v3327
    %3405 = vmatpush.msra.mxu0 %v3323
    %3406 = vmatpush.msra.mxu0 %v3319
    %3407 = vmatpush.msra.mxu0 %v3315
    %3408 = vmatpush.msra.mxu0 %v3311
    %3409 = vmatpush.msra.mxu0 %v3307
    %3410 = vmatpush.msra.mxu0 %v3303
    %3411 = vmatpush.msra.mxu0 %v3299
    %3412 = vmatpush.msra.mxu0 %v3295
    %3413 = vmatmul.f32.gmra.mxu0 %v2998
    %v3414 = vpop.f32.mrf.mxu0
    %v3415 = vadd.f32 0.0, %v3414
    %3416 = vdwg.mxu0
    %3417 = vmatpush.msra.mxu0 %v3356
    %3418 = vmatpush.msra.mxu0 %v3352
    %3419 = vmatpush.msra.mxu0 %v3348
    %3420 = vmatpush.msra.mxu0 %v3344
    %3421 = vmatpush.msra.mxu0 %v3340
    %3422 = vmatpush.msra.mxu0 %v3336
    %3423 = vmatpush.msra.mxu0 %v3332
    %3424 = vmatpush.msra.mxu0 %v3328
    %3425 = vmatpush.msra.mxu0 %v3324
    %3426 = vmatpush.msra.mxu0 %v3320
    %3427 = vmatpush.msra.mxu0 %v3316
    %3428 = vmatpush.msra.mxu0 %v3312
    %3429 = vmatpush.msra.mxu0 %v3308
    %3430 = vmatpush.msra.mxu0 %v3304
    %3431 = vmatpush.msra.mxu0 %v3300
    %3432 = vmatpush.msra.mxu0 %v3296
    %3433 = vmatmul.f32.gmra.mxu0 %v2998
    %v3434 = vpop.f32.mrf.mxu0
    %v3435 = vadd.f32 0.0, %v3434
    %3436 = vdwg.mxu0
    %3437 = vmatpush.msra.mxu0 %v3289
    %3438 = vmatpush.msra.mxu0 %v3285
    %3439 = vmatpush.msra.mxu0 %v3281
    %3440 = vmatpush.msra.mxu0 %v3277
    %3441 = vmatpush.msra.mxu0 %v3273
    %3442 = vmatpush.msra.mxu0 %v3269
    %3443 = vmatpush.msra.mxu0 %v3265
    %3444 = vmatpush.msra.mxu0 %v3261
    %3445 = vmatpush.msra.mxu0 %v3257
    %3446 = vmatpush.msra.mxu0 %v3253
    %3447 = vmatpush.msra.mxu0 %v3249
    %3448 = vmatpush.msra.mxu0 %v3245
    %3449 = vmatpush.msra.mxu0 %v3241
    %3450 = vmatpush.msra.mxu0 %v3237
    %3451 = vmatpush.msra.mxu0 %v3233
    %3452 = vmatpush.msra.mxu0 %v3229
    %3453 = vmatmul.f32.gmra.mxu0 %v3228
    %v3454 = vpop.f32.mrf.mxu0
    %v3455 = vadd.f32 %v3375, %v3454
    %3456 = vdwg.mxu0
    %3457 = vmatpush.msra.mxu0 %v3290
    %3458 = vmatpush.msra.mxu0 %v3286
    %3459 = vmatpush.msra.mxu0 %v3282
    %3460 = vmatpush.msra.mxu0 %v3278
    %3461 = vmatpush.msra.mxu0 %v3274
    %3462 = vmatpush.msra.mxu0 %v3270
    %3463 = vmatpush.msra.mxu0 %v3266
    %3464 = vmatpush.msra.mxu0 %v3262
    %3465 = vmatpush.msra.mxu0 %v3258
    %3466 = vmatpush.msra.mxu0 %v3254
    %3467 = vmatpush.msra.mxu0 %v3250
    %3468 = vmatpush.msra.mxu0 %v3246
    %3469 = vmatpush.msra.mxu0 %v3242
    %3470 = vmatpush.msra.mxu0 %v3238
    %3471 = vmatpush.msra.mxu0 %v3234
    %3472 = vmatpush.msra.mxu0 %v3230
    %3473 = vmatmul.f32.gmra.mxu0 %v3228
    %v3474 = vpop.f32.mrf.mxu0
    %v3475 = vadd.f32 %v3395, %v3474
    %3476 = vdwg.mxu0
    %3477 = vmatpush.msra.mxu0 %v3291
    %3478 = vmatpush.msra.mxu0 %v3287
    %3479 = vmatpush.msra.mxu0 %v3283
    %3480 = vmatpush.msra.mxu0 %v3279
    %3481 = vmatpush.msra.mxu0 %v3275
    %3482 = vmatpush.msra.mxu0 %v3271
    %3483 = vmatpush.msra.mxu0 %v3267
    %3484 = vmatpush.msra.mxu0 %v3263
    %3485 = vmatpush.msra.mxu0 %v3259
    %3486 = vmatpush.msra.mxu0 %v3255
    %3487 = vmatpush.msra.mxu0 %v3251
    %3488 = vmatpush.msra.mxu0 %v3247
    %3489 = vmatpush.msra.mxu0 %v3243
    %3490 = vmatpush.msra.mxu0 %v3239
    %3491 = vmatpush.msra.mxu0 %v3235
    %3492 = vmatpush.msra.mxu0 %v3231
    %3493 = vmatmul.f32.gmra.mxu0 %v3228
    %v3494 = vpop.f32.mrf.mxu0
    %v3495 = vadd.f32 %v3415, %v3494
    %3496 = vdwg.mxu0
    %3497 = vmatpush.msra.mxu0 %v3292
    %3498 = vmatpush.msra.mxu0 %v3288
    %3499 = vmatpush.msra.mxu0 %v3284
    %3500 = vmatpush.msra.mxu0 %v3280
    %3501 = vmatpush.msra.mxu0 %v3276
    %3502 = vmatpush.msra.mxu0 %v3272
    %3503 = vmatpush.msra.mxu0 %v3268
    %3504 = vmatpush.msra.mxu0 %v3264
    %3505 = vmatpush.msra.mxu0 %v3260
    %3506 = vmatpush.msra.mxu0 %v3256
    %3507 = vmatpush.msra.mxu0 %v3252
    %3508 = vmatpush.msra.mxu0 %v3248
    %3509 = vmatpush.msra.mxu0 %v3244
    %3510 = vmatpush.msra.mxu0 %v3240
    %3511 = vmatpush.msra.mxu0 %v3236
    %3512 = vmatpush.msra.mxu0 %v3232
    %3513 = vmatmul.f32.gmra.mxu0 %v3228
    %v3514 = vpop.f32.mrf.mxu0
    %v3515 = vadd.f32 %v3435, %v3514
    %3516 = vdwg.mxu0
    %v3517 = vld [vmem:[%s4] sm:$0xf]
    %v3519 = vperm.slane %v3517, 0
    %v3520 = vperm.slane %v3517, 1
    %v3521 = vperm.slane %v3517, 2
    %v3522 = vperm.slane %v3517, 3
    %v3527 = vadd.f32 %v3455, %v3519
    %v3528 = vadd.f32 %v3475, %v3520
    %v3529 = vadd.f32 %v3495, %v3521
    %v3530 = vadd.f32 %v3515, %v3522
    %v3531 = vxor.u32 %v3527, 2147483648
    %v3532 = vmul.f32 %v3531, 1.442695
    %v3533 = vpow.pop %v3532
    %v3534 = vadd.f32 %v3533, 1.0
    %v3535 = vrcp.pop %v3534
    %v3536 = vmul.f32 %v3534, %v3535
    %v3537 = vsub.f32 1.0, %v3536
    %v3538 = vmul.f32 %v3535, %v3537
    %v3539 = vadd.f32 %v3535, %v3538
    %vm3540 = vweird.f32 %v3534
    %vm3541 = vweird.f32 %v3535
    %vm3542 = vmor %vm3540, %vm3541
    %v3543 = vsel %vm3542, %v3535, %v3539
    %v3544 = vand.u32 2147483647, %v3534
    %vm3545 = vcmp.eq.f32.partialorder %v3544, 8.507059e+37
    %v3546 = vand.u32 %v3534, 2147483648
    %v3547 = vor.u32 1.1754944e-38, %v3546
    %v3548 = vsel %vm3545, %v3547, %v3543
    %v3549 = vmul.f32 1.0, %v3548
    %v3550 = vxor.u32 %v3528, 2147483648
    %v3551 = vmul.f32 %v3550, 1.442695
    %v3552 = vpow.pop %v3551
    %v3553 = vadd.f32 %v3552, 1.0
    %v3554 = vrcp.pop %v3553
    %v3555 = vmul.f32 %v3553, %v3554
    %v3556 = vsub.f32 1.0, %v3555
    %v3557 = vmul.f32 %v3554, %v3556
    %v3558 = vadd.f32 %v3554, %v3557
    %vm3559 = vweird.f32 %v3553
    %vm3560 = vweird.f32 %v3554
    %vm3561 = vmor %vm3559, %vm3560
    %v3562 = vsel %vm3561, %v3554, %v3558
    %v3563 = vand.u32 2147483647, %v3553
    %vm3564 = vcmp.eq.f32.partialorder %v3563, 8.507059e+37
    %v3565 = vand.u32 %v3553, 2147483648
    %v3566 = vor.u32 1.1754944e-38, %v3565
    %v3567 = vsel %vm3564, %v3566, %v3562
    %v3568 = vmul.f32 1.0, %v3567
    %v3569 = vtanh.pop %v3529
    %v3570 = vxor.u32 %v3530, 2147483648
    %v3571 = vmul.f32 %v3570, 1.442695
    %v3572 = vpow.pop %v3571
    %v3573 = vadd.f32 %v3572, 1.0
    %v3574 = vrcp.pop %v3573
    %v3575 = vmul.f32 %v3573, %v3574
    %v3576 = vsub.f32 1.0, %v3575
    %v3577 = vmul.f32 %v3574, %v3576
    %v3578 = vadd.f32 %v3574, %v3577
    %vm3579 = vweird.f32 %v3573
    %vm3580 = vweird.f32 %v3574
    %vm3581 = vmor %vm3579, %vm3580
    %v3582 = vsel %vm3581, %v3574, %v3578
    %v3583 = vand.u32 2147483647, %v3573
    %vm3584 = vcmp.eq.f32.partialorder %v3583, 8.507059e+37
    %v3585 = vand.u32 %v3573, 2147483648
    %v3586 = vor.u32 1.1754944e-38, %v3585
    %v3587 = vsel %vm3584, %v3586, %v3582
    %v3588 = vmul.f32 1.0, %v3587
    %v3589 = vmul.f32 %v3568, %v2996
    %v3590 = vmul.f32 %v3549, %v3569
    %v3591 = vadd.f32 %v3589, %v3590
    %v3592 = vtanh.pop %v3591
    %v3593 = vmul.f32 %v3588, %v3592
    %s3594 = scalar_lea.vmem %s5, 10
    %3595 = vst [vmem:[%s3594] sm:$0x3] %v3593
    %s3596 = scalar_lea.vmem %s0, 48
    %v3597 = vld [vmem:[%s3596] sm:$0xff]
    %v3598 = vld [vmem:[%s1] sm:$0xff]
    %v3599 = vld [vmem:[%s1 + $0x8] sm:$0xff]
    %v3600 = vld [vmem:[%s1 + $0x10] sm:$0xff]
    %v3601 = vld [vmem:[%s1 + $0x18] sm:$0xff]
    %v3602 = vld [vmem:[%s1 + $0x20] sm:$0xff]
    %v3603 = vld [vmem:[%s1 + $0x28] sm:$0xff]
    %v3604 = vld [vmem:[%s1 + $0x30] sm:$0xff]
    %v3605 = vld [vmem:[%s1 + $0x38] sm:$0xff]
    %v3606 = vld [vmem:[%s1 + $0x40] sm:$0xff]
    %v3607 = vld [vmem:[%s1 + $0x48] sm:$0xff]
    %v3608 = vld [vmem:[%s1 + $0x50] sm:$0xff]
    %v3609 = vld [vmem:[%s1 + $0x58] sm:$0xff]
    %v3610 = vld [vmem:[%s1 + $0x60] sm:$0xff]
    %v3611 = vld [vmem:[%s1 + $0x68] sm:$0xff]
    %v3612 = vld [vmem:[%s1 + $0x70] sm:$0xff]
    %v3613 = vld [vmem:[%s1 + $0x78] sm:$0xff]
    %v3614 = vld [vmem:[%s1 + $0x80] sm:$0xff]
    %v3615 = vld [vmem:[%s1 + $0x88] sm:$0xff]
    %v3616 = vld [vmem:[%s1 + $0x90] sm:$0xff]
    %v3617 = vld [vmem:[%s1 + $0x98] sm:$0xff]
    %v3618 = vld [vmem:[%s1 + $0xa0] sm:$0xff]
    %v3619 = vld [vmem:[%s1 + $0xa8] sm:$0xff]
    %v3620 = vld [vmem:[%s1 + $0xb0] sm:$0xff]
    %v3621 = vld [vmem:[%s1 + $0xb8] sm:$0xff]
    %v3622 = vld [vmem:[%s1 + $0xc0] sm:$0xff]
    %v3623 = vld [vmem:[%s1 + $0xc8] sm:$0xff]
    %v3624 = vld [vmem:[%s1 + $0xd0] sm:$0xff]
    %v3625 = vld [vmem:[%s1 + $0xd8] sm:$0xff]
    %v3626 = vld [vmem:[%s1 + $0xe0] sm:$0xff]
    %v3627 = vld [vmem:[%s1 + $0xe8] sm:$0xff]
    %v3628 = vld [vmem:[%s1 + $0xf0] sm:$0xff]
    %v3629 = vld [vmem:[%s1 + $0xf8] sm:$0xff]
    %v3630 = vld [vmem:[%s1 + $0x100] sm:$0xff]
    %v3631 = vld [vmem:[%s1 + $0x108] sm:$0xff]
    %v3632 = vld [vmem:[%s1 + $0x110] sm:$0xff]
    %v3633 = vld [vmem:[%s1 + $0x118] sm:$0xff]
    %v3634 = vld [vmem:[%s1 + $0x120] sm:$0xff]
    %v3635 = vld [vmem:[%s1 + $0x128] sm:$0xff]
    %v3636 = vld [vmem:[%s1 + $0x130] sm:$0xff]
    %v3637 = vld [vmem:[%s1 + $0x138] sm:$0xff]
    %v3638 = vld [vmem:[%s1 + $0x140] sm:$0xff]
    %v3639 = vld [vmem:[%s1 + $0x148] sm:$0xff]
    %v3640 = vld [vmem:[%s1 + $0x150] sm:$0xff]
    %v3641 = vld [vmem:[%s1 + $0x158] sm:$0xff]
    %v3642 = vld [vmem:[%s1 + $0x160] sm:$0xff]
    %v3643 = vld [vmem:[%s1 + $0x168] sm:$0xff]
    %v3644 = vld [vmem:[%s1 + $0x170] sm:$0xff]
    %v3645 = vld [vmem:[%s1 + $0x178] sm:$0xff]
    %v3646 = vld [vmem:[%s1 + $0x180] sm:$0xff]
    %v3647 = vld [vmem:[%s1 + $0x188] sm:$0xff]
    %v3648 = vld [vmem:[%s1 + $0x190] sm:$0xff]
    %v3649 = vld [vmem:[%s1 + $0x198] sm:$0xff]
    %v3650 = vld [vmem:[%s1 + $0x1a0] sm:$0xff]
    %v3651 = vld [vmem:[%s1 + $0x1a8] sm:$0xff]
    %v3652 = vld [vmem:[%s1 + $0x1b0] sm:$0xff]
    %v3653 = vld [vmem:[%s1 + $0x1b8] sm:$0xff]
    %v3654 = vld [vmem:[%s1 + $0x1c0] sm:$0xff]
    %v3655 = vld [vmem:[%s1 + $0x1c8] sm:$0xff]
    %v3656 = vld [vmem:[%s1 + $0x1d0] sm:$0xff]
    %v3657 = vld [vmem:[%s1 + $0x1d8] sm:$0xff]
    %v3658 = vld [vmem:[%s1 + $0x1e0] sm:$0xff]
    %v3659 = vld [vmem:[%s1 + $0x1e8] sm:$0xff]
    %v3660 = vld [vmem:[%s1 + $0x1f0] sm:$0xff]
    %v3661 = vld [vmem:[%s1 + $0x1f8] sm:$0xff]
    %3662 = vmatpush.msra.mxu0 %v3658
    %3663 = vmatpush.msra.mxu0 %v3654
    %3664 = vmatpush.msra.mxu0 %v3650
    %3665 = vmatpush.msra.mxu0 %v3646
    %3666 = vmatpush.msra.mxu0 %v3642
    %3667 = vmatpush.msra.mxu0 %v3638
    %3668 = vmatpush.msra.mxu0 %v3634
    %3669 = vmatpush.msra.mxu0 %v3630
    %3670 = vmatpush.msra.mxu0 %v3626
    %3671 = vmatpush.msra.mxu0 %v3622
    %3672 = vmatpush.msra.mxu0 %v3618
    %3673 = vmatpush.msra.mxu0 %v3614
    %3674 = vmatpush.msra.mxu0 %v3610
    %3675 = vmatpush.msra.mxu0 %v3606
    %3676 = vmatpush.msra.mxu0 %v3602
    %3677 = vmatpush.msra.mxu0 %v3598
    %3678 = vmatmul.f32.gmra.mxu0 %v3228
    %v3679 = vpop.f32.mrf.mxu0
    %v3680 = vadd.f32 0.0, %v3679
    %3681 = vdwg.mxu0
    %3682 = vmatpush.msra.mxu0 %v3659
    %3683 = vmatpush.msra.mxu0 %v3655
    %3684 = vmatpush.msra.mxu0 %v3651
    %3685 = vmatpush.msra.mxu0 %v3647
    %3686 = vmatpush.msra.mxu0 %v3643
    %3687 = vmatpush.msra.mxu0 %v3639
    %3688 = vmatpush.msra.mxu0 %v3635
    %3689 = vmatpush.msra.mxu0 %v3631
    %3690 = vmatpush.msra.mxu0 %v3627
    %3691 = vmatpush.msra.mxu0 %v3623
    %3692 = vmatpush.msra.mxu0 %v3619
    %3693 = vmatpush.msra.mxu0 %v3615
    %3694 = vmatpush.msra.mxu0 %v3611
    %3695 = vmatpush.msra.mxu0 %v3607
    %3696 = vmatpush.msra.mxu0 %v3603
    %3697 = vmatpush.msra.mxu0 %v3599
    %3698 = vmatmul.f32.gmra.mxu0 %v3228
    %v3699 = vpop.f32.mrf.mxu0
    %v3700 = vadd.f32 0.0, %v3699
    %3701 = vdwg.mxu0
    %3702 = vmatpush.msra.mxu0 %v3660
    %3703 = vmatpush.msra.mxu0 %v3656
    %3704 = vmatpush.msra.mxu0 %v3652
    %3705 = vmatpush.msra.mxu0 %v3648
    %3706 = vmatpush.msra.mxu0 %v3644
    %3707 = vmatpush.msra.mxu0 %v3640
    %3708 = vmatpush.msra.mxu0 %v3636
    %3709 = vmatpush.msra.mxu0 %v3632
    %3710 = vmatpush.msra.mxu0 %v3628
    %3711 = vmatpush.msra.mxu0 %v3624
    %3712 = vmatpush.msra.mxu0 %v3620
    %3713 = vmatpush.msra.mxu0 %v3616
    %3714 = vmatpush.msra.mxu0 %v3612
    %3715 = vmatpush.msra.mxu0 %v3608
    %3716 = vmatpush.msra.mxu0 %v3604
    %3717 = vmatpush.msra.mxu0 %v3600
    %3718 = vmatmul.f32.gmra.mxu0 %v3228
    %v3719 = vpop.f32.mrf.mxu0
    %v3720 = vadd.f32 0.0, %v3719
    %3721 = vdwg.mxu0
    %3722 = vmatpush.msra.mxu0 %v3661
    %3723 = vmatpush.msra.mxu0 %v3657
    %3724 = vmatpush.msra.mxu0 %v3653
    %3725 = vmatpush.msra.mxu0 %v3649
    %3726 = vmatpush.msra.mxu0 %v3645
    %3727 = vmatpush.msra.mxu0 %v3641
    %3728 = vmatpush.msra.mxu0 %v3637
    %3729 = vmatpush.msra.mxu0 %v3633
    %3730 = vmatpush.msra.mxu0 %v3629
    %3731 = vmatpush.msra.mxu0 %v3625
    %3732 = vmatpush.msra.mxu0 %v3621
    %3733 = vmatpush.msra.mxu0 %v3617
    %3734 = vmatpush.msra.mxu0 %v3613
    %3735 = vmatpush.msra.mxu0 %v3609
    %3736 = vmatpush.msra.mxu0 %v3605
    %3737 = vmatpush.msra.mxu0 %v3601
    %3738 = vmatmul.f32.gmra.mxu0 %v3228
    %v3739 = vpop.f32.mrf.mxu0
    %v3740 = vadd.f32 0.0, %v3739
    %3741 = vdwg.mxu0
    %v3746 = vrot.slane %v3700, 6
    %v3747 = vrot.slane %v3720, 4
    %v3748 = vrot.slane %v3740, 2
    %v3749 = vsel %vm177, %v3680, %v3746
    %v3750 = vsel %vm179, %v3747, %v3748
    %v3751 = vsel %vm181, %v3749, %v3750
    %v3753 = vadd.f32 %v3597, %v3751
    %v3754 = vxor.u32 %v3753, 2147483648
    %v3755 = vmul.f32 %v3754, 1.442695
    %v3756 = vpow.pop %v3755
    %v3757 = vadd.f32 %v3756, 1.0
    %v3758 = vrcp.pop %v3757
    %v3759 = vmul.f32 %v3757, %v3758
    %v3760 = vsub.f32 1.0, %v3759
    %v3761 = vmul.f32 %v3758, %v3760
    %v3762 = vadd.f32 %v3758, %v3761
    %vm3763 = vweird.f32 %v3757
    %vm3764 = vweird.f32 %v3758
    %vm3765 = vmor %vm3763, %vm3764
    %v3766 = vsel %vm3765, %v3758, %v3762
    %v3767 = vand.u32 2147483647, %v3757
    %vm3768 = vcmp.eq.f32.partialorder %v3767, 8.507059e+37
    %v3769 = vand.u32 %v3757, 2147483648
    %v3770 = vor.u32 1.1754944e-38, %v3769
    %v3771 = vsel %vm3768, %v3770, %v3766
    %v3772 = vmul.f32 1.0, %v3771
    %v3774 = vrot.slane %v3753, 2
    %v3776 = vxor.u32 %v3774, 2147483648
    %v3777 = vmul.f32 %v3776, 1.442695
    %v3778 = vpow.pop %v3777
    %v3779 = vadd.f32 %v3778, 1.0
    %v3780 = vrcp.pop %v3779
    %v3781 = vmul.f32 %v3779, %v3780
    %v3782 = vsub.f32 1.0, %v3781
    %v3783 = vmul.f32 %v3780, %v3782
    %v3784 = vadd.f32 %v3780, %v3783
    %vm3785 = vweird.f32 %v3779
    %vm3786 = vweird.f32 %v3780
    %vm3787 = vmor %vm3785, %vm3786
    %v3788 = vsel %vm3787, %v3780, %v3784
    %v3789 = vand.u32 2147483647, %v3779
    %vm3790 = vcmp.eq.f32.partialorder %v3789, 8.507059e+37
    %v3791 = vand.u32 %v3779, 2147483648
    %v3792 = vor.u32 1.1754944e-38, %v3791
    %v3793 = vsel %vm3790, %v3792, %v3788
    %v3794 = vmul.f32 1.0, %v3793
    %v3795 = vrot.slane %v3753, 4
    %v3797 = vtanh.pop %v3795
    %v3798 = vrot.slane %v3753, 6
    %v3800 = vxor.u32 %v3798, 2147483648
    %v3801 = vmul.f32 %v3800, 1.442695
    %v3802 = vpow.pop %v3801
    %v3803 = vadd.f32 %v3802, 1.0
    %v3804 = vrcp.pop %v3803
    %v3805 = vmul.f32 %v3803, %v3804
    %v3806 = vsub.f32 1.0, %v3805
    %v3807 = vmul.f32 %v3804, %v3806
    %v3808 = vadd.f32 %v3804, %v3807
    %vm3809 = vweird.f32 %v3803
    %vm3810 = vweird.f32 %v3804
    %vm3811 = vmor %vm3809, %vm3810
    %v3812 = vsel %vm3811, %v3804, %v3808
    %v3813 = vand.u32 2147483647, %v3803
    %vm3814 = vcmp.eq.f32.partialorder %v3813, 8.507059e+37
    %v3815 = vand.u32 %v3803, 2147483648
    %v3816 = vor.u32 1.1754944e-38, %v3815
    %v3817 = vsel %vm3814, %v3816, %v3812
    %v3818 = vmul.f32 1.0, %v3817
    %v3819 = vmul.f32 %v3794, %v3226
    %v3820 = vmul.f32 %v3772, %v3797
    %v3821 = vadd.f32 %v3819, %v3820
    %v3822 = vtanh.pop %v3821
    %v3823 = vmul.f32 %v3818, %v3822
    %v3824 = vld [vmem:[%s2] sm:$0xff]
    %v3825 = vld [vmem:[%s2 + $0x8] sm:$0xff]
    %v3826 = vld [vmem:[%s2 + $0x10] sm:$0xff]
    %v3827 = vld [vmem:[%s2 + $0x18] sm:$0xff]
    %v3828 = vld [vmem:[%s2 + $0x20] sm:$0xff]
    %v3829 = vld [vmem:[%s2 + $0x28] sm:$0xff]
    %v3830 = vld [vmem:[%s2 + $0x30] sm:$0xff]
    %v3831 = vld [vmem:[%s2 + $0x38] sm:$0xff]
    %v3832 = vld [vmem:[%s2 + $0x40] sm:$0xff]
    %v3833 = vld [vmem:[%s2 + $0x48] sm:$0xff]
    %v3834 = vld [vmem:[%s2 + $0x50] sm:$0xff]
    %v3835 = vld [vmem:[%s2 + $0x58] sm:$0xff]
    %v3836 = vld [vmem:[%s2 + $0x60] sm:$0xff]
    %v3837 = vld [vmem:[%s2 + $0x68] sm:$0xff]
    %v3838 = vld [vmem:[%s2 + $0x70] sm:$0xff]
    %v3839 = vld [vmem:[%s2 + $0x78] sm:$0xff]
    %v3840 = vld [vmem:[%s2 + $0x80] sm:$0xff]
    %v3841 = vld [vmem:[%s2 + $0x88] sm:$0xff]
    %v3842 = vld [vmem:[%s2 + $0x90] sm:$0xff]
    %v3843 = vld [vmem:[%s2 + $0x98] sm:$0xff]
    %v3844 = vld [vmem:[%s2 + $0xa0] sm:$0xff]
    %v3845 = vld [vmem:[%s2 + $0xa8] sm:$0xff]
    %v3846 = vld [vmem:[%s2 + $0xb0] sm:$0xff]
    %v3847 = vld [vmem:[%s2 + $0xb8] sm:$0xff]
    %v3848 = vld [vmem:[%s2 + $0xc0] sm:$0xff]
    %v3849 = vld [vmem:[%s2 + $0xc8] sm:$0xff]
    %v3850 = vld [vmem:[%s2 + $0xd0] sm:$0xff]
    %v3851 = vld [vmem:[%s2 + $0xd8] sm:$0xff]
    %v3852 = vld [vmem:[%s2 + $0xe0] sm:$0xff]
    %v3853 = vld [vmem:[%s2 + $0xe8] sm:$0xff]
    %v3854 = vld [vmem:[%s2 + $0xf0] sm:$0xff]
    %v3855 = vld [vmem:[%s2 + $0xf8] sm:$0xff]
    %v3856 = vld [vmem:[%s2 + $0x100] sm:$0xff]
    %v3857 = vld [vmem:[%s2 + $0x108] sm:$0xff]
    %v3858 = vld [vmem:[%s2 + $0x110] sm:$0xff]
    %v3859 = vld [vmem:[%s2 + $0x118] sm:$0xff]
    %v3860 = vld [vmem:[%s2 + $0x120] sm:$0xff]
    %v3861 = vld [vmem:[%s2 + $0x128] sm:$0xff]
    %v3862 = vld [vmem:[%s2 + $0x130] sm:$0xff]
    %v3863 = vld [vmem:[%s2 + $0x138] sm:$0xff]
    %v3864 = vld [vmem:[%s2 + $0x140] sm:$0xff]
    %v3865 = vld [vmem:[%s2 + $0x148] sm:$0xff]
    %v3866 = vld [vmem:[%s2 + $0x150] sm:$0xff]
    %v3867 = vld [vmem:[%s2 + $0x158] sm:$0xff]
    %v3868 = vld [vmem:[%s2 + $0x160] sm:$0xff]
    %v3869 = vld [vmem:[%s2 + $0x168] sm:$0xff]
    %v3870 = vld [vmem:[%s2 + $0x170] sm:$0xff]
    %v3871 = vld [vmem:[%s2 + $0x178] sm:$0xff]
    %v3872 = vld [vmem:[%s2 + $0x180] sm:$0xff]
    %v3873 = vld [vmem:[%s2 + $0x188] sm:$0xff]
    %v3874 = vld [vmem:[%s2 + $0x190] sm:$0xff]
    %v3875 = vld [vmem:[%s2 + $0x198] sm:$0xff]
    %v3876 = vld [vmem:[%s2 + $0x1a0] sm:$0xff]
    %v3877 = vld [vmem:[%s2 + $0x1a8] sm:$0xff]
    %v3878 = vld [vmem:[%s2 + $0x1b0] sm:$0xff]
    %v3879 = vld [vmem:[%s2 + $0x1b8] sm:$0xff]
    %v3880 = vld [vmem:[%s2 + $0x1c0] sm:$0xff]
    %v3881 = vld [vmem:[%s2 + $0x1c8] sm:$0xff]
    %v3882 = vld [vmem:[%s2 + $0x1d0] sm:$0xff]
    %v3883 = vld [vmem:[%s2 + $0x1d8] sm:$0xff]
    %v3884 = vld [vmem:[%s2 + $0x1e0] sm:$0xff]
    %v3885 = vld [vmem:[%s2 + $0x1e8] sm:$0xff]
    %v3886 = vld [vmem:[%s2 + $0x1f0] sm:$0xff]
    %v3887 = vld [vmem:[%s2 + $0x1f8] sm:$0xff]
    %v3888 = vld [vmem:[%s3] sm:$0xff]
    %v3889 = vld [vmem:[%s3 + $0x8] sm:$0xff]
    %v3890 = vld [vmem:[%s3 + $0x10] sm:$0xff]
    %v3891 = vld [vmem:[%s3 + $0x18] sm:$0xff]
    %v3892 = vld [vmem:[%s3 + $0x20] sm:$0xff]
    %v3893 = vld [vmem:[%s3 + $0x28] sm:$0xff]
    %v3894 = vld [vmem:[%s3 + $0x30] sm:$0xff]
    %v3895 = vld [vmem:[%s3 + $0x38] sm:$0xff]
    %v3896 = vld [vmem:[%s3 + $0x40] sm:$0xff]
    %v3897 = vld [vmem:[%s3 + $0x48] sm:$0xff]
    %v3898 = vld [vmem:[%s3 + $0x50] sm:$0xff]
    %v3899 = vld [vmem:[%s3 + $0x58] sm:$0xff]
    %v3900 = vld [vmem:[%s3 + $0x60] sm:$0xff]
    %v3901 = vld [vmem:[%s3 + $0x68] sm:$0xff]
    %v3902 = vld [vmem:[%s3 + $0x70] sm:$0xff]
    %v3903 = vld [vmem:[%s3 + $0x78] sm:$0xff]
    %v3904 = vld [vmem:[%s3 + $0x80] sm:$0xff]
    %v3905 = vld [vmem:[%s3 + $0x88] sm:$0xff]
    %v3906 = vld [vmem:[%s3 + $0x90] sm:$0xff]
    %v3907 = vld [vmem:[%s3 + $0x98] sm:$0xff]
    %v3908 = vld [vmem:[%s3 + $0xa0] sm:$0xff]
    %v3909 = vld [vmem:[%s3 + $0xa8] sm:$0xff]
    %v3910 = vld [vmem:[%s3 + $0xb0] sm:$0xff]
    %v3911 = vld [vmem:[%s3 + $0xb8] sm:$0xff]
    %v3912 = vld [vmem:[%s3 + $0xc0] sm:$0xff]
    %v3913 = vld [vmem:[%s3 + $0xc8] sm:$0xff]
    %v3914 = vld [vmem:[%s3 + $0xd0] sm:$0xff]
    %v3915 = vld [vmem:[%s3 + $0xd8] sm:$0xff]
    %v3916 = vld [vmem:[%s3 + $0xe0] sm:$0xff]
    %v3917 = vld [vmem:[%s3 + $0xe8] sm:$0xff]
    %v3918 = vld [vmem:[%s3 + $0xf0] sm:$0xff]
    %v3919 = vld [vmem:[%s3 + $0xf8] sm:$0xff]
    %v3920 = vld [vmem:[%s3 + $0x100] sm:$0xff]
    %v3921 = vld [vmem:[%s3 + $0x108] sm:$0xff]
    %v3922 = vld [vmem:[%s3 + $0x110] sm:$0xff]
    %v3923 = vld [vmem:[%s3 + $0x118] sm:$0xff]
    %v3924 = vld [vmem:[%s3 + $0x120] sm:$0xff]
    %v3925 = vld [vmem:[%s3 + $0x128] sm:$0xff]
    %v3926 = vld [vmem:[%s3 + $0x130] sm:$0xff]
    %v3927 = vld [vmem:[%s3 + $0x138] sm:$0xff]
    %v3928 = vld [vmem:[%s3 + $0x140] sm:$0xff]
    %v3929 = vld [vmem:[%s3 + $0x148] sm:$0xff]
    %v3930 = vld [vmem:[%s3 + $0x150] sm:$0xff]
    %v3931 = vld [vmem:[%s3 + $0x158] sm:$0xff]
    %v3932 = vld [vmem:[%s3 + $0x160] sm:$0xff]
    %v3933 = vld [vmem:[%s3 + $0x168] sm:$0xff]
    %v3934 = vld [vmem:[%s3 + $0x170] sm:$0xff]
    %v3935 = vld [vmem:[%s3 + $0x178] sm:$0xff]
    %v3936 = vld [vmem:[%s3 + $0x180] sm:$0xff]
    %v3937 = vld [vmem:[%s3 + $0x188] sm:$0xff]
    %v3938 = vld [vmem:[%s3 + $0x190] sm:$0xff]
    %v3939 = vld [vmem:[%s3 + $0x198] sm:$0xff]
    %v3940 = vld [vmem:[%s3 + $0x1a0] sm:$0xff]
    %v3941 = vld [vmem:[%s3 + $0x1a8] sm:$0xff]
    %v3942 = vld [vmem:[%s3 + $0x1b0] sm:$0xff]
    %v3943 = vld [vmem:[%s3 + $0x1b8] sm:$0xff]
    %v3944 = vld [vmem:[%s3 + $0x1c0] sm:$0xff]
    %v3945 = vld [vmem:[%s3 + $0x1c8] sm:$0xff]
    %v3946 = vld [vmem:[%s3 + $0x1d0] sm:$0xff]
    %v3947 = vld [vmem:[%s3 + $0x1d8] sm:$0xff]
    %v3948 = vld [vmem:[%s3 + $0x1e0] sm:$0xff]
    %v3949 = vld [vmem:[%s3 + $0x1e8] sm:$0xff]
    %v3950 = vld [vmem:[%s3 + $0x1f0] sm:$0xff]
    %v3951 = vld [vmem:[%s3 + $0x1f8] sm:$0xff]
    %3952 = vmatpush.msra.mxu0 %v3948
    %3953 = vmatpush.msra.mxu0 %v3944
    %3954 = vmatpush.msra.mxu0 %v3940
    %3955 = vmatpush.msra.mxu0 %v3936
    %3956 = vmatpush.msra.mxu0 %v3932
    %3957 = vmatpush.msra.mxu0 %v3928
    %3958 = vmatpush.msra.mxu0 %v3924
    %3959 = vmatpush.msra.mxu0 %v3920
    %3960 = vmatpush.msra.mxu0 %v3916
    %3961 = vmatpush.msra.mxu0 %v3912
    %3962 = vmatpush.msra.mxu0 %v3908
    %3963 = vmatpush.msra.mxu0 %v3904
    %3964 = vmatpush.msra.mxu0 %v3900
    %3965 = vmatpush.msra.mxu0 %v3896
    %3966 = vmatpush.msra.mxu0 %v3892
    %3967 = vmatpush.msra.mxu0 %v3888
    %3968 = vmatmul.f32.gmra.mxu0 %v3593
    %v3969 = vpop.f32.mrf.mxu0
    %v3970 = vadd.f32 0.0, %v3969
    %3971 = vdwg.mxu0
    %3972 = vmatpush.msra.mxu0 %v3949
    %3973 = vmatpush.msra.mxu0 %v3945
    %3974 = vmatpush.msra.mxu0 %v3941
    %3975 = vmatpush.msra.mxu0 %v3937
    %3976 = vmatpush.msra.mxu0 %v3933
    %3977 = vmatpush.msra.mxu0 %v3929
    %3978 = vmatpush.msra.mxu0 %v3925
    %3979 = vmatpush.msra.mxu0 %v3921
    %3980 = vmatpush.msra.mxu0 %v3917
    %3981 = vmatpush.msra.mxu0 %v3913
    %3982 = vmatpush.msra.mxu0 %v3909
    %3983 = vmatpush.msra.mxu0 %v3905
    %3984 = vmatpush.msra.mxu0 %v3901
    %3985 = vmatpush.msra.mxu0 %v3897
    %3986 = vmatpush.msra.mxu0 %v3893
    %3987 = vmatpush.msra.mxu0 %v3889
    %3988 = vmatmul.f32.gmra.mxu0 %v3593
    %v3989 = vpop.f32.mrf.mxu0
    %v3990 = vadd.f32 0.0, %v3989
    %3991 = vdwg.mxu0
    %3992 = vmatpush.msra.mxu0 %v3950
    %3993 = vmatpush.msra.mxu0 %v3946
    %3994 = vmatpush.msra.mxu0 %v3942
    %3995 = vmatpush.msra.mxu0 %v3938
    %3996 = vmatpush.msra.mxu0 %v3934
    %3997 = vmatpush.msra.mxu0 %v3930
    %3998 = vmatpush.msra.mxu0 %v3926
    %3999 = vmatpush.msra.mxu0 %v3922
    %4000 = vmatpush.msra.mxu0 %v3918
    %4001 = vmatpush.msra.mxu0 %v3914
    %4002 = vmatpush.msra.mxu0 %v3910
    %4003 = vmatpush.msra.mxu0 %v3906
    %4004 = vmatpush.msra.mxu0 %v3902
    %4005 = vmatpush.msra.mxu0 %v3898
    %4006 = vmatpush.msra.mxu0 %v3894
    %4007 = vmatpush.msra.mxu0 %v3890
    %4008 = vmatmul.f32.gmra.mxu0 %v3593
    %v4009 = vpop.f32.mrf.mxu0
    %v4010 = vadd.f32 0.0, %v4009
    %4011 = vdwg.mxu0
    %4012 = vmatpush.msra.mxu0 %v3951
    %4013 = vmatpush.msra.mxu0 %v3947
    %4014 = vmatpush.msra.mxu0 %v3943
    %4015 = vmatpush.msra.mxu0 %v3939
    %4016 = vmatpush.msra.mxu0 %v3935
    %4017 = vmatpush.msra.mxu0 %v3931
    %4018 = vmatpush.msra.mxu0 %v3927
    %4019 = vmatpush.msra.mxu0 %v3923
    %4020 = vmatpush.msra.mxu0 %v3919
    %4021 = vmatpush.msra.mxu0 %v3915
    %4022 = vmatpush.msra.mxu0 %v3911
    %4023 = vmatpush.msra.mxu0 %v3907
    %4024 = vmatpush.msra.mxu0 %v3903
    %4025 = vmatpush.msra.mxu0 %v3899
    %4026 = vmatpush.msra.mxu0 %v3895
    %4027 = vmatpush.msra.mxu0 %v3891
    %4028 = vmatmul.f32.gmra.mxu0 %v3593
    %v4029 = vpop.f32.mrf.mxu0
    %v4030 = vadd.f32 0.0, %v4029
    %4031 = vdwg.mxu0
    %4032 = vmatpush.msra.mxu0 %v3884
    %4033 = vmatpush.msra.mxu0 %v3880
    %4034 = vmatpush.msra.mxu0 %v3876
    %4035 = vmatpush.msra.mxu0 %v3872
    %4036 = vmatpush.msra.mxu0 %v3868
    %4037 = vmatpush.msra.mxu0 %v3864
    %4038 = vmatpush.msra.mxu0 %v3860
    %4039 = vmatpush.msra.mxu0 %v3856
    %4040 = vmatpush.msra.mxu0 %v3852
    %4041 = vmatpush.msra.mxu0 %v3848
    %4042 = vmatpush.msra.mxu0 %v3844
    %4043 = vmatpush.msra.mxu0 %v3840
    %4044 = vmatpush.msra.mxu0 %v3836
    %4045 = vmatpush.msra.mxu0 %v3832
    %4046 = vmatpush.msra.mxu0 %v3828
    %4047 = vmatpush.msra.mxu0 %v3824
    %4048 = vmatmul.f32.gmra.mxu0 %v3823
    %v4049 = vpop.f32.mrf.mxu0
    %v4050 = vadd.f32 %v3970, %v4049
    %4051 = vdwg.mxu0
    %4052 = vmatpush.msra.mxu0 %v3885
    %4053 = vmatpush.msra.mxu0 %v3881
    %4054 = vmatpush.msra.mxu0 %v3877
    %4055 = vmatpush.msra.mxu0 %v3873
    %4056 = vmatpush.msra.mxu0 %v3869
    %4057 = vmatpush.msra.mxu0 %v3865
    %4058 = vmatpush.msra.mxu0 %v3861
    %4059 = vmatpush.msra.mxu0 %v3857
    %4060 = vmatpush.msra.mxu0 %v3853
    %4061 = vmatpush.msra.mxu0 %v3849
    %4062 = vmatpush.msra.mxu0 %v3845
    %4063 = vmatpush.msra.mxu0 %v3841
    %4064 = vmatpush.msra.mxu0 %v3837
    %4065 = vmatpush.msra.mxu0 %v3833
    %4066 = vmatpush.msra.mxu0 %v3829
    %4067 = vmatpush.msra.mxu0 %v3825
    %4068 = vmatmul.f32.gmra.mxu0 %v3823
    %v4069 = vpop.f32.mrf.mxu0
    %v4070 = vadd.f32 %v3990, %v4069
    %4071 = vdwg.mxu0
    %4072 = vmatpush.msra.mxu0 %v3886
    %4073 = vmatpush.msra.mxu0 %v3882
    %4074 = vmatpush.msra.mxu0 %v3878
    %4075 = vmatpush.msra.mxu0 %v3874
    %4076 = vmatpush.msra.mxu0 %v3870
    %4077 = vmatpush.msra.mxu0 %v3866
    %4078 = vmatpush.msra.mxu0 %v3862
    %4079 = vmatpush.msra.mxu0 %v3858
    %4080 = vmatpush.msra.mxu0 %v3854
    %4081 = vmatpush.msra.mxu0 %v3850
    %4082 = vmatpush.msra.mxu0 %v3846
    %4083 = vmatpush.msra.mxu0 %v3842
    %4084 = vmatpush.msra.mxu0 %v3838
    %4085 = vmatpush.msra.mxu0 %v3834
    %4086 = vmatpush.msra.mxu0 %v3830
    %4087 = vmatpush.msra.mxu0 %v3826
    %4088 = vmatmul.f32.gmra.mxu0 %v3823
    %v4089 = vpop.f32.mrf.mxu0
    %v4090 = vadd.f32 %v4010, %v4089
    %4091 = vdwg.mxu0
    %4092 = vmatpush.msra.mxu0 %v3887
    %4093 = vmatpush.msra.mxu0 %v3883
    %4094 = vmatpush.msra.mxu0 %v3879
    %4095 = vmatpush.msra.mxu0 %v3875
    %4096 = vmatpush.msra.mxu0 %v3871
    %4097 = vmatpush.msra.mxu0 %v3867
    %4098 = vmatpush.msra.mxu0 %v3863
    %4099 = vmatpush.msra.mxu0 %v3859
    %4100 = vmatpush.msra.mxu0 %v3855
    %4101 = vmatpush.msra.mxu0 %v3851
    %4102 = vmatpush.msra.mxu0 %v3847
    %4103 = vmatpush.msra.mxu0 %v3843
    %4104 = vmatpush.msra.mxu0 %v3839
    %4105 = vmatpush.msra.mxu0 %v3835
    %4106 = vmatpush.msra.mxu0 %v3831
    %4107 = vmatpush.msra.mxu0 %v3827
    %4108 = vmatmul.f32.gmra.mxu0 %v3823
    %v4109 = vpop.f32.mrf.mxu0
    %v4110 = vadd.f32 %v4030, %v4109
    %4111 = vdwg.mxu0
    %v4112 = vld [vmem:[%s4] sm:$0xf]
    %v4114 = vperm.slane %v4112, 0
    %v4115 = vperm.slane %v4112, 1
    %v4116 = vperm.slane %v4112, 2
    %v4117 = vperm.slane %v4112, 3
    %v4122 = vadd.f32 %v4050, %v4114
    %v4123 = vadd.f32 %v4070, %v4115
    %v4124 = vadd.f32 %v4090, %v4116
    %v4125 = vadd.f32 %v4110, %v4117
    %v4126 = vxor.u32 %v4122, 2147483648
    %v4127 = vmul.f32 %v4126, 1.442695
    %v4128 = vpow.pop %v4127
    %v4129 = vadd.f32 %v4128, 1.0
    %v4130 = vrcp.pop %v4129
    %v4131 = vmul.f32 %v4129, %v4130
    %v4132 = vsub.f32 1.0, %v4131
    %v4133 = vmul.f32 %v4130, %v4132
    %v4134 = vadd.f32 %v4130, %v4133
    %vm4135 = vweird.f32 %v4129
    %vm4136 = vweird.f32 %v4130
    %vm4137 = vmor %vm4135, %vm4136
    %v4138 = vsel %vm4137, %v4130, %v4134
    %v4139 = vand.u32 2147483647, %v4129
    %vm4140 = vcmp.eq.f32.partialorder %v4139, 8.507059e+37
    %v4141 = vand.u32 %v4129, 2147483648
    %v4142 = vor.u32 1.1754944e-38, %v4141
    %v4143 = vsel %vm4140, %v4142, %v4138
    %v4144 = vmul.f32 1.0, %v4143
    %v4145 = vxor.u32 %v4123, 2147483648
    %v4146 = vmul.f32 %v4145, 1.442695
    %v4147 = vpow.pop %v4146
    %v4148 = vadd.f32 %v4147, 1.0
    %v4149 = vrcp.pop %v4148
    %v4150 = vmul.f32 %v4148, %v4149
    %v4151 = vsub.f32 1.0, %v4150
    %v4152 = vmul.f32 %v4149, %v4151
    %v4153 = vadd.f32 %v4149, %v4152
    %vm4154 = vweird.f32 %v4148
    %vm4155 = vweird.f32 %v4149
    %vm4156 = vmor %vm4154, %vm4155
    %v4157 = vsel %vm4156, %v4149, %v4153
    %v4158 = vand.u32 2147483647, %v4148
    %vm4159 = vcmp.eq.f32.partialorder %v4158, 8.507059e+37
    %v4160 = vand.u32 %v4148, 2147483648
    %v4161 = vor.u32 1.1754944e-38, %v4160
    %v4162 = vsel %vm4159, %v4161, %v4157
    %v4163 = vmul.f32 1.0, %v4162
    %v4164 = vtanh.pop %v4124
    %v4165 = vxor.u32 %v4125, 2147483648
    %v4166 = vmul.f32 %v4165, 1.442695
    %v4167 = vpow.pop %v4166
    %v4168 = vadd.f32 %v4167, 1.0
    %v4169 = vrcp.pop %v4168
    %v4170 = vmul.f32 %v4168, %v4169
    %v4171 = vsub.f32 1.0, %v4170
    %v4172 = vmul.f32 %v4169, %v4171
    %v4173 = vadd.f32 %v4169, %v4172
    %vm4174 = vweird.f32 %v4168
    %vm4175 = vweird.f32 %v4169
    %vm4176 = vmor %vm4174, %vm4175
    %v4177 = vsel %vm4176, %v4169, %v4173
    %v4178 = vand.u32 2147483647, %v4168
    %vm4179 = vcmp.eq.f32.partialorder %v4178, 8.507059e+37
    %v4180 = vand.u32 %v4168, 2147483648
    %v4181 = vor.u32 1.1754944e-38, %v4180
    %v4182 = vsel %vm4179, %v4181, %v4177
    %v4183 = vmul.f32 1.0, %v4182
    %v4184 = vmul.f32 %v4163, %v3591
    %v4185 = vmul.f32 %v4144, %v4164
    %v4186 = vadd.f32 %v4184, %v4185
    %v4187 = vtanh.pop %v4186
    %v4188 = vmul.f32 %v4183, %v4187
    %s4189 = scalar_lea.vmem %s5, 12
    %4190 = vst [vmem:[%s4189] sm:$0x3] %v4188
    %s4191 = scalar_lea.vmem %s0, 56
    %v4192 = vld [vmem:[%s4191] sm:$0xff]
    %v4193 = vld [vmem:[%s1] sm:$0xff]
    %v4194 = vld [vmem:[%s1 + $0x8] sm:$0xff]
    %v4195 = vld [vmem:[%s1 + $0x10] sm:$0xff]
    %v4196 = vld [vmem:[%s1 + $0x18] sm:$0xff]
    %v4197 = vld [vmem:[%s1 + $0x20] sm:$0xff]
    %v4198 = vld [vmem:[%s1 + $0x28] sm:$0xff]
    %v4199 = vld [vmem:[%s1 + $0x30] sm:$0xff]
    %v4200 = vld [vmem:[%s1 + $0x38] sm:$0xff]
    %v4201 = vld [vmem:[%s1 + $0x40] sm:$0xff]
    %v4202 = vld [vmem:[%s1 + $0x48] sm:$0xff]
    %v4203 = vld [vmem:[%s1 + $0x50] sm:$0xff]
    %v4204 = vld [vmem:[%s1 + $0x58] sm:$0xff]
    %v4205 = vld [vmem:[%s1 + $0x60] sm:$0xff]
    %v4206 = vld [vmem:[%s1 + $0x68] sm:$0xff]
    %v4207 = vld [vmem:[%s1 + $0x70] sm:$0xff]
    %v4208 = vld [vmem:[%s1 + $0x78] sm:$0xff]
    %v4209 = vld [vmem:[%s1 + $0x80] sm:$0xff]
    %v4210 = vld [vmem:[%s1 + $0x88] sm:$0xff]
    %v4211 = vld [vmem:[%s1 + $0x90] sm:$0xff]
    %v4212 = vld [vmem:[%s1 + $0x98] sm:$0xff]
    %v4213 = vld [vmem:[%s1 + $0xa0] sm:$0xff]
    %v4214 = vld [vmem:[%s1 + $0xa8] sm:$0xff]
    %v4215 = vld [vmem:[%s1 + $0xb0] sm:$0xff]
    %v4216 = vld [vmem:[%s1 + $0xb8] sm:$0xff]
    %v4217 = vld [vmem:[%s1 + $0xc0] sm:$0xff]
    %v4218 = vld [vmem:[%s1 + $0xc8] sm:$0xff]
    %v4219 = vld [vmem:[%s1 + $0xd0] sm:$0xff]
    %v4220 = vld [vmem:[%s1 + $0xd8] sm:$0xff]
    %v4221 = vld [vmem:[%s1 + $0xe0] sm:$0xff]
    %v4222 = vld [vmem:[%s1 + $0xe8] sm:$0xff]
    %v4223 = vld [vmem:[%s1 + $0xf0] sm:$0xff]
    %v4224 = vld [vmem:[%s1 + $0xf8] sm:$0xff]
    %v4225 = vld [vmem:[%s1 + $0x100] sm:$0xff]
    %v4226 = vld [vmem:[%s1 + $0x108] sm:$0xff]
    %v4227 = vld [vmem:[%s1 + $0x110] sm:$0xff]
    %v4228 = vld [vmem:[%s1 + $0x118] sm:$0xff]
    %v4229 = vld [vmem:[%s1 + $0x120] sm:$0xff]
    %v4230 = vld [vmem:[%s1 + $0x128] sm:$0xff]
    %v4231 = vld [vmem:[%s1 + $0x130] sm:$0xff]
    %v4232 = vld [vmem:[%s1 + $0x138] sm:$0xff]
    %v4233 = vld [vmem:[%s1 + $0x140] sm:$0xff]
    %v4234 = vld [vmem:[%s1 + $0x148] sm:$0xff]
    %v4235 = vld [vmem:[%s1 + $0x150] sm:$0xff]
    %v4236 = vld [vmem:[%s1 + $0x158] sm:$0xff]
    %v4237 = vld [vmem:[%s1 + $0x160] sm:$0xff]
    %v4238 = vld [vmem:[%s1 + $0x168] sm:$0xff]
    %v4239 = vld [vmem:[%s1 + $0x170] sm:$0xff]
    %v4240 = vld [vmem:[%s1 + $0x178] sm:$0xff]
    %v4241 = vld [vmem:[%s1 + $0x180] sm:$0xff]
    %v4242 = vld [vmem:[%s1 + $0x188] sm:$0xff]
    %v4243 = vld [vmem:[%s1 + $0x190] sm:$0xff]
    %v4244 = vld [vmem:[%s1 + $0x198] sm:$0xff]
    %v4245 = vld [vmem:[%s1 + $0x1a0] sm:$0xff]
    %v4246 = vld [vmem:[%s1 + $0x1a8] sm:$0xff]
    %v4247 = vld [vmem:[%s1 + $0x1b0] sm:$0xff]
    %v4248 = vld [vmem:[%s1 + $0x1b8] sm:$0xff]
    %v4249 = vld [vmem:[%s1 + $0x1c0] sm:$0xff]
    %v4250 = vld [vmem:[%s1 + $0x1c8] sm:$0xff]
    %v4251 = vld [vmem:[%s1 + $0x1d0] sm:$0xff]
    %v4252 = vld [vmem:[%s1 + $0x1d8] sm:$0xff]
    %v4253 = vld [vmem:[%s1 + $0x1e0] sm:$0xff]
    %v4254 = vld [vmem:[%s1 + $0x1e8] sm:$0xff]
    %v4255 = vld [vmem:[%s1 + $0x1f0] sm:$0xff]
    %v4256 = vld [vmem:[%s1 + $0x1f8] sm:$0xff]
    %4257 = vmatpush.msra.mxu0 %v4253
    %4258 = vmatpush.msra.mxu0 %v4249
    %4259 = vmatpush.msra.mxu0 %v4245
    %4260 = vmatpush.msra.mxu0 %v4241
    %4261 = vmatpush.msra.mxu0 %v4237
    %4262 = vmatpush.msra.mxu0 %v4233
    %4263 = vmatpush.msra.mxu0 %v4229
    %4264 = vmatpush.msra.mxu0 %v4225
    %4265 = vmatpush.msra.mxu0 %v4221
    %4266 = vmatpush.msra.mxu0 %v4217
    %4267 = vmatpush.msra.mxu0 %v4213
    %4268 = vmatpush.msra.mxu0 %v4209
    %4269 = vmatpush.msra.mxu0 %v4205
    %4270 = vmatpush.msra.mxu0 %v4201
    %4271 = vmatpush.msra.mxu0 %v4197
    %4272 = vmatpush.msra.mxu0 %v4193
    %4273 = vmatmul.f32.gmra.mxu0 %v3823
    %v4274 = vpop.f32.mrf.mxu0
    %v4275 = vadd.f32 0.0, %v4274
    %4276 = vdwg.mxu0
    %4277 = vmatpush.msra.mxu0 %v4254
    %4278 = vmatpush.msra.mxu0 %v4250
    %4279 = vmatpush.msra.mxu0 %v4246
    %4280 = vmatpush.msra.mxu0 %v4242
    %4281 = vmatpush.msra.mxu0 %v4238
    %4282 = vmatpush.msra.mxu0 %v4234
    %4283 = vmatpush.msra.mxu0 %v4230
    %4284 = vmatpush.msra.mxu0 %v4226
    %4285 = vmatpush.msra.mxu0 %v4222
    %4286 = vmatpush.msra.mxu0 %v4218
    %4287 = vmatpush.msra.mxu0 %v4214
    %4288 = vmatpush.msra.mxu0 %v4210
    %4289 = vmatpush.msra.mxu0 %v4206
    %4290 = vmatpush.msra.mxu0 %v4202
    %4291 = vmatpush.msra.mxu0 %v4198
    %4292 = vmatpush.msra.mxu0 %v4194
    %4293 = vmatmul.f32.gmra.mxu0 %v3823
    %v4294 = vpop.f32.mrf.mxu0
    %v4295 = vadd.f32 0.0, %v4294
    %4296 = vdwg.mxu0
    %4297 = vmatpush.msra.mxu0 %v4255
    %4298 = vmatpush.msra.mxu0 %v4251
    %4299 = vmatpush.msra.mxu0 %v4247
    %4300 = vmatpush.msra.mxu0 %v4243
    %4301 = vmatpush.msra.mxu0 %v4239
    %4302 = vmatpush.msra.mxu0 %v4235
    %4303 = vmatpush.msra.mxu0 %v4231
    %4304 = vmatpush.msra.mxu0 %v4227
    %4305 = vmatpush.msra.mxu0 %v4223
    %4306 = vmatpush.msra.mxu0 %v4219
    %4307 = vmatpush.msra.mxu0 %v4215
    %4308 = vmatpush.msra.mxu0 %v4211
    %4309 = vmatpush.msra.mxu0 %v4207
    %4310 = vmatpush.msra.mxu0 %v4203
    %4311 = vmatpush.msra.mxu0 %v4199
    %4312 = vmatpush.msra.mxu0 %v4195
    %4313 = vmatmul.f32.gmra.mxu0 %v3823
    %v4314 = vpop.f32.mrf.mxu0
    %v4315 = vadd.f32 0.0, %v4314
    %4316 = vdwg.mxu0
    %4317 = vmatpush.msra.mxu0 %v4256
    %4318 = vmatpush.msra.mxu0 %v4252
    %4319 = vmatpush.msra.mxu0 %v4248
    %4320 = vmatpush.msra.mxu0 %v4244
    %4321 = vmatpush.msra.mxu0 %v4240
    %4322 = vmatpush.msra.mxu0 %v4236
    %4323 = vmatpush.msra.mxu0 %v4232
    %4324 = vmatpush.msra.mxu0 %v4228
    %4325 = vmatpush.msra.mxu0 %v4224
    %4326 = vmatpush.msra.mxu0 %v4220
    %4327 = vmatpush.msra.mxu0 %v4216
    %4328 = vmatpush.msra.mxu0 %v4212
    %4329 = vmatpush.msra.mxu0 %v4208
    %4330 = vmatpush.msra.mxu0 %v4204
    %4331 = vmatpush.msra.mxu0 %v4200
    %4332 = vmatpush.msra.mxu0 %v4196
    %4333 = vmatmul.f32.gmra.mxu0 %v3823
    %v4334 = vpop.f32.mrf.mxu0
    %v4335 = vadd.f32 0.0, %v4334
    %4336 = vdwg.mxu0
    %v4341 = vrot.slane %v4295, 6
    %v4342 = vrot.slane %v4315, 4
    %v4343 = vrot.slane %v4335, 2
    %v4344 = vsel %vm177, %v4275, %v4341
    %v4345 = vsel %vm179, %v4342, %v4343
    %v4346 = vsel %vm181, %v4344, %v4345
    %v4348 = vadd.f32 %v4192, %v4346
    %v4349 = vxor.u32 %v4348, 2147483648
    %v4350 = vmul.f32 %v4349, 1.442695
    %v4351 = vpow.pop %v4350
    %v4352 = vadd.f32 %v4351, 1.0
    %v4353 = vrcp.pop %v4352
    %v4354 = vmul.f32 %v4352, %v4353
    %v4355 = vsub.f32 1.0, %v4354
    %v4356 = vmul.f32 %v4353, %v4355
    %v4357 = vadd.f32 %v4353, %v4356
    %vm4358 = vweird.f32 %v4352
    %vm4359 = vweird.f32 %v4353
    %vm4360 = vmor %vm4358, %vm4359
    %v4361 = vsel %vm4360, %v4353, %v4357
    %v4362 = vand.u32 2147483647, %v4352
    %vm4363 = vcmp.eq.f32.partialorder %v4362, 8.507059e+37
    %v4364 = vand.u32 %v4352, 2147483648
    %v4365 = vor.u32 1.1754944e-38, %v4364
    %v4366 = vsel %vm4363, %v4365, %v4361
    %v4367 = vmul.f32 1.0, %v4366
    %v4369 = vrot.slane %v4348, 2
    %v4371 = vxor.u32 %v4369, 2147483648
    %v4372 = vmul.f32 %v4371, 1.442695
    %v4373 = vpow.pop %v4372
    %v4374 = vadd.f32 %v4373, 1.0
    %v4375 = vrcp.pop %v4374
    %v4376 = vmul.f32 %v4374, %v4375
    %v4377 = vsub.f32 1.0, %v4376
    %v4378 = vmul.f32 %v4375, %v4377
    %v4379 = vadd.f32 %v4375, %v4378
    %vm4380 = vweird.f32 %v4374
    %vm4381 = vweird.f32 %v4375
    %vm4382 = vmor %vm4380, %vm4381
    %v4383 = vsel %vm4382, %v4375, %v4379
    %v4384 = vand.u32 2147483647, %v4374
    %vm4385 = vcmp.eq.f32.partialorder %v4384, 8.507059e+37
    %v4386 = vand.u32 %v4374, 2147483648
    %v4387 = vor.u32 1.1754944e-38, %v4386
    %v4388 = vsel %vm4385, %v4387, %v4383
    %v4389 = vmul.f32 1.0, %v4388
    %v4390 = vrot.slane %v4348, 4
    %v4392 = vtanh.pop %v4390
    %v4393 = vrot.slane %v4348, 6
    %v4395 = vxor.u32 %v4393, 2147483648
    %v4396 = vmul.f32 %v4395, 1.442695
    %v4397 = vpow.pop %v4396
    %v4398 = vadd.f32 %v4397, 1.0
    %v4399 = vrcp.pop %v4398
    %v4400 = vmul.f32 %v4398, %v4399
    %v4401 = vsub.f32 1.0, %v4400
    %v4402 = vmul.f32 %v4399, %v4401
    %v4403 = vadd.f32 %v4399, %v4402
    %vm4404 = vweird.f32 %v4398
    %vm4405 = vweird.f32 %v4399
    %vm4406 = vmor %vm4404, %vm4405
    %v4407 = vsel %vm4406, %v4399, %v4403
    %v4408 = vand.u32 2147483647, %v4398
    %vm4409 = vcmp.eq.f32.partialorder %v4408, 8.507059e+37
    %v4410 = vand.u32 %v4398, 2147483648
    %v4411 = vor.u32 1.1754944e-38, %v4410
    %v4412 = vsel %vm4409, %v4411, %v4407
    %v4413 = vmul.f32 1.0, %v4412
    %v4414 = vmul.f32 %v4389, %v3821
    %v4415 = vmul.f32 %v4367, %v4392
    %v4416 = vadd.f32 %v4414, %v4415
    %v4417 = vtanh.pop %v4416
    %v4418 = vmul.f32 %v4413, %v4417
    %v4419 = vld [vmem:[%s2] sm:$0xff]
    %v4420 = vld [vmem:[%s2 + $0x8] sm:$0xff]
    %v4421 = vld [vmem:[%s2 + $0x10] sm:$0xff]
    %v4422 = vld [vmem:[%s2 + $0x18] sm:$0xff]
    %v4423 = vld [vmem:[%s2 + $0x20] sm:$0xff]
    %v4424 = vld [vmem:[%s2 + $0x28] sm:$0xff]
    %v4425 = vld [vmem:[%s2 + $0x30] sm:$0xff]
    %v4426 = vld [vmem:[%s2 + $0x38] sm:$0xff]
    %v4427 = vld [vmem:[%s2 + $0x40] sm:$0xff]
    %v4428 = vld [vmem:[%s2 + $0x48] sm:$0xff]
    %v4429 = vld [vmem:[%s2 + $0x50] sm:$0xff]
    %v4430 = vld [vmem:[%s2 + $0x58] sm:$0xff]
    %v4431 = vld [vmem:[%s2 + $0x60] sm:$0xff]
    %v4432 = vld [vmem:[%s2 + $0x68] sm:$0xff]
    %v4433 = vld [vmem:[%s2 + $0x70] sm:$0xff]
    %v4434 = vld [vmem:[%s2 + $0x78] sm:$0xff]
    %v4435 = vld [vmem:[%s2 + $0x80] sm:$0xff]
    %v4436 = vld [vmem:[%s2 + $0x88] sm:$0xff]
    %v4437 = vld [vmem:[%s2 + $0x90] sm:$0xff]
    %v4438 = vld [vmem:[%s2 + $0x98] sm:$0xff]
    %v4439 = vld [vmem:[%s2 + $0xa0] sm:$0xff]
    %v4440 = vld [vmem:[%s2 + $0xa8] sm:$0xff]
    %v4441 = vld [vmem:[%s2 + $0xb0] sm:$0xff]
    %v4442 = vld [vmem:[%s2 + $0xb8] sm:$0xff]
    %v4443 = vld [vmem:[%s2 + $0xc0] sm:$0xff]
    %v4444 = vld [vmem:[%s2 + $0xc8] sm:$0xff]
    %v4445 = vld [vmem:[%s2 + $0xd0] sm:$0xff]
    %v4446 = vld [vmem:[%s2 + $0xd8] sm:$0xff]
    %v4447 = vld [vmem:[%s2 + $0xe0] sm:$0xff]
    %v4448 = vld [vmem:[%s2 + $0xe8] sm:$0xff]
    %v4449 = vld [vmem:[%s2 + $0xf0] sm:$0xff]
    %v4450 = vld [vmem:[%s2 + $0xf8] sm:$0xff]
    %v4451 = vld [vmem:[%s2 + $0x100] sm:$0xff]
    %v4452 = vld [vmem:[%s2 + $0x108] sm:$0xff]
    %v4453 = vld [vmem:[%s2 + $0x110] sm:$0xff]
    %v4454 = vld [vmem:[%s2 + $0x118] sm:$0xff]
    %v4455 = vld [vmem:[%s2 + $0x120] sm:$0xff]
    %v4456 = vld [vmem:[%s2 + $0x128] sm:$0xff]
    %v4457 = vld [vmem:[%s2 + $0x130] sm:$0xff]
    %v4458 = vld [vmem:[%s2 + $0x138] sm:$0xff]
    %v4459 = vld [vmem:[%s2 + $0x140] sm:$0xff]
    %v4460 = vld [vmem:[%s2 + $0x148] sm:$0xff]
    %v4461 = vld [vmem:[%s2 + $0x150] sm:$0xff]
    %v4462 = vld [vmem:[%s2 + $0x158] sm:$0xff]
    %v4463 = vld [vmem:[%s2 + $0x160] sm:$0xff]
    %v4464 = vld [vmem:[%s2 + $0x168] sm:$0xff]
    %v4465 = vld [vmem:[%s2 + $0x170] sm:$0xff]
    %v4466 = vld [vmem:[%s2 + $0x178] sm:$0xff]
    %v4467 = vld [vmem:[%s2 + $0x180] sm:$0xff]
    %v4468 = vld [vmem:[%s2 + $0x188] sm:$0xff]
    %v4469 = vld [vmem:[%s2 + $0x190] sm:$0xff]
    %v4470 = vld [vmem:[%s2 + $0x198] sm:$0xff]
    %v4471 = vld [vmem:[%s2 + $0x1a0] sm:$0xff]
    %v4472 = vld [vmem:[%s2 + $0x1a8] sm:$0xff]
    %v4473 = vld [vmem:[%s2 + $0x1b0] sm:$0xff]
    %v4474 = vld [vmem:[%s2 + $0x1b8] sm:$0xff]
    %v4475 = vld [vmem:[%s2 + $0x1c0] sm:$0xff]
    %v4476 = vld [vmem:[%s2 + $0x1c8] sm:$0xff]
    %v4477 = vld [vmem:[%s2 + $0x1d0] sm:$0xff]
    %v4478 = vld [vmem:[%s2 + $0x1d8] sm:$0xff]
    %v4479 = vld [vmem:[%s2 + $0x1e0] sm:$0xff]
    %v4480 = vld [vmem:[%s2 + $0x1e8] sm:$0xff]
    %v4481 = vld [vmem:[%s2 + $0x1f0] sm:$0xff]
    %v4482 = vld [vmem:[%s2 + $0x1f8] sm:$0xff]
    %v4483 = vld [vmem:[%s3] sm:$0xff]
    %v4484 = vld [vmem:[%s3 + $0x8] sm:$0xff]
    %v4485 = vld [vmem:[%s3 + $0x10] sm:$0xff]
    %v4486 = vld [vmem:[%s3 + $0x18] sm:$0xff]
    %v4487 = vld [vmem:[%s3 + $0x20] sm:$0xff]
    %v4488 = vld [vmem:[%s3 + $0x28] sm:$0xff]
    %v4489 = vld [vmem:[%s3 + $0x30] sm:$0xff]
    %v4490 = vld [vmem:[%s3 + $0x38] sm:$0xff]
    %v4491 = vld [vmem:[%s3 + $0x40] sm:$0xff]
    %v4492 = vld [vmem:[%s3 + $0x48] sm:$0xff]
    %v4493 = vld [vmem:[%s3 + $0x50] sm:$0xff]
    %v4494 = vld [vmem:[%s3 + $0x58] sm:$0xff]
    %v4495 = vld [vmem:[%s3 + $0x60] sm:$0xff]
    %v4496 = vld [vmem:[%s3 + $0x68] sm:$0xff]
    %v4497 = vld [vmem:[%s3 + $0x70] sm:$0xff]
    %v4498 = vld [vmem:[%s3 + $0x78] sm:$0xff]
    %v4499 = vld [vmem:[%s3 + $0x80] sm:$0xff]
    %v4500 = vld [vmem:[%s3 + $0x88] sm:$0xff]
    %v4501 = vld [vmem:[%s3 + $0x90] sm:$0xff]
    %v4502 = vld [vmem:[%s3 + $0x98] sm:$0xff]
    %v4503 = vld [vmem:[%s3 + $0xa0] sm:$0xff]
    %v4504 = vld [vmem:[%s3 + $0xa8] sm:$0xff]
    %v4505 = vld [vmem:[%s3 + $0xb0] sm:$0xff]
    %v4506 = vld [vmem:[%s3 + $0xb8] sm:$0xff]
    %v4507 = vld [vmem:[%s3 + $0xc0] sm:$0xff]
    %v4508 = vld [vmem:[%s3 + $0xc8] sm:$0xff]
    %v4509 = vld [vmem:[%s3 + $0xd0] sm:$0xff]
    %v4510 = vld [vmem:[%s3 + $0xd8] sm:$0xff]
    %v4511 = vld [vmem:[%s3 + $0xe0] sm:$0xff]
    %v4512 = vld [vmem:[%s3 + $0xe8] sm:$0xff]
    %v4513 = vld [vmem:[%s3 + $0xf0] sm:$0xff]
    %v4514 = vld [vmem:[%s3 + $0xf8] sm:$0xff]
    %v4515 = vld [vmem:[%s3 + $0x100] sm:$0xff]
    %v4516 = vld [vmem:[%s3 + $0x108] sm:$0xff]
    %v4517 = vld [vmem:[%s3 + $0x110] sm:$0xff]
    %v4518 = vld [vmem:[%s3 + $0x118] sm:$0xff]
    %v4519 = vld [vmem:[%s3 + $0x120] sm:$0xff]
    %v4520 = vld [vmem:[%s3 + $0x128] sm:$0xff]
    %v4521 = vld [vmem:[%s3 + $0x130] sm:$0xff]
    %v4522 = vld [vmem:[%s3 + $0x138] sm:$0xff]
    %v4523 = vld [vmem:[%s3 + $0x140] sm:$0xff]
    %v4524 = vld [vmem:[%s3 + $0x148] sm:$0xff]
    %v4525 = vld [vmem:[%s3 + $0x150] sm:$0xff]
    %v4526 = vld [vmem:[%s3 + $0x158] sm:$0xff]
    %v4527 = vld [vmem:[%s3 + $0x160] sm:$0xff]
    %v4528 = vld [vmem:[%s3 + $0x168] sm:$0xff]
    %v4529 = vld [vmem:[%s3 + $0x170] sm:$0xff]
    %v4530 = vld [vmem:[%s3 + $0x178] sm:$0xff]
    %v4531 = vld [vmem:[%s3 + $0x180] sm:$0xff]
    %v4532 = vld [vmem:[%s3 + $0x188] sm:$0xff]
    %v4533 = vld [vmem:[%s3 + $0x190] sm:$0xff]
    %v4534 = vld [vmem:[%s3 + $0x198] sm:$0xff]
    %v4535 = vld [vmem:[%s3 + $0x1a0] sm:$0xff]
    %v4536 = vld [vmem:[%s3 + $0x1a8] sm:$0xff]
    %v4537 = vld [vmem:[%s3 + $0x1b0] sm:$0xff]
    %v4538 = vld [vmem:[%s3 + $0x1b8] sm:$0xff]
    %v4539 = vld [vmem:[%s3 + $0x1c0] sm:$0xff]
    %v4540 = vld [vmem:[%s3 + $0x1c8] sm:$0xff]
    %v4541 = vld [vmem:[%s3 + $0x1d0] sm:$0xff]
    %v4542 = vld [vmem:[%s3 + $0x1d8] sm:$0xff]
    %v4543 = vld [vmem:[%s3 + $0x1e0] sm:$0xff]
    %v4544 = vld [vmem:[%s3 + $0x1e8] sm:$0xff]
    %v4545 = vld [vmem:[%s3 + $0x1f0] sm:$0xff]
    %v4546 = vld [vmem:[%s3 + $0x1f8] sm:$0xff]
    %4547 = vmatpush.msra.mxu0 %v4543
    %4548 = vmatpush.msra.mxu0 %v4539
    %4549 = vmatpush.msra.mxu0 %v4535
    %4550 = vmatpush.msra.mxu0 %v4531
    %4551 = vmatpush.msra.mxu0 %v4527
    %4552 = vmatpush.msra.mxu0 %v4523
    %4553 = vmatpush.msra.mxu0 %v4519
    %4554 = vmatpush.msra.mxu0 %v4515
    %4555 = vmatpush.msra.mxu0 %v4511
    %4556 = vmatpush.msra.mxu0 %v4507
    %4557 = vmatpush.msra.mxu0 %v4503
    %4558 = vmatpush.msra.mxu0 %v4499
    %4559 = vmatpush.msra.mxu0 %v4495
    %4560 = vmatpush.msra.mxu0 %v4491
    %4561 = vmatpush.msra.mxu0 %v4487
    %4562 = vmatpush.msra.mxu0 %v4483
    %4563 = vmatmul.f32.gmra.mxu0 %v4188
    %v4564 = vpop.f32.mrf.mxu0
    %v4565 = vadd.f32 0.0, %v4564
    %4566 = vdwg.mxu0
    %4567 = vmatpush.msra.mxu0 %v4544
    %4568 = vmatpush.msra.mxu0 %v4540
    %4569 = vmatpush.msra.mxu0 %v4536
    %4570 = vmatpush.msra.mxu0 %v4532
    %4571 = vmatpush.msra.mxu0 %v4528
    %4572 = vmatpush.msra.mxu0 %v4524
    %4573 = vmatpush.msra.mxu0 %v4520
    %4574 = vmatpush.msra.mxu0 %v4516
    %4575 = vmatpush.msra.mxu0 %v4512
    %4576 = vmatpush.msra.mxu0 %v4508
    %4577 = vmatpush.msra.mxu0 %v4504
    %4578 = vmatpush.msra.mxu0 %v4500
    %4579 = vmatpush.msra.mxu0 %v4496
    %4580 = vmatpush.msra.mxu0 %v4492
    %4581 = vmatpush.msra.mxu0 %v4488
    %4582 = vmatpush.msra.mxu0 %v4484
    %4583 = vmatmul.f32.gmra.mxu0 %v4188
    %v4584 = vpop.f32.mrf.mxu0
    %v4585 = vadd.f32 0.0, %v4584
    %4586 = vdwg.mxu0
    %4587 = vmatpush.msra.mxu0 %v4545
    %4588 = vmatpush.msra.mxu0 %v4541
    %4589 = vmatpush.msra.mxu0 %v4537
    %4590 = vmatpush.msra.mxu0 %v4533
    %4591 = vmatpush.msra.mxu0 %v4529
    %4592 = vmatpush.msra.mxu0 %v4525
    %4593 = vmatpush.msra.mxu0 %v4521
    %4594 = vmatpush.msra.mxu0 %v4517
    %4595 = vmatpush.msra.mxu0 %v4513
    %4596 = vmatpush.msra.mxu0 %v4509
    %4597 = vmatpush.msra.mxu0 %v4505
    %4598 = vmatpush.msra.mxu0 %v4501
    %4599 = vmatpush.msra.mxu0 %v4497
    %4600 = vmatpush.msra.mxu0 %v4493
    %4601 = vmatpush.msra.mxu0 %v4489
    %4602 = vmatpush.msra.mxu0 %v4485
    %4603 = vmatmul.f32.gmra.mxu0 %v4188
    %v4604 = vpop.f32.mrf.mxu0
    %v4605 = vadd.f32 0.0, %v4604
    %4606 = vdwg.mxu0
    %4607 = vmatpush.msra.mxu0 %v4546
    %4608 = vmatpush.msra.mxu0 %v4542
    %4609 = vmatpush.msra.mxu0 %v4538
    %4610 = vmatpush.msra.mxu0 %v4534
    %4611 = vmatpush.msra.mxu0 %v4530
    %4612 = vmatpush.msra.mxu0 %v4526
    %4613 = vmatpush.msra.mxu0 %v4522
    %4614 = vmatpush.msra.mxu0 %v4518
    %4615 = vmatpush.msra.mxu0 %v4514
    %4616 = vmatpush.msra.mxu0 %v4510
    %4617 = vmatpush.msra.mxu0 %v4506
    %4618 = vmatpush.msra.mxu0 %v4502
    %4619 = vmatpush.msra.mxu0 %v4498
    %4620 = vmatpush.msra.mxu0 %v4494
    %4621 = vmatpush.msra.mxu0 %v4490
    %4622 = vmatpush.msra.mxu0 %v4486
    %4623 = vmatmul.f32.gmra.mxu0 %v4188
    %v4624 = vpop.f32.mrf.mxu0
    %v4625 = vadd.f32 0.0, %v4624
    %4626 = vdwg.mxu0
    %4627 = vmatpush.msra.mxu0 %v4479
    %4628 = vmatpush.msra.mxu0 %v4475
    %4629 = vmatpush.msra.mxu0 %v4471
    %4630 = vmatpush.msra.mxu0 %v4467
    %4631 = vmatpush.msra.mxu0 %v4463
    %4632 = vmatpush.msra.mxu0 %v4459
    %4633 = vmatpush.msra.mxu0 %v4455
    %4634 = vmatpush.msra.mxu0 %v4451
    %4635 = vmatpush.msra.mxu0 %v4447
    %4636 = vmatpush.msra.mxu0 %v4443
    %4637 = vmatpush.msra.mxu0 %v4439
    %4638 = vmatpush.msra.mxu0 %v4435
    %4639 = vmatpush.msra.mxu0 %v4431
    %4640 = vmatpush.msra.mxu0 %v4427
    %4641 = vmatpush.msra.mxu0 %v4423
    %4642 = vmatpush.msra.mxu0 %v4419
    %4643 = vmatmul.f32.gmra.mxu0 %v4418
    %v4644 = vpop.f32.mrf.mxu0
    %v4645 = vadd.f32 %v4565, %v4644
    %4646 = vdwg.mxu0
    %4647 = vmatpush.msra.mxu0 %v4480
    %4648 = vmatpush.msra.mxu0 %v4476
    %4649 = vmatpush.msra.mxu0 %v4472
    %4650 = vmatpush.msra.mxu0 %v4468
    %4651 = vmatpush.msra.mxu0 %v4464
    %4652 = vmatpush.msra.mxu0 %v4460
    %4653 = vmatpush.msra.mxu0 %v4456
    %4654 = vmatpush.msra.mxu0 %v4452
    %4655 = vmatpush.msra.mxu0 %v4448
    %4656 = vmatpush.msra.mxu0 %v4444
    %4657 = vmatpush.msra.mxu0 %v4440
    %4658 = vmatpush.msra.mxu0 %v4436
    %4659 = vmatpush.msra.mxu0 %v4432
    %4660 = vmatpush.msra.mxu0 %v4428
    %4661 = vmatpush.msra.mxu0 %v4424
    %4662 = vmatpush.msra.mxu0 %v4420
    %4663 = vmatmul.f32.gmra.mxu0 %v4418
    %v4664 = vpop.f32.mrf.mxu0
    %v4665 = vadd.f32 %v4585, %v4664
    %4666 = vdwg.mxu0
    %4667 = vmatpush.msra.mxu0 %v4481
    %4668 = vmatpush.msra.mxu0 %v4477
    %4669 = vmatpush.msra.mxu0 %v4473
    %4670 = vmatpush.msra.mxu0 %v4469
    %4671 = vmatpush.msra.mxu0 %v4465
    %4672 = vmatpush.msra.mxu0 %v4461
    %4673 = vmatpush.msra.mxu0 %v4457
    %4674 = vmatpush.msra.mxu0 %v4453
    %4675 = vmatpush.msra.mxu0 %v4449
    %4676 = vmatpush.msra.mxu0 %v4445
    %4677 = vmatpush.msra.mxu0 %v4441
    %4678 = vmatpush.msra.mxu0 %v4437
    %4679 = vmatpush.msra.mxu0 %v4433
    %4680 = vmatpush.msra.mxu0 %v4429
    %4681 = vmatpush.msra.mxu0 %v4425
    %4682 = vmatpush.msra.mxu0 %v4421
    %4683 = vmatmul.f32.gmra.mxu0 %v4418
    %v4684 = vpop.f32.mrf.mxu0
    %v4685 = vadd.f32 %v4605, %v4684
    %4686 = vdwg.mxu0
    %4687 = vmatpush.msra.mxu0 %v4482
    %4688 = vmatpush.msra.mxu0 %v4478
    %4689 = vmatpush.msra.mxu0 %v4474
    %4690 = vmatpush.msra.mxu0 %v4470
    %4691 = vmatpush.msra.mxu0 %v4466
    %4692 = vmatpush.msra.mxu0 %v4462
    %4693 = vmatpush.msra.mxu0 %v4458
    %4694 = vmatpush.msra.mxu0 %v4454
    %4695 = vmatpush.msra.mxu0 %v4450
    %4696 = vmatpush.msra.mxu0 %v4446
    %4697 = vmatpush.msra.mxu0 %v4442
    %4698 = vmatpush.msra.mxu0 %v4438
    %4699 = vmatpush.msra.mxu0 %v4434
    %4700 = vmatpush.msra.mxu0 %v4430
    %4701 = vmatpush.msra.mxu0 %v4426
    %4702 = vmatpush.msra.mxu0 %v4422
    %4703 = vmatmul.f32.gmra.mxu0 %v4418
    %v4704 = vpop.f32.mrf.mxu0
    %v4705 = vadd.f32 %v4625, %v4704
    %4706 = vdwg.mxu0
    %v4707 = vld [vmem:[%s4] sm:$0xf]
    %v4709 = vperm.slane %v4707, 0
    %v4710 = vperm.slane %v4707, 1
    %v4711 = vperm.slane %v4707, 2
    %v4712 = vperm.slane %v4707, 3
    %v4717 = vadd.f32 %v4645, %v4709
    %v4718 = vadd.f32 %v4665, %v4710
    %v4719 = vadd.f32 %v4685, %v4711
    %v4720 = vadd.f32 %v4705, %v4712
    %v4721 = vxor.u32 %v4717, 2147483648
    %v4722 = vmul.f32 %v4721, 1.442695
    %v4723 = vpow.pop %v4722
    %v4724 = vadd.f32 %v4723, 1.0
    %v4725 = vrcp.pop %v4724
    %v4726 = vmul.f32 %v4724, %v4725
    %v4727 = vsub.f32 1.0, %v4726
    %v4728 = vmul.f32 %v4725, %v4727
    %v4729 = vadd.f32 %v4725, %v4728
    %vm4730 = vweird.f32 %v4724
    %vm4731 = vweird.f32 %v4725
    %vm4732 = vmor %vm4730, %vm4731
    %v4733 = vsel %vm4732, %v4725, %v4729
    %v4734 = vand.u32 2147483647, %v4724
    %vm4735 = vcmp.eq.f32.partialorder %v4734, 8.507059e+37
    %v4736 = vand.u32 %v4724, 2147483648
    %v4737 = vor.u32 1.1754944e-38, %v4736
    %v4738 = vsel %vm4735, %v4737, %v4733
    %v4739 = vmul.f32 1.0, %v4738
    %v4740 = vxor.u32 %v4718, 2147483648
    %v4741 = vmul.f32 %v4740, 1.442695
    %v4742 = vpow.pop %v4741
    %v4743 = vadd.f32 %v4742, 1.0
    %v4744 = vrcp.pop %v4743
    %v4745 = vmul.f32 %v4743, %v4744
    %v4746 = vsub.f32 1.0, %v4745
    %v4747 = vmul.f32 %v4744, %v4746
    %v4748 = vadd.f32 %v4744, %v4747
    %vm4749 = vweird.f32 %v4743
    %vm4750 = vweird.f32 %v4744
    %vm4751 = vmor %vm4749, %vm4750
    %v4752 = vsel %vm4751, %v4744, %v4748
    %v4753 = vand.u32 2147483647, %v4743
    %vm4754 = vcmp.eq.f32.partialorder %v4753, 8.507059e+37
    %v4755 = vand.u32 %v4743, 2147483648
    %v4756 = vor.u32 1.1754944e-38, %v4755
    %v4757 = vsel %vm4754, %v4756, %v4752
    %v4758 = vmul.f32 1.0, %v4757
    %v4759 = vtanh.pop %v4719
    %v4760 = vxor.u32 %v4720, 2147483648
    %v4761 = vmul.f32 %v4760, 1.442695
    %v4762 = vpow.pop %v4761
    %v4763 = vadd.f32 %v4762, 1.0
    %v4764 = vrcp.pop %v4763
    %v4765 = vmul.f32 %v4763, %v4764
    %v4766 = vsub.f32 1.0, %v4765
    %v4767 = vmul.f32 %v4764, %v4766
    %v4768 = vadd.f32 %v4764, %v4767
    %vm4769 = vweird.f32 %v4763
    %vm4770 = vweird.f32 %v4764
    %vm4771 = vmor %vm4769, %vm4770
    %v4772 = vsel %vm4771, %v4764, %v4768
    %v4773 = vand.u32 2147483647, %v4763
    %vm4774 = vcmp.eq.f32.partialorder %v4773, 8.507059e+37
    %v4775 = vand.u32 %v4763, 2147483648
    %v4776 = vor.u32 1.1754944e-38, %v4775
    %v4777 = vsel %vm4774, %v4776, %v4772
    %v4778 = vmul.f32 1.0, %v4777
    %v4779 = vmul.f32 %v4758, %v4186
    %v4780 = vmul.f32 %v4739, %v4759
    %v4781 = vadd.f32 %v4779, %v4780
    %v4782 = vtanh.pop %v4781
    %v4783 = vmul.f32 %v4778, %v4782
    %s4784 = scalar_lea.vmem %s5, 14
    %4785 = vst [vmem:[%s4784] sm:$0x3] %v4783
    %4786 = vst [vmem:[#allocation2] sm:$0x3] %v4418
    %4787 = vst [vmem:[#allocation4] sm:$0x3] %v4416
    %s4788 = scalar_lea.vmem [#allocation2], 2
    %4789 = vst [vmem:[%s4788] sm:$0x3] %v4783
    %s4790 = scalar_lea.vmem [#allocation4], 2
    %4791 = vst [vmem:[%s4790] sm:$0x3] %v4781
    // Predicated region
    $region22: #{ast2class2_forward.4} parent=1 // pred_check
      _
    $region23: #{ast2class2_forward.4} parent=1 // pred_check_branch
      %4793 = sbr.rel (0) target = $region25
    $region24: #{ast2class2_forward.4} parent=1 // pred_region
      _
    $region25: #{ast2class2_forward.4} parent=1 // pred_fallthru
      _
    // Predicated region
    $region26: #{ast2class2_forward.4} parent=1 // pred_check
      _
    $region27: #{ast2class2_forward.4} parent=1 // pred_check_branch
      %4795 = sbr.rel (0) target = $region29
    $region28: #{ast2class2_forward.4} parent=1 // pred_region
      %4797 = vsyncadd [#allocation3], 0
      %s4798 = sshll.u32 [#allocation2], 4
      %s4799 = int_to_ptr.vmem [resolvable:$true] %s4798
      %s4800 = sshll.u32 %s6, 4
      %s4801 = int_to_ptr.hbm [resolvable:$true] %s4800
      %4806 = dma.vmem_to_hbm [thread:$0]  %s4799, 64, %s4801, [#allocation3], 32, 32, 2
    $region29: #{ast2class2_forward.4} parent=1 // pred_fallthru
      _
    // Predicated region
    $region30: #{ast2class2_forward.4} parent=1 // pred_check
      _
    $region31: #{ast2class2_forward.4} parent=1 // pred_check_branch
      %4808 = sbr.rel (0) target = $region33
    $region32: #{ast2class2_forward.4} parent=1 // pred_region
      %4810 = vsyncadd [#allocation5], 0
      %s4811 = sshll.u32 [#allocation4], 4
      %s4812 = int_to_ptr.vmem [resolvable:$true] %s4811
      %s4813 = sshll.u32 %s7, 4
      %s4814 = int_to_ptr.hbm [resolvable:$true] %s4813
      %4819 = dma.vmem_to_hbm [thread:$0]  %s4812, 64, %s4814, [#allocation5], 32, 32, 2
    $region33: #{ast2class2_forward.4} parent=1 // pred_fallthru
      _
    // Predicated region
    $region34: #{ast2class2_forward.4} parent=1 // pred_check
      _
    $region35: #{ast2class2_forward.4} parent=1 // pred_check_branch
      %4821 = sbr.rel (0) target = $region37
    $region36: #{ast2class2_forward.4} parent=1 // pred_region
      _
    $region37: #{ast2class2_forward.4} parent=1 // pred_fallthru
      _
    // Predicated region
    $region38: #{ast2class2_forward.4} parent=1 // pred_check
      _
    $region39: #{ast2class2_forward.4} parent=1 // pred_check_branch
      %4823 = sbr.rel (0) target = $region41
    $region40: #{ast2class2_forward.4} parent=1 // pred_region
      %4825 = dma.done [#allocation3], 64
    $region41: #{ast2class2_forward.4} parent=1 // pred_fallthru
      _
    // Predicated region
    $region42: #{ast2class2_forward.4} parent=1 // pred_check
      _
    $region43: #{ast2class2_forward.4} parent=1 // pred_check_branch
      %4827 = sbr.rel (0) target = $region45
    $region44: #{ast2class2_forward.4} parent=1 // pred_region
      %4829 = dma.done [#allocation5], 64
    $region45: #{ast2class2_forward.4} parent=1 // pred_fallthru
      _
    %4830 = vsyncpa [#allocation3], 1
    %4831 = vsyncpa [#allocation5], 1

</llo_original>
